<compile_context>
chip_gen: v7x
topology: tpu7x:2x2x1
jax: 0.10.0
libtpu: 0.0.40
codegen_flags: <defaults>
</compile_context>

<pallas_src>
import functools
import math

import jax
import jax.numpy as jnp
from jax.experimental import pallas as pl
from jax.experimental.pallas import tpu as pltpu


_PI = 3.14159265358979323846


def _round_up(x, m):
    return ((x + m - 1) // m) * m


def _cdiv(a, b):
    return -(-a // b)


def _physical_vmem_bytes():
    """Per-core VMEM capacity; conservative 64 MiB (v7x) if the query fails."""
    try:
        cap = getattr(pltpu.get_tpu_info(), "vmem_capacity_bytes", None)
        if cap:
            return int(cap)
    except Exception:
        pass
    return 64 * 1024 * 1024


def _fast_sin(x):
    """sin(x) via range reduction to [-pi/2, pi/2] + odd degree-9 polynomial.

    Max abs error ~4e-6: far below bf16 output precision and fine at 1e-4
    tolerances in f32, with roughly half the VALU ops of the full-precision
    jnp.sin expansion (the binding slot once I/O is bf16)."""
    k = jnp.round(x * jnp.float32(1.0 / _PI))
    r = x - k * jnp.float32(_PI)
    parity = k - 2.0 * jnp.floor(0.5 * k)          # 0.0 or 1.0
    sign = 1.0 - 2.0 * parity                      # (-1)^k
    r2 = r * r
    p = jnp.float32(2.7557319e-06)
    p = p * r2 + jnp.float32(-1.9841270e-04)
    p = p * r2 + jnp.float32(8.3333333e-03)
    p = p * r2 + jnp.float32(-1.6666667e-01)
    return sign * (r + r * (r2 * p))


def _contract(h, w):
    """(TB, K) @ (K, N) -> f32 (TB, N).

    Tiny-K (first SIREN layer, K = 2/3 coordinates) skips the MXU (which would
    pad K to 128/256) and uses statically-unrolled VPU broadcast FMAs."""
    if h.shape[1] >= 8:
        return jnp.dot(h.astype(w.dtype), w, preferred_element_type=jnp.float32)
    acc = h[:, 0:1].astype(jnp.float32) * w[0:1, :].astype(jnp.float32)
    for k in range(1, h.shape[1]):
        acc = acc + (h[:, k:k + 1].astype(jnp.float32)
                     * w[k:k + 1, :].astype(jnp.float32))
    return acc


def _sine_layer_kernel(x_ref, w_ref, b_ref, o_ref, *, omega_0, fast_sin):
    acc = _contract(x_ref[...], w_ref[...])
    acc = acc + b_ref[...].astype(jnp.float32)
    if omega_0 != 1.0:  # static: omega folded into params -> skip the multiply
        acc = jnp.float32(omega_0) * acc
    s = _fast_sin(acc) if fast_sin else jnp.sin(acc)
    o_ref[...] = s.astype(o_ref.dtype)


def _siren_stack_kernel(*refs, omegas, fast_sin):
    """Fused stack: x tile in, final activation tile out; hidden activations
    stay in VMEM/vregs for the whole batch tile."""
    n = len(omegas)
    x_ref, o_ref = refs[0], refs[-1]
    h = x_ref[...]
    for l in range(n):
        w_ref, b_ref = refs[1 + 2 * l], refs[2 + 2 * l]
        acc = _contract(h, w_ref[...]) + b_ref[...].astype(jnp.float32)
        if omegas[l] != 1.0:
            acc = jnp.float32(omegas[l]) * acc
        h = _fast_sin(acc) if fast_sin else jnp.sin(acc)
    o_ref[...] = h.astype(o_ref.dtype)


def _choose_batch_tile(B, bytes_per_row, budget, max_tb, min_grid=2):
    """Largest batch tile (multiple of 8) fitting the budget, capped so the
    'parallel' batch axis has at least min_grid steps (v7x megacore)."""
    tb = budget // max(bytes_per_row, 1)
    tb = min(tb, _round_up(max_tb, 8), _round_up(B, 8))
    tb = max((tb // 8) * 8, 8)
    if B > 8 * min_grid:
        tb = min(tb, max(_round_up(_cdiv(B, min_grid), 8), 8))
    return tb


def sine_layer(x, w_t, b, *, omega_0=30.0, block_b=8192, out_block=None,
               vmem_budget_bytes=None, fast_sin=None, min_grid=2):
    """SIREN sine layer: sin(omega_0 * (x @ w_t + b)).

    x:   (B, in_features)
    w_t: (in_features, out_features)  -- nn.Linear weight, pre-transposed
    b:   (out_features,) or (1, out_features)
    Returns (B, out_features) in x.dtype.
    """
    B, IN = x.shape
    IN2, OUT = w_t.shape
    assert IN == IN2, (IN, IN2)
    b = b.reshape(1, OUT)
    out_dtype = x.dtype

    phys_vmem = _physical_vmem_bytes()
    if vmem_budget_bytes is None:
        vmem_budget_bytes = int(0.70 * phys_vmem)
    if fast_sin is None:
        fast_sin = jnp.dtype(out_dtype).itemsize <= 2

    x_isz = jnp.dtype(x.dtype).itemsize
    w_isz = jnp.dtype(w_t.dtype).itemsize
    o_isz = jnp.dtype(out_dtype).itemsize

    # Keep the whole weight VMEM-resident when it fits; otherwise stream
    # (IN, TN) weight tiles over a second (parallel) grid axis.
    if out_block is not None:
        TN = OUT if out_block >= OUT else max(128, (out_block // 128) * 128)
        TN = min(TN, OUT)
    elif 2 * (IN + 1) * OUT * w_isz <= vmem_budget_bytes // 2:
        TN = OUT
    else:
        TN = max(128, ((vmem_budget_bytes // 2)
                       // max(2 * (IN + 1) * w_isz, 1)) // 128 * 128)
        TN = min(TN, OUT)
    n_out = _cdiv(OUT, TN)

    resident = 2 * (IN + 1) * TN * w_isz                       # weight + bias
    bytes_per_row = 2 * IN * x_isz + 2 * TN * o_isz + 8 * TN   # x/out + f32 temps
    TB = _choose_batch_tile(B, bytes_per_row,
                            max(vmem_budget_bytes - resident, 8 * bytes_per_row),
                            block_b, min_grid=min_grid)
    nb = _cdiv(B, TB)

    vmem_need = resident + TB * bytes_per_row
    vmem_limit = int(min(max(int(vmem_need * 1.3) + (8 << 20), 32 << 20),
                         phys_vmem))

    kernel = functools.partial(_sine_layer_kernel, omega_0=float(omega_0),
                               fast_sin=bool(fast_sin))
    w_passes = nb if n_out > 1 else 1
    cost = pl.CostEstimate(
        flops=2 * B * IN * OUT,
        transcendentals=B * OUT,
        bytes_accessed=(B * IN * x_isz + w_passes * (IN + 1) * OUT * w_isz
                        + B * OUT * o_isz),
    )

    return pl.pallas_call(
        kernel,
        out_shape=jax.ShapeDtypeStruct((B, OUT), out_dtype),
        grid_spec=pltpu.PrefetchScalarGridSpec(
            num_scalar_prefetch=0,
            grid=(nb, n_out),
            in_specs=[
                pl.BlockSpec((TB, IN), lambda i, j: (i, 0)),   # batch-tiled x
                pl.BlockSpec((IN, TN), lambda i, j: (0, j)),   # resident / OUT-tiled W
                pl.BlockSpec((1, TN), lambda i, j: (0, j)),    # bias
            ],
            out_specs=pl.BlockSpec((TB, TN), lambda i, j: (i, j)),
        ),
        compiler_params=pltpu.CompilerParams(
            dimension_semantics=("parallel", "parallel"),
            vmem_limit_bytes=vmem_limit,
        ),
        cost_estimate=cost,
    )(x, w_t, b)


def siren_stack(x, layers, *, omega_0s=None, block_b=8192,
                vmem_budget_bytes=None, fast_sin=None, min_grid=2):
    """Fused stack of SineLayers: sin(om_l * (h @ w_l + b_l)) applied in order.

    All layer weights stay VMEM-resident; only the network input and the final
    output touch HBM (removes the per-layer activation round-trips). Falls back
    to per-layer sine_layer calls if the weights don't fit the VMEM budget.
    layers: sequence of (w_t, b) with w_t (in, out) pre-transposed.
    """
    B, IN0 = x.shape
    n = len(layers)
    if omega_0s is None:
        omega_0s = (1.0,) * n
    out_dtype = x.dtype

    phys_vmem = _physical_vmem_bytes()
    if vmem_budget_bytes is None:
        vmem_budget_bytes = int(0.70 * phys_vmem)
    if fast_sin is None:
        fast_sin = jnp.dtype(out_dtype).itemsize <= 2

    # First pass: shapes, resident bytes, reshaped biases.
    widths, biases, resident = [], [], 0
    d = IN0
    for (w_t, bb) in layers:
        ki, ko = w_t.shape
        assert ki == d, (ki, d)
        w_isz = jnp.dtype(w_t.dtype).itemsize
        resident += 2 * (ki + 1) * ko * w_isz
        biases.append(bb.reshape(1, ko))
        widths.append(ko)
        d = ko
    OUT = widths[-1]

    if resident > vmem_budget_bytes // 2:
        # Weights too large to keep resident -> per-layer (OUT-tiled) kernels.
        h = x
        for (w_t, bb), om in zip(layers, omega_0s):
            h = sine_layer(h, w_t, bb, omega_0=om, block_b=block_b,
                           vmem_budget_bytes=vmem_budget_bytes,
                           fast_sin=fast_sin, min_grid=min_grid)
        return h

    x_isz = jnp.dtype(x.dtype).itemsize
    o_isz = jnp.dtype(out_dtype).itemsize
    max_w = max([IN0] + widths)
    bytes_per_row = 2 * IN0 * x_isz + 2 * OUT * o_isz + 12 * max_w  # f32 temps
    TB = _choose_batch_tile(B, bytes_per_row,
                            max(vmem_budget_bytes - resident, 8 * bytes_per_row),
                            block_b, min_grid=min_grid)
    nb = _cdiv(B, TB)

    vmem_need = resident + TB * bytes_per_row
    vmem_limit = int(min(max(int(vmem_need * 1.3) + (8 << 20), 32 << 20),
                         phys_vmem))

    args = [x]
    in_specs = [pl.BlockSpec((TB, IN0), lambda i: (i, 0))]
    for (w_t, _), bb in zip(layers, biases):
        ki, ko = w_t.shape
        args += [w_t, bb]
        in_specs.append(pl.BlockSpec((ki, ko), lambda i: (0, 0)))  # resident W
        in_specs.append(pl.BlockSpec((1, ko), lambda i: (0, 0)))   # resident b

    flops, trans, wbytes = 0, 0, 0
    d = IN0
    for (w_t, _), ko in zip(layers, widths):
        flops += 2 * B * d * ko
        trans += B * ko
        wbytes += (d + 1) * ko * jnp.dtype(w_t.dtype).itemsize
        d = ko
    cost = pl.CostEstimate(
        flops=flops, transcendentals=trans,
        bytes_accessed=B * IN0 * x_isz + wbytes + B * OUT * o_isz)

    kernel = functools.partial(_siren_stack_kernel,
                               omegas=tuple(float(o) for o in omega_0s),
                               fast_sin=bool(fast_sin))

    return pl.pallas_call(
        kernel,
        out_shape=jax.ShapeDtypeStruct((B, OUT), out_dtype),
        grid_spec=pltpu.PrefetchScalarGridSpec(
            num_scalar_prefetch=0,
            grid=(nb,),
            in_specs=in_specs,
            out_specs=pl.BlockSpec((TB, OUT), lambda i: (i, 0)),
        ),
        compiler_params=pltpu.CompilerParams(
            dimension_semantics=("parallel",),
            vmem_limit_bytes=vmem_limit,
        ),
        cost_estimate=cost,
    )(*args)


def init_sine_layer_params(key, in_features, out_features, *, is_first=False,
                           omega_0=30.0, fold_omega=True, dtype=jnp.float32):
    """Deterministic SIREN init (mirrors SineLayer.init_weights).

    With fold_omega=True, omega_0 is folded into the returned parameters once
    (sin(w0*(xW+b)) == sin(x*(w0*W) + w0*b)); call sine_layer with omega_0=1.0
    so the kernel skips the per-element multiply.
    """
    kw, kb = jax.random.split(key)
    if is_first:
        bound_w = 1.0 / in_features
    else:
        bound_w = math.sqrt(6.0 / in_features) / omega_0
    w = jax.random.uniform(kw, (out_features, in_features),
                           minval=-bound_w, maxval=bound_w, dtype=jnp.float32)
    bound_b = 1.0 / math.sqrt(in_features)  # nn.Linear default bias init
    b = jax.random.uniform(kb, (1, out_features),
                           minval=-bound_b, maxval=bound_b, dtype=jnp.float32)
    w_t = w.T
    if fold_omega:
        w_t = omega_0 * w_t
        b = omega_0 * b
    return w_t.astype(dtype), b.astype(dtype)


if __name__ == "__main__":
    key = jax.random.PRNGKey(0)
    k_x, k_1, k_2 = jax.random.split(key, 3)

    # Small SIREN-style stack: (x, y) coordinates -> 128 hidden -> 64 features.
    B, IN, HIDDEN, OUT = 1000, 2, 128, 64
    omega_0 = 30.0

    x = jax.random.uniform(k_x, (B, IN), minval=-1.0, maxval=1.0,
                           dtype=jnp.float32)

    # omega_0 folded into the params once at init.
    w1, b1 = init_sine_layer_params(k_1, IN, HIDDEN, is_first=True,
                                    omega_0=omega_0, fold_omega=True)
    w2, b2 = init_sine_layer_params(k_2, HIDDEN, OUT, is_first=False,
                                    omega_0=omega_0, fold_omega=True)

    def stack_ref(xv, layers, omegas):
        h = xv
        for (w, bb), om in zip(layers, omegas):
            acc = jnp.dot(h.astype(w.dtype), w,
                          preferred_element_type=jnp.float32)
            acc = acc + bb.reshape(1, -1).astype(jnp.float32)
            if om != 1.0:
                acc = om * acc
            h = jnp.sin(acc)
        return h.astype(xv.dtype)

    # --- per-layer kernels: tiny-K VPU path + ragged batch tiles (1000 rows,
    #     2 grid steps of 504), then MXU path with narrow unpadded OUT=64.
    h = sine_layer(x, w1, b1, omega_0=1.0)
    y = jax.block_until_ready(sine_layer(h, w2, b2, omega_0=1.0))

    h_ref = jnp.sin(x @ w1 + b1)
    y_ref = jnp.sin(h_ref @ w2 + b2)
    assert h.shape == (B, HIDDEN) and y.shape == (B, OUT)
    assert jnp.allclose(h, h_ref, atol=1e-4, rtol=1e-4)
    assert jnp.allclose(y, y_ref, atol=1e-4, rtol=1e-4)

    # --- un-folded path: omega applied inside the kernel epilogue.
    w1_raw, b1_raw = init_sine_layer_params(k_1, IN, HIDDEN, is_first=True,
                                            omega_0=omega_0, fold_omega=False)
    h_unf = jax.block_until_ready(sine_layer(x, w1_raw, b1_raw, omega_0=omega_0))
    assert jnp.allclose(h_unf, h_ref, atol=1e-4, rtol=1e-4)

    # --- fused stack: intermediate activations never touch HBM.
    y_fused = jax.block_until_ready(
        siren_stack(x, [(w1, b1), (w2, b2)], omega_0s=(1.0, 1.0)))
    assert jnp.allclose(y_fused, y_ref, atol=1e-4, rtol=1e-4)

    # --- fused stack with the cheap polynomial sine (f32).
    y_fast = jax.block_until_ready(
        siren_stack(x, [(w1, b1), (w2, b2)], omega_0s=(1.0, 1.0), fast_sin=True))
    assert jnp.allclose(y_fast, y_ref, atol=5e-4, rtol=5e-4)

    # --- bf16 I/O (halves HBM traffic; accumulation + sine still in f32),
    #     compared against a matching bf16-precision JAX reference.
    xb = x.astype(jnp.bfloat16)
    layers_bf16 = [(w1.astype(jnp.bfloat16), b1.astype(jnp.bfloat16)),
                   (w2.astype(jnp.bfloat16), b2.astype(jnp.bfloat16))]
    y_bf16 = jax.block_until_ready(
        siren_stack(xb, layers_bf16, omega_0s=(1.0, 1.0)))
    y_bf16_ref = stack_ref(xb, layers_bf16, (1.0, 1.0))
    assert y_bf16.dtype == jnp.bfloat16 and y_bf16.shape == (B, OUT)
    assert jnp.allclose(y_bf16.astype(jnp.float32),
                        y_bf16_ref.astype(jnp.float32), atol=2e-2, rtol=2e-2)

    print("KERNEL_OK")
</pallas_src>

<mosaic_0001>
module attributes {stable_mosaic.version = 11 : i64} {
  func.func @_sine_layer_kernel(%arg0: i32, %arg1: i32, %arg2: memref<504x2xf32, #tpu.memory_space<vmem>>, %arg3: memref<2x128xf32, #tpu.memory_space<vmem>>, %arg4: memref<1x128xf32, #tpu.memory_space<vmem>>, %arg5: memref<504x128xf32, #tpu.memory_space<vmem>>) attributes {dimension_semantics = [#tpu.dimension_semantics<parallel>, #tpu.dimension_semantics<parallel>], iteration_bounds = array<i64: 2, 1>, scalar_prefetch = 0 : i64, scratch_operands = 0 : i64, tpu.core_type = #tpu.core_type<tc>, window_params = [{transform_indices = @transform_0, window_bounds = array<i64: 504, 2>}, {transform_indices = @transform_1, window_bounds = array<i64: 2, 128>}, {transform_indices = @transform_2, window_bounds = array<i64: 1, 128>}, {transform_indices = @transform_3, window_bounds = array<i64: 504, 128>}]} {
    %c0 = arith.constant 0 : index
    %c0_0 = arith.constant 0 : index
    %0 = vector.load %arg2[%c0, %c0_0] : memref<504x2xf32, #tpu.memory_space<vmem>>, vector<504x2xf32>
    %c0_1 = arith.constant 0 : index
    %c0_2 = arith.constant 0 : index
    %1 = vector.load %arg3[%c0_1, %c0_2] : memref<2x128xf32, #tpu.memory_space<vmem>>, vector<2x128xf32>
    %2 = vector.extract_strided_slice %0 {offsets = [0, 0], sizes = [504, 1], strides = [1, 1]} : vector<504x2xf32> to vector<504x1xf32>
    %3 = vector.extract_strided_slice %1 {offsets = [0, 0], sizes = [1, 128], strides = [1, 1]} : vector<2x128xf32> to vector<1x128xf32>
    %4 = vector.broadcast %2 : vector<504x1xf32> to vector<504x128xf32>
    %5 = vector.broadcast %3 : vector<1x128xf32> to vector<504x128xf32>
    %6 = arith.mulf %4, %5 : vector<504x128xf32>
    %7 = vector.extract_strided_slice %0 {offsets = [0, 1], sizes = [504, 1], strides = [1, 1]} : vector<504x2xf32> to vector<504x1xf32>
    %8 = vector.extract_strided_slice %1 {offsets = [1, 0], sizes = [1, 128], strides = [1, 1]} : vector<2x128xf32> to vector<1x128xf32>
    %9 = vector.broadcast %7 : vector<504x1xf32> to vector<504x128xf32>
    %10 = vector.broadcast %8 : vector<1x128xf32> to vector<504x128xf32>
    %11 = arith.mulf %9, %10 : vector<504x128xf32>
    %12 = arith.addf %6, %11 : vector<504x128xf32>
    %c0_3 = arith.constant 0 : index
    %c0_4 = arith.constant 0 : index
    %13 = vector.load %arg4[%c0_3, %c0_4] : memref<1x128xf32, #tpu.memory_space<vmem>>, vector<1x128xf32>
    %14 = vector.broadcast %13 : vector<1x128xf32> to vector<504x128xf32>
    %15 = arith.addf %12, %14 : vector<504x128xf32>
    %16 = math.sin %15 : vector<504x128xf32>
    %c0_5 = arith.constant 0 : index
    %c0_6 = arith.constant 0 : index
    %17 = vector.load %arg5[%c0_5, %c0_6] : memref<504x128xf32, #tpu.memory_space<vmem>>, vector<504x128xf32>
    tpu.vector_store %arg5[%c0_5, %c0_6], %16 {strides = array<i32>} : memref<504x128xf32, #tpu.memory_space<vmem>>, vector<504x128xf32>,
    return
  }
  func.func @transform_0(%arg0: i32, %arg1: i32) -> (i32, i32) {
    %c0_i32 = arith.constant 0 : i32
    %c0_i32_0 = arith.constant 0 : i32
    return %arg0, %c0_i32 : i32, i32
  }
  func.func @transform_1(%arg0: i32, %arg1: i32) -> (i32, i32) {
    %c0_i32 = arith.constant 0 : i32
    %c0_i32_0 = arith.constant 0 : i32
    return %c0_i32, %arg1 : i32, i32
  }
  func.func @transform_2(%arg0: i32, %arg1: i32) -> (i32, i32) {
    %c0_i32 = arith.constant 0 : i32
    %c0_i32_0 = arith.constant 0 : i32
    return %c0_i32, %arg1 : i32, i32
  }
  func.func @transform_3(%arg0: i32, %arg1: i32) -> (i32, i32) {
    %c0_i32 = arith.constant 0 : i32
    return %arg0, %arg1 : i32, i32
  }
}

</mosaic_0001>

<llo_original>
// kernel: tpu_custom_call.1
$region0: #{tpu_custom_call.1}
  #allocation0 [shape = 'u32[]', space=smem, size = 0x4, offset = 0x4, fixed_abs, tag = 'smem constant byte address 0x4 - core index']
  #allocation1 [shape = 'u32[144,128]{1,0:T(1,128)}', space=vmem, size = 0x12000, scoped, tag = 'internal scratch']
  %s0 = inlined_call_operand.vmem [shape: f32[1000,2], index: 0, kind: input, shape index: {}]
  %s1 = inlined_call_operand.vmem [shape: f32[2,128], index: 1, kind: input, shape index: {}]
  %s2 = inlined_call_operand.vmem [shape: f32[1,128], index: 2, kind: input, shape index: {}]
  %s3 = inlined_call_operand.hbm [shape: f32[1000,128], index: 3, kind: output, shape index: {}]
  %s4 = sld [smem:[#allocation0]]
  $region45: #{tpu_custom_call.1} parent=0
    _
  %s6 = ssub.s32 1, %s4
  %s7 = scalar_select 0, %s6, %s4
  $region1: #{tpu_custom_call.1} parent=0
    #allocation2 [shape = 'u8[516096]{0}', space=vmem, size = 0x7e000, scoped, tag = 'output window, operand 0']
    #allocation3 [shape = 's32[2]{0}', space=sflag, size = 0x8, scoped, tag = 'scoped memory for tpu_custom_call.1']
    %8 = vsyncpa [#allocation3], 0
    %s9 = scalar_lea.sflag [#allocation3], 1
    %10 = vsyncpa %s9, 0
    loop: start=0, step=1, limit=4
    $region2: #{tpu_custom_call.1} parent=1 // loop_pre_header
      _
    $region3: #{tpu_custom_call.1} parent=1 // loop_header
      %s12 = sphi 0, %s16
      %p13 = scmp.ge.s32.totalorder %s12, 4
      %s19 = sphi 0, %s31
      %s20 = sphi 0, %s27
      %s21 = sphi 0, %s19
      %s22 = sphi 0, %s20
      %s23 = sphi 0, %s21
      %s24 = sphi 0, %s22
      %s34 = sphi 0, %s36
      %s37 = sphi 0, %s34
      %s38 = sphi 0, %s37
      %s54 = sphi 0, %s38
      %s60 = sphi 0, %s62
      %s63 = sphi 0, %s60
      %s64 = sphi 0, %s63
      %s80 = sphi 0, %s64
      %s86 = sphi 0, %s88
      %s89 = sphi 0, %s86
      %s90 = sphi 0, %s89
      %s106 = sphi 0, %s90
      %s114 = sphi 0, %s116
      %s117 = sphi 0, %s114
      %s118 = sphi 0, %s117
      %s134 = sphi 0, %s118
    $region4: #{tpu_custom_call.1} parent=1 // loop_header_branch
      %15 = sbr.rel (%p13) target = $region8
    $region5: #{tpu_custom_call.1} parent=1 // loop_body
      %s17 = ssub.s32 %s12, 1
      %s18 = ssub.s32 %s12, 2
      %s25 = sadd.s32 1, %s20
      %p26 = scmp.ge.s32.totalorder %s25, 1
      %s27 = scalar_select %p26, 0, %s25
      %s28 = sadd.s32 1, %s19
      %s29 = scalar_select %p26, %s28, %s19
      %p30 = scmp.ge.s32.totalorder %s29, 2
      %s31 = scalar_select %p30, 0, %s29
      %s32 = ssub.s32 %s19, %s31
      %p33 = scmp.eq.s32.totalorder %s32, 0
      %s35 = sadd.s32 %s34, 1
      %s36 = scalar_select %p33, %s34, %s35
      %p39 = pneg %p33
      %p40 = scmp.eq.s32.totalorder %s12, 1
      %p41 = por %p39, %p40
      %p42 = scmp.ne.s32.totalorder %s34, %s37
      %p43 = scmp.eq.s32.totalorder %s12, 0
      %p44 = por %p42, %p43
      %p45 = scmp.ne.s32.totalorder %s34, %s37
      %p46 = scmp.eq.s32.totalorder %s17, 1
      %p47 = por %p45, %p46
      %p48 = scmp.ne.s32.totalorder %s37, %s38
      %p49 = scmp.eq.s32.totalorder %s17, 0
      %p50 = por %p48, %p49
      %p51 = scmp.ne.s32.totalorder %s37, %s38
      %p52 = scmp.eq.s32.totalorder %s18, 1
      %p53 = por %p51, %p52
      %p55 = scmp.ne.s32.totalorder %s38, %s54
      %p56 = scmp.eq.s32.totalorder %s18, 0
      %p57 = por %p55, %p56
      %s58 = ssub.s32 %s20, %s27
      %p59 = scmp.eq.s32.totalorder %s58, 0
      %s61 = sadd.s32 %s60, 1
      %s62 = scalar_select %p59, %s60, %s61
      %p65 = pneg %p59
      %p66 = scmp.eq.s32.totalorder %s12, 1
      %p67 = por %p65, %p66
      %p68 = scmp.ne.s32.totalorder %s60, %s63
      %p69 = scmp.eq.s32.totalorder %s12, 0
      %p70 = por %p68, %p69
      %p71 = scmp.ne.s32.totalorder %s60, %s63
      %p72 = scmp.eq.s32.totalorder %s17, 1
      %p73 = por %p71, %p72
      %p74 = scmp.ne.s32.totalorder %s63, %s64
      %p75 = scmp.eq.s32.totalorder %s17, 0
      %p76 = por %p74, %p75
      %p77 = scmp.ne.s32.totalorder %s63, %s64
      %p78 = scmp.eq.s32.totalorder %s18, 1
      %p79 = por %p77, %p78
      %p81 = scmp.ne.s32.totalorder %s64, %s80
      %p82 = scmp.eq.s32.totalorder %s18, 0
      %p83 = por %p81, %p82
      %s84 = ssub.s32 %s20, %s27
      %p85 = scmp.eq.s32.totalorder %s84, 0
      %s87 = sadd.s32 %s86, 1
      %s88 = scalar_select %p85, %s86, %s87
      %p91 = pneg %p85
      %p92 = scmp.eq.s32.totalorder %s12, 1
      %p93 = por %p91, %p92
      %p94 = scmp.ne.s32.totalorder %s86, %s89
      %p95 = scmp.eq.s32.totalorder %s12, 0
      %p96 = por %p94, %p95
      %p97 = scmp.ne.s32.totalorder %s86, %s89
      %p98 = scmp.eq.s32.totalorder %s17, 1
      %p99 = por %p97, %p98
      %p100 = scmp.ne.s32.totalorder %s89, %s90
      %p101 = scmp.eq.s32.totalorder %s17, 0
      %p102 = por %p100, %p101
      %p103 = scmp.ne.s32.totalorder %s89, %s90
      %p104 = scmp.eq.s32.totalorder %s18, 1
      %p105 = por %p103, %p104
      %p107 = scmp.ne.s32.totalorder %s90, %s106
      %p108 = scmp.eq.s32.totalorder %s18, 0
      %p109 = por %p107, %p108
      %s110 = ssub.s32 %s19, %s31
      %s111 = ssub.s32 %s20, %s27
      %s112 = sor.u32 %s110, %s111
      %p113 = scmp.eq.s32.totalorder %s112, 0
      %s115 = sadd.s32 %s114, 1
      %s116 = scalar_select %p113, %s114, %s115
      %p119 = pneg %p113
      %p120 = scmp.eq.s32.totalorder %s12, 1
      %p121 = por %p119, %p120
      %p122 = scmp.ne.s32.totalorder %s114, %s117
      %p123 = scmp.eq.s32.totalorder %s12, 0
      %p124 = por %p122, %p123
      %p125 = scmp.ne.s32.totalorder %s114, %s117
      %p126 = scmp.eq.s32.totalorder %s17, 1
      %p127 = por %p125, %p126
      %p128 = scmp.ne.s32.totalorder %s117, %s118
      %p129 = scmp.eq.s32.totalorder %s17, 0
      %p130 = por %p128, %p129
      %p131 = scmp.ne.s32.totalorder %s117, %s118
      %p132 = scmp.eq.s32.totalorder %s18, 1
      %p133 = por %p131, %p132
      %p135 = scmp.ne.s32.totalorder %s118, %s134
      %p136 = scmp.eq.s32.totalorder %s18, 0
      %p137 = por %p135, %p136
      %p138 = scmp.le.s32.totalorder 1, %s12
      %p139 = scmp.lt.s32.totalorder %s12, 3
      %p140 = pnand %p138, %p139
      %p141 = pneg %p140
      // Predicated region
      $region9: #{tpu_custom_call.1} parent=5 // pred_check
        _
      $region10: #{tpu_custom_call.1} parent=5 // pred_check_branch
        %143 = sbr.rel (%p140) target = $region12
      $region11: #{tpu_custom_call.1} parent=5 // pred_region
        %s144 = ssub.s32 %s12, 1
        // Predicated region
        $region13: #{tpu_custom_call.1} parent=11 // pred_check
          %p145 = pneg %p76
        $region14: #{tpu_custom_call.1} parent=11 // pred_check_branch
          %147 = sbr.rel (%p145) target = $region16
        $region15: #{tpu_custom_call.1} parent=11 // pred_region
          %p148 = scmp.lt.s32.totalorder %s22, 0
          %s149 = scalar_select %p148, %s22, 0
          %s150 = smul.addr %s149, 2
          %s151 = scalar_lea.vmem %s1, %s150
        $region16: #{tpu_custom_call.1} parent=11 // pred_fallthru
          _
        // Predicated region
        $region17: #{tpu_custom_call.1} parent=11 // pred_check
          %p152 = pneg %p102
        $region18: #{tpu_custom_call.1} parent=11 // pred_check_branch
          %154 = sbr.rel (%p152) target = $region20
        $region19: #{tpu_custom_call.1} parent=11 // pred_region
          %p155 = scmp.lt.s32.totalorder %s22, 0
          %s156 = scalar_select %p155, %s22, 0
          %s157 = scalar_lea.vmem %s2, %s156
        $region20: #{tpu_custom_call.1} parent=11 // pred_fallthru
          _
      $region12: #{tpu_custom_call.1} parent=5 // pred_fallthru
        _
      %p158 = scmp.lt.s32.totalorder %s12, 2
      // Predicated region
      $region21: #{tpu_custom_call.1} parent=5 // pred_check
        %p159 = pneg %p158
      $region22: #{tpu_custom_call.1} parent=5 // pred_check_branch
        %161 = sbr.rel (%p159) target = $region24
      $region23: #{tpu_custom_call.1} parent=5 // pred_region
        // Predicated region
        $region25: #{tpu_custom_call.1} parent=23 // pred_check
          %p162 = pneg %p44
        $region26: #{tpu_custom_call.1} parent=23 // pred_check_branch
          %164 = sbr.rel (%p162) target = $region28
        $region27: #{tpu_custom_call.1} parent=23 // pred_region
          %s165 = smul.u32 63, %s19
          %s166 = ssub.s32 125, %s165
          %p167 = scmp.lt.s32.totalorder %s166, 63
          %s168 = scalar_select %p167, %s166, 63
          %s169 = smul.u32 128, %s168
          %p170 = scmp.lt.s32.totalorder %s165, 124
          %s171 = scalar_select %p170, %s165, 124
          %s172 = smul.addr %s171, 8
          %s173 = scalar_lea.vmem %s0, %s172
          %s174 = smul.u32 63, %s19
          %s175 = ssub.s32 125, %s174
          %p176 = scmp.lt.s32.totalorder %s175, 63
          %s177 = scalar_select %p176, %s175, 63
          %s178 = smul.u32 128, %s177
        $region28: #{tpu_custom_call.1} parent=23 // pred_fallthru
          _
      $region24: #{tpu_custom_call.1} parent=5 // pred_fallthru
        _
      %p179 = scmp.le.s32.totalorder 1, %s12
      %p180 = scmp.lt.s32.totalorder %s12, 3
      %p181 = pnand %p179, %p180
      %p182 = pneg %p181
      // Predicated region
      $region29: #{tpu_custom_call.1} parent=5 // pred_check
        _
      $region30: #{tpu_custom_call.1} parent=5 // pred_check_branch
        %184 = sbr.rel (%p181) target = $region32
      $region31: #{tpu_custom_call.1} parent=5 // pred_region
        %s185 = ssub.s32 %s12, 1
        %s186 = smul.u32 63, %s21
        %s187 = ssub.s32 125, %s186
        %p188 = scmp.lt.s32.totalorder %s187, 63
        %s189 = scalar_select %p188, %s187, 63
        %s190 = smul.u32 128, %s189
        %p191 = scmp.lt.s32.totalorder %s186, 124
        %s192 = scalar_select %p191, %s186, 124
        %s193 = smul.addr %s192, 8
        %s194 = scalar_lea.vmem %s0, %s193
        %p195 = pneg %p50
        %p196 = pneg %p47
        %p197 = scmp.lt.s32.totalorder %s22, 0
        %s198 = scalar_select %p197, %s22, 0
        %s199 = smul.addr %s198, 2
        %s200 = scalar_lea.vmem %s1, %s199
        %p201 = pneg %p76
        %p202 = pneg %p73
        %p203 = scmp.lt.s32.totalorder %s22, 0
        %s204 = scalar_select %p203, %s22, 0
        %s205 = scalar_lea.vmem %s2, %s204
        %p206 = pneg %p102
        %p207 = pneg %p99
        %p208 = pneg %p130
        %p209 = pneg %p127
        %s210 = sand.u32 %s117, 1
        %s211 = scalar_lea.sflag [#allocation3], %s210
        %s212 = sand.u32 %s117, 1
        %s213 = smul.addr %s212, 504
        %s214 = scalar_lea.vmem [#allocation2], %s213
        %s215 = smul.u32 63, %s21
        %s216 = ssub.s32 125, %s215
        %p217 = scmp.lt.s32.totalorder %s216, 63
        %s218 = scalar_select %p217, %s216, 63
        %s219 = smul.u32 128, %s218
        %p220 = scmp.lt.s32.totalorder %s215, 124
        %s221 = scalar_select %p220, %s215, 124
        %s222 = smul.addr %s221, 8
        %s223 = scalar_lea.vmem %s0, %s222
        %s224 = smul.u32 63, %s21
        %s225 = ssub.s32 125, %s224
        %p226 = scmp.lt.s32.totalorder %s225, 63
        %s227 = scalar_select %p226, %s225, 63
        %s228 = smul.u32 128, %s227
        %p229 = scmp.lt.s32.totalorder %s22, 0
        %s230 = scalar_select %p229, %s22, 0
        %s231 = smul.addr %s230, 2
        %s232 = scalar_lea.vmem %s1, %s231
        %p233 = scmp.lt.s32.totalorder %s22, 0
        %s234 = scalar_select %p233, %s22, 0
        %s235 = scalar_lea.vmem %s2, %s234
        %s236 = smul.u32 63, %s21
        %s237 = ssub.s32 125, %s236
        %p238 = scmp.lt.s32.totalorder %s237, 63
        %s239 = scalar_select %p238, %s237, 63
        %s240 = smul.u32 128, %s239
        %v241 = vld [vmem:[%s223] sm:$0xff]
        %v242 = vld [vmem:[%s223 + $0x8] sm:$0xff]
        %v243 = vld [vmem:[%s223 + $0x10] sm:$0xff]
        %v244 = vld [vmem:[%s223 + $0x18] sm:$0xff]
        %v245 = vld [vmem:[%s223 + $0x20] sm:$0xff]
        %v246 = vld [vmem:[%s223 + $0x28] sm:$0xff]
        %v247 = vld [vmem:[%s223 + $0x30] sm:$0xff]
        %v248 = vld [vmem:[%s223 + $0x38] sm:$0xff]
        %v249 = vld [vmem:[%s223 + $0x40] sm:$0xff]
        %v250 = vld [vmem:[%s223 + $0x48] sm:$0xff]
        %v251 = vld [vmem:[%s223 + $0x50] sm:$0xff]
        %v252 = vld [vmem:[%s223 + $0x58] sm:$0xff]
        %v253 = vld [vmem:[%s223 + $0x60] sm:$0xff]
        %v254 = vld [vmem:[%s223 + $0x68] sm:$0xff]
        %v255 = vld [vmem:[%s223 + $0x70] sm:$0xff]
        %v256 = vld [vmem:[%s223 + $0x78] sm:$0xff]
        %v257 = vld [vmem:[%s223 + $0x80] sm:$0xff]
        %v258 = vld [vmem:[%s223 + $0x88] sm:$0xff]
        %v259 = vld [vmem:[%s223 + $0x90] sm:$0xff]
        %v260 = vld [vmem:[%s223 + $0x98] sm:$0xff]
        %v261 = vld [vmem:[%s223 + $0xa0] sm:$0xff]
        %v262 = vld [vmem:[%s223 + $0xa8] sm:$0xff]
        %v263 = vld [vmem:[%s223 + $0xb0] sm:$0xff]
        %v264 = vld [vmem:[%s223 + $0xb8] sm:$0xff]
        %v265 = vld [vmem:[%s223 + $0xc0] sm:$0xff]
        %v266 = vld [vmem:[%s223 + $0xc8] sm:$0xff]
        %v267 = vld [vmem:[%s223 + $0xd0] sm:$0xff]
        %v268 = vld [vmem:[%s223 + $0xd8] sm:$0xff]
        %v269 = vld [vmem:[%s223 + $0xe0] sm:$0xff]
        %v270 = vld [vmem:[%s223 + $0xe8] sm:$0xff]
        %v271 = vld [vmem:[%s223 + $0xf0] sm:$0xff]
        %v272 = vld [vmem:[%s223 + $0xf8] sm:$0xff]
        %v273 = vld [vmem:[%s223 + $0x100] sm:$0xff]
        %v274 = vld [vmem:[%s223 + $0x108] sm:$0xff]
        %v275 = vld [vmem:[%s223 + $0x110] sm:$0xff]
        %v276 = vld [vmem:[%s223 + $0x118] sm:$0xff]
        %v277 = vld [vmem:[%s223 + $0x120] sm:$0xff]
        %v278 = vld [vmem:[%s223 + $0x128] sm:$0xff]
        %v279 = vld [vmem:[%s223 + $0x130] sm:$0xff]
        %v280 = vld [vmem:[%s223 + $0x138] sm:$0xff]
        %v281 = vld [vmem:[%s223 + $0x140] sm:$0xff]
        %v282 = vld [vmem:[%s223 + $0x148] sm:$0xff]
        %v283 = vld [vmem:[%s223 + $0x150] sm:$0xff]
        %v284 = vld [vmem:[%s223 + $0x158] sm:$0xff]
        %v285 = vld [vmem:[%s223 + $0x160] sm:$0xff]
        %v286 = vld [vmem:[%s223 + $0x168] sm:$0xff]
        %v287 = vld [vmem:[%s223 + $0x170] sm:$0xff]
        %v288 = vld [vmem:[%s223 + $0x178] sm:$0xff]
        %v289 = vld [vmem:[%s223 + $0x180] sm:$0xff]
        %v290 = vld [vmem:[%s223 + $0x188] sm:$0xff]
        %v291 = vld [vmem:[%s223 + $0x190] sm:$0xff]
        %v292 = vld [vmem:[%s223 + $0x198] sm:$0xff]
        %v293 = vld [vmem:[%s223 + $0x1a0] sm:$0xff]
        %v294 = vld [vmem:[%s223 + $0x1a8] sm:$0xff]
        %v295 = vld [vmem:[%s223 + $0x1b0] sm:$0xff]
        %v296 = vld [vmem:[%s223 + $0x1b8] sm:$0xff]
        %v297 = vld [vmem:[%s223 + $0x1c0] sm:$0xff]
        %v298 = vld [vmem:[%s223 + $0x1c8] sm:$0xff]
        %v299 = vld [vmem:[%s223 + $0x1d0] sm:$0xff]
        %v300 = vld [vmem:[%s223 + $0x1d8] sm:$0xff]
        %v301 = vld [vmem:[%s223 + $0x1e0] sm:$0xff]
        %v302 = vld [vmem:[%s223 + $0x1e8] sm:$0xff]
        %v303 = vld [vmem:[%s223 + $0x1f0] sm:$0xff]
        %v304 = vld [vmem:[%s232] sm:$0x3]
        %306 = vset.pattern.permute.xlu0 0
        %307 = vperm.xlu0 %306, %v241
        %v308 = vpop.permute.xlu0 %307
        %311 = vset.pattern.permute.xlu0 0
        %312 = vperm.xlu0 %311, %v242
        %v313 = vpop.permute.xlu0 %312
        %316 = vset.pattern.permute.xlu0 0
        %317 = vperm.xlu0 %316, %v243
        %v318 = vpop.permute.xlu0 %317
        %321 = vset.pattern.permute.xlu0 0
        %322 = vperm.xlu0 %321, %v244
        %v323 = vpop.permute.xlu0 %322
        %326 = vset.pattern.permute.xlu0 0
        %327 = vperm.xlu0 %326, %v245
        %v328 = vpop.permute.xlu0 %327
        %331 = vset.pattern.permute.xlu0 0
        %332 = vperm.xlu0 %331, %v246
        %v333 = vpop.permute.xlu0 %332
        %336 = vset.pattern.permute.xlu0 0
        %337 = vperm.xlu0 %336, %v247
        %v338 = vpop.permute.xlu0 %337
        %341 = vset.pattern.permute.xlu0 0
        %342 = vperm.xlu0 %341, %v248
        %v343 = vpop.permute.xlu0 %342
        %346 = vset.pattern.permute.xlu0 0
        %347 = vperm.xlu0 %346, %v249
        %v348 = vpop.permute.xlu0 %347
        %351 = vset.pattern.permute.xlu0 0
        %352 = vperm.xlu0 %351, %v250
        %v353 = vpop.permute.xlu0 %352
        %356 = vset.pattern.permute.xlu0 0
        %357 = vperm.xlu0 %356, %v251
        %v358 = vpop.permute.xlu0 %357
        %361 = vset.pattern.permute.xlu0 0
        %362 = vperm.xlu0 %361, %v252
        %v363 = vpop.permute.xlu0 %362
        %366 = vset.pattern.permute.xlu0 0
        %367 = vperm.xlu0 %366, %v253
        %v368 = vpop.permute.xlu0 %367
        %371 = vset.pattern.permute.xlu0 0
        %372 = vperm.xlu0 %371, %v254
        %v373 = vpop.permute.xlu0 %372
        %376 = vset.pattern.permute.xlu0 0
        %377 = vperm.xlu0 %376, %v255
        %v378 = vpop.permute.xlu0 %377
        %381 = vset.pattern.permute.xlu0 0
        %382 = vperm.xlu0 %381, %v256
        %v383 = vpop.permute.xlu0 %382
        %386 = vset.pattern.permute.xlu0 0
        %387 = vperm.xlu0 %386, %v257
        %v388 = vpop.permute.xlu0 %387
        %391 = vset.pattern.permute.xlu0 0
        %392 = vperm.xlu0 %391, %v258
        %v393 = vpop.permute.xlu0 %392
        %396 = vset.pattern.permute.xlu0 0
        %397 = vperm.xlu0 %396, %v259
        %v398 = vpop.permute.xlu0 %397
        %401 = vset.pattern.permute.xlu0 0
        %402 = vperm.xlu0 %401, %v260
        %v403 = vpop.permute.xlu0 %402
        %406 = vset.pattern.permute.xlu0 0
        %407 = vperm.xlu0 %406, %v261
        %v408 = vpop.permute.xlu0 %407
        %411 = vset.pattern.permute.xlu0 0
        %412 = vperm.xlu0 %411, %v262
        %v413 = vpop.permute.xlu0 %412
        %416 = vset.pattern.permute.xlu0 0
        %417 = vperm.xlu0 %416, %v263
        %v418 = vpop.permute.xlu0 %417
        %421 = vset.pattern.permute.xlu0 0
        %422 = vperm.xlu0 %421, %v264
        %v423 = vpop.permute.xlu0 %422
        %426 = vset.pattern.permute.xlu0 0
        %427 = vperm.xlu0 %426, %v265
        %v428 = vpop.permute.xlu0 %427
        %431 = vset.pattern.permute.xlu0 0
        %432 = vperm.xlu0 %431, %v266
        %v433 = vpop.permute.xlu0 %432
        %436 = vset.pattern.permute.xlu0 0
        %437 = vperm.xlu0 %436, %v267
        %v438 = vpop.permute.xlu0 %437
        %441 = vset.pattern.permute.xlu0 0
        %442 = vperm.xlu0 %441, %v268
        %v443 = vpop.permute.xlu0 %442
        %446 = vset.pattern.permute.xlu0 0
        %447 = vperm.xlu0 %446, %v269
        %v448 = vpop.permute.xlu0 %447
        %451 = vset.pattern.permute.xlu0 0
        %452 = vperm.xlu0 %451, %v270
        %v453 = vpop.permute.xlu0 %452
        %456 = vset.pattern.permute.xlu0 0
        %457 = vperm.xlu0 %456, %v271
        %v458 = vpop.permute.xlu0 %457
        %461 = vset.pattern.permute.xlu0 0
        %462 = vperm.xlu0 %461, %v272
        %v463 = vpop.permute.xlu0 %462
        %466 = vset.pattern.permute.xlu0 0
        %467 = vperm.xlu0 %466, %v273
        %v468 = vpop.permute.xlu0 %467
        %471 = vset.pattern.permute.xlu0 0
        %472 = vperm.xlu0 %471, %v274
        %v473 = vpop.permute.xlu0 %472
        %476 = vset.pattern.permute.xlu0 0
        %477 = vperm.xlu0 %476, %v275
        %v478 = vpop.permute.xlu0 %477
        %481 = vset.pattern.permute.xlu0 0
        %482 = vperm.xlu0 %481, %v276
        %v483 = vpop.permute.xlu0 %482
        %486 = vset.pattern.permute.xlu0 0
        %487 = vperm.xlu0 %486, %v277
        %v488 = vpop.permute.xlu0 %487
        %491 = vset.pattern.permute.xlu0 0
        %492 = vperm.xlu0 %491, %v278
        %v493 = vpop.permute.xlu0 %492
        %496 = vset.pattern.permute.xlu0 0
        %497 = vperm.xlu0 %496, %v279
        %v498 = vpop.permute.xlu0 %497
        %501 = vset.pattern.permute.xlu0 0
        %502 = vperm.xlu0 %501, %v280
        %v503 = vpop.permute.xlu0 %502
        %506 = vset.pattern.permute.xlu0 0
        %507 = vperm.xlu0 %506, %v281
        %v508 = vpop.permute.xlu0 %507
        %511 = vset.pattern.permute.xlu0 0
        %512 = vperm.xlu0 %511, %v282
        %v513 = vpop.permute.xlu0 %512
        %516 = vset.pattern.permute.xlu0 0
        %517 = vperm.xlu0 %516, %v283
        %v518 = vpop.permute.xlu0 %517
        %521 = vset.pattern.permute.xlu0 0
        %522 = vperm.xlu0 %521, %v284
        %v523 = vpop.permute.xlu0 %522
        %526 = vset.pattern.permute.xlu0 0
        %527 = vperm.xlu0 %526, %v285
        %v528 = vpop.permute.xlu0 %527
        %531 = vset.pattern.permute.xlu0 0
        %532 = vperm.xlu0 %531, %v286
        %v533 = vpop.permute.xlu0 %532
        %536 = vset.pattern.permute.xlu0 0
        %537 = vperm.xlu0 %536, %v287
        %v538 = vpop.permute.xlu0 %537
        %541 = vset.pattern.permute.xlu0 0
        %542 = vperm.xlu0 %541, %v288
        %v543 = vpop.permute.xlu0 %542
        %546 = vset.pattern.permute.xlu0 0
        %547 = vperm.xlu0 %546, %v289
        %v548 = vpop.permute.xlu0 %547
        %551 = vset.pattern.permute.xlu0 0
        %552 = vperm.xlu0 %551, %v290
        %v553 = vpop.permute.xlu0 %552
        %556 = vset.pattern.permute.xlu0 0
        %557 = vperm.xlu0 %556, %v291
        %v558 = vpop.permute.xlu0 %557
        %561 = vset.pattern.permute.xlu0 0
        %562 = vperm.xlu0 %561, %v292
        %v563 = vpop.permute.xlu0 %562
        %566 = vset.pattern.permute.xlu0 0
        %567 = vperm.xlu0 %566, %v293
        %v568 = vpop.permute.xlu0 %567
        %571 = vset.pattern.permute.xlu0 0
        %572 = vperm.xlu0 %571, %v294
        %v573 = vpop.permute.xlu0 %572
        %576 = vset.pattern.permute.xlu0 0
        %577 = vperm.xlu0 %576, %v295
        %v578 = vpop.permute.xlu0 %577
        %581 = vset.pattern.permute.xlu0 0
        %582 = vperm.xlu0 %581, %v296
        %v583 = vpop.permute.xlu0 %582
        %586 = vset.pattern.permute.xlu0 0
        %587 = vperm.xlu0 %586, %v297
        %v588 = vpop.permute.xlu0 %587
        %591 = vset.pattern.permute.xlu0 0
        %592 = vperm.xlu0 %591, %v298
        %v593 = vpop.permute.xlu0 %592
        %596 = vset.pattern.permute.xlu0 0
        %597 = vperm.xlu0 %596, %v299
        %v598 = vpop.permute.xlu0 %597
        %601 = vset.pattern.permute.xlu0 0
        %602 = vperm.xlu0 %601, %v300
        %v603 = vpop.permute.xlu0 %602
        %606 = vset.pattern.permute.xlu0 0
        %607 = vperm.xlu0 %606, %v301
        %v608 = vpop.permute.xlu0 %607
        %611 = vset.pattern.permute.xlu0 0
        %612 = vperm.xlu0 %611, %v302
        %v613 = vpop.permute.xlu0 %612
        %616 = vset.pattern.permute.xlu0 0
        %617 = vperm.xlu0 %616, %v303
        %v618 = vpop.permute.xlu0 %617
        %v620 = vlaneseq
        %v621 = vshrl.u32 %v620, 7
        %v622 = vsub.s32 0, %v621
        %v623 = vrot.slane %v304, %v622
        %v624 = vmul.f32 %v308, %v623
        %v625 = vmul.f32 %v313, %v623
        %v626 = vmul.f32 %v318, %v623
        %v627 = vmul.f32 %v323, %v623
        %v628 = vmul.f32 %v328, %v623
        %v629 = vmul.f32 %v333, %v623
        %v630 = vmul.f32 %v338, %v623
        %v631 = vmul.f32 %v343, %v623
        %v632 = vmul.f32 %v348, %v623
        %v633 = vmul.f32 %v353, %v623
        %v634 = vmul.f32 %v358, %v623
        %v635 = vmul.f32 %v363, %v623
        %v636 = vmul.f32 %v368, %v623
        %v637 = vmul.f32 %v373, %v623
        %v638 = vmul.f32 %v378, %v623
        %v639 = vmul.f32 %v383, %v623
        %v640 = vmul.f32 %v388, %v623
        %v641 = vmul.f32 %v393, %v623
        %v642 = vmul.f32 %v398, %v623
        %v643 = vmul.f32 %v403, %v623
        %v644 = vmul.f32 %v408, %v623
        %v645 = vmul.f32 %v413, %v623
        %v646 = vmul.f32 %v418, %v623
        %v647 = vmul.f32 %v423, %v623
        %v648 = vmul.f32 %v428, %v623
        %v649 = vmul.f32 %v433, %v623
        %v650 = vmul.f32 %v438, %v623
        %v651 = vmul.f32 %v443, %v623
        %v652 = vmul.f32 %v448, %v623
        %v653 = vmul.f32 %v453, %v623
        %v654 = vmul.f32 %v458, %v623
        %v655 = vmul.f32 %v463, %v623
        %v656 = vmul.f32 %v468, %v623
        %v657 = vmul.f32 %v473, %v623
        %v658 = vmul.f32 %v478, %v623
        %v659 = vmul.f32 %v483, %v623
        %v660 = vmul.f32 %v488, %v623
        %v661 = vmul.f32 %v493, %v623
        %v662 = vmul.f32 %v498, %v623
        %v663 = vmul.f32 %v503, %v623
        %v664 = vmul.f32 %v508, %v623
        %v665 = vmul.f32 %v513, %v623
        %v666 = vmul.f32 %v518, %v623
        %v667 = vmul.f32 %v523, %v623
        %v668 = vmul.f32 %v528, %v623
        %v669 = vmul.f32 %v533, %v623
        %v670 = vmul.f32 %v538, %v623
        %v671 = vmul.f32 %v543, %v623
        %v672 = vmul.f32 %v548, %v623
        %v673 = vmul.f32 %v553, %v623
        %v674 = vmul.f32 %v558, %v623
        %v675 = vmul.f32 %v563, %v623
        %v676 = vmul.f32 %v568, %v623
        %v677 = vmul.f32 %v573, %v623
        %v678 = vmul.f32 %v578, %v623
        %v679 = vmul.f32 %v583, %v623
        %v680 = vmul.f32 %v588, %v623
        %v681 = vmul.f32 %v593, %v623
        %v682 = vmul.f32 %v598, %v623
        %v683 = vmul.f32 %v603, %v623
        %v684 = vmul.f32 %v608, %v623
        %v685 = vmul.f32 %v613, %v623
        %v686 = vmul.f32 %v618, %v623
        %687 = vset.pattern.permute.xlu0 1
        %688 = vperm.xlu0 %687, %v241
        %v689 = vpop.permute.xlu0 %688
        %691 = vset.pattern.permute.xlu0 1
        %692 = vperm.xlu0 %691, %v242
        %v693 = vpop.permute.xlu0 %692
        %695 = vset.pattern.permute.xlu0 1
        %696 = vperm.xlu0 %695, %v243
        %v697 = vpop.permute.xlu0 %696
        %699 = vset.pattern.permute.xlu0 1
        %700 = vperm.xlu0 %699, %v244
        %v701 = vpop.permute.xlu0 %700
        %703 = vset.pattern.permute.xlu0 1
        %704 = vperm.xlu0 %703, %v245
        %v705 = vpop.permute.xlu0 %704
        %707 = vset.pattern.permute.xlu0 1
        %708 = vperm.xlu0 %707, %v246
        %v709 = vpop.permute.xlu0 %708
        %711 = vset.pattern.permute.xlu0 1
        %712 = vperm.xlu0 %711, %v247
        %v713 = vpop.permute.xlu0 %712
        %715 = vset.pattern.permute.xlu0 1
        %716 = vperm.xlu0 %715, %v248
        %v717 = vpop.permute.xlu0 %716
        %719 = vset.pattern.permute.xlu0 1
        %720 = vperm.xlu0 %719, %v249
        %v721 = vpop.permute.xlu0 %720
        %723 = vset.pattern.permute.xlu0 1
        %724 = vperm.xlu0 %723, %v250
        %v725 = vpop.permute.xlu0 %724
        %727 = vset.pattern.permute.xlu0 1
        %728 = vperm.xlu0 %727, %v251
        %v729 = vpop.permute.xlu0 %728
        %731 = vset.pattern.permute.xlu0 1
        %732 = vperm.xlu0 %731, %v252
        %v733 = vpop.permute.xlu0 %732
        %735 = vset.pattern.permute.xlu0 1
        %736 = vperm.xlu0 %735, %v253
        %v737 = vpop.permute.xlu0 %736
        %739 = vset.pattern.permute.xlu0 1
        %740 = vperm.xlu0 %739, %v254
        %v741 = vpop.permute.xlu0 %740
        %743 = vset.pattern.permute.xlu0 1
        %744 = vperm.xlu0 %743, %v255
        %v745 = vpop.permute.xlu0 %744
        %747 = vset.pattern.permute.xlu0 1
        %748 = vperm.xlu0 %747, %v256
        %v749 = vpop.permute.xlu0 %748
        %751 = vset.pattern.permute.xlu0 1
        %752 = vperm.xlu0 %751, %v257
        %v753 = vpop.permute.xlu0 %752
        %755 = vset.pattern.permute.xlu0 1
        %756 = vperm.xlu0 %755, %v258
        %v757 = vpop.permute.xlu0 %756
        %759 = vset.pattern.permute.xlu0 1
        %760 = vperm.xlu0 %759, %v259
        %v761 = vpop.permute.xlu0 %760
        %763 = vset.pattern.permute.xlu0 1
        %764 = vperm.xlu0 %763, %v260
        %v765 = vpop.permute.xlu0 %764
        %767 = vset.pattern.permute.xlu0 1
        %768 = vperm.xlu0 %767, %v261
        %v769 = vpop.permute.xlu0 %768
        %771 = vset.pattern.permute.xlu0 1
        %772 = vperm.xlu0 %771, %v262
        %v773 = vpop.permute.xlu0 %772
        %775 = vset.pattern.permute.xlu0 1
        %776 = vperm.xlu0 %775, %v263
        %v777 = vpop.permute.xlu0 %776
        %779 = vset.pattern.permute.xlu0 1
        %780 = vperm.xlu0 %779, %v264
        %v781 = vpop.permute.xlu0 %780
        %783 = vset.pattern.permute.xlu0 1
        %784 = vperm.xlu0 %783, %v265
        %v785 = vpop.permute.xlu0 %784
        %787 = vset.pattern.permute.xlu0 1
        %788 = vperm.xlu0 %787, %v266
        %v789 = vpop.permute.xlu0 %788
        %791 = vset.pattern.permute.xlu0 1
        %792 = vperm.xlu0 %791, %v267
        %v793 = vpop.permute.xlu0 %792
        %795 = vset.pattern.permute.xlu0 1
        %796 = vperm.xlu0 %795, %v268
        %v797 = vpop.permute.xlu0 %796
        %799 = vset.pattern.permute.xlu0 1
        %800 = vperm.xlu0 %799, %v269
        %v801 = vpop.permute.xlu0 %800
        %803 = vset.pattern.permute.xlu0 1
        %804 = vperm.xlu0 %803, %v270
        %v805 = vpop.permute.xlu0 %804
        %807 = vset.pattern.permute.xlu0 1
        %808 = vperm.xlu0 %807, %v271
        %v809 = vpop.permute.xlu0 %808
        %811 = vset.pattern.permute.xlu0 1
        %812 = vperm.xlu0 %811, %v272
        %v813 = vpop.permute.xlu0 %812
        %815 = vset.pattern.permute.xlu0 1
        %816 = vperm.xlu0 %815, %v273
        %v817 = vpop.permute.xlu0 %816
        %819 = vset.pattern.permute.xlu0 1
        %820 = vperm.xlu0 %819, %v274
        %v821 = vpop.permute.xlu0 %820
        %823 = vset.pattern.permute.xlu0 1
        %824 = vperm.xlu0 %823, %v275
        %v825 = vpop.permute.xlu0 %824
        %827 = vset.pattern.permute.xlu0 1
        %828 = vperm.xlu0 %827, %v276
        %v829 = vpop.permute.xlu0 %828
        %831 = vset.pattern.permute.xlu0 1
        %832 = vperm.xlu0 %831, %v277
        %v833 = vpop.permute.xlu0 %832
        %835 = vset.pattern.permute.xlu0 1
        %836 = vperm.xlu0 %835, %v278
        %v837 = vpop.permute.xlu0 %836
        %839 = vset.pattern.permute.xlu0 1
        %840 = vperm.xlu0 %839, %v279
        %v841 = vpop.permute.xlu0 %840
        %843 = vset.pattern.permute.xlu0 1
        %844 = vperm.xlu0 %843, %v280
        %v845 = vpop.permute.xlu0 %844
        %847 = vset.pattern.permute.xlu0 1
        %848 = vperm.xlu0 %847, %v281
        %v849 = vpop.permute.xlu0 %848
        %851 = vset.pattern.permute.xlu0 1
        %852 = vperm.xlu0 %851, %v282
        %v853 = vpop.permute.xlu0 %852
        %855 = vset.pattern.permute.xlu0 1
        %856 = vperm.xlu0 %855, %v283
        %v857 = vpop.permute.xlu0 %856
        %859 = vset.pattern.permute.xlu0 1
        %860 = vperm.xlu0 %859, %v284
        %v861 = vpop.permute.xlu0 %860
        %863 = vset.pattern.permute.xlu0 1
        %864 = vperm.xlu0 %863, %v285
        %v865 = vpop.permute.xlu0 %864
        %867 = vset.pattern.permute.xlu0 1
        %868 = vperm.xlu0 %867, %v286
        %v869 = vpop.permute.xlu0 %868
        %871 = vset.pattern.permute.xlu0 1
        %872 = vperm.xlu0 %871, %v287
        %v873 = vpop.permute.xlu0 %872
        %875 = vset.pattern.permute.xlu0 1
        %876 = vperm.xlu0 %875, %v288
        %v877 = vpop.permute.xlu0 %876
        %879 = vset.pattern.permute.xlu0 1
        %880 = vperm.xlu0 %879, %v289
        %v881 = vpop.permute.xlu0 %880
        %883 = vset.pattern.permute.xlu0 1
        %884 = vperm.xlu0 %883, %v290
        %v885 = vpop.permute.xlu0 %884
        %887 = vset.pattern.permute.xlu0 1
        %888 = vperm.xlu0 %887, %v291
        %v889 = vpop.permute.xlu0 %888
        %891 = vset.pattern.permute.xlu0 1
        %892 = vperm.xlu0 %891, %v292
        %v893 = vpop.permute.xlu0 %892
        %895 = vset.pattern.permute.xlu0 1
        %896 = vperm.xlu0 %895, %v293
        %v897 = vpop.permute.xlu0 %896
        %899 = vset.pattern.permute.xlu0 1
        %900 = vperm.xlu0 %899, %v294
        %v901 = vpop.permute.xlu0 %900
        %903 = vset.pattern.permute.xlu0 1
        %904 = vperm.xlu0 %903, %v295
        %v905 = vpop.permute.xlu0 %904
        %907 = vset.pattern.permute.xlu0 1
        %908 = vperm.xlu0 %907, %v296
        %v909 = vpop.permute.xlu0 %908
        %911 = vset.pattern.permute.xlu0 1
        %912 = vperm.xlu0 %911, %v297
        %v913 = vpop.permute.xlu0 %912
        %915 = vset.pattern.permute.xlu0 1
        %916 = vperm.xlu0 %915, %v298
        %v917 = vpop.permute.xlu0 %916
        %919 = vset.pattern.permute.xlu0 1
        %920 = vperm.xlu0 %919, %v299
        %v921 = vpop.permute.xlu0 %920
        %923 = vset.pattern.permute.xlu0 1
        %924 = vperm.xlu0 %923, %v300
        %v925 = vpop.permute.xlu0 %924
        %927 = vset.pattern.permute.xlu0 1
        %928 = vperm.xlu0 %927, %v301
        %v929 = vpop.permute.xlu0 %928
        %931 = vset.pattern.permute.xlu0 1
        %932 = vperm.xlu0 %931, %v302
        %v933 = vpop.permute.xlu0 %932
        %935 = vset.pattern.permute.xlu0 1
        %936 = vperm.xlu0 %935, %v303
        %v937 = vpop.permute.xlu0 %936
        %v939 = vlaneseq
        %v940 = vshrl.u32 %v939, 7
        %v941 = vsub.s32 1, %v940
        %v942 = vrot.slane %v304, %v941
        %v943 = vmul.f32 %v689, %v942
        %v944 = vmul.f32 %v693, %v942
        %v945 = vmul.f32 %v697, %v942
        %v946 = vmul.f32 %v701, %v942
        %v947 = vmul.f32 %v705, %v942
        %v948 = vmul.f32 %v709, %v942
        %v949 = vmul.f32 %v713, %v942
        %v950 = vmul.f32 %v717, %v942
        %v951 = vmul.f32 %v721, %v942
        %v952 = vmul.f32 %v725, %v942
        %v953 = vmul.f32 %v729, %v942
        %v954 = vmul.f32 %v733, %v942
        %v955 = vmul.f32 %v737, %v942
        %v956 = vmul.f32 %v741, %v942
        %v957 = vmul.f32 %v745, %v942
        %v958 = vmul.f32 %v749, %v942
        %v959 = vmul.f32 %v753, %v942
        %v960 = vmul.f32 %v757, %v942
        %v961 = vmul.f32 %v761, %v942
        %v962 = vmul.f32 %v765, %v942
        %v963 = vmul.f32 %v769, %v942
        %v964 = vmul.f32 %v773, %v942
        %v965 = vmul.f32 %v777, %v942
        %v966 = vmul.f32 %v781, %v942
        %v967 = vmul.f32 %v785, %v942
        %v968 = vmul.f32 %v789, %v942
        %v969 = vmul.f32 %v793, %v942
        %v970 = vmul.f32 %v797, %v942
        %v971 = vmul.f32 %v801, %v942
        %v972 = vmul.f32 %v805, %v942
        %v973 = vmul.f32 %v809, %v942
        %v974 = vmul.f32 %v813, %v942
        %v975 = vmul.f32 %v817, %v942
        %v976 = vmul.f32 %v821, %v942
        %v977 = vmul.f32 %v825, %v942
        %v978 = vmul.f32 %v829, %v942
        %v979 = vmul.f32 %v833, %v942
        %v980 = vmul.f32 %v837, %v942
        %v981 = vmul.f32 %v841, %v942
        %v982 = vmul.f32 %v845, %v942
        %v983 = vmul.f32 %v849, %v942
        %v984 = vmul.f32 %v853, %v942
        %v985 = vmul.f32 %v857, %v942
        %v986 = vmul.f32 %v861, %v942
        %v987 = vmul.f32 %v865, %v942
        %v988 = vmul.f32 %v869, %v942
        %v989 = vmul.f32 %v873, %v942
        %v990 = vmul.f32 %v877, %v942
        %v991 = vmul.f32 %v881, %v942
        %v992 = vmul.f32 %v885, %v942
        %v993 = vmul.f32 %v889, %v942
        %v994 = vmul.f32 %v893, %v942
        %v995 = vmul.f32 %v897, %v942
        %v996 = vmul.f32 %v901, %v942
        %v997 = vmul.f32 %v905, %v942
        %v998 = vmul.f32 %v909, %v942
        %v999 = vmul.f32 %v913, %v942
        %v1000 = vmul.f32 %v917, %v942
        %v1001 = vmul.f32 %v921, %v942
        %v1002 = vmul.f32 %v925, %v942
        %v1003 = vmul.f32 %v929, %v942
        %v1004 = vmul.f32 %v933, %v942
        %v1005 = vmul.f32 %v937, %v942
        %v1006 = vadd.f32 %v624, %v943
        %v1007 = vadd.f32 %v625, %v944
        %v1008 = vadd.f32 %v626, %v945
        %v1009 = vadd.f32 %v627, %v946
        %v1010 = vadd.f32 %v628, %v947
        %v1011 = vadd.f32 %v629, %v948
        %v1012 = vadd.f32 %v630, %v949
        %v1013 = vadd.f32 %v631, %v950
        %v1014 = vadd.f32 %v632, %v951
        %v1015 = vadd.f32 %v633, %v952
        %v1016 = vadd.f32 %v634, %v953
        %v1017 = vadd.f32 %v635, %v954
        %v1018 = vadd.f32 %v636, %v955
        %v1019 = vadd.f32 %v637, %v956
        %v1020 = vadd.f32 %v638, %v957
        %v1021 = vadd.f32 %v639, %v958
        %v1022 = vadd.f32 %v640, %v959
        %v1023 = vadd.f32 %v641, %v960
        %v1024 = vadd.f32 %v642, %v961
        %v1025 = vadd.f32 %v643, %v962
        %v1026 = vadd.f32 %v644, %v963
        %v1027 = vadd.f32 %v645, %v964
        %v1028 = vadd.f32 %v646, %v965
        %v1029 = vadd.f32 %v647, %v966
        %v1030 = vadd.f32 %v648, %v967
        %v1031 = vadd.f32 %v649, %v968
        %v1032 = vadd.f32 %v650, %v969
        %v1033 = vadd.f32 %v651, %v970
        %v1034 = vadd.f32 %v652, %v971
        %v1035 = vadd.f32 %v653, %v972
        %v1036 = vadd.f32 %v654, %v973
        %v1037 = vadd.f32 %v655, %v974
        %v1038 = vadd.f32 %v656, %v975
        %v1039 = vadd.f32 %v657, %v976
        %v1040 = vadd.f32 %v658, %v977
        %v1041 = vadd.f32 %v659, %v978
        %v1042 = vadd.f32 %v660, %v979
        %v1043 = vadd.f32 %v661, %v980
        %v1044 = vadd.f32 %v662, %v981
        %v1045 = vadd.f32 %v663, %v982
        %v1046 = vadd.f32 %v664, %v983
        %v1047 = vadd.f32 %v665, %v984
        %v1048 = vadd.f32 %v666, %v985
        %v1049 = vadd.f32 %v667, %v986
        %v1050 = vadd.f32 %v668, %v987
        %v1051 = vadd.f32 %v669, %v988
        %v1052 = vadd.f32 %v670, %v989
        %v1053 = vadd.f32 %v671, %v990
        %v1054 = vadd.f32 %v672, %v991
        %v1055 = vadd.f32 %v673, %v992
        %v1056 = vadd.f32 %v674, %v993
        %v1057 = vadd.f32 %v675, %v994
        %v1058 = vadd.f32 %v676, %v995
        %v1059 = vadd.f32 %v677, %v996
        %v1060 = vadd.f32 %v678, %v997
        %v1061 = vadd.f32 %v679, %v998
        %v1062 = vadd.f32 %v680, %v999
        %v1063 = vadd.f32 %v681, %v1000
        %v1064 = vadd.f32 %v682, %v1001
        %v1065 = vadd.f32 %v683, %v1002
        %v1066 = vadd.f32 %v684, %v1003
        %v1067 = vadd.f32 %v685, %v1004
        %v1068 = vadd.f32 %v686, %v1005
        %v1069 = vld [vmem:[%s235] sm:$0x1]
        %v1071 = vlaneseq
        %v1072 = vshrl.u32 %v1071, 7
        %v1073 = vsub.s32 0, %v1072
        %v1074 = vrot.slane %v1069, %v1073
        %v1076 = vadd.f32 %v1006, %v1074
        %v1077 = vadd.f32 %v1007, %v1074
        %v1078 = vadd.f32 %v1008, %v1074
        %v1079 = vadd.f32 %v1009, %v1074
        %v1080 = vadd.f32 %v1010, %v1074
        %v1081 = vadd.f32 %v1011, %v1074
        %v1082 = vadd.f32 %v1012, %v1074
        %v1083 = vadd.f32 %v1013, %v1074
        %v1084 = vadd.f32 %v1014, %v1074
        %v1085 = vadd.f32 %v1015, %v1074
        %v1086 = vadd.f32 %v1016, %v1074
        %v1087 = vadd.f32 %v1017, %v1074
        %v1088 = vadd.f32 %v1018, %v1074
        %v1089 = vadd.f32 %v1019, %v1074
        %v1090 = vadd.f32 %v1020, %v1074
        %v1091 = vadd.f32 %v1021, %v1074
        %v1092 = vadd.f32 %v1022, %v1074
        %v1093 = vadd.f32 %v1023, %v1074
        %v1094 = vadd.f32 %v1024, %v1074
        %v1095 = vadd.f32 %v1025, %v1074
        %v1096 = vadd.f32 %v1026, %v1074
        %v1097 = vadd.f32 %v1027, %v1074
        %v1098 = vadd.f32 %v1028, %v1074
        %v1099 = vadd.f32 %v1029, %v1074
        %v1100 = vadd.f32 %v1030, %v1074
        %v1101 = vadd.f32 %v1031, %v1074
        %v1102 = vadd.f32 %v1032, %v1074
        %v1103 = vadd.f32 %v1033, %v1074
        %v1104 = vadd.f32 %v1034, %v1074
        %v1105 = vadd.f32 %v1035, %v1074
        %v1106 = vadd.f32 %v1036, %v1074
        %v1107 = vadd.f32 %v1037, %v1074
        %v1108 = vadd.f32 %v1038, %v1074
        %v1109 = vadd.f32 %v1039, %v1074
        %v1110 = vadd.f32 %v1040, %v1074
        %v1111 = vadd.f32 %v1041, %v1074
        %v1112 = vadd.f32 %v1042, %v1074
        %v1113 = vadd.f32 %v1043, %v1074
        %v1114 = vadd.f32 %v1044, %v1074
        %v1115 = vadd.f32 %v1045, %v1074
        %v1116 = vadd.f32 %v1046, %v1074
        %v1117 = vadd.f32 %v1047, %v1074
        %v1118 = vadd.f32 %v1048, %v1074
        %v1119 = vadd.f32 %v1049, %v1074
        %v1120 = vadd.f32 %v1050, %v1074
        %v1121 = vadd.f32 %v1051, %v1074
        %v1122 = vadd.f32 %v1052, %v1074
        %v1123 = vadd.f32 %v1053, %v1074
        %v1124 = vadd.f32 %v1054, %v1074
        %v1125 = vadd.f32 %v1055, %v1074
        %v1126 = vadd.f32 %v1056, %v1074
        %v1127 = vadd.f32 %v1057, %v1074
        %v1128 = vadd.f32 %v1058, %v1074
        %v1129 = vadd.f32 %v1059, %v1074
        %v1130 = vadd.f32 %v1060, %v1074
        %v1131 = vadd.f32 %v1061, %v1074
        %v1132 = vadd.f32 %v1062, %v1074
        %v1133 = vadd.f32 %v1063, %v1074
        %v1134 = vadd.f32 %v1064, %v1074
        %v1135 = vadd.f32 %v1065, %v1074
        %v1136 = vadd.f32 %v1066, %v1074
        %v1137 = vadd.f32 %v1067, %v1074
        %v1138 = vadd.f32 %v1068, %v1074
        %v1139 = vand.u32 2147483647, %v1076
        %vm1140 = vcmp.le.f32.partialorder %v1139, 0.7853982
        %vm1141 = vcmp.lt.s32.totalorder %v1076, 0
        %v1142 = vand.u32 %v1076, 2139095040
        %v1143 = vshrl.u32 %v1142, 23
        %v1144 = vsub.s32 %v1143, 127
        %v1145 = vand.u32 2147483647, %v1076
        %v1146 = vand.u32 %v1145, 8388607
        %v1147 = vor.u32 %v1146, 8388608
        %v1148 = vsub.s32 0, %v1147
        %v1149 = vadd.s32 %v1144, 1
        %vm1150 = vcmp.gt.s32.totalorder %v1149, 0
        %v1151 = vsel %vm1150, %v1149, 0
        %v1152 = vshrl.u32 %v1151, 5
        %v1153 = vand.u32 %v1151, 31
        %v1154 = vsub.s32 32, %v1153
        %v1155 = vshrl.u32 683565275, %v1154
        %v1156 = vshll.u32 683565275, %v1153
        %v1157 = vshrl.u32 2475754826, %v1154
        %v1158 = vor.u32 %v1156, %v1157
        %v1159 = vshll.u32 2475754826, %v1153
        %v1160 = vshrl.u32 2131351028, %v1154
        %v1161 = vor.u32 %v1159, %v1160
        %v1162 = vshll.u32 2131351028, %v1153
        %v1163 = vshrl.u32 2102212464, %v1154
        %v1164 = vor.u32 %v1162, %v1163
        %v1165 = vshll.u32 2102212464, %v1153
        %v1166 = vshrl.u32 920167782, %v1154
        %v1167 = vor.u32 %v1165, %v1166
        %v1168 = vshll.u32 920167782, %v1153
        %v1169 = vshrl.u32 1326507024, %v1154
        %v1170 = vor.u32 %v1168, %v1169
        %vm1171 = vcmp.lt.s32.totalorder %v1152, 1
        %vm1172 = vcmp.lt.s32.totalorder %v1152, 2
        %vm1173 = vcmp.lt.s32.totalorder %v1152, 3
        %vm1174 = vcmp.lt.s32.totalorder %v1152, 4
        %v1175 = vsel %vm1171, %v1155, %v1158
        %v1176 = vsel %vm1174, %v1164, 2102212464
        %v1177 = vsel %vm1173, %v1161, %v1176
        %v1178 = vsel %vm1172, %v1175, %v1177
        %v1179 = vsel %vm1171, %v1158, %v1161
        %v1180 = vsel %vm1174, %v1167, 920167782
        %v1181 = vsel %vm1173, %v1164, %v1180
        %v1182 = vsel %vm1172, %v1179, %v1181
        %v1183 = vsel %vm1171, %v1161, %v1164
        %v1184 = vsel %vm1174, %v1170, 1326507024
        %v1185 = vsel %vm1173, %v1167, %v1184
        %v1186 = vsel %vm1172, %v1183, %v1185
        %v1187 = vshll.u32 %v1147, 8
        %v1188 = vmul.u32.u64.compose %v1187, %v1186
        %v1189 = vextract.low.u32 %v1188
        %v1190 = vextract.high.u32 %v1188
        %v1191 = vmul.u32.u64.compose %v1187, %v1182
        %v1192 = vextract.low.u32 %v1191
        %v1193 = vextract.high.u32 %v1191
        %v1194 = vmul.u32 %v1187, %v1178
        %v1195 = vadd.s32 %v1190, %v1192
        %vm1196 = vc.u32 %v1190, %v1192
        %v1197 = vadd.s32 %v1193, 1
        %v1198 = vsel %vm1196, %v1197, %v1193
        %v1199 = vadd.s32 %v1194, %v1198
        %v1200 = vadd.s32 %v1199, 536870912
        %v1201 = vshrl.u32 %v1200, 30
        %v1202 = vshll.u32 %v1201, 30
        %v1203 = vsub.s32 %v1199, %v1202
        %vm1204 = vcmp.lt.s32.totalorder %v1203, 0
        %v1205 = vsub.s32 0, %v1203
        %v1206 = vsel %vm1204, %v1205, %v1203
        %v1207 = vclz %v1206
        %v1208 = vsub.s32 %v1207, 2
        %vm1209 = vcmp.gt.s32.totalorder 0, %v1208
        %v1210 = vsel %vm1209, 0, %v1208
        %v1211 = vsub.s32 32, %v1210
        %v1212 = vshll.u32 %v1203, %v1210
        %v1213 = vshrl.u32 %v1195, %v1211
        %v1214 = vor.u32 %v1212, %v1213
        %v1215 = vsub.s32 4294967266, %v1210
        %v1216 = vadd.s32 %v1215, 127
        %v1217 = vshll.u32 %v1216, 23
        %v1218 = vor.u32 4788187, %v1217
        %v1219 = vand.u32 2147483647, %v1218
        %v1221 = vcvt.s32.f32 %v1214
        %v1222 = vmul.f32 %v1221, %v1219
        %v1223 = vxor.u32 %v1222, 2147483648
        %v1224 = vsel %vm1141, %v1223, %v1222
        %v1225 = vsub.s32 4, %v1201
        %v1226 = vsel %vm1141, %v1225, %v1201
        %v1227 = vsel %vm1140, %v1076, %v1224
        %v1228 = vsel %vm1140, 0, %v1226
        %v1229 = vcosq.f32.pop %v1227
        %v1230 = vsinq.f32.pop %v1227
        %vm1231 = vweird.f32 %v1076
        %v1232 = vadd.s32 %v1228, 3
        %v1233 = vand.u32 %v1232, 3
        %vm1234 = vcmp.lt.s32.totalorder %v1233, 2
        %vm1235 = vcmp.eq.s32.totalorder %v1233, 0
        %v1236 = vxor.u32 %v1230, 2147483648
        %v1237 = vsel %vm1235, %v1229, %v1236
        %vm1238 = vcmp.eq.s32.totalorder %v1233, 2
        %v1239 = vxor.u32 %v1229, 2147483648
        %v1240 = vsel %vm1238, %v1239, %v1230
        %v1241 = vsel %vm1234, %v1237, %v1240
        %v1242 = vsel %vm1231, nan, %v1241
        %v1243 = vand.u32 2147483647, %v1077
        %vm1244 = vcmp.le.f32.partialorder %v1243, 0.7853982
        %vm1245 = vcmp.lt.s32.totalorder %v1077, 0
        %v1246 = vand.u32 %v1077, 2139095040
        %v1247 = vshrl.u32 %v1246, 23
        %v1248 = vsub.s32 %v1247, 127
        %v1249 = vand.u32 2147483647, %v1077
        %v1250 = vand.u32 %v1249, 8388607
        %v1251 = vor.u32 %v1250, 8388608
        %v1252 = vsub.s32 0, %v1251
        %v1253 = vadd.s32 %v1248, 1
        %vm1254 = vcmp.gt.s32.totalorder %v1253, 0
        %v1255 = vsel %vm1254, %v1253, 0
        %v1256 = vshrl.u32 %v1255, 5
        %v1257 = vand.u32 %v1255, 31
        %v1258 = vsub.s32 32, %v1257
        %v1259 = vshrl.u32 683565275, %v1258
        %v1260 = vshll.u32 683565275, %v1257
        %v1261 = vshrl.u32 2475754826, %v1258
        %v1262 = vor.u32 %v1260, %v1261
        %v1263 = vshll.u32 2475754826, %v1257
        %v1264 = vshrl.u32 2131351028, %v1258
        %v1265 = vor.u32 %v1263, %v1264
        %v1266 = vshll.u32 2131351028, %v1257
        %v1267 = vshrl.u32 2102212464, %v1258
        %v1268 = vor.u32 %v1266, %v1267
        %v1269 = vshll.u32 2102212464, %v1257
        %v1270 = vshrl.u32 920167782, %v1258
        %v1271 = vor.u32 %v1269, %v1270
        %v1272 = vshll.u32 920167782, %v1257
        %v1273 = vshrl.u32 1326507024, %v1258
        %v1274 = vor.u32 %v1272, %v1273
        %vm1275 = vcmp.lt.s32.totalorder %v1256, 1
        %vm1276 = vcmp.lt.s32.totalorder %v1256, 2
        %vm1277 = vcmp.lt.s32.totalorder %v1256, 3
        %vm1278 = vcmp.lt.s32.totalorder %v1256, 4
        %v1279 = vsel %vm1275, %v1259, %v1262
        %v1280 = vsel %vm1278, %v1268, 2102212464
        %v1281 = vsel %vm1277, %v1265, %v1280
        %v1282 = vsel %vm1276, %v1279, %v1281
        %v1283 = vsel %vm1275, %v1262, %v1265
        %v1284 = vsel %vm1278, %v1271, 920167782
        %v1285 = vsel %vm1277, %v1268, %v1284
        %v1286 = vsel %vm1276, %v1283, %v1285
        %v1287 = vsel %vm1275, %v1265, %v1268
        %v1288 = vsel %vm1278, %v1274, 1326507024
        %v1289 = vsel %vm1277, %v1271, %v1288
        %v1290 = vsel %vm1276, %v1287, %v1289
        %v1291 = vshll.u32 %v1251, 8
        %v1292 = vmul.u32.u64.compose %v1291, %v1290
        %v1293 = vextract.low.u32 %v1292
        %v1294 = vextract.high.u32 %v1292
        %v1295 = vmul.u32.u64.compose %v1291, %v1286
        %v1296 = vextract.low.u32 %v1295
        %v1297 = vextract.high.u32 %v1295
        %v1298 = vmul.u32 %v1291, %v1282
        %v1299 = vadd.s32 %v1294, %v1296
        %vm1300 = vc.u32 %v1294, %v1296
        %v1301 = vadd.s32 %v1297, 1
        %v1302 = vsel %vm1300, %v1301, %v1297
        %v1303 = vadd.s32 %v1298, %v1302
        %v1304 = vadd.s32 %v1303, 536870912
        %v1305 = vshrl.u32 %v1304, 30
        %v1306 = vshll.u32 %v1305, 30
        %v1307 = vsub.s32 %v1303, %v1306
        %vm1308 = vcmp.lt.s32.totalorder %v1307, 0
        %v1309 = vsub.s32 0, %v1307
        %v1310 = vsel %vm1308, %v1309, %v1307
        %v1311 = vclz %v1310
        %v1312 = vsub.s32 %v1311, 2
        %vm1313 = vcmp.gt.s32.totalorder 0, %v1312
        %v1314 = vsel %vm1313, 0, %v1312
        %v1315 = vsub.s32 32, %v1314
        %v1316 = vshll.u32 %v1307, %v1314
        %v1317 = vshrl.u32 %v1299, %v1315
        %v1318 = vor.u32 %v1316, %v1317
        %v1319 = vsub.s32 4294967266, %v1314
        %v1320 = vadd.s32 %v1319, 127
        %v1321 = vshll.u32 %v1320, 23
        %v1322 = vor.u32 4788187, %v1321
        %v1323 = vand.u32 2147483647, %v1322
        %v1325 = vcvt.s32.f32 %v1318
        %v1326 = vmul.f32 %v1325, %v1323
        %v1327 = vxor.u32 %v1326, 2147483648
        %v1328 = vsel %vm1245, %v1327, %v1326
        %v1329 = vsub.s32 4, %v1305
        %v1330 = vsel %vm1245, %v1329, %v1305
        %v1331 = vsel %vm1244, %v1077, %v1328
        %v1332 = vsel %vm1244, 0, %v1330
        %v1333 = vcosq.f32.pop %v1331
        %v1334 = vsinq.f32.pop %v1331
        %vm1335 = vweird.f32 %v1077
        %v1336 = vadd.s32 %v1332, 3
        %v1337 = vand.u32 %v1336, 3
        %vm1338 = vcmp.lt.s32.totalorder %v1337, 2
        %vm1339 = vcmp.eq.s32.totalorder %v1337, 0
        %v1340 = vxor.u32 %v1334, 2147483648
        %v1341 = vsel %vm1339, %v1333, %v1340
        %vm1342 = vcmp.eq.s32.totalorder %v1337, 2
        %v1343 = vxor.u32 %v1333, 2147483648
        %v1344 = vsel %vm1342, %v1343, %v1334
        %v1345 = vsel %vm1338, %v1341, %v1344
        %v1346 = vsel %vm1335, nan, %v1345
        %v1347 = vand.u32 2147483647, %v1078
        %vm1348 = vcmp.le.f32.partialorder %v1347, 0.7853982
        %vm1349 = vcmp.lt.s32.totalorder %v1078, 0
        %v1350 = vand.u32 %v1078, 2139095040
        %v1351 = vshrl.u32 %v1350, 23
        %v1352 = vsub.s32 %v1351, 127
        %v1353 = vand.u32 2147483647, %v1078
        %v1354 = vand.u32 %v1353, 8388607
        %v1355 = vor.u32 %v1354, 8388608
        %v1356 = vsub.s32 0, %v1355
        %v1357 = vadd.s32 %v1352, 1
        %vm1358 = vcmp.gt.s32.totalorder %v1357, 0
        %v1359 = vsel %vm1358, %v1357, 0
        %v1360 = vshrl.u32 %v1359, 5
        %v1361 = vand.u32 %v1359, 31
        %v1362 = vsub.s32 32, %v1361
        %v1363 = vshrl.u32 683565275, %v1362
        %v1364 = vshll.u32 683565275, %v1361
        %v1365 = vshrl.u32 2475754826, %v1362
        %v1366 = vor.u32 %v1364, %v1365
        %v1367 = vshll.u32 2475754826, %v1361
        %v1368 = vshrl.u32 2131351028, %v1362
        %v1369 = vor.u32 %v1367, %v1368
        %v1370 = vshll.u32 2131351028, %v1361
        %v1371 = vshrl.u32 2102212464, %v1362
        %v1372 = vor.u32 %v1370, %v1371
        %v1373 = vshll.u32 2102212464, %v1361
        %v1374 = vshrl.u32 920167782, %v1362
        %v1375 = vor.u32 %v1373, %v1374
        %v1376 = vshll.u32 920167782, %v1361
        %v1377 = vshrl.u32 1326507024, %v1362
        %v1378 = vor.u32 %v1376, %v1377
        %vm1379 = vcmp.lt.s32.totalorder %v1360, 1
        %vm1380 = vcmp.lt.s32.totalorder %v1360, 2
        %vm1381 = vcmp.lt.s32.totalorder %v1360, 3
        %vm1382 = vcmp.lt.s32.totalorder %v1360, 4
        %v1383 = vsel %vm1379, %v1363, %v1366
        %v1384 = vsel %vm1382, %v1372, 2102212464
        %v1385 = vsel %vm1381, %v1369, %v1384
        %v1386 = vsel %vm1380, %v1383, %v1385
        %v1387 = vsel %vm1379, %v1366, %v1369
        %v1388 = vsel %vm1382, %v1375, 920167782
        %v1389 = vsel %vm1381, %v1372, %v1388
        %v1390 = vsel %vm1380, %v1387, %v1389
        %v1391 = vsel %vm1379, %v1369, %v1372
        %v1392 = vsel %vm1382, %v1378, 1326507024
        %v1393 = vsel %vm1381, %v1375, %v1392
        %v1394 = vsel %vm1380, %v1391, %v1393
        %v1395 = vshll.u32 %v1355, 8
        %v1396 = vmul.u32.u64.compose %v1395, %v1394
        %v1397 = vextract.low.u32 %v1396
        %v1398 = vextract.high.u32 %v1396
        %v1399 = vmul.u32.u64.compose %v1395, %v1390
        %v1400 = vextract.low.u32 %v1399
        %v1401 = vextract.high.u32 %v1399
        %v1402 = vmul.u32 %v1395, %v1386
        %v1403 = vadd.s32 %v1398, %v1400
        %vm1404 = vc.u32 %v1398, %v1400
        %v1405 = vadd.s32 %v1401, 1
        %v1406 = vsel %vm1404, %v1405, %v1401
        %v1407 = vadd.s32 %v1402, %v1406
        %v1408 = vadd.s32 %v1407, 536870912
        %v1409 = vshrl.u32 %v1408, 30
        %v1410 = vshll.u32 %v1409, 30
        %v1411 = vsub.s32 %v1407, %v1410
        %vm1412 = vcmp.lt.s32.totalorder %v1411, 0
        %v1413 = vsub.s32 0, %v1411
        %v1414 = vsel %vm1412, %v1413, %v1411
        %v1415 = vclz %v1414
        %v1416 = vsub.s32 %v1415, 2
        %vm1417 = vcmp.gt.s32.totalorder 0, %v1416
        %v1418 = vsel %vm1417, 0, %v1416
        %v1419 = vsub.s32 32, %v1418
        %v1420 = vshll.u32 %v1411, %v1418
        %v1421 = vshrl.u32 %v1403, %v1419
        %v1422 = vor.u32 %v1420, %v1421
        %v1423 = vsub.s32 4294967266, %v1418
        %v1424 = vadd.s32 %v1423, 127
        %v1425 = vshll.u32 %v1424, 23
        %v1426 = vor.u32 4788187, %v1425
        %v1427 = vand.u32 2147483647, %v1426
        %v1429 = vcvt.s32.f32 %v1422
        %v1430 = vmul.f32 %v1429, %v1427
        %v1431 = vxor.u32 %v1430, 2147483648
        %v1432 = vsel %vm1349, %v1431, %v1430
        %v1433 = vsub.s32 4, %v1409
        %v1434 = vsel %vm1349, %v1433, %v1409
        %v1435 = vsel %vm1348, %v1078, %v1432
        %v1436 = vsel %vm1348, 0, %v1434
        %v1437 = vcosq.f32.pop %v1435
        %v1438 = vsinq.f32.pop %v1435
        %vm1439 = vweird.f32 %v1078
        %v1440 = vadd.s32 %v1436, 3
        %v1441 = vand.u32 %v1440, 3
        %vm1442 = vcmp.lt.s32.totalorder %v1441, 2
        %vm1443 = vcmp.eq.s32.totalorder %v1441, 0
        %v1444 = vxor.u32 %v1438, 2147483648
        %v1445 = vsel %vm1443, %v1437, %v1444
        %vm1446 = vcmp.eq.s32.totalorder %v1441, 2
        %v1447 = vxor.u32 %v1437, 2147483648
        %v1448 = vsel %vm1446, %v1447, %v1438
        %v1449 = vsel %vm1442, %v1445, %v1448
        %v1450 = vsel %vm1439, nan, %v1449
        %v1451 = vand.u32 2147483647, %v1079
        %vm1452 = vcmp.le.f32.partialorder %v1451, 0.7853982
        %vm1453 = vcmp.lt.s32.totalorder %v1079, 0
        %v1454 = vand.u32 %v1079, 2139095040
        %v1455 = vshrl.u32 %v1454, 23
        %v1456 = vsub.s32 %v1455, 127
        %v1457 = vand.u32 2147483647, %v1079
        %v1458 = vand.u32 %v1457, 8388607
        %v1459 = vor.u32 %v1458, 8388608
        %v1460 = vsub.s32 0, %v1459
        %v1461 = vadd.s32 %v1456, 1
        %vm1462 = vcmp.gt.s32.totalorder %v1461, 0
        %v1463 = vsel %vm1462, %v1461, 0
        %v1464 = vshrl.u32 %v1463, 5
        %v1465 = vand.u32 %v1463, 31
        %v1466 = vsub.s32 32, %v1465
        %v1467 = vshrl.u32 683565275, %v1466
        %v1468 = vshll.u32 683565275, %v1465
        %v1469 = vshrl.u32 2475754826, %v1466
        %v1470 = vor.u32 %v1468, %v1469
        %v1471 = vshll.u32 2475754826, %v1465
        %v1472 = vshrl.u32 2131351028, %v1466
        %v1473 = vor.u32 %v1471, %v1472
        %v1474 = vshll.u32 2131351028, %v1465
        %v1475 = vshrl.u32 2102212464, %v1466
        %v1476 = vor.u32 %v1474, %v1475
        %v1477 = vshll.u32 2102212464, %v1465
        %v1478 = vshrl.u32 920167782, %v1466
        %v1479 = vor.u32 %v1477, %v1478
        %v1480 = vshll.u32 920167782, %v1465
        %v1481 = vshrl.u32 1326507024, %v1466
        %v1482 = vor.u32 %v1480, %v1481
        %vm1483 = vcmp.lt.s32.totalorder %v1464, 1
        %vm1484 = vcmp.lt.s32.totalorder %v1464, 2
        %vm1485 = vcmp.lt.s32.totalorder %v1464, 3
        %vm1486 = vcmp.lt.s32.totalorder %v1464, 4
        %v1487 = vsel %vm1483, %v1467, %v1470
        %v1488 = vsel %vm1486, %v1476, 2102212464
        %v1489 = vsel %vm1485, %v1473, %v1488
        %v1490 = vsel %vm1484, %v1487, %v1489
        %v1491 = vsel %vm1483, %v1470, %v1473
        %v1492 = vsel %vm1486, %v1479, 920167782
        %v1493 = vsel %vm1485, %v1476, %v1492
        %v1494 = vsel %vm1484, %v1491, %v1493
        %v1495 = vsel %vm1483, %v1473, %v1476
        %v1496 = vsel %vm1486, %v1482, 1326507024
        %v1497 = vsel %vm1485, %v1479, %v1496
        %v1498 = vsel %vm1484, %v1495, %v1497
        %v1499 = vshll.u32 %v1459, 8
        %v1500 = vmul.u32.u64.compose %v1499, %v1498
        %v1501 = vextract.low.u32 %v1500
        %v1502 = vextract.high.u32 %v1500
        %v1503 = vmul.u32.u64.compose %v1499, %v1494
        %v1504 = vextract.low.u32 %v1503
        %v1505 = vextract.high.u32 %v1503
        %v1506 = vmul.u32 %v1499, %v1490
        %v1507 = vadd.s32 %v1502, %v1504
        %vm1508 = vc.u32 %v1502, %v1504
        %v1509 = vadd.s32 %v1505, 1
        %v1510 = vsel %vm1508, %v1509, %v1505
        %v1511 = vadd.s32 %v1506, %v1510
        %v1512 = vadd.s32 %v1511, 536870912
        %v1513 = vshrl.u32 %v1512, 30
        %v1514 = vshll.u32 %v1513, 30
        %v1515 = vsub.s32 %v1511, %v1514
        %vm1516 = vcmp.lt.s32.totalorder %v1515, 0
        %v1517 = vsub.s32 0, %v1515
        %v1518 = vsel %vm1516, %v1517, %v1515
        %v1519 = vclz %v1518
        %v1520 = vsub.s32 %v1519, 2
        %vm1521 = vcmp.gt.s32.totalorder 0, %v1520
        %v1522 = vsel %vm1521, 0, %v1520
        %v1523 = vsub.s32 32, %v1522
        %v1524 = vshll.u32 %v1515, %v1522
        %v1525 = vshrl.u32 %v1507, %v1523
        %v1526 = vor.u32 %v1524, %v1525
        %v1527 = vsub.s32 4294967266, %v1522
        %v1528 = vadd.s32 %v1527, 127
        %v1529 = vshll.u32 %v1528, 23
        %v1530 = vor.u32 4788187, %v1529
        %v1531 = vand.u32 2147483647, %v1530
        %v1533 = vcvt.s32.f32 %v1526
        %v1534 = vmul.f32 %v1533, %v1531
        %v1535 = vxor.u32 %v1534, 2147483648
        %v1536 = vsel %vm1453, %v1535, %v1534
        %v1537 = vsub.s32 4, %v1513
        %v1538 = vsel %vm1453, %v1537, %v1513
        %v1539 = vsel %vm1452, %v1079, %v1536
        %v1540 = vsel %vm1452, 0, %v1538
        %v1541 = vcosq.f32.pop %v1539
        %v1542 = vsinq.f32.pop %v1539
        %vm1543 = vweird.f32 %v1079
        %v1544 = vadd.s32 %v1540, 3
        %v1545 = vand.u32 %v1544, 3
        %vm1546 = vcmp.lt.s32.totalorder %v1545, 2
        %vm1547 = vcmp.eq.s32.totalorder %v1545, 0
        %v1548 = vxor.u32 %v1542, 2147483648
        %v1549 = vsel %vm1547, %v1541, %v1548
        %vm1550 = vcmp.eq.s32.totalorder %v1545, 2
        %v1551 = vxor.u32 %v1541, 2147483648
        %v1552 = vsel %vm1550, %v1551, %v1542
        %v1553 = vsel %vm1546, %v1549, %v1552
        %v1554 = vsel %vm1543, nan, %v1553
        %v1555 = vand.u32 2147483647, %v1080
        %vm1556 = vcmp.le.f32.partialorder %v1555, 0.7853982
        %vm1557 = vcmp.lt.s32.totalorder %v1080, 0
        %v1558 = vand.u32 %v1080, 2139095040
        %v1559 = vshrl.u32 %v1558, 23
        %v1560 = vsub.s32 %v1559, 127
        %v1561 = vand.u32 2147483647, %v1080
        %v1562 = vand.u32 %v1561, 8388607
        %v1563 = vor.u32 %v1562, 8388608
        %v1564 = vsub.s32 0, %v1563
        %v1565 = vadd.s32 %v1560, 1
        %vm1566 = vcmp.gt.s32.totalorder %v1565, 0
        %v1567 = vsel %vm1566, %v1565, 0
        %v1568 = vshrl.u32 %v1567, 5
        %v1569 = vand.u32 %v1567, 31
        %v1570 = vsub.s32 32, %v1569
        %v1571 = vshrl.u32 683565275, %v1570
        %v1572 = vshll.u32 683565275, %v1569
        %v1573 = vshrl.u32 2475754826, %v1570
        %v1574 = vor.u32 %v1572, %v1573
        %v1575 = vshll.u32 2475754826, %v1569
        %v1576 = vshrl.u32 2131351028, %v1570
        %v1577 = vor.u32 %v1575, %v1576
        %v1578 = vshll.u32 2131351028, %v1569
        %v1579 = vshrl.u32 2102212464, %v1570
        %v1580 = vor.u32 %v1578, %v1579
        %v1581 = vshll.u32 2102212464, %v1569
        %v1582 = vshrl.u32 920167782, %v1570
        %v1583 = vor.u32 %v1581, %v1582
        %v1584 = vshll.u32 920167782, %v1569
        %v1585 = vshrl.u32 1326507024, %v1570
        %v1586 = vor.u32 %v1584, %v1585
        %vm1587 = vcmp.lt.s32.totalorder %v1568, 1
        %vm1588 = vcmp.lt.s32.totalorder %v1568, 2
        %vm1589 = vcmp.lt.s32.totalorder %v1568, 3
        %vm1590 = vcmp.lt.s32.totalorder %v1568, 4
        %v1591 = vsel %vm1587, %v1571, %v1574
        %v1592 = vsel %vm1590, %v1580, 2102212464
        %v1593 = vsel %vm1589, %v1577, %v1592
        %v1594 = vsel %vm1588, %v1591, %v1593
        %v1595 = vsel %vm1587, %v1574, %v1577
        %v1596 = vsel %vm1590, %v1583, 920167782
        %v1597 = vsel %vm1589, %v1580, %v1596
        %v1598 = vsel %vm1588, %v1595, %v1597
        %v1599 = vsel %vm1587, %v1577, %v1580
        %v1600 = vsel %vm1590, %v1586, 1326507024
        %v1601 = vsel %vm1589, %v1583, %v1600
        %v1602 = vsel %vm1588, %v1599, %v1601
        %v1603 = vshll.u32 %v1563, 8
        %v1604 = vmul.u32.u64.compose %v1603, %v1602
        %v1605 = vextract.low.u32 %v1604
        %v1606 = vextract.high.u32 %v1604
        %v1607 = vmul.u32.u64.compose %v1603, %v1598
        %v1608 = vextract.low.u32 %v1607
        %v1609 = vextract.high.u32 %v1607
        %v1610 = vmul.u32 %v1603, %v1594
        %v1611 = vadd.s32 %v1606, %v1608
        %vm1612 = vc.u32 %v1606, %v1608
        %v1613 = vadd.s32 %v1609, 1
        %v1614 = vsel %vm1612, %v1613, %v1609
        %v1615 = vadd.s32 %v1610, %v1614
        %v1616 = vadd.s32 %v1615, 536870912
        %v1617 = vshrl.u32 %v1616, 30
        %v1618 = vshll.u32 %v1617, 30
        %v1619 = vsub.s32 %v1615, %v1618
        %vm1620 = vcmp.lt.s32.totalorder %v1619, 0
        %v1621 = vsub.s32 0, %v1619
        %v1622 = vsel %vm1620, %v1621, %v1619
        %v1623 = vclz %v1622
        %v1624 = vsub.s32 %v1623, 2
        %vm1625 = vcmp.gt.s32.totalorder 0, %v1624
        %v1626 = vsel %vm1625, 0, %v1624
        %v1627 = vsub.s32 32, %v1626
        %v1628 = vshll.u32 %v1619, %v1626
        %v1629 = vshrl.u32 %v1611, %v1627
        %v1630 = vor.u32 %v1628, %v1629
        %v1631 = vsub.s32 4294967266, %v1626
        %v1632 = vadd.s32 %v1631, 127
        %v1633 = vshll.u32 %v1632, 23
        %v1634 = vor.u32 4788187, %v1633
        %v1635 = vand.u32 2147483647, %v1634
        %v1637 = vcvt.s32.f32 %v1630
        %v1638 = vmul.f32 %v1637, %v1635
        %v1639 = vxor.u32 %v1638, 2147483648
        %v1640 = vsel %vm1557, %v1639, %v1638
        %v1641 = vsub.s32 4, %v1617
        %v1642 = vsel %vm1557, %v1641, %v1617
        %v1643 = vsel %vm1556, %v1080, %v1640
        %v1644 = vsel %vm1556, 0, %v1642
        %v1645 = vcosq.f32.pop %v1643
        %v1646 = vsinq.f32.pop %v1643
        %vm1647 = vweird.f32 %v1080
        %v1648 = vadd.s32 %v1644, 3
        %v1649 = vand.u32 %v1648, 3
        %vm1650 = vcmp.lt.s32.totalorder %v1649, 2
        %vm1651 = vcmp.eq.s32.totalorder %v1649, 0
        %v1652 = vxor.u32 %v1646, 2147483648
        %v1653 = vsel %vm1651, %v1645, %v1652
        %vm1654 = vcmp.eq.s32.totalorder %v1649, 2
        %v1655 = vxor.u32 %v1645, 2147483648
        %v1656 = vsel %vm1654, %v1655, %v1646
        %v1657 = vsel %vm1650, %v1653, %v1656
        %v1658 = vsel %vm1647, nan, %v1657
        %v1659 = vand.u32 2147483647, %v1081
        %vm1660 = vcmp.le.f32.partialorder %v1659, 0.7853982
        %vm1661 = vcmp.lt.s32.totalorder %v1081, 0
        %v1662 = vand.u32 %v1081, 2139095040
        %v1663 = vshrl.u32 %v1662, 23
        %v1664 = vsub.s32 %v1663, 127
        %v1665 = vand.u32 2147483647, %v1081
        %v1666 = vand.u32 %v1665, 8388607
        %v1667 = vor.u32 %v1666, 8388608
        %v1668 = vsub.s32 0, %v1667
        %v1669 = vadd.s32 %v1664, 1
        %vm1670 = vcmp.gt.s32.totalorder %v1669, 0
        %v1671 = vsel %vm1670, %v1669, 0
        %v1672 = vshrl.u32 %v1671, 5
        %v1673 = vand.u32 %v1671, 31
        %v1674 = vsub.s32 32, %v1673
        %v1675 = vshrl.u32 683565275, %v1674
        %v1676 = vshll.u32 683565275, %v1673
        %v1677 = vshrl.u32 2475754826, %v1674
        %v1678 = vor.u32 %v1676, %v1677
        %v1679 = vshll.u32 2475754826, %v1673
        %v1680 = vshrl.u32 2131351028, %v1674
        %v1681 = vor.u32 %v1679, %v1680
        %v1682 = vshll.u32 2131351028, %v1673
        %v1683 = vshrl.u32 2102212464, %v1674
        %v1684 = vor.u32 %v1682, %v1683
        %v1685 = vshll.u32 2102212464, %v1673
        %v1686 = vshrl.u32 920167782, %v1674
        %v1687 = vor.u32 %v1685, %v1686
        %v1688 = vshll.u32 920167782, %v1673
        %v1689 = vshrl.u32 1326507024, %v1674
        %v1690 = vor.u32 %v1688, %v1689
        %vm1691 = vcmp.lt.s32.totalorder %v1672, 1
        %vm1692 = vcmp.lt.s32.totalorder %v1672, 2
        %vm1693 = vcmp.lt.s32.totalorder %v1672, 3
        %vm1694 = vcmp.lt.s32.totalorder %v1672, 4
        %v1695 = vsel %vm1691, %v1675, %v1678
        %v1696 = vsel %vm1694, %v1684, 2102212464
        %v1697 = vsel %vm1693, %v1681, %v1696
        %v1698 = vsel %vm1692, %v1695, %v1697
        %v1699 = vsel %vm1691, %v1678, %v1681
        %v1700 = vsel %vm1694, %v1687, 920167782
        %v1701 = vsel %vm1693, %v1684, %v1700
        %v1702 = vsel %vm1692, %v1699, %v1701
        %v1703 = vsel %vm1691, %v1681, %v1684
        %v1704 = vsel %vm1694, %v1690, 1326507024
        %v1705 = vsel %vm1693, %v1687, %v1704
        %v1706 = vsel %vm1692, %v1703, %v1705
        %v1707 = vshll.u32 %v1667, 8
        %v1708 = vmul.u32.u64.compose %v1707, %v1706
        %v1709 = vextract.low.u32 %v1708
        %v1710 = vextract.high.u32 %v1708
        %v1711 = vmul.u32.u64.compose %v1707, %v1702
        %v1712 = vextract.low.u32 %v1711
        %v1713 = vextract.high.u32 %v1711
        %v1714 = vmul.u32 %v1707, %v1698
        %v1715 = vadd.s32 %v1710, %v1712
        %vm1716 = vc.u32 %v1710, %v1712
        %v1717 = vadd.s32 %v1713, 1
        %v1718 = vsel %vm1716, %v1717, %v1713
        %v1719 = vadd.s32 %v1714, %v1718
        %v1720 = vadd.s32 %v1719, 536870912
        %v1721 = vshrl.u32 %v1720, 30
        %v1722 = vshll.u32 %v1721, 30
        %v1723 = vsub.s32 %v1719, %v1722
        %vm1724 = vcmp.lt.s32.totalorder %v1723, 0
        %v1725 = vsub.s32 0, %v1723
        %v1726 = vsel %vm1724, %v1725, %v1723
        %v1727 = vclz %v1726
        %v1728 = vsub.s32 %v1727, 2
        %vm1729 = vcmp.gt.s32.totalorder 0, %v1728
        %v1730 = vsel %vm1729, 0, %v1728
        %v1731 = vsub.s32 32, %v1730
        %v1732 = vshll.u32 %v1723, %v1730
        %v1733 = vshrl.u32 %v1715, %v1731
        %v1734 = vor.u32 %v1732, %v1733
        %v1735 = vsub.s32 4294967266, %v1730
        %v1736 = vadd.s32 %v1735, 127
        %v1737 = vshll.u32 %v1736, 23
        %v1738 = vor.u32 4788187, %v1737
        %v1739 = vand.u32 2147483647, %v1738
        %v1741 = vcvt.s32.f32 %v1734
        %v1742 = vmul.f32 %v1741, %v1739
        %v1743 = vxor.u32 %v1742, 2147483648
        %v1744 = vsel %vm1661, %v1743, %v1742
        %v1745 = vsub.s32 4, %v1721
        %v1746 = vsel %vm1661, %v1745, %v1721
        %v1747 = vsel %vm1660, %v1081, %v1744
        %v1748 = vsel %vm1660, 0, %v1746
        %v1749 = vcosq.f32.pop %v1747
        %v1750 = vsinq.f32.pop %v1747
        %vm1751 = vweird.f32 %v1081
        %v1752 = vadd.s32 %v1748, 3
        %v1753 = vand.u32 %v1752, 3
        %vm1754 = vcmp.lt.s32.totalorder %v1753, 2
        %vm1755 = vcmp.eq.s32.totalorder %v1753, 0
        %v1756 = vxor.u32 %v1750, 2147483648
        %v1757 = vsel %vm1755, %v1749, %v1756
        %vm1758 = vcmp.eq.s32.totalorder %v1753, 2
        %v1759 = vxor.u32 %v1749, 2147483648
        %v1760 = vsel %vm1758, %v1759, %v1750
        %v1761 = vsel %vm1754, %v1757, %v1760
        %v1762 = vsel %vm1751, nan, %v1761
        %v1763 = vand.u32 2147483647, %v1082
        %vm1764 = vcmp.le.f32.partialorder %v1763, 0.7853982
        %vm1765 = vcmp.lt.s32.totalorder %v1082, 0
        %v1766 = vand.u32 %v1082, 2139095040
        %v1767 = vshrl.u32 %v1766, 23
        %v1768 = vsub.s32 %v1767, 127
        %v1769 = vand.u32 2147483647, %v1082
        %v1770 = vand.u32 %v1769, 8388607
        %v1771 = vor.u32 %v1770, 8388608
        %v1772 = vsub.s32 0, %v1771
        %v1773 = vadd.s32 %v1768, 1
        %vm1774 = vcmp.gt.s32.totalorder %v1773, 0
        %v1775 = vsel %vm1774, %v1773, 0
        %v1776 = vshrl.u32 %v1775, 5
        %v1777 = vand.u32 %v1775, 31
        %v1778 = vsub.s32 32, %v1777
        %v1779 = vshrl.u32 683565275, %v1778
        %v1780 = vshll.u32 683565275, %v1777
        %v1781 = vshrl.u32 2475754826, %v1778
        %v1782 = vor.u32 %v1780, %v1781
        %v1783 = vshll.u32 2475754826, %v1777
        %v1784 = vshrl.u32 2131351028, %v1778
        %v1785 = vor.u32 %v1783, %v1784
        %v1786 = vshll.u32 2131351028, %v1777
        %v1787 = vshrl.u32 2102212464, %v1778
        %v1788 = vor.u32 %v1786, %v1787
        %v1789 = vshll.u32 2102212464, %v1777
        %v1790 = vshrl.u32 920167782, %v1778
        %v1791 = vor.u32 %v1789, %v1790
        %v1792 = vshll.u32 920167782, %v1777
        %v1793 = vshrl.u32 1326507024, %v1778
        %v1794 = vor.u32 %v1792, %v1793
        %vm1795 = vcmp.lt.s32.totalorder %v1776, 1
        %vm1796 = vcmp.lt.s32.totalorder %v1776, 2
        %vm1797 = vcmp.lt.s32.totalorder %v1776, 3
        %vm1798 = vcmp.lt.s32.totalorder %v1776, 4
        %v1799 = vsel %vm1795, %v1779, %v1782
        %v1800 = vsel %vm1798, %v1788, 2102212464
        %v1801 = vsel %vm1797, %v1785, %v1800
        %v1802 = vsel %vm1796, %v1799, %v1801
        %v1803 = vsel %vm1795, %v1782, %v1785
        %v1804 = vsel %vm1798, %v1791, 920167782
        %v1805 = vsel %vm1797, %v1788, %v1804
        %v1806 = vsel %vm1796, %v1803, %v1805
        %v1807 = vsel %vm1795, %v1785, %v1788
        %v1808 = vsel %vm1798, %v1794, 1326507024
        %v1809 = vsel %vm1797, %v1791, %v1808
        %v1810 = vsel %vm1796, %v1807, %v1809
        %v1811 = vshll.u32 %v1771, 8
        %v1812 = vmul.u32.u64.compose %v1811, %v1810
        %v1813 = vextract.low.u32 %v1812
        %v1814 = vextract.high.u32 %v1812
        %v1815 = vmul.u32.u64.compose %v1811, %v1806
        %v1816 = vextract.low.u32 %v1815
        %v1817 = vextract.high.u32 %v1815
        %v1818 = vmul.u32 %v1811, %v1802
        %v1819 = vadd.s32 %v1814, %v1816
        %vm1820 = vc.u32 %v1814, %v1816
        %v1821 = vadd.s32 %v1817, 1
        %v1822 = vsel %vm1820, %v1821, %v1817
        %v1823 = vadd.s32 %v1818, %v1822
        %v1824 = vadd.s32 %v1823, 536870912
        %v1825 = vshrl.u32 %v1824, 30
        %v1826 = vshll.u32 %v1825, 30
        %v1827 = vsub.s32 %v1823, %v1826
        %vm1828 = vcmp.lt.s32.totalorder %v1827, 0
        %v1829 = vsub.s32 0, %v1827
        %v1830 = vsel %vm1828, %v1829, %v1827
        %v1831 = vclz %v1830
        %v1832 = vsub.s32 %v1831, 2
        %vm1833 = vcmp.gt.s32.totalorder 0, %v1832
        %v1834 = vsel %vm1833, 0, %v1832
        %v1835 = vsub.s32 32, %v1834
        %v1836 = vshll.u32 %v1827, %v1834
        %v1837 = vshrl.u32 %v1819, %v1835
        %v1838 = vor.u32 %v1836, %v1837
        %v1839 = vsub.s32 4294967266, %v1834
        %v1840 = vadd.s32 %v1839, 127
        %v1841 = vshll.u32 %v1840, 23
        %v1842 = vor.u32 4788187, %v1841
        %v1843 = vand.u32 2147483647, %v1842
        %v1845 = vcvt.s32.f32 %v1838
        %v1846 = vmul.f32 %v1845, %v1843
        %v1847 = vxor.u32 %v1846, 2147483648
        %v1848 = vsel %vm1765, %v1847, %v1846
        %v1849 = vsub.s32 4, %v1825
        %v1850 = vsel %vm1765, %v1849, %v1825
        %v1851 = vsel %vm1764, %v1082, %v1848
        %v1852 = vsel %vm1764, 0, %v1850
        %v1853 = vcosq.f32.pop %v1851
        %v1854 = vsinq.f32.pop %v1851
        %vm1855 = vweird.f32 %v1082
        %v1856 = vadd.s32 %v1852, 3
        %v1857 = vand.u32 %v1856, 3
        %vm1858 = vcmp.lt.s32.totalorder %v1857, 2
        %vm1859 = vcmp.eq.s32.totalorder %v1857, 0
        %v1860 = vxor.u32 %v1854, 2147483648
        %v1861 = vsel %vm1859, %v1853, %v1860
        %vm1862 = vcmp.eq.s32.totalorder %v1857, 2
        %v1863 = vxor.u32 %v1853, 2147483648
        %v1864 = vsel %vm1862, %v1863, %v1854
        %v1865 = vsel %vm1858, %v1861, %v1864
        %v1866 = vsel %vm1855, nan, %v1865
        %v1867 = vand.u32 2147483647, %v1083
        %vm1868 = vcmp.le.f32.partialorder %v1867, 0.7853982
        %vm1869 = vcmp.lt.s32.totalorder %v1083, 0
        %v1870 = vand.u32 %v1083, 2139095040
        %v1871 = vshrl.u32 %v1870, 23
        %v1872 = vsub.s32 %v1871, 127
        %v1873 = vand.u32 2147483647, %v1083
        %v1874 = vand.u32 %v1873, 8388607
        %v1875 = vor.u32 %v1874, 8388608
        %v1876 = vsub.s32 0, %v1875
        %v1877 = vadd.s32 %v1872, 1
        %vm1878 = vcmp.gt.s32.totalorder %v1877, 0
        %v1879 = vsel %vm1878, %v1877, 0
        %v1880 = vshrl.u32 %v1879, 5
        %v1881 = vand.u32 %v1879, 31
        %v1882 = vsub.s32 32, %v1881
        %v1883 = vshrl.u32 683565275, %v1882
        %v1884 = vshll.u32 683565275, %v1881
        %v1885 = vshrl.u32 2475754826, %v1882
        %v1886 = vor.u32 %v1884, %v1885
        %v1887 = vshll.u32 2475754826, %v1881
        %v1888 = vshrl.u32 2131351028, %v1882
        %v1889 = vor.u32 %v1887, %v1888
        %v1890 = vshll.u32 2131351028, %v1881
        %v1891 = vshrl.u32 2102212464, %v1882
        %v1892 = vor.u32 %v1890, %v1891
        %v1893 = vshll.u32 2102212464, %v1881
        %v1894 = vshrl.u32 920167782, %v1882
        %v1895 = vor.u32 %v1893, %v1894
        %v1896 = vshll.u32 920167782, %v1881
        %v1897 = vshrl.u32 1326507024, %v1882
        %v1898 = vor.u32 %v1896, %v1897
        %vm1899 = vcmp.lt.s32.totalorder %v1880, 1
        %vm1900 = vcmp.lt.s32.totalorder %v1880, 2
        %vm1901 = vcmp.lt.s32.totalorder %v1880, 3
        %vm1902 = vcmp.lt.s32.totalorder %v1880, 4
        %v1903 = vsel %vm1899, %v1883, %v1886
        %v1904 = vsel %vm1902, %v1892, 2102212464
        %v1905 = vsel %vm1901, %v1889, %v1904
        %v1906 = vsel %vm1900, %v1903, %v1905
        %v1907 = vsel %vm1899, %v1886, %v1889
        %v1908 = vsel %vm1902, %v1895, 920167782
        %v1909 = vsel %vm1901, %v1892, %v1908
        %v1910 = vsel %vm1900, %v1907, %v1909
        %v1911 = vsel %vm1899, %v1889, %v1892
        %v1912 = vsel %vm1902, %v1898, 1326507024
        %v1913 = vsel %vm1901, %v1895, %v1912
        %v1914 = vsel %vm1900, %v1911, %v1913
        %v1915 = vshll.u32 %v1875, 8
        %v1916 = vmul.u32.u64.compose %v1915, %v1914
        %v1917 = vextract.low.u32 %v1916
        %v1918 = vextract.high.u32 %v1916
        %v1919 = vmul.u32.u64.compose %v1915, %v1910
        %v1920 = vextract.low.u32 %v1919
        %v1921 = vextract.high.u32 %v1919
        %v1922 = vmul.u32 %v1915, %v1906
        %v1923 = vadd.s32 %v1918, %v1920
        %vm1924 = vc.u32 %v1918, %v1920
        %v1925 = vadd.s32 %v1921, 1
        %v1926 = vsel %vm1924, %v1925, %v1921
        %v1927 = vadd.s32 %v1922, %v1926
        %v1928 = vadd.s32 %v1927, 536870912
        %v1929 = vshrl.u32 %v1928, 30
        %v1930 = vshll.u32 %v1929, 30
        %v1931 = vsub.s32 %v1927, %v1930
        %vm1932 = vcmp.lt.s32.totalorder %v1931, 0
        %v1933 = vsub.s32 0, %v1931
        %v1934 = vsel %vm1932, %v1933, %v1931
        %v1935 = vclz %v1934
        %v1936 = vsub.s32 %v1935, 2
        %vm1937 = vcmp.gt.s32.totalorder 0, %v1936
        %v1938 = vsel %vm1937, 0, %v1936
        %v1939 = vsub.s32 32, %v1938
        %v1940 = vshll.u32 %v1931, %v1938
        %v1941 = vshrl.u32 %v1923, %v1939
        %v1942 = vor.u32 %v1940, %v1941
        %v1943 = vsub.s32 4294967266, %v1938
        %v1944 = vadd.s32 %v1943, 127
        %v1945 = vshll.u32 %v1944, 23
        %v1946 = vor.u32 4788187, %v1945
        %v1947 = vand.u32 2147483647, %v1946
        %v1949 = vcvt.s32.f32 %v1942
        %v1950 = vmul.f32 %v1949, %v1947
        %v1951 = vxor.u32 %v1950, 2147483648
        %v1952 = vsel %vm1869, %v1951, %v1950
        %v1953 = vsub.s32 4, %v1929
        %v1954 = vsel %vm1869, %v1953, %v1929
        %v1955 = vsel %vm1868, %v1083, %v1952
        %v1956 = vsel %vm1868, 0, %v1954
        %v1957 = vcosq.f32.pop %v1955
        %v1958 = vsinq.f32.pop %v1955
        %vm1959 = vweird.f32 %v1083
        %v1960 = vadd.s32 %v1956, 3
        %v1961 = vand.u32 %v1960, 3
        %vm1962 = vcmp.lt.s32.totalorder %v1961, 2
        %vm1963 = vcmp.eq.s32.totalorder %v1961, 0
        %v1964 = vxor.u32 %v1958, 2147483648
        %v1965 = vsel %vm1963, %v1957, %v1964
        %vm1966 = vcmp.eq.s32.totalorder %v1961, 2
        %v1967 = vxor.u32 %v1957, 2147483648
        %v1968 = vsel %vm1966, %v1967, %v1958
        %v1969 = vsel %vm1962, %v1965, %v1968
        %v1970 = vsel %vm1959, nan, %v1969
        %v1971 = vand.u32 2147483647, %v1084
        %vm1972 = vcmp.le.f32.partialorder %v1971, 0.7853982
        %vm1973 = vcmp.lt.s32.totalorder %v1084, 0
        %v1974 = vand.u32 %v1084, 2139095040
        %v1975 = vshrl.u32 %v1974, 23
        %v1976 = vsub.s32 %v1975, 127
        %v1977 = vand.u32 2147483647, %v1084
        %v1978 = vand.u32 %v1977, 8388607
        %v1979 = vor.u32 %v1978, 8388608
        %v1980 = vsub.s32 0, %v1979
        %v1981 = vadd.s32 %v1976, 1
        %vm1982 = vcmp.gt.s32.totalorder %v1981, 0
        %v1983 = vsel %vm1982, %v1981, 0
        %v1984 = vshrl.u32 %v1983, 5
        %v1985 = vand.u32 %v1983, 31
        %v1986 = vsub.s32 32, %v1985
        %v1987 = vshrl.u32 683565275, %v1986
        %v1988 = vshll.u32 683565275, %v1985
        %v1989 = vshrl.u32 2475754826, %v1986
        %v1990 = vor.u32 %v1988, %v1989
        %v1991 = vshll.u32 2475754826, %v1985
        %v1992 = vshrl.u32 2131351028, %v1986
        %v1993 = vor.u32 %v1991, %v1992
        %v1994 = vshll.u32 2131351028, %v1985
        %v1995 = vshrl.u32 2102212464, %v1986
        %v1996 = vor.u32 %v1994, %v1995
        %v1997 = vshll.u32 2102212464, %v1985
        %v1998 = vshrl.u32 920167782, %v1986
        %v1999 = vor.u32 %v1997, %v1998
        %v2000 = vshll.u32 920167782, %v1985
        %v2001 = vshrl.u32 1326507024, %v1986
        %v2002 = vor.u32 %v2000, %v2001
        %vm2003 = vcmp.lt.s32.totalorder %v1984, 1
        %vm2004 = vcmp.lt.s32.totalorder %v1984, 2
        %vm2005 = vcmp.lt.s32.totalorder %v1984, 3
        %vm2006 = vcmp.lt.s32.totalorder %v1984, 4
        %v2007 = vsel %vm2003, %v1987, %v1990
        %v2008 = vsel %vm2006, %v1996, 2102212464
        %v2009 = vsel %vm2005, %v1993, %v2008
        %v2010 = vsel %vm2004, %v2007, %v2009
        %v2011 = vsel %vm2003, %v1990, %v1993
        %v2012 = vsel %vm2006, %v1999, 920167782
        %v2013 = vsel %vm2005, %v1996, %v2012
        %v2014 = vsel %vm2004, %v2011, %v2013
        %v2015 = vsel %vm2003, %v1993, %v1996
        %v2016 = vsel %vm2006, %v2002, 1326507024
        %v2017 = vsel %vm2005, %v1999, %v2016
        %v2018 = vsel %vm2004, %v2015, %v2017
        %v2019 = vshll.u32 %v1979, 8
        %v2020 = vmul.u32.u64.compose %v2019, %v2018
        %v2021 = vextract.low.u32 %v2020
        %v2022 = vextract.high.u32 %v2020
        %v2023 = vmul.u32.u64.compose %v2019, %v2014
        %v2024 = vextract.low.u32 %v2023
        %v2025 = vextract.high.u32 %v2023
        %v2026 = vmul.u32 %v2019, %v2010
        %v2027 = vadd.s32 %v2022, %v2024
        %vm2028 = vc.u32 %v2022, %v2024
        %v2029 = vadd.s32 %v2025, 1
        %v2030 = vsel %vm2028, %v2029, %v2025
        %v2031 = vadd.s32 %v2026, %v2030
        %v2032 = vadd.s32 %v2031, 536870912
        %v2033 = vshrl.u32 %v2032, 30
        %v2034 = vshll.u32 %v2033, 30
        %v2035 = vsub.s32 %v2031, %v2034
        %vm2036 = vcmp.lt.s32.totalorder %v2035, 0
        %v2037 = vsub.s32 0, %v2035
        %v2038 = vsel %vm2036, %v2037, %v2035
        %v2039 = vclz %v2038
        %v2040 = vsub.s32 %v2039, 2
        %vm2041 = vcmp.gt.s32.totalorder 0, %v2040
        %v2042 = vsel %vm2041, 0, %v2040
        %v2043 = vsub.s32 32, %v2042
        %v2044 = vshll.u32 %v2035, %v2042
        %v2045 = vshrl.u32 %v2027, %v2043
        %v2046 = vor.u32 %v2044, %v2045
        %v2047 = vsub.s32 4294967266, %v2042
        %v2048 = vadd.s32 %v2047, 127
        %v2049 = vshll.u32 %v2048, 23
        %v2050 = vor.u32 4788187, %v2049
        %v2051 = vand.u32 2147483647, %v2050
        %v2053 = vcvt.s32.f32 %v2046
        %v2054 = vmul.f32 %v2053, %v2051
        %v2055 = vxor.u32 %v2054, 2147483648
        %v2056 = vsel %vm1973, %v2055, %v2054
        %v2057 = vsub.s32 4, %v2033
        %v2058 = vsel %vm1973, %v2057, %v2033
        %v2059 = vsel %vm1972, %v1084, %v2056
        %v2060 = vsel %vm1972, 0, %v2058
        %v2061 = vcosq.f32.pop %v2059
        %v2062 = vsinq.f32.pop %v2059
        %vm2063 = vweird.f32 %v1084
        %v2064 = vadd.s32 %v2060, 3
        %v2065 = vand.u32 %v2064, 3
        %vm2066 = vcmp.lt.s32.totalorder %v2065, 2
        %vm2067 = vcmp.eq.s32.totalorder %v2065, 0
        %v2068 = vxor.u32 %v2062, 2147483648
        %v2069 = vsel %vm2067, %v2061, %v2068
        %vm2070 = vcmp.eq.s32.totalorder %v2065, 2
        %v2071 = vxor.u32 %v2061, 2147483648
        %v2072 = vsel %vm2070, %v2071, %v2062
        %v2073 = vsel %vm2066, %v2069, %v2072
        %v2074 = vsel %vm2063, nan, %v2073
        %v2075 = vand.u32 2147483647, %v1085
        %vm2076 = vcmp.le.f32.partialorder %v2075, 0.7853982
        %vm2077 = vcmp.lt.s32.totalorder %v1085, 0
        %v2078 = vand.u32 %v1085, 2139095040
        %v2079 = vshrl.u32 %v2078, 23
        %v2080 = vsub.s32 %v2079, 127
        %v2081 = vand.u32 2147483647, %v1085
        %v2082 = vand.u32 %v2081, 8388607
        %v2083 = vor.u32 %v2082, 8388608
        %v2084 = vsub.s32 0, %v2083
        %v2085 = vadd.s32 %v2080, 1
        %vm2086 = vcmp.gt.s32.totalorder %v2085, 0
        %v2087 = vsel %vm2086, %v2085, 0
        %v2088 = vshrl.u32 %v2087, 5
        %v2089 = vand.u32 %v2087, 31
        %v2090 = vsub.s32 32, %v2089
        %v2091 = vshrl.u32 683565275, %v2090
        %v2092 = vshll.u32 683565275, %v2089
        %v2093 = vshrl.u32 2475754826, %v2090
        %v2094 = vor.u32 %v2092, %v2093
        %v2095 = vshll.u32 2475754826, %v2089
        %v2096 = vshrl.u32 2131351028, %v2090
        %v2097 = vor.u32 %v2095, %v2096
        %v2098 = vshll.u32 2131351028, %v2089
        %v2099 = vshrl.u32 2102212464, %v2090
        %v2100 = vor.u32 %v2098, %v2099
        %v2101 = vshll.u32 2102212464, %v2089
        %v2102 = vshrl.u32 920167782, %v2090
        %v2103 = vor.u32 %v2101, %v2102
        %v2104 = vshll.u32 920167782, %v2089
        %v2105 = vshrl.u32 1326507024, %v2090
        %v2106 = vor.u32 %v2104, %v2105
        %vm2107 = vcmp.lt.s32.totalorder %v2088, 1
        %vm2108 = vcmp.lt.s32.totalorder %v2088, 2
        %vm2109 = vcmp.lt.s32.totalorder %v2088, 3
        %vm2110 = vcmp.lt.s32.totalorder %v2088, 4
        %v2111 = vsel %vm2107, %v2091, %v2094
        %v2112 = vsel %vm2110, %v2100, 2102212464
        %v2113 = vsel %vm2109, %v2097, %v2112
        %v2114 = vsel %vm2108, %v2111, %v2113
        %v2115 = vsel %vm2107, %v2094, %v2097
        %v2116 = vsel %vm2110, %v2103, 920167782
        %v2117 = vsel %vm2109, %v2100, %v2116
        %v2118 = vsel %vm2108, %v2115, %v2117
        %v2119 = vsel %vm2107, %v2097, %v2100
        %v2120 = vsel %vm2110, %v2106, 1326507024
        %v2121 = vsel %vm2109, %v2103, %v2120
        %v2122 = vsel %vm2108, %v2119, %v2121
        %v2123 = vshll.u32 %v2083, 8
        %v2124 = vmul.u32.u64.compose %v2123, %v2122
        %v2125 = vextract.low.u32 %v2124
        %v2126 = vextract.high.u32 %v2124
        %v2127 = vmul.u32.u64.compose %v2123, %v2118
        %v2128 = vextract.low.u32 %v2127
        %v2129 = vextract.high.u32 %v2127
        %v2130 = vmul.u32 %v2123, %v2114
        %v2131 = vadd.s32 %v2126, %v2128
        %vm2132 = vc.u32 %v2126, %v2128
        %v2133 = vadd.s32 %v2129, 1
        %v2134 = vsel %vm2132, %v2133, %v2129
        %v2135 = vadd.s32 %v2130, %v2134
        %v2136 = vadd.s32 %v2135, 536870912
        %v2137 = vshrl.u32 %v2136, 30
        %v2138 = vshll.u32 %v2137, 30
        %v2139 = vsub.s32 %v2135, %v2138
        %vm2140 = vcmp.lt.s32.totalorder %v2139, 0
        %v2141 = vsub.s32 0, %v2139
        %v2142 = vsel %vm2140, %v2141, %v2139
        %v2143 = vclz %v2142
        %v2144 = vsub.s32 %v2143, 2
        %vm2145 = vcmp.gt.s32.totalorder 0, %v2144
        %v2146 = vsel %vm2145, 0, %v2144
        %v2147 = vsub.s32 32, %v2146
        %v2148 = vshll.u32 %v2139, %v2146
        %v2149 = vshrl.u32 %v2131, %v2147
        %v2150 = vor.u32 %v2148, %v2149
        %v2151 = vsub.s32 4294967266, %v2146
        %v2152 = vadd.s32 %v2151, 127
        %v2153 = vshll.u32 %v2152, 23
        %v2154 = vor.u32 4788187, %v2153
        %v2155 = vand.u32 2147483647, %v2154
        %v2157 = vcvt.s32.f32 %v2150
        %v2158 = vmul.f32 %v2157, %v2155
        %v2159 = vxor.u32 %v2158, 2147483648
        %v2160 = vsel %vm2077, %v2159, %v2158
        %v2161 = vsub.s32 4, %v2137
        %v2162 = vsel %vm2077, %v2161, %v2137
        %v2163 = vsel %vm2076, %v1085, %v2160
        %v2164 = vsel %vm2076, 0, %v2162
        %v2165 = vcosq.f32.pop %v2163
        %v2166 = vsinq.f32.pop %v2163
        %vm2167 = vweird.f32 %v1085
        %v2168 = vadd.s32 %v2164, 3
        %v2169 = vand.u32 %v2168, 3
        %vm2170 = vcmp.lt.s32.totalorder %v2169, 2
        %vm2171 = vcmp.eq.s32.totalorder %v2169, 0
        %v2172 = vxor.u32 %v2166, 2147483648
        %v2173 = vsel %vm2171, %v2165, %v2172
        %vm2174 = vcmp.eq.s32.totalorder %v2169, 2
        %v2175 = vxor.u32 %v2165, 2147483648
        %v2176 = vsel %vm2174, %v2175, %v2166
        %v2177 = vsel %vm2170, %v2173, %v2176
        %v2178 = vsel %vm2167, nan, %v2177
        %v2179 = vand.u32 2147483647, %v1086
        %vm2180 = vcmp.le.f32.partialorder %v2179, 0.7853982
        %vm2181 = vcmp.lt.s32.totalorder %v1086, 0
        %v2182 = vand.u32 %v1086, 2139095040
        %v2183 = vshrl.u32 %v2182, 23
        %v2184 = vsub.s32 %v2183, 127
        %v2185 = vand.u32 2147483647, %v1086
        %v2186 = vand.u32 %v2185, 8388607
        %v2187 = vor.u32 %v2186, 8388608
        %v2188 = vsub.s32 0, %v2187
        %v2189 = vadd.s32 %v2184, 1
        %vm2190 = vcmp.gt.s32.totalorder %v2189, 0
        %v2191 = vsel %vm2190, %v2189, 0
        %v2192 = vshrl.u32 %v2191, 5
        %v2193 = vand.u32 %v2191, 31
        %v2194 = vsub.s32 32, %v2193
        %v2195 = vshrl.u32 683565275, %v2194
        %v2196 = vshll.u32 683565275, %v2193
        %v2197 = vshrl.u32 2475754826, %v2194
        %v2198 = vor.u32 %v2196, %v2197
        %v2199 = vshll.u32 2475754826, %v2193
        %v2200 = vshrl.u32 2131351028, %v2194
        %v2201 = vor.u32 %v2199, %v2200
        %v2202 = vshll.u32 2131351028, %v2193
        %v2203 = vshrl.u32 2102212464, %v2194
        %v2204 = vor.u32 %v2202, %v2203
        %v2205 = vshll.u32 2102212464, %v2193
        %v2206 = vshrl.u32 920167782, %v2194
        %v2207 = vor.u32 %v2205, %v2206
        %v2208 = vshll.u32 920167782, %v2193
        %v2209 = vshrl.u32 1326507024, %v2194
        %v2210 = vor.u32 %v2208, %v2209
        %vm2211 = vcmp.lt.s32.totalorder %v2192, 1
        %vm2212 = vcmp.lt.s32.totalorder %v2192, 2
        %vm2213 = vcmp.lt.s32.totalorder %v2192, 3
        %vm2214 = vcmp.lt.s32.totalorder %v2192, 4
        %v2215 = vsel %vm2211, %v2195, %v2198
        %v2216 = vsel %vm2214, %v2204, 2102212464
        %v2217 = vsel %vm2213, %v2201, %v2216
        %v2218 = vsel %vm2212, %v2215, %v2217
        %v2219 = vsel %vm2211, %v2198, %v2201
        %v2220 = vsel %vm2214, %v2207, 920167782
        %v2221 = vsel %vm2213, %v2204, %v2220
        %v2222 = vsel %vm2212, %v2219, %v2221
        %v2223 = vsel %vm2211, %v2201, %v2204
        %v2224 = vsel %vm2214, %v2210, 1326507024
        %v2225 = vsel %vm2213, %v2207, %v2224
        %v2226 = vsel %vm2212, %v2223, %v2225
        %v2227 = vshll.u32 %v2187, 8
        %v2228 = vmul.u32.u64.compose %v2227, %v2226
        %v2229 = vextract.low.u32 %v2228
        %v2230 = vextract.high.u32 %v2228
        %v2231 = vmul.u32.u64.compose %v2227, %v2222
        %v2232 = vextract.low.u32 %v2231
        %v2233 = vextract.high.u32 %v2231
        %v2234 = vmul.u32 %v2227, %v2218
        %v2235 = vadd.s32 %v2230, %v2232
        %vm2236 = vc.u32 %v2230, %v2232
        %v2237 = vadd.s32 %v2233, 1
        %v2238 = vsel %vm2236, %v2237, %v2233
        %v2239 = vadd.s32 %v2234, %v2238
        %v2240 = vadd.s32 %v2239, 536870912
        %v2241 = vshrl.u32 %v2240, 30
        %v2242 = vshll.u32 %v2241, 30
        %v2243 = vsub.s32 %v2239, %v2242
        %vm2244 = vcmp.lt.s32.totalorder %v2243, 0
        %v2245 = vsub.s32 0, %v2243
        %v2246 = vsel %vm2244, %v2245, %v2243
        %v2247 = vclz %v2246
        %v2248 = vsub.s32 %v2247, 2
        %vm2249 = vcmp.gt.s32.totalorder 0, %v2248
        %v2250 = vsel %vm2249, 0, %v2248
        %v2251 = vsub.s32 32, %v2250
        %v2252 = vshll.u32 %v2243, %v2250
        %v2253 = vshrl.u32 %v2235, %v2251
        %v2254 = vor.u32 %v2252, %v2253
        %v2255 = vsub.s32 4294967266, %v2250
        %v2256 = vadd.s32 %v2255, 127
        %v2257 = vshll.u32 %v2256, 23
        %v2258 = vor.u32 4788187, %v2257
        %v2259 = vand.u32 2147483647, %v2258
        %v2261 = vcvt.s32.f32 %v2254
        %v2262 = vmul.f32 %v2261, %v2259
        %v2263 = vxor.u32 %v2262, 2147483648
        %v2264 = vsel %vm2181, %v2263, %v2262
        %v2265 = vsub.s32 4, %v2241
        %v2266 = vsel %vm2181, %v2265, %v2241
        %v2267 = vsel %vm2180, %v1086, %v2264
        %v2268 = vsel %vm2180, 0, %v2266
        %v2269 = vcosq.f32.pop %v2267
        %v2270 = vsinq.f32.pop %v2267
        %vm2271 = vweird.f32 %v1086
        %v2272 = vadd.s32 %v2268, 3
        %v2273 = vand.u32 %v2272, 3
        %vm2274 = vcmp.lt.s32.totalorder %v2273, 2
        %vm2275 = vcmp.eq.s32.totalorder %v2273, 0
        %v2276 = vxor.u32 %v2270, 2147483648
        %v2277 = vsel %vm2275, %v2269, %v2276
        %vm2278 = vcmp.eq.s32.totalorder %v2273, 2
        %v2279 = vxor.u32 %v2269, 2147483648
        %v2280 = vsel %vm2278, %v2279, %v2270
        %v2281 = vsel %vm2274, %v2277, %v2280
        %v2282 = vsel %vm2271, nan, %v2281
        %v2283 = vand.u32 2147483647, %v1087
        %vm2284 = vcmp.le.f32.partialorder %v2283, 0.7853982
        %vm2285 = vcmp.lt.s32.totalorder %v1087, 0
        %v2286 = vand.u32 %v1087, 2139095040
        %v2287 = vshrl.u32 %v2286, 23
        %v2288 = vsub.s32 %v2287, 127
        %v2289 = vand.u32 2147483647, %v1087
        %v2290 = vand.u32 %v2289, 8388607
        %v2291 = vor.u32 %v2290, 8388608
        %v2292 = vsub.s32 0, %v2291
        %v2293 = vadd.s32 %v2288, 1
        %vm2294 = vcmp.gt.s32.totalorder %v2293, 0
        %v2295 = vsel %vm2294, %v2293, 0
        %v2296 = vshrl.u32 %v2295, 5
        %v2297 = vand.u32 %v2295, 31
        %v2298 = vsub.s32 32, %v2297
        %v2299 = vshrl.u32 683565275, %v2298
        %v2300 = vshll.u32 683565275, %v2297
        %v2301 = vshrl.u32 2475754826, %v2298
        %v2302 = vor.u32 %v2300, %v2301
        %v2303 = vshll.u32 2475754826, %v2297
        %v2304 = vshrl.u32 2131351028, %v2298
        %v2305 = vor.u32 %v2303, %v2304
        %v2306 = vshll.u32 2131351028, %v2297
        %v2307 = vshrl.u32 2102212464, %v2298
        %v2308 = vor.u32 %v2306, %v2307
        %v2309 = vshll.u32 2102212464, %v2297
        %v2310 = vshrl.u32 920167782, %v2298
        %v2311 = vor.u32 %v2309, %v2310
        %v2312 = vshll.u32 920167782, %v2297
        %v2313 = vshrl.u32 1326507024, %v2298
        %v2314 = vor.u32 %v2312, %v2313
        %vm2315 = vcmp.lt.s32.totalorder %v2296, 1
        %vm2316 = vcmp.lt.s32.totalorder %v2296, 2
        %vm2317 = vcmp.lt.s32.totalorder %v2296, 3
        %vm2318 = vcmp.lt.s32.totalorder %v2296, 4
        %v2319 = vsel %vm2315, %v2299, %v2302
        %v2320 = vsel %vm2318, %v2308, 2102212464
        %v2321 = vsel %vm2317, %v2305, %v2320
        %v2322 = vsel %vm2316, %v2319, %v2321
        %v2323 = vsel %vm2315, %v2302, %v2305
        %v2324 = vsel %vm2318, %v2311, 920167782
        %v2325 = vsel %vm2317, %v2308, %v2324
        %v2326 = vsel %vm2316, %v2323, %v2325
        %v2327 = vsel %vm2315, %v2305, %v2308
        %v2328 = vsel %vm2318, %v2314, 1326507024
        %v2329 = vsel %vm2317, %v2311, %v2328
        %v2330 = vsel %vm2316, %v2327, %v2329
        %v2331 = vshll.u32 %v2291, 8
        %v2332 = vmul.u32.u64.compose %v2331, %v2330
        %v2333 = vextract.low.u32 %v2332
        %v2334 = vextract.high.u32 %v2332
        %v2335 = vmul.u32.u64.compose %v2331, %v2326
        %v2336 = vextract.low.u32 %v2335
        %v2337 = vextract.high.u32 %v2335
        %v2338 = vmul.u32 %v2331, %v2322
        %v2339 = vadd.s32 %v2334, %v2336
        %vm2340 = vc.u32 %v2334, %v2336
        %v2341 = vadd.s32 %v2337, 1
        %v2342 = vsel %vm2340, %v2341, %v2337
        %v2343 = vadd.s32 %v2338, %v2342
        %v2344 = vadd.s32 %v2343, 536870912
        %v2345 = vshrl.u32 %v2344, 30
        %v2346 = vshll.u32 %v2345, 30
        %v2347 = vsub.s32 %v2343, %v2346
        %vm2348 = vcmp.lt.s32.totalorder %v2347, 0
        %v2349 = vsub.s32 0, %v2347
        %v2350 = vsel %vm2348, %v2349, %v2347
        %v2351 = vclz %v2350
        %v2352 = vsub.s32 %v2351, 2
        %vm2353 = vcmp.gt.s32.totalorder 0, %v2352
        %v2354 = vsel %vm2353, 0, %v2352
        %v2355 = vsub.s32 32, %v2354
        %v2356 = vshll.u32 %v2347, %v2354
        %v2357 = vshrl.u32 %v2339, %v2355
        %v2358 = vor.u32 %v2356, %v2357
        %v2359 = vsub.s32 4294967266, %v2354
        %v2360 = vadd.s32 %v2359, 127
        %v2361 = vshll.u32 %v2360, 23
        %v2362 = vor.u32 4788187, %v2361
        %v2363 = vand.u32 2147483647, %v2362
        %v2365 = vcvt.s32.f32 %v2358
        %v2366 = vmul.f32 %v2365, %v2363
        %v2367 = vxor.u32 %v2366, 2147483648
        %v2368 = vsel %vm2285, %v2367, %v2366
        %v2369 = vsub.s32 4, %v2345
        %v2370 = vsel %vm2285, %v2369, %v2345
        %v2371 = vsel %vm2284, %v1087, %v2368
        %v2372 = vsel %vm2284, 0, %v2370
        %v2373 = vcosq.f32.pop %v2371
        %v2374 = vsinq.f32.pop %v2371
        %vm2375 = vweird.f32 %v1087
        %v2376 = vadd.s32 %v2372, 3
        %v2377 = vand.u32 %v2376, 3
        %vm2378 = vcmp.lt.s32.totalorder %v2377, 2
        %vm2379 = vcmp.eq.s32.totalorder %v2377, 0
        %v2380 = vxor.u32 %v2374, 2147483648
        %v2381 = vsel %vm2379, %v2373, %v2380
        %vm2382 = vcmp.eq.s32.totalorder %v2377, 2
        %v2383 = vxor.u32 %v2373, 2147483648
        %v2384 = vsel %vm2382, %v2383, %v2374
        %v2385 = vsel %vm2378, %v2381, %v2384
        %v2386 = vsel %vm2375, nan, %v2385
        %v2387 = vand.u32 2147483647, %v1088
        %vm2388 = vcmp.le.f32.partialorder %v2387, 0.7853982
        %vm2389 = vcmp.lt.s32.totalorder %v1088, 0
        %v2390 = vand.u32 %v1088, 2139095040
        %v2391 = vshrl.u32 %v2390, 23
        %v2392 = vsub.s32 %v2391, 127
        %v2393 = vand.u32 2147483647, %v1088
        %v2394 = vand.u32 %v2393, 8388607
        %v2395 = vor.u32 %v2394, 8388608
        %v2396 = vsub.s32 0, %v2395
        %v2397 = vadd.s32 %v2392, 1
        %vm2398 = vcmp.gt.s32.totalorder %v2397, 0
        %v2399 = vsel %vm2398, %v2397, 0
        %v2400 = vshrl.u32 %v2399, 5
        %v2401 = vand.u32 %v2399, 31
        %v2402 = vsub.s32 32, %v2401
        %v2403 = vshrl.u32 683565275, %v2402
        %v2404 = vshll.u32 683565275, %v2401
        %v2405 = vshrl.u32 2475754826, %v2402
        %v2406 = vor.u32 %v2404, %v2405
        %v2407 = vshll.u32 2475754826, %v2401
        %v2408 = vshrl.u32 2131351028, %v2402
        %v2409 = vor.u32 %v2407, %v2408
        %v2410 = vshll.u32 2131351028, %v2401
        %v2411 = vshrl.u32 2102212464, %v2402
        %v2412 = vor.u32 %v2410, %v2411
        %v2413 = vshll.u32 2102212464, %v2401
        %v2414 = vshrl.u32 920167782, %v2402
        %v2415 = vor.u32 %v2413, %v2414
        %v2416 = vshll.u32 920167782, %v2401
        %v2417 = vshrl.u32 1326507024, %v2402
        %v2418 = vor.u32 %v2416, %v2417
        %vm2419 = vcmp.lt.s32.totalorder %v2400, 1
        %vm2420 = vcmp.lt.s32.totalorder %v2400, 2
        %vm2421 = vcmp.lt.s32.totalorder %v2400, 3
        %vm2422 = vcmp.lt.s32.totalorder %v2400, 4
        %v2423 = vsel %vm2419, %v2403, %v2406
        %v2424 = vsel %vm2422, %v2412, 2102212464
        %v2425 = vsel %vm2421, %v2409, %v2424
        %v2426 = vsel %vm2420, %v2423, %v2425
        %v2427 = vsel %vm2419, %v2406, %v2409
        %v2428 = vsel %vm2422, %v2415, 920167782
        %v2429 = vsel %vm2421, %v2412, %v2428
        %v2430 = vsel %vm2420, %v2427, %v2429
        %v2431 = vsel %vm2419, %v2409, %v2412
        %v2432 = vsel %vm2422, %v2418, 1326507024
        %v2433 = vsel %vm2421, %v2415, %v2432
        %v2434 = vsel %vm2420, %v2431, %v2433
        %v2435 = vshll.u32 %v2395, 8
        %v2436 = vmul.u32.u64.compose %v2435, %v2434
        %v2437 = vextract.low.u32 %v2436
        %v2438 = vextract.high.u32 %v2436
        %v2439 = vmul.u32.u64.compose %v2435, %v2430
        %v2440 = vextract.low.u32 %v2439
        %v2441 = vextract.high.u32 %v2439
        %v2442 = vmul.u32 %v2435, %v2426
        %v2443 = vadd.s32 %v2438, %v2440
        %vm2444 = vc.u32 %v2438, %v2440
        %v2445 = vadd.s32 %v2441, 1
        %v2446 = vsel %vm2444, %v2445, %v2441
        %v2447 = vadd.s32 %v2442, %v2446
        %v2448 = vadd.s32 %v2447, 536870912
        %v2449 = vshrl.u32 %v2448, 30
        %v2450 = vshll.u32 %v2449, 30
        %v2451 = vsub.s32 %v2447, %v2450
        %vm2452 = vcmp.lt.s32.totalorder %v2451, 0
        %v2453 = vsub.s32 0, %v2451
        %v2454 = vsel %vm2452, %v2453, %v2451
        %v2455 = vclz %v2454
        %v2456 = vsub.s32 %v2455, 2
        %vm2457 = vcmp.gt.s32.totalorder 0, %v2456
        %v2458 = vsel %vm2457, 0, %v2456
        %v2459 = vsub.s32 32, %v2458
        %v2460 = vshll.u32 %v2451, %v2458
        %v2461 = vshrl.u32 %v2443, %v2459
        %v2462 = vor.u32 %v2460, %v2461
        %v2463 = vsub.s32 4294967266, %v2458
        %v2464 = vadd.s32 %v2463, 127
        %v2465 = vshll.u32 %v2464, 23
        %v2466 = vor.u32 4788187, %v2465
        %v2467 = vand.u32 2147483647, %v2466
        %v2469 = vcvt.s32.f32 %v2462
        %v2470 = vmul.f32 %v2469, %v2467
        %v2471 = vxor.u32 %v2470, 2147483648
        %v2472 = vsel %vm2389, %v2471, %v2470
        %v2473 = vsub.s32 4, %v2449
        %v2474 = vsel %vm2389, %v2473, %v2449
        %v2475 = vsel %vm2388, %v1088, %v2472
        %v2476 = vsel %vm2388, 0, %v2474
        %v2477 = vcosq.f32.pop %v2475
        %v2478 = vsinq.f32.pop %v2475
        %vm2479 = vweird.f32 %v1088
        %v2480 = vadd.s32 %v2476, 3
        %v2481 = vand.u32 %v2480, 3
        %vm2482 = vcmp.lt.s32.totalorder %v2481, 2
        %vm2483 = vcmp.eq.s32.totalorder %v2481, 0
        %v2484 = vxor.u32 %v2478, 2147483648
        %v2485 = vsel %vm2483, %v2477, %v2484
        %vm2486 = vcmp.eq.s32.totalorder %v2481, 2
        %v2487 = vxor.u32 %v2477, 2147483648
        %v2488 = vsel %vm2486, %v2487, %v2478
        %v2489 = vsel %vm2482, %v2485, %v2488
        %v2490 = vsel %vm2479, nan, %v2489
        %v2491 = vand.u32 2147483647, %v1089
        %vm2492 = vcmp.le.f32.partialorder %v2491, 0.7853982
        %vm2493 = vcmp.lt.s32.totalorder %v1089, 0
        %v2494 = vand.u32 %v1089, 2139095040
        %v2495 = vshrl.u32 %v2494, 23
        %v2496 = vsub.s32 %v2495, 127
        %v2497 = vand.u32 2147483647, %v1089
        %v2498 = vand.u32 %v2497, 8388607
        %v2499 = vor.u32 %v2498, 8388608
        %v2500 = vsub.s32 0, %v2499
        %v2501 = vadd.s32 %v2496, 1
        %vm2502 = vcmp.gt.s32.totalorder %v2501, 0
        %v2503 = vsel %vm2502, %v2501, 0
        %v2504 = vshrl.u32 %v2503, 5
        %v2505 = vand.u32 %v2503, 31
        %v2506 = vsub.s32 32, %v2505
        %v2507 = vshrl.u32 683565275, %v2506
        %v2508 = vshll.u32 683565275, %v2505
        %v2509 = vshrl.u32 2475754826, %v2506
        %v2510 = vor.u32 %v2508, %v2509
        %v2511 = vshll.u32 2475754826, %v2505
        %v2512 = vshrl.u32 2131351028, %v2506
        %v2513 = vor.u32 %v2511, %v2512
        %v2514 = vshll.u32 2131351028, %v2505
        %v2515 = vshrl.u32 2102212464, %v2506
        %v2516 = vor.u32 %v2514, %v2515
        %v2517 = vshll.u32 2102212464, %v2505
        %v2518 = vshrl.u32 920167782, %v2506
        %v2519 = vor.u32 %v2517, %v2518
        %v2520 = vshll.u32 920167782, %v2505
        %v2521 = vshrl.u32 1326507024, %v2506
        %v2522 = vor.u32 %v2520, %v2521
        %vm2523 = vcmp.lt.s32.totalorder %v2504, 1
        %vm2524 = vcmp.lt.s32.totalorder %v2504, 2
        %vm2525 = vcmp.lt.s32.totalorder %v2504, 3
        %vm2526 = vcmp.lt.s32.totalorder %v2504, 4
        %v2527 = vsel %vm2523, %v2507, %v2510
        %v2528 = vsel %vm2526, %v2516, 2102212464
        %v2529 = vsel %vm2525, %v2513, %v2528
        %v2530 = vsel %vm2524, %v2527, %v2529
        %v2531 = vsel %vm2523, %v2510, %v2513
        %v2532 = vsel %vm2526, %v2519, 920167782
        %v2533 = vsel %vm2525, %v2516, %v2532
        %v2534 = vsel %vm2524, %v2531, %v2533
        %v2535 = vsel %vm2523, %v2513, %v2516
        %v2536 = vsel %vm2526, %v2522, 1326507024
        %v2537 = vsel %vm2525, %v2519, %v2536
        %v2538 = vsel %vm2524, %v2535, %v2537
        %v2539 = vshll.u32 %v2499, 8
        %v2540 = vmul.u32.u64.compose %v2539, %v2538
        %v2541 = vextract.low.u32 %v2540
        %v2542 = vextract.high.u32 %v2540
        %v2543 = vmul.u32.u64.compose %v2539, %v2534
        %v2544 = vextract.low.u32 %v2543
        %v2545 = vextract.high.u32 %v2543
        %v2546 = vmul.u32 %v2539, %v2530
        %v2547 = vadd.s32 %v2542, %v2544
        %vm2548 = vc.u32 %v2542, %v2544
        %v2549 = vadd.s32 %v2545, 1
        %v2550 = vsel %vm2548, %v2549, %v2545
        %v2551 = vadd.s32 %v2546, %v2550
        %v2552 = vadd.s32 %v2551, 536870912
        %v2553 = vshrl.u32 %v2552, 30
        %v2554 = vshll.u32 %v2553, 30
        %v2555 = vsub.s32 %v2551, %v2554
        %vm2556 = vcmp.lt.s32.totalorder %v2555, 0
        %v2557 = vsub.s32 0, %v2555
        %v2558 = vsel %vm2556, %v2557, %v2555
        %v2559 = vclz %v2558
        %v2560 = vsub.s32 %v2559, 2
        %vm2561 = vcmp.gt.s32.totalorder 0, %v2560
        %v2562 = vsel %vm2561, 0, %v2560
        %v2563 = vsub.s32 32, %v2562
        %v2564 = vshll.u32 %v2555, %v2562
        %v2565 = vshrl.u32 %v2547, %v2563
        %v2566 = vor.u32 %v2564, %v2565
        %v2567 = vsub.s32 4294967266, %v2562
        %v2568 = vadd.s32 %v2567, 127
        %v2569 = vshll.u32 %v2568, 23
        %v2570 = vor.u32 4788187, %v2569
        %v2571 = vand.u32 2147483647, %v2570
        %v2573 = vcvt.s32.f32 %v2566
        %v2574 = vmul.f32 %v2573, %v2571
        %v2575 = vxor.u32 %v2574, 2147483648
        %v2576 = vsel %vm2493, %v2575, %v2574
        %v2577 = vsub.s32 4, %v2553
        %v2578 = vsel %vm2493, %v2577, %v2553
        %v2579 = vsel %vm2492, %v1089, %v2576
        %v2580 = vsel %vm2492, 0, %v2578
        %v2581 = vcosq.f32.pop %v2579
        %v2582 = vsinq.f32.pop %v2579
        %vm2583 = vweird.f32 %v1089
        %v2584 = vadd.s32 %v2580, 3
        %v2585 = vand.u32 %v2584, 3
        %vm2586 = vcmp.lt.s32.totalorder %v2585, 2
        %vm2587 = vcmp.eq.s32.totalorder %v2585, 0
        %v2588 = vxor.u32 %v2582, 2147483648
        %v2589 = vsel %vm2587, %v2581, %v2588
        %vm2590 = vcmp.eq.s32.totalorder %v2585, 2
        %v2591 = vxor.u32 %v2581, 2147483648
        %v2592 = vsel %vm2590, %v2591, %v2582
        %v2593 = vsel %vm2586, %v2589, %v2592
        %v2594 = vsel %vm2583, nan, %v2593
        %v2595 = vand.u32 2147483647, %v1090
        %vm2596 = vcmp.le.f32.partialorder %v2595, 0.7853982
        %vm2597 = vcmp.lt.s32.totalorder %v1090, 0
        %v2598 = vand.u32 %v1090, 2139095040
        %v2599 = vshrl.u32 %v2598, 23
        %v2600 = vsub.s32 %v2599, 127
        %v2601 = vand.u32 2147483647, %v1090
        %v2602 = vand.u32 %v2601, 8388607
        %v2603 = vor.u32 %v2602, 8388608
        %v2604 = vsub.s32 0, %v2603
        %v2605 = vadd.s32 %v2600, 1
        %vm2606 = vcmp.gt.s32.totalorder %v2605, 0
        %v2607 = vsel %vm2606, %v2605, 0
        %v2608 = vshrl.u32 %v2607, 5
        %v2609 = vand.u32 %v2607, 31
        %v2610 = vsub.s32 32, %v2609
        %v2611 = vshrl.u32 683565275, %v2610
        %v2612 = vshll.u32 683565275, %v2609
        %v2613 = vshrl.u32 2475754826, %v2610
        %v2614 = vor.u32 %v2612, %v2613
        %v2615 = vshll.u32 2475754826, %v2609
        %v2616 = vshrl.u32 2131351028, %v2610
        %v2617 = vor.u32 %v2615, %v2616
        %v2618 = vshll.u32 2131351028, %v2609
        %v2619 = vshrl.u32 2102212464, %v2610
        %v2620 = vor.u32 %v2618, %v2619
        %v2621 = vshll.u32 2102212464, %v2609
        %v2622 = vshrl.u32 920167782, %v2610
        %v2623 = vor.u32 %v2621, %v2622
        %v2624 = vshll.u32 920167782, %v2609
        %v2625 = vshrl.u32 1326507024, %v2610
        %v2626 = vor.u32 %v2624, %v2625
        %vm2627 = vcmp.lt.s32.totalorder %v2608, 1
        %vm2628 = vcmp.lt.s32.totalorder %v2608, 2
        %vm2629 = vcmp.lt.s32.totalorder %v2608, 3
        %vm2630 = vcmp.lt.s32.totalorder %v2608, 4
        %v2631 = vsel %vm2627, %v2611, %v2614
        %v2632 = vsel %vm2630, %v2620, 2102212464
        %v2633 = vsel %vm2629, %v2617, %v2632
        %v2634 = vsel %vm2628, %v2631, %v2633
        %v2635 = vsel %vm2627, %v2614, %v2617
        %v2636 = vsel %vm2630, %v2623, 920167782
        %v2637 = vsel %vm2629, %v2620, %v2636
        %v2638 = vsel %vm2628, %v2635, %v2637
        %v2639 = vsel %vm2627, %v2617, %v2620
        %v2640 = vsel %vm2630, %v2626, 1326507024
        %v2641 = vsel %vm2629, %v2623, %v2640
        %v2642 = vsel %vm2628, %v2639, %v2641
        %v2643 = vshll.u32 %v2603, 8
        %v2644 = vmul.u32.u64.compose %v2643, %v2642
        %v2645 = vextract.low.u32 %v2644
        %v2646 = vextract.high.u32 %v2644
        %v2647 = vmul.u32.u64.compose %v2643, %v2638
        %v2648 = vextract.low.u32 %v2647
        %v2649 = vextract.high.u32 %v2647
        %v2650 = vmul.u32 %v2643, %v2634
        %v2651 = vadd.s32 %v2646, %v2648
        %vm2652 = vc.u32 %v2646, %v2648
        %v2653 = vadd.s32 %v2649, 1
        %v2654 = vsel %vm2652, %v2653, %v2649
        %v2655 = vadd.s32 %v2650, %v2654
        %v2656 = vadd.s32 %v2655, 536870912
        %v2657 = vshrl.u32 %v2656, 30
        %v2658 = vshll.u32 %v2657, 30
        %v2659 = vsub.s32 %v2655, %v2658
        %vm2660 = vcmp.lt.s32.totalorder %v2659, 0
        %v2661 = vsub.s32 0, %v2659
        %v2662 = vsel %vm2660, %v2661, %v2659
        %v2663 = vclz %v2662
        %v2664 = vsub.s32 %v2663, 2
        %vm2665 = vcmp.gt.s32.totalorder 0, %v2664
        %v2666 = vsel %vm2665, 0, %v2664
        %v2667 = vsub.s32 32, %v2666
        %v2668 = vshll.u32 %v2659, %v2666
        %v2669 = vshrl.u32 %v2651, %v2667
        %v2670 = vor.u32 %v2668, %v2669
        %v2671 = vsub.s32 4294967266, %v2666
        %v2672 = vadd.s32 %v2671, 127
        %v2673 = vshll.u32 %v2672, 23
        %v2674 = vor.u32 4788187, %v2673
        %v2675 = vand.u32 2147483647, %v2674
        %v2677 = vcvt.s32.f32 %v2670
        %v2678 = vmul.f32 %v2677, %v2675
        %v2679 = vxor.u32 %v2678, 2147483648
        %v2680 = vsel %vm2597, %v2679, %v2678
        %v2681 = vsub.s32 4, %v2657
        %v2682 = vsel %vm2597, %v2681, %v2657
        %v2683 = vsel %vm2596, %v1090, %v2680
        %v2684 = vsel %vm2596, 0, %v2682
        %v2685 = vcosq.f32.pop %v2683
        %v2686 = vsinq.f32.pop %v2683
        %vm2687 = vweird.f32 %v1090
        %v2688 = vadd.s32 %v2684, 3
        %v2689 = vand.u32 %v2688, 3
        %vm2690 = vcmp.lt.s32.totalorder %v2689, 2
        %vm2691 = vcmp.eq.s32.totalorder %v2689, 0
        %v2692 = vxor.u32 %v2686, 2147483648
        %v2693 = vsel %vm2691, %v2685, %v2692
        %vm2694 = vcmp.eq.s32.totalorder %v2689, 2
        %v2695 = vxor.u32 %v2685, 2147483648
        %v2696 = vsel %vm2694, %v2695, %v2686
        %v2697 = vsel %vm2690, %v2693, %v2696
        %v2698 = vsel %vm2687, nan, %v2697
        %v2699 = vand.u32 2147483647, %v1091
        %vm2700 = vcmp.le.f32.partialorder %v2699, 0.7853982
        %vm2701 = vcmp.lt.s32.totalorder %v1091, 0
        %v2702 = vand.u32 %v1091, 2139095040
        %v2703 = vshrl.u32 %v2702, 23
        %v2704 = vsub.s32 %v2703, 127
        %v2705 = vand.u32 2147483647, %v1091
        %v2706 = vand.u32 %v2705, 8388607
        %v2707 = vor.u32 %v2706, 8388608
        %v2708 = vsub.s32 0, %v2707
        %v2709 = vadd.s32 %v2704, 1
        %vm2710 = vcmp.gt.s32.totalorder %v2709, 0
        %v2711 = vsel %vm2710, %v2709, 0
        %v2712 = vshrl.u32 %v2711, 5
        %v2713 = vand.u32 %v2711, 31
        %v2714 = vsub.s32 32, %v2713
        %v2715 = vshrl.u32 683565275, %v2714
        %v2716 = vshll.u32 683565275, %v2713
        %v2717 = vshrl.u32 2475754826, %v2714
        %v2718 = vor.u32 %v2716, %v2717
        %v2719 = vshll.u32 2475754826, %v2713
        %v2720 = vshrl.u32 2131351028, %v2714
        %v2721 = vor.u32 %v2719, %v2720
        %v2722 = vshll.u32 2131351028, %v2713
        %v2723 = vshrl.u32 2102212464, %v2714
        %v2724 = vor.u32 %v2722, %v2723
        %v2725 = vshll.u32 2102212464, %v2713
        %v2726 = vshrl.u32 920167782, %v2714
        %v2727 = vor.u32 %v2725, %v2726
        %v2728 = vshll.u32 920167782, %v2713
        %v2729 = vshrl.u32 1326507024, %v2714
        %v2730 = vor.u32 %v2728, %v2729
        %vm2731 = vcmp.lt.s32.totalorder %v2712, 1
        %vm2732 = vcmp.lt.s32.totalorder %v2712, 2
        %vm2733 = vcmp.lt.s32.totalorder %v2712, 3
        %vm2734 = vcmp.lt.s32.totalorder %v2712, 4
        %v2735 = vsel %vm2731, %v2715, %v2718
        %v2736 = vsel %vm2734, %v2724, 2102212464
        %v2737 = vsel %vm2733, %v2721, %v2736
        %v2738 = vsel %vm2732, %v2735, %v2737
        %v2739 = vsel %vm2731, %v2718, %v2721
        %v2740 = vsel %vm2734, %v2727, 920167782
        %v2741 = vsel %vm2733, %v2724, %v2740
        %v2742 = vsel %vm2732, %v2739, %v2741
        %v2743 = vsel %vm2731, %v2721, %v2724
        %v2744 = vsel %vm2734, %v2730, 1326507024
        %v2745 = vsel %vm2733, %v2727, %v2744
        %v2746 = vsel %vm2732, %v2743, %v2745
        %v2747 = vshll.u32 %v2707, 8
        %v2748 = vmul.u32.u64.compose %v2747, %v2746
        %v2749 = vextract.low.u32 %v2748
        %v2750 = vextract.high.u32 %v2748
        %v2751 = vmul.u32.u64.compose %v2747, %v2742
        %v2752 = vextract.low.u32 %v2751
        %v2753 = vextract.high.u32 %v2751
        %v2754 = vmul.u32 %v2747, %v2738
        %v2755 = vadd.s32 %v2750, %v2752
        %vm2756 = vc.u32 %v2750, %v2752
        %v2757 = vadd.s32 %v2753, 1
        %v2758 = vsel %vm2756, %v2757, %v2753
        %v2759 = vadd.s32 %v2754, %v2758
        %v2760 = vadd.s32 %v2759, 536870912
        %v2761 = vshrl.u32 %v2760, 30
        %v2762 = vshll.u32 %v2761, 30
        %v2763 = vsub.s32 %v2759, %v2762
        %vm2764 = vcmp.lt.s32.totalorder %v2763, 0
        %v2765 = vsub.s32 0, %v2763
        %v2766 = vsel %vm2764, %v2765, %v2763
        %v2767 = vclz %v2766
        %v2768 = vsub.s32 %v2767, 2
        %vm2769 = vcmp.gt.s32.totalorder 0, %v2768
        %v2770 = vsel %vm2769, 0, %v2768
        %v2771 = vsub.s32 32, %v2770
        %v2772 = vshll.u32 %v2763, %v2770
        %v2773 = vshrl.u32 %v2755, %v2771
        %v2774 = vor.u32 %v2772, %v2773
        %v2775 = vsub.s32 4294967266, %v2770
        %v2776 = vadd.s32 %v2775, 127
        %v2777 = vshll.u32 %v2776, 23
        %v2778 = vor.u32 4788187, %v2777
        %v2779 = vand.u32 2147483647, %v2778
        %v2781 = vcvt.s32.f32 %v2774
        %v2782 = vmul.f32 %v2781, %v2779
        %v2783 = vxor.u32 %v2782, 2147483648
        %v2784 = vsel %vm2701, %v2783, %v2782
        %v2785 = vsub.s32 4, %v2761
        %v2786 = vsel %vm2701, %v2785, %v2761
        %v2787 = vsel %vm2700, %v1091, %v2784
        %v2788 = vsel %vm2700, 0, %v2786
        %v2789 = vcosq.f32.pop %v2787
        %v2790 = vsinq.f32.pop %v2787
        %vm2791 = vweird.f32 %v1091
        %v2792 = vadd.s32 %v2788, 3
        %v2793 = vand.u32 %v2792, 3
        %vm2794 = vcmp.lt.s32.totalorder %v2793, 2
        %vm2795 = vcmp.eq.s32.totalorder %v2793, 0
        %v2796 = vxor.u32 %v2790, 2147483648
        %v2797 = vsel %vm2795, %v2789, %v2796
        %vm2798 = vcmp.eq.s32.totalorder %v2793, 2
        %v2799 = vxor.u32 %v2789, 2147483648
        %v2800 = vsel %vm2798, %v2799, %v2790
        %v2801 = vsel %vm2794, %v2797, %v2800
        %v2802 = vsel %vm2791, nan, %v2801
        %v2803 = vand.u32 2147483647, %v1092
        %vm2804 = vcmp.le.f32.partialorder %v2803, 0.7853982
        %vm2805 = vcmp.lt.s32.totalorder %v1092, 0
        %v2806 = vand.u32 %v1092, 2139095040
        %v2807 = vshrl.u32 %v2806, 23
        %v2808 = vsub.s32 %v2807, 127
        %v2809 = vand.u32 2147483647, %v1092
        %v2810 = vand.u32 %v2809, 8388607
        %v2811 = vor.u32 %v2810, 8388608
        %v2812 = vsub.s32 0, %v2811
        %v2813 = vadd.s32 %v2808, 1
        %vm2814 = vcmp.gt.s32.totalorder %v2813, 0
        %v2815 = vsel %vm2814, %v2813, 0
        %v2816 = vshrl.u32 %v2815, 5
        %v2817 = vand.u32 %v2815, 31
        %v2818 = vsub.s32 32, %v2817
        %v2819 = vshrl.u32 683565275, %v2818
        %v2820 = vshll.u32 683565275, %v2817
        %v2821 = vshrl.u32 2475754826, %v2818
        %v2822 = vor.u32 %v2820, %v2821
        %v2823 = vshll.u32 2475754826, %v2817
        %v2824 = vshrl.u32 2131351028, %v2818
        %v2825 = vor.u32 %v2823, %v2824
        %v2826 = vshll.u32 2131351028, %v2817
        %v2827 = vshrl.u32 2102212464, %v2818
        %v2828 = vor.u32 %v2826, %v2827
        %v2829 = vshll.u32 2102212464, %v2817
        %v2830 = vshrl.u32 920167782, %v2818
        %v2831 = vor.u32 %v2829, %v2830
        %v2832 = vshll.u32 920167782, %v2817
        %v2833 = vshrl.u32 1326507024, %v2818
        %v2834 = vor.u32 %v2832, %v2833
        %vm2835 = vcmp.lt.s32.totalorder %v2816, 1
        %vm2836 = vcmp.lt.s32.totalorder %v2816, 2
        %vm2837 = vcmp.lt.s32.totalorder %v2816, 3
        %vm2838 = vcmp.lt.s32.totalorder %v2816, 4
        %v2839 = vsel %vm2835, %v2819, %v2822
        %v2840 = vsel %vm2838, %v2828, 2102212464
        %v2841 = vsel %vm2837, %v2825, %v2840
        %v2842 = vsel %vm2836, %v2839, %v2841
        %v2843 = vsel %vm2835, %v2822, %v2825
        %v2844 = vsel %vm2838, %v2831, 920167782
        %v2845 = vsel %vm2837, %v2828, %v2844
        %v2846 = vsel %vm2836, %v2843, %v2845
        %v2847 = vsel %vm2835, %v2825, %v2828
        %v2848 = vsel %vm2838, %v2834, 1326507024
        %v2849 = vsel %vm2837, %v2831, %v2848
        %v2850 = vsel %vm2836, %v2847, %v2849
        %v2851 = vshll.u32 %v2811, 8
        %v2852 = vmul.u32.u64.compose %v2851, %v2850
        %v2853 = vextract.low.u32 %v2852
        %v2854 = vextract.high.u32 %v2852
        %v2855 = vmul.u32.u64.compose %v2851, %v2846
        %v2856 = vextract.low.u32 %v2855
        %v2857 = vextract.high.u32 %v2855
        %v2858 = vmul.u32 %v2851, %v2842
        %v2859 = vadd.s32 %v2854, %v2856
        %vm2860 = vc.u32 %v2854, %v2856
        %v2861 = vadd.s32 %v2857, 1
        %v2862 = vsel %vm2860, %v2861, %v2857
        %v2863 = vadd.s32 %v2858, %v2862
        %v2864 = vadd.s32 %v2863, 536870912
        %v2865 = vshrl.u32 %v2864, 30
        %v2866 = vshll.u32 %v2865, 30
        %v2867 = vsub.s32 %v2863, %v2866
        %vm2868 = vcmp.lt.s32.totalorder %v2867, 0
        %v2869 = vsub.s32 0, %v2867
        %v2870 = vsel %vm2868, %v2869, %v2867
        %v2871 = vclz %v2870
        %v2872 = vsub.s32 %v2871, 2
        %vm2873 = vcmp.gt.s32.totalorder 0, %v2872
        %v2874 = vsel %vm2873, 0, %v2872
        %v2875 = vsub.s32 32, %v2874
        %v2876 = vshll.u32 %v2867, %v2874
        %v2877 = vshrl.u32 %v2859, %v2875
        %v2878 = vor.u32 %v2876, %v2877
        %v2879 = vsub.s32 4294967266, %v2874
        %v2880 = vadd.s32 %v2879, 127
        %v2881 = vshll.u32 %v2880, 23
        %v2882 = vor.u32 4788187, %v2881
        %v2883 = vand.u32 2147483647, %v2882
        %v2885 = vcvt.s32.f32 %v2878
        %v2886 = vmul.f32 %v2885, %v2883
        %v2887 = vxor.u32 %v2886, 2147483648
        %v2888 = vsel %vm2805, %v2887, %v2886
        %v2889 = vsub.s32 4, %v2865
        %v2890 = vsel %vm2805, %v2889, %v2865
        %v2891 = vsel %vm2804, %v1092, %v2888
        %v2892 = vsel %vm2804, 0, %v2890
        %v2893 = vcosq.f32.pop %v2891
        %v2894 = vsinq.f32.pop %v2891
        %vm2895 = vweird.f32 %v1092
        %v2896 = vadd.s32 %v2892, 3
        %v2897 = vand.u32 %v2896, 3
        %vm2898 = vcmp.lt.s32.totalorder %v2897, 2
        %vm2899 = vcmp.eq.s32.totalorder %v2897, 0
        %v2900 = vxor.u32 %v2894, 2147483648
        %v2901 = vsel %vm2899, %v2893, %v2900
        %vm2902 = vcmp.eq.s32.totalorder %v2897, 2
        %v2903 = vxor.u32 %v2893, 2147483648
        %v2904 = vsel %vm2902, %v2903, %v2894
        %v2905 = vsel %vm2898, %v2901, %v2904
        %v2906 = vsel %vm2895, nan, %v2905
        %v2907 = vand.u32 2147483647, %v1093
        %vm2908 = vcmp.le.f32.partialorder %v2907, 0.7853982
        %vm2909 = vcmp.lt.s32.totalorder %v1093, 0
        %v2910 = vand.u32 %v1093, 2139095040
        %v2911 = vshrl.u32 %v2910, 23
        %v2912 = vsub.s32 %v2911, 127
        %v2913 = vand.u32 2147483647, %v1093
        %v2914 = vand.u32 %v2913, 8388607
        %v2915 = vor.u32 %v2914, 8388608
        %v2916 = vsub.s32 0, %v2915
        %v2917 = vadd.s32 %v2912, 1
        %vm2918 = vcmp.gt.s32.totalorder %v2917, 0
        %v2919 = vsel %vm2918, %v2917, 0
        %v2920 = vshrl.u32 %v2919, 5
        %v2921 = vand.u32 %v2919, 31
        %v2922 = vsub.s32 32, %v2921
        %v2923 = vshrl.u32 683565275, %v2922
        %v2924 = vshll.u32 683565275, %v2921
        %v2925 = vshrl.u32 2475754826, %v2922
        %v2926 = vor.u32 %v2924, %v2925
        %v2927 = vshll.u32 2475754826, %v2921
        %v2928 = vshrl.u32 2131351028, %v2922
        %v2929 = vor.u32 %v2927, %v2928
        %v2930 = vshll.u32 2131351028, %v2921
        %v2931 = vshrl.u32 2102212464, %v2922
        %v2932 = vor.u32 %v2930, %v2931
        %v2933 = vshll.u32 2102212464, %v2921
        %v2934 = vshrl.u32 920167782, %v2922
        %v2935 = vor.u32 %v2933, %v2934
        %v2936 = vshll.u32 920167782, %v2921
        %v2937 = vshrl.u32 1326507024, %v2922
        %v2938 = vor.u32 %v2936, %v2937
        %vm2939 = vcmp.lt.s32.totalorder %v2920, 1
        %vm2940 = vcmp.lt.s32.totalorder %v2920, 2
        %vm2941 = vcmp.lt.s32.totalorder %v2920, 3
        %vm2942 = vcmp.lt.s32.totalorder %v2920, 4
        %v2943 = vsel %vm2939, %v2923, %v2926
        %v2944 = vsel %vm2942, %v2932, 2102212464
        %v2945 = vsel %vm2941, %v2929, %v2944
        %v2946 = vsel %vm2940, %v2943, %v2945
        %v2947 = vsel %vm2939, %v2926, %v2929
        %v2948 = vsel %vm2942, %v2935, 920167782
        %v2949 = vsel %vm2941, %v2932, %v2948
        %v2950 = vsel %vm2940, %v2947, %v2949
        %v2951 = vsel %vm2939, %v2929, %v2932
        %v2952 = vsel %vm2942, %v2938, 1326507024
        %v2953 = vsel %vm2941, %v2935, %v2952
        %v2954 = vsel %vm2940, %v2951, %v2953
        %v2955 = vshll.u32 %v2915, 8
        %v2956 = vmul.u32.u64.compose %v2955, %v2954
        %v2957 = vextract.low.u32 %v2956
        %v2958 = vextract.high.u32 %v2956
        %v2959 = vmul.u32.u64.compose %v2955, %v2950
        %v2960 = vextract.low.u32 %v2959
        %v2961 = vextract.high.u32 %v2959
        %v2962 = vmul.u32 %v2955, %v2946
        %v2963 = vadd.s32 %v2958, %v2960
        %vm2964 = vc.u32 %v2958, %v2960
        %v2965 = vadd.s32 %v2961, 1
        %v2966 = vsel %vm2964, %v2965, %v2961
        %v2967 = vadd.s32 %v2962, %v2966
        %v2968 = vadd.s32 %v2967, 536870912
        %v2969 = vshrl.u32 %v2968, 30
        %v2970 = vshll.u32 %v2969, 30
        %v2971 = vsub.s32 %v2967, %v2970
        %vm2972 = vcmp.lt.s32.totalorder %v2971, 0
        %v2973 = vsub.s32 0, %v2971
        %v2974 = vsel %vm2972, %v2973, %v2971
        %v2975 = vclz %v2974
        %v2976 = vsub.s32 %v2975, 2
        %vm2977 = vcmp.gt.s32.totalorder 0, %v2976
        %v2978 = vsel %vm2977, 0, %v2976
        %v2979 = vsub.s32 32, %v2978
        %v2980 = vshll.u32 %v2971, %v2978
        %v2981 = vshrl.u32 %v2963, %v2979
        %v2982 = vor.u32 %v2980, %v2981
        %v2983 = vsub.s32 4294967266, %v2978
        %v2984 = vadd.s32 %v2983, 127
        %v2985 = vshll.u32 %v2984, 23
        %v2986 = vor.u32 4788187, %v2985
        %v2987 = vand.u32 2147483647, %v2986
        %v2989 = vcvt.s32.f32 %v2982
        %v2990 = vmul.f32 %v2989, %v2987
        %v2991 = vxor.u32 %v2990, 2147483648
        %v2992 = vsel %vm2909, %v2991, %v2990
        %v2993 = vsub.s32 4, %v2969
        %v2994 = vsel %vm2909, %v2993, %v2969
        %v2995 = vsel %vm2908, %v1093, %v2992
        %v2996 = vsel %vm2908, 0, %v2994
        %v2997 = vcosq.f32.pop %v2995
        %v2998 = vsinq.f32.pop %v2995
        %vm2999 = vweird.f32 %v1093
        %v3000 = vadd.s32 %v2996, 3
        %v3001 = vand.u32 %v3000, 3
        %vm3002 = vcmp.lt.s32.totalorder %v3001, 2
        %vm3003 = vcmp.eq.s32.totalorder %v3001, 0
        %v3004 = vxor.u32 %v2998, 2147483648
        %v3005 = vsel %vm3003, %v2997, %v3004
        %vm3006 = vcmp.eq.s32.totalorder %v3001, 2
        %v3007 = vxor.u32 %v2997, 2147483648
        %v3008 = vsel %vm3006, %v3007, %v2998
        %v3009 = vsel %vm3002, %v3005, %v3008
        %v3010 = vsel %vm2999, nan, %v3009
        %v3011 = vand.u32 2147483647, %v1094
        %vm3012 = vcmp.le.f32.partialorder %v3011, 0.7853982
        %vm3013 = vcmp.lt.s32.totalorder %v1094, 0
        %v3014 = vand.u32 %v1094, 2139095040
        %v3015 = vshrl.u32 %v3014, 23
        %v3016 = vsub.s32 %v3015, 127
        %v3017 = vand.u32 2147483647, %v1094
        %v3018 = vand.u32 %v3017, 8388607
        %v3019 = vor.u32 %v3018, 8388608
        %v3020 = vsub.s32 0, %v3019
        %v3021 = vadd.s32 %v3016, 1
        %vm3022 = vcmp.gt.s32.totalorder %v3021, 0
        %v3023 = vsel %vm3022, %v3021, 0
        %v3024 = vshrl.u32 %v3023, 5
        %v3025 = vand.u32 %v3023, 31
        %v3026 = vsub.s32 32, %v3025
        %v3027 = vshrl.u32 683565275, %v3026
        %v3028 = vshll.u32 683565275, %v3025
        %v3029 = vshrl.u32 2475754826, %v3026
        %v3030 = vor.u32 %v3028, %v3029
        %v3031 = vshll.u32 2475754826, %v3025
        %v3032 = vshrl.u32 2131351028, %v3026
        %v3033 = vor.u32 %v3031, %v3032
        %v3034 = vshll.u32 2131351028, %v3025
        %v3035 = vshrl.u32 2102212464, %v3026
        %v3036 = vor.u32 %v3034, %v3035
        %v3037 = vshll.u32 2102212464, %v3025
        %v3038 = vshrl.u32 920167782, %v3026
        %v3039 = vor.u32 %v3037, %v3038
        %v3040 = vshll.u32 920167782, %v3025
        %v3041 = vshrl.u32 1326507024, %v3026
        %v3042 = vor.u32 %v3040, %v3041
        %vm3043 = vcmp.lt.s32.totalorder %v3024, 1
        %vm3044 = vcmp.lt.s32.totalorder %v3024, 2
        %vm3045 = vcmp.lt.s32.totalorder %v3024, 3
        %vm3046 = vcmp.lt.s32.totalorder %v3024, 4
        %v3047 = vsel %vm3043, %v3027, %v3030
        %v3048 = vsel %vm3046, %v3036, 2102212464
        %v3049 = vsel %vm3045, %v3033, %v3048
        %v3050 = vsel %vm3044, %v3047, %v3049
        %v3051 = vsel %vm3043, %v3030, %v3033
        %v3052 = vsel %vm3046, %v3039, 920167782
        %v3053 = vsel %vm3045, %v3036, %v3052
        %v3054 = vsel %vm3044, %v3051, %v3053
        %v3055 = vsel %vm3043, %v3033, %v3036
        %v3056 = vsel %vm3046, %v3042, 1326507024
        %v3057 = vsel %vm3045, %v3039, %v3056
        %v3058 = vsel %vm3044, %v3055, %v3057
        %v3059 = vshll.u32 %v3019, 8
        %v3060 = vmul.u32.u64.compose %v3059, %v3058
        %v3061 = vextract.low.u32 %v3060
        %v3062 = vextract.high.u32 %v3060
        %v3063 = vmul.u32.u64.compose %v3059, %v3054
        %v3064 = vextract.low.u32 %v3063
        %v3065 = vextract.high.u32 %v3063
        %v3066 = vmul.u32 %v3059, %v3050
        %v3067 = vadd.s32 %v3062, %v3064
        %vm3068 = vc.u32 %v3062, %v3064
        %v3069 = vadd.s32 %v3065, 1
        %v3070 = vsel %vm3068, %v3069, %v3065
        %v3071 = vadd.s32 %v3066, %v3070
        %v3072 = vadd.s32 %v3071, 536870912
        %v3073 = vshrl.u32 %v3072, 30
        %v3074 = vshll.u32 %v3073, 30
        %v3075 = vsub.s32 %v3071, %v3074
        %vm3076 = vcmp.lt.s32.totalorder %v3075, 0
        %v3077 = vsub.s32 0, %v3075
        %v3078 = vsel %vm3076, %v3077, %v3075
        %v3079 = vclz %v3078
        %v3080 = vsub.s32 %v3079, 2
        %vm3081 = vcmp.gt.s32.totalorder 0, %v3080
        %v3082 = vsel %vm3081, 0, %v3080
        %v3083 = vsub.s32 32, %v3082
        %v3084 = vshll.u32 %v3075, %v3082
        %v3085 = vshrl.u32 %v3067, %v3083
        %v3086 = vor.u32 %v3084, %v3085
        %v3087 = vsub.s32 4294967266, %v3082
        %v3088 = vadd.s32 %v3087, 127
        %v3089 = vshll.u32 %v3088, 23
        %v3090 = vor.u32 4788187, %v3089
        %v3091 = vand.u32 2147483647, %v3090
        %v3093 = vcvt.s32.f32 %v3086
        %v3094 = vmul.f32 %v3093, %v3091
        %v3095 = vxor.u32 %v3094, 2147483648
        %v3096 = vsel %vm3013, %v3095, %v3094
        %v3097 = vsub.s32 4, %v3073
        %v3098 = vsel %vm3013, %v3097, %v3073
        %v3099 = vsel %vm3012, %v1094, %v3096
        %v3100 = vsel %vm3012, 0, %v3098
        %v3101 = vcosq.f32.pop %v3099
        %v3102 = vsinq.f32.pop %v3099
        %vm3103 = vweird.f32 %v1094
        %v3104 = vadd.s32 %v3100, 3
        %v3105 = vand.u32 %v3104, 3
        %vm3106 = vcmp.lt.s32.totalorder %v3105, 2
        %vm3107 = vcmp.eq.s32.totalorder %v3105, 0
        %v3108 = vxor.u32 %v3102, 2147483648
        %v3109 = vsel %vm3107, %v3101, %v3108
        %vm3110 = vcmp.eq.s32.totalorder %v3105, 2
        %v3111 = vxor.u32 %v3101, 2147483648
        %v3112 = vsel %vm3110, %v3111, %v3102
        %v3113 = vsel %vm3106, %v3109, %v3112
        %v3114 = vsel %vm3103, nan, %v3113
        %v3115 = vand.u32 2147483647, %v1095
        %vm3116 = vcmp.le.f32.partialorder %v3115, 0.7853982
        %vm3117 = vcmp.lt.s32.totalorder %v1095, 0
        %v3118 = vand.u32 %v1095, 2139095040
        %v3119 = vshrl.u32 %v3118, 23
        %v3120 = vsub.s32 %v3119, 127
        %v3121 = vand.u32 2147483647, %v1095
        %v3122 = vand.u32 %v3121, 8388607
        %v3123 = vor.u32 %v3122, 8388608
        %v3124 = vsub.s32 0, %v3123
        %v3125 = vadd.s32 %v3120, 1
        %vm3126 = vcmp.gt.s32.totalorder %v3125, 0
        %v3127 = vsel %vm3126, %v3125, 0
        %v3128 = vshrl.u32 %v3127, 5
        %v3129 = vand.u32 %v3127, 31
        %v3130 = vsub.s32 32, %v3129
        %v3131 = vshrl.u32 683565275, %v3130
        %v3132 = vshll.u32 683565275, %v3129
        %v3133 = vshrl.u32 2475754826, %v3130
        %v3134 = vor.u32 %v3132, %v3133
        %v3135 = vshll.u32 2475754826, %v3129
        %v3136 = vshrl.u32 2131351028, %v3130
        %v3137 = vor.u32 %v3135, %v3136
        %v3138 = vshll.u32 2131351028, %v3129
        %v3139 = vshrl.u32 2102212464, %v3130
        %v3140 = vor.u32 %v3138, %v3139
        %v3141 = vshll.u32 2102212464, %v3129
        %v3142 = vshrl.u32 920167782, %v3130
        %v3143 = vor.u32 %v3141, %v3142
        %v3144 = vshll.u32 920167782, %v3129
        %v3145 = vshrl.u32 1326507024, %v3130
        %v3146 = vor.u32 %v3144, %v3145
        %vm3147 = vcmp.lt.s32.totalorder %v3128, 1
        %vm3148 = vcmp.lt.s32.totalorder %v3128, 2
        %vm3149 = vcmp.lt.s32.totalorder %v3128, 3
        %vm3150 = vcmp.lt.s32.totalorder %v3128, 4
        %v3151 = vsel %vm3147, %v3131, %v3134
        %v3152 = vsel %vm3150, %v3140, 2102212464
        %v3153 = vsel %vm3149, %v3137, %v3152
        %v3154 = vsel %vm3148, %v3151, %v3153
        %v3155 = vsel %vm3147, %v3134, %v3137
        %v3156 = vsel %vm3150, %v3143, 920167782
        %v3157 = vsel %vm3149, %v3140, %v3156
        %v3158 = vsel %vm3148, %v3155, %v3157
        %v3159 = vsel %vm3147, %v3137, %v3140
        %v3160 = vsel %vm3150, %v3146, 1326507024
        %v3161 = vsel %vm3149, %v3143, %v3160
        %v3162 = vsel %vm3148, %v3159, %v3161
        %v3163 = vshll.u32 %v3123, 8
        %v3164 = vmul.u32.u64.compose %v3163, %v3162
        %v3165 = vextract.low.u32 %v3164
        %v3166 = vextract.high.u32 %v3164
        %v3167 = vmul.u32.u64.compose %v3163, %v3158
        %v3168 = vextract.low.u32 %v3167
        %v3169 = vextract.high.u32 %v3167
        %v3170 = vmul.u32 %v3163, %v3154
        %v3171 = vadd.s32 %v3166, %v3168
        %vm3172 = vc.u32 %v3166, %v3168
        %v3173 = vadd.s32 %v3169, 1
        %v3174 = vsel %vm3172, %v3173, %v3169
        %v3175 = vadd.s32 %v3170, %v3174
        %v3176 = vadd.s32 %v3175, 536870912
        %v3177 = vshrl.u32 %v3176, 30
        %v3178 = vshll.u32 %v3177, 30
        %v3179 = vsub.s32 %v3175, %v3178
        %vm3180 = vcmp.lt.s32.totalorder %v3179, 0
        %v3181 = vsub.s32 0, %v3179
        %v3182 = vsel %vm3180, %v3181, %v3179
        %v3183 = vclz %v3182
        %v3184 = vsub.s32 %v3183, 2
        %vm3185 = vcmp.gt.s32.totalorder 0, %v3184
        %v3186 = vsel %vm3185, 0, %v3184
        %v3187 = vsub.s32 32, %v3186
        %v3188 = vshll.u32 %v3179, %v3186
        %v3189 = vshrl.u32 %v3171, %v3187
        %v3190 = vor.u32 %v3188, %v3189
        %v3191 = vsub.s32 4294967266, %v3186
        %v3192 = vadd.s32 %v3191, 127
        %v3193 = vshll.u32 %v3192, 23
        %v3194 = vor.u32 4788187, %v3193
        %v3195 = vand.u32 2147483647, %v3194
        %v3197 = vcvt.s32.f32 %v3190
        %v3198 = vmul.f32 %v3197, %v3195
        %v3199 = vxor.u32 %v3198, 2147483648
        %v3200 = vsel %vm3117, %v3199, %v3198
        %v3201 = vsub.s32 4, %v3177
        %v3202 = vsel %vm3117, %v3201, %v3177
        %v3203 = vsel %vm3116, %v1095, %v3200
        %v3204 = vsel %vm3116, 0, %v3202
        %v3205 = vcosq.f32.pop %v3203
        %v3206 = vsinq.f32.pop %v3203
        %vm3207 = vweird.f32 %v1095
        %v3208 = vadd.s32 %v3204, 3
        %v3209 = vand.u32 %v3208, 3
        %vm3210 = vcmp.lt.s32.totalorder %v3209, 2
        %vm3211 = vcmp.eq.s32.totalorder %v3209, 0
        %v3212 = vxor.u32 %v3206, 2147483648
        %v3213 = vsel %vm3211, %v3205, %v3212
        %vm3214 = vcmp.eq.s32.totalorder %v3209, 2
        %v3215 = vxor.u32 %v3205, 2147483648
        %v3216 = vsel %vm3214, %v3215, %v3206
        %v3217 = vsel %vm3210, %v3213, %v3216
        %v3218 = vsel %vm3207, nan, %v3217
        %v3219 = vand.u32 2147483647, %v1096
        %vm3220 = vcmp.le.f32.partialorder %v3219, 0.7853982
        %vm3221 = vcmp.lt.s32.totalorder %v1096, 0
        %v3222 = vand.u32 %v1096, 2139095040
        %v3223 = vshrl.u32 %v3222, 23
        %v3224 = vsub.s32 %v3223, 127
        %v3225 = vand.u32 2147483647, %v1096
        %v3226 = vand.u32 %v3225, 8388607
        %v3227 = vor.u32 %v3226, 8388608
        %v3228 = vsub.s32 0, %v3227
        %v3229 = vadd.s32 %v3224, 1
        %vm3230 = vcmp.gt.s32.totalorder %v3229, 0
        %v3231 = vsel %vm3230, %v3229, 0
        %v3232 = vshrl.u32 %v3231, 5
        %v3233 = vand.u32 %v3231, 31
        %v3234 = vsub.s32 32, %v3233
        %v3235 = vshrl.u32 683565275, %v3234
        %v3236 = vshll.u32 683565275, %v3233
        %v3237 = vshrl.u32 2475754826, %v3234
        %v3238 = vor.u32 %v3236, %v3237
        %v3239 = vshll.u32 2475754826, %v3233
        %v3240 = vshrl.u32 2131351028, %v3234
        %v3241 = vor.u32 %v3239, %v3240
        %v3242 = vshll.u32 2131351028, %v3233
        %v3243 = vshrl.u32 2102212464, %v3234
        %v3244 = vor.u32 %v3242, %v3243
        %v3245 = vshll.u32 2102212464, %v3233
        %v3246 = vshrl.u32 920167782, %v3234
        %v3247 = vor.u32 %v3245, %v3246
        %v3248 = vshll.u32 920167782, %v3233
        %v3249 = vshrl.u32 1326507024, %v3234
        %v3250 = vor.u32 %v3248, %v3249
        %vm3251 = vcmp.lt.s32.totalorder %v3232, 1
        %vm3252 = vcmp.lt.s32.totalorder %v3232, 2
        %vm3253 = vcmp.lt.s32.totalorder %v3232, 3
        %vm3254 = vcmp.lt.s32.totalorder %v3232, 4
        %v3255 = vsel %vm3251, %v3235, %v3238
        %v3256 = vsel %vm3254, %v3244, 2102212464
        %v3257 = vsel %vm3253, %v3241, %v3256
        %v3258 = vsel %vm3252, %v3255, %v3257
        %v3259 = vsel %vm3251, %v3238, %v3241
        %v3260 = vsel %vm3254, %v3247, 920167782
        %v3261 = vsel %vm3253, %v3244, %v3260
        %v3262 = vsel %vm3252, %v3259, %v3261
        %v3263 = vsel %vm3251, %v3241, %v3244
        %v3264 = vsel %vm3254, %v3250, 1326507024
        %v3265 = vsel %vm3253, %v3247, %v3264
        %v3266 = vsel %vm3252, %v3263, %v3265
        %v3267 = vshll.u32 %v3227, 8
        %v3268 = vmul.u32.u64.compose %v3267, %v3266
        %v3269 = vextract.low.u32 %v3268
        %v3270 = vextract.high.u32 %v3268
        %v3271 = vmul.u32.u64.compose %v3267, %v3262
        %v3272 = vextract.low.u32 %v3271
        %v3273 = vextract.high.u32 %v3271
        %v3274 = vmul.u32 %v3267, %v3258
        %v3275 = vadd.s32 %v3270, %v3272
        %vm3276 = vc.u32 %v3270, %v3272
        %v3277 = vadd.s32 %v3273, 1
        %v3278 = vsel %vm3276, %v3277, %v3273
        %v3279 = vadd.s32 %v3274, %v3278
        %v3280 = vadd.s32 %v3279, 536870912
        %v3281 = vshrl.u32 %v3280, 30
        %v3282 = vshll.u32 %v3281, 30
        %v3283 = vsub.s32 %v3279, %v3282
        %vm3284 = vcmp.lt.s32.totalorder %v3283, 0
        %v3285 = vsub.s32 0, %v3283
        %v3286 = vsel %vm3284, %v3285, %v3283
        %v3287 = vclz %v3286
        %v3288 = vsub.s32 %v3287, 2
        %vm3289 = vcmp.gt.s32.totalorder 0, %v3288
        %v3290 = vsel %vm3289, 0, %v3288
        %v3291 = vsub.s32 32, %v3290
        %v3292 = vshll.u32 %v3283, %v3290
        %v3293 = vshrl.u32 %v3275, %v3291
        %v3294 = vor.u32 %v3292, %v3293
        %v3295 = vsub.s32 4294967266, %v3290
        %v3296 = vadd.s32 %v3295, 127
        %v3297 = vshll.u32 %v3296, 23
        %v3298 = vor.u32 4788187, %v3297
        %v3299 = vand.u32 2147483647, %v3298
        %v3301 = vcvt.s32.f32 %v3294
        %v3302 = vmul.f32 %v3301, %v3299
        %v3303 = vxor.u32 %v3302, 2147483648
        %v3304 = vsel %vm3221, %v3303, %v3302
        %v3305 = vsub.s32 4, %v3281
        %v3306 = vsel %vm3221, %v3305, %v3281
        %v3307 = vsel %vm3220, %v1096, %v3304
        %v3308 = vsel %vm3220, 0, %v3306
        %v3309 = vcosq.f32.pop %v3307
        %v3310 = vsinq.f32.pop %v3307
        %vm3311 = vweird.f32 %v1096
        %v3312 = vadd.s32 %v3308, 3
        %v3313 = vand.u32 %v3312, 3
        %vm3314 = vcmp.lt.s32.totalorder %v3313, 2
        %vm3315 = vcmp.eq.s32.totalorder %v3313, 0
        %v3316 = vxor.u32 %v3310, 2147483648
        %v3317 = vsel %vm3315, %v3309, %v3316
        %vm3318 = vcmp.eq.s32.totalorder %v3313, 2
        %v3319 = vxor.u32 %v3309, 2147483648
        %v3320 = vsel %vm3318, %v3319, %v3310
        %v3321 = vsel %vm3314, %v3317, %v3320
        %v3322 = vsel %vm3311, nan, %v3321
        %v3323 = vand.u32 2147483647, %v1097
        %vm3324 = vcmp.le.f32.partialorder %v3323, 0.7853982
        %vm3325 = vcmp.lt.s32.totalorder %v1097, 0
        %v3326 = vand.u32 %v1097, 2139095040
        %v3327 = vshrl.u32 %v3326, 23
        %v3328 = vsub.s32 %v3327, 127
        %v3329 = vand.u32 2147483647, %v1097
        %v3330 = vand.u32 %v3329, 8388607
        %v3331 = vor.u32 %v3330, 8388608
        %v3332 = vsub.s32 0, %v3331
        %v3333 = vadd.s32 %v3328, 1
        %vm3334 = vcmp.gt.s32.totalorder %v3333, 0
        %v3335 = vsel %vm3334, %v3333, 0
        %v3336 = vshrl.u32 %v3335, 5
        %v3337 = vand.u32 %v3335, 31
        %v3338 = vsub.s32 32, %v3337
        %v3339 = vshrl.u32 683565275, %v3338
        %v3340 = vshll.u32 683565275, %v3337
        %v3341 = vshrl.u32 2475754826, %v3338
        %v3342 = vor.u32 %v3340, %v3341
        %v3343 = vshll.u32 2475754826, %v3337
        %v3344 = vshrl.u32 2131351028, %v3338
        %v3345 = vor.u32 %v3343, %v3344
        %v3346 = vshll.u32 2131351028, %v3337
        %v3347 = vshrl.u32 2102212464, %v3338
        %v3348 = vor.u32 %v3346, %v3347
        %v3349 = vshll.u32 2102212464, %v3337
        %v3350 = vshrl.u32 920167782, %v3338
        %v3351 = vor.u32 %v3349, %v3350
        %v3352 = vshll.u32 920167782, %v3337
        %v3353 = vshrl.u32 1326507024, %v3338
        %v3354 = vor.u32 %v3352, %v3353
        %vm3355 = vcmp.lt.s32.totalorder %v3336, 1
        %vm3356 = vcmp.lt.s32.totalorder %v3336, 2
        %vm3357 = vcmp.lt.s32.totalorder %v3336, 3
        %vm3358 = vcmp.lt.s32.totalorder %v3336, 4
        %v3359 = vsel %vm3355, %v3339, %v3342
        %v3360 = vsel %vm3358, %v3348, 2102212464
        %v3361 = vsel %vm3357, %v3345, %v3360
        %v3362 = vsel %vm3356, %v3359, %v3361
        %v3363 = vsel %vm3355, %v3342, %v3345
        %v3364 = vsel %vm3358, %v3351, 920167782
        %v3365 = vsel %vm3357, %v3348, %v3364
        %v3366 = vsel %vm3356, %v3363, %v3365
        %v3367 = vsel %vm3355, %v3345, %v3348
        %v3368 = vsel %vm3358, %v3354, 1326507024
        %v3369 = vsel %vm3357, %v3351, %v3368
        %v3370 = vsel %vm3356, %v3367, %v3369
        %v3371 = vshll.u32 %v3331, 8
        %v3372 = vmul.u32.u64.compose %v3371, %v3370
        %v3373 = vextract.low.u32 %v3372
        %v3374 = vextract.high.u32 %v3372
        %v3375 = vmul.u32.u64.compose %v3371, %v3366
        %v3376 = vextract.low.u32 %v3375
        %v3377 = vextract.high.u32 %v3375
        %v3378 = vmul.u32 %v3371, %v3362
        %v3379 = vadd.s32 %v3374, %v3376
        %vm3380 = vc.u32 %v3374, %v3376
        %v3381 = vadd.s32 %v3377, 1
        %v3382 = vsel %vm3380, %v3381, %v3377
        %v3383 = vadd.s32 %v3378, %v3382
        %v3384 = vadd.s32 %v3383, 536870912
        %v3385 = vshrl.u32 %v3384, 30
        %v3386 = vshll.u32 %v3385, 30
        %v3387 = vsub.s32 %v3383, %v3386
        %vm3388 = vcmp.lt.s32.totalorder %v3387, 0
        %v3389 = vsub.s32 0, %v3387
        %v3390 = vsel %vm3388, %v3389, %v3387
        %v3391 = vclz %v3390
        %v3392 = vsub.s32 %v3391, 2
        %vm3393 = vcmp.gt.s32.totalorder 0, %v3392
        %v3394 = vsel %vm3393, 0, %v3392
        %v3395 = vsub.s32 32, %v3394
        %v3396 = vshll.u32 %v3387, %v3394
        %v3397 = vshrl.u32 %v3379, %v3395
        %v3398 = vor.u32 %v3396, %v3397
        %v3399 = vsub.s32 4294967266, %v3394
        %v3400 = vadd.s32 %v3399, 127
        %v3401 = vshll.u32 %v3400, 23
        %v3402 = vor.u32 4788187, %v3401
        %v3403 = vand.u32 2147483647, %v3402
        %v3405 = vcvt.s32.f32 %v3398
        %v3406 = vmul.f32 %v3405, %v3403
        %v3407 = vxor.u32 %v3406, 2147483648
        %v3408 = vsel %vm3325, %v3407, %v3406
        %v3409 = vsub.s32 4, %v3385
        %v3410 = vsel %vm3325, %v3409, %v3385
        %v3411 = vsel %vm3324, %v1097, %v3408
        %v3412 = vsel %vm3324, 0, %v3410
        %v3413 = vcosq.f32.pop %v3411
        %v3414 = vsinq.f32.pop %v3411
        %vm3415 = vweird.f32 %v1097
        %v3416 = vadd.s32 %v3412, 3
        %v3417 = vand.u32 %v3416, 3
        %vm3418 = vcmp.lt.s32.totalorder %v3417, 2
        %vm3419 = vcmp.eq.s32.totalorder %v3417, 0
        %v3420 = vxor.u32 %v3414, 2147483648
        %v3421 = vsel %vm3419, %v3413, %v3420
        %vm3422 = vcmp.eq.s32.totalorder %v3417, 2
        %v3423 = vxor.u32 %v3413, 2147483648
        %v3424 = vsel %vm3422, %v3423, %v3414
        %v3425 = vsel %vm3418, %v3421, %v3424
        %v3426 = vsel %vm3415, nan, %v3425
        %v3427 = vand.u32 2147483647, %v1098
        %vm3428 = vcmp.le.f32.partialorder %v3427, 0.7853982
        %vm3429 = vcmp.lt.s32.totalorder %v1098, 0
        %v3430 = vand.u32 %v1098, 2139095040
        %v3431 = vshrl.u32 %v3430, 23
        %v3432 = vsub.s32 %v3431, 127
        %v3433 = vand.u32 2147483647, %v1098
        %v3434 = vand.u32 %v3433, 8388607
        %v3435 = vor.u32 %v3434, 8388608
        %v3436 = vsub.s32 0, %v3435
        %v3437 = vadd.s32 %v3432, 1
        %vm3438 = vcmp.gt.s32.totalorder %v3437, 0
        %v3439 = vsel %vm3438, %v3437, 0
        %v3440 = vshrl.u32 %v3439, 5
        %v3441 = vand.u32 %v3439, 31
        %v3442 = vsub.s32 32, %v3441
        %v3443 = vshrl.u32 683565275, %v3442
        %v3444 = vshll.u32 683565275, %v3441
        %v3445 = vshrl.u32 2475754826, %v3442
        %v3446 = vor.u32 %v3444, %v3445
        %v3447 = vshll.u32 2475754826, %v3441
        %v3448 = vshrl.u32 2131351028, %v3442
        %v3449 = vor.u32 %v3447, %v3448
        %v3450 = vshll.u32 2131351028, %v3441
        %v3451 = vshrl.u32 2102212464, %v3442
        %v3452 = vor.u32 %v3450, %v3451
        %v3453 = vshll.u32 2102212464, %v3441
        %v3454 = vshrl.u32 920167782, %v3442
        %v3455 = vor.u32 %v3453, %v3454
        %v3456 = vshll.u32 920167782, %v3441
        %v3457 = vshrl.u32 1326507024, %v3442
        %v3458 = vor.u32 %v3456, %v3457
        %vm3459 = vcmp.lt.s32.totalorder %v3440, 1
        %vm3460 = vcmp.lt.s32.totalorder %v3440, 2
        %vm3461 = vcmp.lt.s32.totalorder %v3440, 3
        %vm3462 = vcmp.lt.s32.totalorder %v3440, 4
        %v3463 = vsel %vm3459, %v3443, %v3446
        %v3464 = vsel %vm3462, %v3452, 2102212464
        %v3465 = vsel %vm3461, %v3449, %v3464
        %v3466 = vsel %vm3460, %v3463, %v3465
        %v3467 = vsel %vm3459, %v3446, %v3449
        %v3468 = vsel %vm3462, %v3455, 920167782
        %v3469 = vsel %vm3461, %v3452, %v3468
        %v3470 = vsel %vm3460, %v3467, %v3469
        %v3471 = vsel %vm3459, %v3449, %v3452
        %v3472 = vsel %vm3462, %v3458, 1326507024
        %v3473 = vsel %vm3461, %v3455, %v3472
        %v3474 = vsel %vm3460, %v3471, %v3473
        %v3475 = vshll.u32 %v3435, 8
        %v3476 = vmul.u32.u64.compose %v3475, %v3474
        %v3477 = vextract.low.u32 %v3476
        %v3478 = vextract.high.u32 %v3476
        %v3479 = vmul.u32.u64.compose %v3475, %v3470
        %v3480 = vextract.low.u32 %v3479
        %v3481 = vextract.high.u32 %v3479
        %v3482 = vmul.u32 %v3475, %v3466
        %v3483 = vadd.s32 %v3478, %v3480
        %vm3484 = vc.u32 %v3478, %v3480
        %v3485 = vadd.s32 %v3481, 1
        %v3486 = vsel %vm3484, %v3485, %v3481
        %v3487 = vadd.s32 %v3482, %v3486
        %v3488 = vadd.s32 %v3487, 536870912
        %v3489 = vshrl.u32 %v3488, 30
        %v3490 = vshll.u32 %v3489, 30
        %v3491 = vsub.s32 %v3487, %v3490
        %vm3492 = vcmp.lt.s32.totalorder %v3491, 0
        %v3493 = vsub.s32 0, %v3491
        %v3494 = vsel %vm3492, %v3493, %v3491
        %v3495 = vclz %v3494
        %v3496 = vsub.s32 %v3495, 2
        %vm3497 = vcmp.gt.s32.totalorder 0, %v3496
        %v3498 = vsel %vm3497, 0, %v3496
        %v3499 = vsub.s32 32, %v3498
        %v3500 = vshll.u32 %v3491, %v3498
        %v3501 = vshrl.u32 %v3483, %v3499
        %v3502 = vor.u32 %v3500, %v3501
        %v3503 = vsub.s32 4294967266, %v3498
        %v3504 = vadd.s32 %v3503, 127
        %v3505 = vshll.u32 %v3504, 23
        %v3506 = vor.u32 4788187, %v3505
        %v3507 = vand.u32 2147483647, %v3506
        %v3509 = vcvt.s32.f32 %v3502
        %v3510 = vmul.f32 %v3509, %v3507
        %v3511 = vxor.u32 %v3510, 2147483648
        %v3512 = vsel %vm3429, %v3511, %v3510
        %v3513 = vsub.s32 4, %v3489
        %v3514 = vsel %vm3429, %v3513, %v3489
        %v3515 = vsel %vm3428, %v1098, %v3512
        %v3516 = vsel %vm3428, 0, %v3514
        %v3517 = vcosq.f32.pop %v3515
        %v3518 = vsinq.f32.pop %v3515
        %vm3519 = vweird.f32 %v1098
        %v3520 = vadd.s32 %v3516, 3
        %v3521 = vand.u32 %v3520, 3
        %vm3522 = vcmp.lt.s32.totalorder %v3521, 2
        %vm3523 = vcmp.eq.s32.totalorder %v3521, 0
        %v3524 = vxor.u32 %v3518, 2147483648
        %v3525 = vsel %vm3523, %v3517, %v3524
        %vm3526 = vcmp.eq.s32.totalorder %v3521, 2
        %v3527 = vxor.u32 %v3517, 2147483648
        %v3528 = vsel %vm3526, %v3527, %v3518
        %v3529 = vsel %vm3522, %v3525, %v3528
        %v3530 = vsel %vm3519, nan, %v3529
        %v3531 = vand.u32 2147483647, %v1099
        %vm3532 = vcmp.le.f32.partialorder %v3531, 0.7853982
        %vm3533 = vcmp.lt.s32.totalorder %v1099, 0
        %v3534 = vand.u32 %v1099, 2139095040
        %v3535 = vshrl.u32 %v3534, 23
        %v3536 = vsub.s32 %v3535, 127
        %v3537 = vand.u32 2147483647, %v1099
        %v3538 = vand.u32 %v3537, 8388607
        %v3539 = vor.u32 %v3538, 8388608
        %v3540 = vsub.s32 0, %v3539
        %v3541 = vadd.s32 %v3536, 1
        %vm3542 = vcmp.gt.s32.totalorder %v3541, 0
        %v3543 = vsel %vm3542, %v3541, 0
        %v3544 = vshrl.u32 %v3543, 5
        %v3545 = vand.u32 %v3543, 31
        %v3546 = vsub.s32 32, %v3545
        %v3547 = vshrl.u32 683565275, %v3546
        %v3548 = vshll.u32 683565275, %v3545
        %v3549 = vshrl.u32 2475754826, %v3546
        %v3550 = vor.u32 %v3548, %v3549
        %v3551 = vshll.u32 2475754826, %v3545
        %v3552 = vshrl.u32 2131351028, %v3546
        %v3553 = vor.u32 %v3551, %v3552
        %v3554 = vshll.u32 2131351028, %v3545
        %v3555 = vshrl.u32 2102212464, %v3546
        %v3556 = vor.u32 %v3554, %v3555
        %v3557 = vshll.u32 2102212464, %v3545
        %v3558 = vshrl.u32 920167782, %v3546
        %v3559 = vor.u32 %v3557, %v3558
        %v3560 = vshll.u32 920167782, %v3545
        %v3561 = vshrl.u32 1326507024, %v3546
        %v3562 = vor.u32 %v3560, %v3561
        %vm3563 = vcmp.lt.s32.totalorder %v3544, 1
        %vm3564 = vcmp.lt.s32.totalorder %v3544, 2
        %vm3565 = vcmp.lt.s32.totalorder %v3544, 3
        %vm3566 = vcmp.lt.s32.totalorder %v3544, 4
        %v3567 = vsel %vm3563, %v3547, %v3550
        %v3568 = vsel %vm3566, %v3556, 2102212464
        %v3569 = vsel %vm3565, %v3553, %v3568
        %v3570 = vsel %vm3564, %v3567, %v3569
        %v3571 = vsel %vm3563, %v3550, %v3553
        %v3572 = vsel %vm3566, %v3559, 920167782
        %v3573 = vsel %vm3565, %v3556, %v3572
        %v3574 = vsel %vm3564, %v3571, %v3573
        %v3575 = vsel %vm3563, %v3553, %v3556
        %v3576 = vsel %vm3566, %v3562, 1326507024
        %v3577 = vsel %vm3565, %v3559, %v3576
        %v3578 = vsel %vm3564, %v3575, %v3577
        %v3579 = vshll.u32 %v3539, 8
        %v3580 = vmul.u32.u64.compose %v3579, %v3578
        %v3581 = vextract.low.u32 %v3580
        %v3582 = vextract.high.u32 %v3580
        %v3583 = vmul.u32.u64.compose %v3579, %v3574
        %v3584 = vextract.low.u32 %v3583
        %v3585 = vextract.high.u32 %v3583
        %v3586 = vmul.u32 %v3579, %v3570
        %v3587 = vadd.s32 %v3582, %v3584
        %vm3588 = vc.u32 %v3582, %v3584
        %v3589 = vadd.s32 %v3585, 1
        %v3590 = vsel %vm3588, %v3589, %v3585
        %v3591 = vadd.s32 %v3586, %v3590
        %v3592 = vadd.s32 %v3591, 536870912
        %v3593 = vshrl.u32 %v3592, 30
        %v3594 = vshll.u32 %v3593, 30
        %v3595 = vsub.s32 %v3591, %v3594
        %vm3596 = vcmp.lt.s32.totalorder %v3595, 0
        %v3597 = vsub.s32 0, %v3595
        %v3598 = vsel %vm3596, %v3597, %v3595
        %v3599 = vclz %v3598
        %v3600 = vsub.s32 %v3599, 2
        %vm3601 = vcmp.gt.s32.totalorder 0, %v3600
        %v3602 = vsel %vm3601, 0, %v3600
        %v3603 = vsub.s32 32, %v3602
        %v3604 = vshll.u32 %v3595, %v3602
        %v3605 = vshrl.u32 %v3587, %v3603
        %v3606 = vor.u32 %v3604, %v3605
        %v3607 = vsub.s32 4294967266, %v3602
        %v3608 = vadd.s32 %v3607, 127
        %v3609 = vshll.u32 %v3608, 23
        %v3610 = vor.u32 4788187, %v3609
        %v3611 = vand.u32 2147483647, %v3610
        %v3613 = vcvt.s32.f32 %v3606
        %v3614 = vmul.f32 %v3613, %v3611
        %v3615 = vxor.u32 %v3614, 2147483648
        %v3616 = vsel %vm3533, %v3615, %v3614
        %v3617 = vsub.s32 4, %v3593
        %v3618 = vsel %vm3533, %v3617, %v3593
        %v3619 = vsel %vm3532, %v1099, %v3616
        %v3620 = vsel %vm3532, 0, %v3618
        %v3621 = vcosq.f32.pop %v3619
        %v3622 = vsinq.f32.pop %v3619
        %vm3623 = vweird.f32 %v1099
        %v3624 = vadd.s32 %v3620, 3
        %v3625 = vand.u32 %v3624, 3
        %vm3626 = vcmp.lt.s32.totalorder %v3625, 2
        %vm3627 = vcmp.eq.s32.totalorder %v3625, 0
        %v3628 = vxor.u32 %v3622, 2147483648
        %v3629 = vsel %vm3627, %v3621, %v3628
        %vm3630 = vcmp.eq.s32.totalorder %v3625, 2
        %v3631 = vxor.u32 %v3621, 2147483648
        %v3632 = vsel %vm3630, %v3631, %v3622
        %v3633 = vsel %vm3626, %v3629, %v3632
        %v3634 = vsel %vm3623, nan, %v3633
        %v3635 = vand.u32 2147483647, %v1100
        %vm3636 = vcmp.le.f32.partialorder %v3635, 0.7853982
        %vm3637 = vcmp.lt.s32.totalorder %v1100, 0
        %v3638 = vand.u32 %v1100, 2139095040
        %v3639 = vshrl.u32 %v3638, 23
        %v3640 = vsub.s32 %v3639, 127
        %v3641 = vand.u32 2147483647, %v1100
        %v3642 = vand.u32 %v3641, 8388607
        %v3643 = vor.u32 %v3642, 8388608
        %v3644 = vsub.s32 0, %v3643
        %v3645 = vadd.s32 %v3640, 1
        %vm3646 = vcmp.gt.s32.totalorder %v3645, 0
        %v3647 = vsel %vm3646, %v3645, 0
        %v3648 = vshrl.u32 %v3647, 5
        %v3649 = vand.u32 %v3647, 31
        %v3650 = vsub.s32 32, %v3649
        %v3651 = vshrl.u32 683565275, %v3650
        %v3652 = vshll.u32 683565275, %v3649
        %v3653 = vshrl.u32 2475754826, %v3650
        %v3654 = vor.u32 %v3652, %v3653
        %v3655 = vshll.u32 2475754826, %v3649
        %v3656 = vshrl.u32 2131351028, %v3650
        %v3657 = vor.u32 %v3655, %v3656
        %v3658 = vshll.u32 2131351028, %v3649
        %v3659 = vshrl.u32 2102212464, %v3650
        %v3660 = vor.u32 %v3658, %v3659
        %v3661 = vshll.u32 2102212464, %v3649
        %v3662 = vshrl.u32 920167782, %v3650
        %v3663 = vor.u32 %v3661, %v3662
        %v3664 = vshll.u32 920167782, %v3649
        %v3665 = vshrl.u32 1326507024, %v3650
        %v3666 = vor.u32 %v3664, %v3665
        %vm3667 = vcmp.lt.s32.totalorder %v3648, 1
        %vm3668 = vcmp.lt.s32.totalorder %v3648, 2
        %vm3669 = vcmp.lt.s32.totalorder %v3648, 3
        %vm3670 = vcmp.lt.s32.totalorder %v3648, 4
        %v3671 = vsel %vm3667, %v3651, %v3654
        %v3672 = vsel %vm3670, %v3660, 2102212464
        %v3673 = vsel %vm3669, %v3657, %v3672
        %v3674 = vsel %vm3668, %v3671, %v3673
        %v3675 = vsel %vm3667, %v3654, %v3657
        %v3676 = vsel %vm3670, %v3663, 920167782
        %v3677 = vsel %vm3669, %v3660, %v3676
        %v3678 = vsel %vm3668, %v3675, %v3677
        %v3679 = vsel %vm3667, %v3657, %v3660
        %v3680 = vsel %vm3670, %v3666, 1326507024
        %v3681 = vsel %vm3669, %v3663, %v3680
        %v3682 = vsel %vm3668, %v3679, %v3681
        %v3683 = vshll.u32 %v3643, 8
        %v3684 = vmul.u32.u64.compose %v3683, %v3682
        %v3685 = vextract.low.u32 %v3684
        %v3686 = vextract.high.u32 %v3684
        %v3687 = vmul.u32.u64.compose %v3683, %v3678
        %v3688 = vextract.low.u32 %v3687
        %v3689 = vextract.high.u32 %v3687
        %v3690 = vmul.u32 %v3683, %v3674
        %v3691 = vadd.s32 %v3686, %v3688
        %vm3692 = vc.u32 %v3686, %v3688
        %v3693 = vadd.s32 %v3689, 1
        %v3694 = vsel %vm3692, %v3693, %v3689
        %v3695 = vadd.s32 %v3690, %v3694
        %v3696 = vadd.s32 %v3695, 536870912
        %v3697 = vshrl.u32 %v3696, 30
        %v3698 = vshll.u32 %v3697, 30
        %v3699 = vsub.s32 %v3695, %v3698
        %vm3700 = vcmp.lt.s32.totalorder %v3699, 0
        %v3701 = vsub.s32 0, %v3699
        %v3702 = vsel %vm3700, %v3701, %v3699
        %v3703 = vclz %v3702
        %v3704 = vsub.s32 %v3703, 2
        %vm3705 = vcmp.gt.s32.totalorder 0, %v3704
        %v3706 = vsel %vm3705, 0, %v3704
        %v3707 = vsub.s32 32, %v3706
        %v3708 = vshll.u32 %v3699, %v3706
        %v3709 = vshrl.u32 %v3691, %v3707
        %v3710 = vor.u32 %v3708, %v3709
        %v3711 = vsub.s32 4294967266, %v3706
        %v3712 = vadd.s32 %v3711, 127
        %v3713 = vshll.u32 %v3712, 23
        %v3714 = vor.u32 4788187, %v3713
        %v3715 = vand.u32 2147483647, %v3714
        %v3717 = vcvt.s32.f32 %v3710
        %v3718 = vmul.f32 %v3717, %v3715
        %v3719 = vxor.u32 %v3718, 2147483648
        %v3720 = vsel %vm3637, %v3719, %v3718
        %v3721 = vsub.s32 4, %v3697
        %v3722 = vsel %vm3637, %v3721, %v3697
        %v3723 = vsel %vm3636, %v1100, %v3720
        %v3724 = vsel %vm3636, 0, %v3722
        %v3725 = vcosq.f32.pop %v3723
        %v3726 = vsinq.f32.pop %v3723
        %vm3727 = vweird.f32 %v1100
        %v3728 = vadd.s32 %v3724, 3
        %v3729 = vand.u32 %v3728, 3
        %vm3730 = vcmp.lt.s32.totalorder %v3729, 2
        %vm3731 = vcmp.eq.s32.totalorder %v3729, 0
        %v3732 = vxor.u32 %v3726, 2147483648
        %v3733 = vsel %vm3731, %v3725, %v3732
        %vm3734 = vcmp.eq.s32.totalorder %v3729, 2
        %v3735 = vxor.u32 %v3725, 2147483648
        %v3736 = vsel %vm3734, %v3735, %v3726
        %v3737 = vsel %vm3730, %v3733, %v3736
        %v3738 = vsel %vm3727, nan, %v3737
        %v3739 = vand.u32 2147483647, %v1101
        %vm3740 = vcmp.le.f32.partialorder %v3739, 0.7853982
        %vm3741 = vcmp.lt.s32.totalorder %v1101, 0
        %v3742 = vand.u32 %v1101, 2139095040
        %v3743 = vshrl.u32 %v3742, 23
        %v3744 = vsub.s32 %v3743, 127
        %v3745 = vand.u32 2147483647, %v1101
        %v3746 = vand.u32 %v3745, 8388607
        %v3747 = vor.u32 %v3746, 8388608
        %v3748 = vsub.s32 0, %v3747
        %v3749 = vadd.s32 %v3744, 1
        %vm3750 = vcmp.gt.s32.totalorder %v3749, 0
        %v3751 = vsel %vm3750, %v3749, 0
        %v3752 = vshrl.u32 %v3751, 5
        %v3753 = vand.u32 %v3751, 31
        %v3754 = vsub.s32 32, %v3753
        %v3755 = vshrl.u32 683565275, %v3754
        %v3756 = vshll.u32 683565275, %v3753
        %v3757 = vshrl.u32 2475754826, %v3754
        %v3758 = vor.u32 %v3756, %v3757
        %v3759 = vshll.u32 2475754826, %v3753
        %v3760 = vshrl.u32 2131351028, %v3754
        %v3761 = vor.u32 %v3759, %v3760
        %v3762 = vshll.u32 2131351028, %v3753
        %v3763 = vshrl.u32 2102212464, %v3754
        %v3764 = vor.u32 %v3762, %v3763
        %v3765 = vshll.u32 2102212464, %v3753
        %v3766 = vshrl.u32 920167782, %v3754
        %v3767 = vor.u32 %v3765, %v3766
        %v3768 = vshll.u32 920167782, %v3753
        %v3769 = vshrl.u32 1326507024, %v3754
        %v3770 = vor.u32 %v3768, %v3769
        %vm3771 = vcmp.lt.s32.totalorder %v3752, 1
        %vm3772 = vcmp.lt.s32.totalorder %v3752, 2
        %vm3773 = vcmp.lt.s32.totalorder %v3752, 3
        %vm3774 = vcmp.lt.s32.totalorder %v3752, 4
        %v3775 = vsel %vm3771, %v3755, %v3758
        %v3776 = vsel %vm3774, %v3764, 2102212464
        %v3777 = vsel %vm3773, %v3761, %v3776
        %v3778 = vsel %vm3772, %v3775, %v3777
        %v3779 = vsel %vm3771, %v3758, %v3761
        %v3780 = vsel %vm3774, %v3767, 920167782
        %v3781 = vsel %vm3773, %v3764, %v3780
        %v3782 = vsel %vm3772, %v3779, %v3781
        %v3783 = vsel %vm3771, %v3761, %v3764
        %v3784 = vsel %vm3774, %v3770, 1326507024
        %v3785 = vsel %vm3773, %v3767, %v3784
        %v3786 = vsel %vm3772, %v3783, %v3785
        %v3787 = vshll.u32 %v3747, 8
        %v3788 = vmul.u32.u64.compose %v3787, %v3786
        %v3789 = vextract.low.u32 %v3788
        %v3790 = vextract.high.u32 %v3788
        %v3791 = vmul.u32.u64.compose %v3787, %v3782
        %v3792 = vextract.low.u32 %v3791
        %v3793 = vextract.high.u32 %v3791
        %v3794 = vmul.u32 %v3787, %v3778
        %v3795 = vadd.s32 %v3790, %v3792
        %vm3796 = vc.u32 %v3790, %v3792
        %v3797 = vadd.s32 %v3793, 1
        %v3798 = vsel %vm3796, %v3797, %v3793
        %v3799 = vadd.s32 %v3794, %v3798
        %v3800 = vadd.s32 %v3799, 536870912
        %v3801 = vshrl.u32 %v3800, 30
        %v3802 = vshll.u32 %v3801, 30
        %v3803 = vsub.s32 %v3799, %v3802
        %vm3804 = vcmp.lt.s32.totalorder %v3803, 0
        %v3805 = vsub.s32 0, %v3803
        %v3806 = vsel %vm3804, %v3805, %v3803
        %v3807 = vclz %v3806
        %v3808 = vsub.s32 %v3807, 2
        %vm3809 = vcmp.gt.s32.totalorder 0, %v3808
        %v3810 = vsel %vm3809, 0, %v3808
        %v3811 = vsub.s32 32, %v3810
        %v3812 = vshll.u32 %v3803, %v3810
        %v3813 = vshrl.u32 %v3795, %v3811
        %v3814 = vor.u32 %v3812, %v3813
        %v3815 = vsub.s32 4294967266, %v3810
        %v3816 = vadd.s32 %v3815, 127
        %v3817 = vshll.u32 %v3816, 23
        %v3818 = vor.u32 4788187, %v3817
        %v3819 = vand.u32 2147483647, %v3818
        %v3821 = vcvt.s32.f32 %v3814
        %v3822 = vmul.f32 %v3821, %v3819
        %v3823 = vxor.u32 %v3822, 2147483648
        %v3824 = vsel %vm3741, %v3823, %v3822
        %v3825 = vsub.s32 4, %v3801
        %v3826 = vsel %vm3741, %v3825, %v3801
        %v3827 = vsel %vm3740, %v1101, %v3824
        %v3828 = vsel %vm3740, 0, %v3826
        %v3829 = vcosq.f32.pop %v3827
        %v3830 = vsinq.f32.pop %v3827
        %vm3831 = vweird.f32 %v1101
        %v3832 = vadd.s32 %v3828, 3
        %v3833 = vand.u32 %v3832, 3
        %vm3834 = vcmp.lt.s32.totalorder %v3833, 2
        %vm3835 = vcmp.eq.s32.totalorder %v3833, 0
        %v3836 = vxor.u32 %v3830, 2147483648
        %v3837 = vsel %vm3835, %v3829, %v3836
        %vm3838 = vcmp.eq.s32.totalorder %v3833, 2
        %v3839 = vxor.u32 %v3829, 2147483648
        %v3840 = vsel %vm3838, %v3839, %v3830
        %v3841 = vsel %vm3834, %v3837, %v3840
        %v3842 = vsel %vm3831, nan, %v3841
        %v3843 = vand.u32 2147483647, %v1102
        %vm3844 = vcmp.le.f32.partialorder %v3843, 0.7853982
        %vm3845 = vcmp.lt.s32.totalorder %v1102, 0
        %v3846 = vand.u32 %v1102, 2139095040
        %v3847 = vshrl.u32 %v3846, 23
        %v3848 = vsub.s32 %v3847, 127
        %v3849 = vand.u32 2147483647, %v1102
        %v3850 = vand.u32 %v3849, 8388607
        %v3851 = vor.u32 %v3850, 8388608
        %v3852 = vsub.s32 0, %v3851
        %v3853 = vadd.s32 %v3848, 1
        %vm3854 = vcmp.gt.s32.totalorder %v3853, 0
        %v3855 = vsel %vm3854, %v3853, 0
        %v3856 = vshrl.u32 %v3855, 5
        %v3857 = vand.u32 %v3855, 31
        %v3858 = vsub.s32 32, %v3857
        %v3859 = vshrl.u32 683565275, %v3858
        %v3860 = vshll.u32 683565275, %v3857
        %v3861 = vshrl.u32 2475754826, %v3858
        %v3862 = vor.u32 %v3860, %v3861
        %v3863 = vshll.u32 2475754826, %v3857
        %v3864 = vshrl.u32 2131351028, %v3858
        %v3865 = vor.u32 %v3863, %v3864
        %v3866 = vshll.u32 2131351028, %v3857
        %v3867 = vshrl.u32 2102212464, %v3858
        %v3868 = vor.u32 %v3866, %v3867
        %v3869 = vshll.u32 2102212464, %v3857
        %v3870 = vshrl.u32 920167782, %v3858
        %v3871 = vor.u32 %v3869, %v3870
        %v3872 = vshll.u32 920167782, %v3857
        %v3873 = vshrl.u32 1326507024, %v3858
        %v3874 = vor.u32 %v3872, %v3873
        %vm3875 = vcmp.lt.s32.totalorder %v3856, 1
        %vm3876 = vcmp.lt.s32.totalorder %v3856, 2
        %vm3877 = vcmp.lt.s32.totalorder %v3856, 3
        %vm3878 = vcmp.lt.s32.totalorder %v3856, 4
        %v3879 = vsel %vm3875, %v3859, %v3862
        %v3880 = vsel %vm3878, %v3868, 2102212464
        %v3881 = vsel %vm3877, %v3865, %v3880
        %v3882 = vsel %vm3876, %v3879, %v3881
        %v3883 = vsel %vm3875, %v3862, %v3865
        %v3884 = vsel %vm3878, %v3871, 920167782
        %v3885 = vsel %vm3877, %v3868, %v3884
        %v3886 = vsel %vm3876, %v3883, %v3885
        %v3887 = vsel %vm3875, %v3865, %v3868
        %v3888 = vsel %vm3878, %v3874, 1326507024
        %v3889 = vsel %vm3877, %v3871, %v3888
        %v3890 = vsel %vm3876, %v3887, %v3889
        %v3891 = vshll.u32 %v3851, 8
        %v3892 = vmul.u32.u64.compose %v3891, %v3890
        %v3893 = vextract.low.u32 %v3892
        %v3894 = vextract.high.u32 %v3892
        %v3895 = vmul.u32.u64.compose %v3891, %v3886
        %v3896 = vextract.low.u32 %v3895
        %v3897 = vextract.high.u32 %v3895
        %v3898 = vmul.u32 %v3891, %v3882
        %v3899 = vadd.s32 %v3894, %v3896
        %vm3900 = vc.u32 %v3894, %v3896
        %v3901 = vadd.s32 %v3897, 1
        %v3902 = vsel %vm3900, %v3901, %v3897
        %v3903 = vadd.s32 %v3898, %v3902
        %v3904 = vadd.s32 %v3903, 536870912
        %v3905 = vshrl.u32 %v3904, 30
        %v3906 = vshll.u32 %v3905, 30
        %v3907 = vsub.s32 %v3903, %v3906
        %vm3908 = vcmp.lt.s32.totalorder %v3907, 0
        %v3909 = vsub.s32 0, %v3907
        %v3910 = vsel %vm3908, %v3909, %v3907
        %v3911 = vclz %v3910
        %v3912 = vsub.s32 %v3911, 2
        %vm3913 = vcmp.gt.s32.totalorder 0, %v3912
        %v3914 = vsel %vm3913, 0, %v3912
        %v3915 = vsub.s32 32, %v3914
        %v3916 = vshll.u32 %v3907, %v3914
        %v3917 = vshrl.u32 %v3899, %v3915
        %v3918 = vor.u32 %v3916, %v3917
        %v3919 = vsub.s32 4294967266, %v3914
        %v3920 = vadd.s32 %v3919, 127
        %v3921 = vshll.u32 %v3920, 23
        %v3922 = vor.u32 4788187, %v3921
        %v3923 = vand.u32 2147483647, %v3922
        %v3925 = vcvt.s32.f32 %v3918
        %v3926 = vmul.f32 %v3925, %v3923
        %v3927 = vxor.u32 %v3926, 2147483648
        %v3928 = vsel %vm3845, %v3927, %v3926
        %v3929 = vsub.s32 4, %v3905
        %v3930 = vsel %vm3845, %v3929, %v3905
        %v3931 = vsel %vm3844, %v1102, %v3928
        %v3932 = vsel %vm3844, 0, %v3930
        %v3933 = vcosq.f32.pop %v3931
        %v3934 = vsinq.f32.pop %v3931
        %vm3935 = vweird.f32 %v1102
        %v3936 = vadd.s32 %v3932, 3
        %v3937 = vand.u32 %v3936, 3
        %vm3938 = vcmp.lt.s32.totalorder %v3937, 2
        %vm3939 = vcmp.eq.s32.totalorder %v3937, 0
        %v3940 = vxor.u32 %v3934, 2147483648
        %v3941 = vsel %vm3939, %v3933, %v3940
        %vm3942 = vcmp.eq.s32.totalorder %v3937, 2
        %v3943 = vxor.u32 %v3933, 2147483648
        %v3944 = vsel %vm3942, %v3943, %v3934
        %v3945 = vsel %vm3938, %v3941, %v3944
        %v3946 = vsel %vm3935, nan, %v3945
        %v3947 = vand.u32 2147483647, %v1103
        %vm3948 = vcmp.le.f32.partialorder %v3947, 0.7853982
        %vm3949 = vcmp.lt.s32.totalorder %v1103, 0
        %v3950 = vand.u32 %v1103, 2139095040
        %v3951 = vshrl.u32 %v3950, 23
        %v3952 = vsub.s32 %v3951, 127
        %v3953 = vand.u32 2147483647, %v1103
        %v3954 = vand.u32 %v3953, 8388607
        %v3955 = vor.u32 %v3954, 8388608
        %v3956 = vsub.s32 0, %v3955
        %v3957 = vadd.s32 %v3952, 1
        %vm3958 = vcmp.gt.s32.totalorder %v3957, 0
        %v3959 = vsel %vm3958, %v3957, 0
        %v3960 = vshrl.u32 %v3959, 5
        %v3961 = vand.u32 %v3959, 31
        %v3962 = vsub.s32 32, %v3961
        %v3963 = vshrl.u32 683565275, %v3962
        %v3964 = vshll.u32 683565275, %v3961
        %v3965 = vshrl.u32 2475754826, %v3962
        %v3966 = vor.u32 %v3964, %v3965
        %v3967 = vshll.u32 2475754826, %v3961
        %v3968 = vshrl.u32 2131351028, %v3962
        %v3969 = vor.u32 %v3967, %v3968
        %v3970 = vshll.u32 2131351028, %v3961
        %v3971 = vshrl.u32 2102212464, %v3962
        %v3972 = vor.u32 %v3970, %v3971
        %v3973 = vshll.u32 2102212464, %v3961
        %v3974 = vshrl.u32 920167782, %v3962
        %v3975 = vor.u32 %v3973, %v3974
        %v3976 = vshll.u32 920167782, %v3961
        %v3977 = vshrl.u32 1326507024, %v3962
        %v3978 = vor.u32 %v3976, %v3977
        %vm3979 = vcmp.lt.s32.totalorder %v3960, 1
        %vm3980 = vcmp.lt.s32.totalorder %v3960, 2
        %vm3981 = vcmp.lt.s32.totalorder %v3960, 3
        %vm3982 = vcmp.lt.s32.totalorder %v3960, 4
        %v3983 = vsel %vm3979, %v3963, %v3966
        %v3984 = vsel %vm3982, %v3972, 2102212464
        %v3985 = vsel %vm3981, %v3969, %v3984
        %v3986 = vsel %vm3980, %v3983, %v3985
        %v3987 = vsel %vm3979, %v3966, %v3969
        %v3988 = vsel %vm3982, %v3975, 920167782
        %v3989 = vsel %vm3981, %v3972, %v3988
        %v3990 = vsel %vm3980, %v3987, %v3989
        %v3991 = vsel %vm3979, %v3969, %v3972
        %v3992 = vsel %vm3982, %v3978, 1326507024
        %v3993 = vsel %vm3981, %v3975, %v3992
        %v3994 = vsel %vm3980, %v3991, %v3993
        %v3995 = vshll.u32 %v3955, 8
        %v3996 = vmul.u32.u64.compose %v3995, %v3994
        %v3997 = vextract.low.u32 %v3996
        %v3998 = vextract.high.u32 %v3996
        %v3999 = vmul.u32.u64.compose %v3995, %v3990
        %v4000 = vextract.low.u32 %v3999
        %v4001 = vextract.high.u32 %v3999
        %v4002 = vmul.u32 %v3995, %v3986
        %v4003 = vadd.s32 %v3998, %v4000
        %vm4004 = vc.u32 %v3998, %v4000
        %v4005 = vadd.s32 %v4001, 1
        %v4006 = vsel %vm4004, %v4005, %v4001
        %v4007 = vadd.s32 %v4002, %v4006
        %v4008 = vadd.s32 %v4007, 536870912
        %v4009 = vshrl.u32 %v4008, 30
        %v4010 = vshll.u32 %v4009, 30
        %v4011 = vsub.s32 %v4007, %v4010
        %vm4012 = vcmp.lt.s32.totalorder %v4011, 0
        %v4013 = vsub.s32 0, %v4011
        %v4014 = vsel %vm4012, %v4013, %v4011
        %v4015 = vclz %v4014
        %v4016 = vsub.s32 %v4015, 2
        %vm4017 = vcmp.gt.s32.totalorder 0, %v4016
        %v4018 = vsel %vm4017, 0, %v4016
        %v4019 = vsub.s32 32, %v4018
        %v4020 = vshll.u32 %v4011, %v4018
        %v4021 = vshrl.u32 %v4003, %v4019
        %v4022 = vor.u32 %v4020, %v4021
        %v4023 = vsub.s32 4294967266, %v4018
        %v4024 = vadd.s32 %v4023, 127
        %v4025 = vshll.u32 %v4024, 23
        %v4026 = vor.u32 4788187, %v4025
        %v4027 = vand.u32 2147483647, %v4026
        %v4029 = vcvt.s32.f32 %v4022
        %v4030 = vmul.f32 %v4029, %v4027
        %v4031 = vxor.u32 %v4030, 2147483648
        %v4032 = vsel %vm3949, %v4031, %v4030
        %v4033 = vsub.s32 4, %v4009
        %v4034 = vsel %vm3949, %v4033, %v4009
        %v4035 = vsel %vm3948, %v1103, %v4032
        %v4036 = vsel %vm3948, 0, %v4034
        %v4037 = vcosq.f32.pop %v4035
        %v4038 = vsinq.f32.pop %v4035
        %vm4039 = vweird.f32 %v1103
        %v4040 = vadd.s32 %v4036, 3
        %v4041 = vand.u32 %v4040, 3
        %vm4042 = vcmp.lt.s32.totalorder %v4041, 2
        %vm4043 = vcmp.eq.s32.totalorder %v4041, 0
        %v4044 = vxor.u32 %v4038, 2147483648
        %v4045 = vsel %vm4043, %v4037, %v4044
        %vm4046 = vcmp.eq.s32.totalorder %v4041, 2
        %v4047 = vxor.u32 %v4037, 2147483648
        %v4048 = vsel %vm4046, %v4047, %v4038
        %v4049 = vsel %vm4042, %v4045, %v4048
        %v4050 = vsel %vm4039, nan, %v4049
        %v4051 = vand.u32 2147483647, %v1104
        %vm4052 = vcmp.le.f32.partialorder %v4051, 0.7853982
        %vm4053 = vcmp.lt.s32.totalorder %v1104, 0
        %v4054 = vand.u32 %v1104, 2139095040
        %v4055 = vshrl.u32 %v4054, 23
        %v4056 = vsub.s32 %v4055, 127
        %v4057 = vand.u32 2147483647, %v1104
        %v4058 = vand.u32 %v4057, 8388607
        %v4059 = vor.u32 %v4058, 8388608
        %v4060 = vsub.s32 0, %v4059
        %v4061 = vadd.s32 %v4056, 1
        %vm4062 = vcmp.gt.s32.totalorder %v4061, 0
        %v4063 = vsel %vm4062, %v4061, 0
        %v4064 = vshrl.u32 %v4063, 5
        %v4065 = vand.u32 %v4063, 31
        %v4066 = vsub.s32 32, %v4065
        %v4067 = vshrl.u32 683565275, %v4066
        %v4068 = vshll.u32 683565275, %v4065
        %v4069 = vshrl.u32 2475754826, %v4066
        %v4070 = vor.u32 %v4068, %v4069
        %v4071 = vshll.u32 2475754826, %v4065
        %v4072 = vshrl.u32 2131351028, %v4066
        %v4073 = vor.u32 %v4071, %v4072
        %v4074 = vshll.u32 2131351028, %v4065
        %v4075 = vshrl.u32 2102212464, %v4066
        %v4076 = vor.u32 %v4074, %v4075
        %v4077 = vshll.u32 2102212464, %v4065
        %v4078 = vshrl.u32 920167782, %v4066
        %v4079 = vor.u32 %v4077, %v4078
        %v4080 = vshll.u32 920167782, %v4065
        %v4081 = vshrl.u32 1326507024, %v4066
        %v4082 = vor.u32 %v4080, %v4081
        %vm4083 = vcmp.lt.s32.totalorder %v4064, 1
        %vm4084 = vcmp.lt.s32.totalorder %v4064, 2
        %vm4085 = vcmp.lt.s32.totalorder %v4064, 3
        %vm4086 = vcmp.lt.s32.totalorder %v4064, 4
        %v4087 = vsel %vm4083, %v4067, %v4070
        %v4088 = vsel %vm4086, %v4076, 2102212464
        %v4089 = vsel %vm4085, %v4073, %v4088
        %v4090 = vsel %vm4084, %v4087, %v4089
        %v4091 = vsel %vm4083, %v4070, %v4073
        %v4092 = vsel %vm4086, %v4079, 920167782
        %v4093 = vsel %vm4085, %v4076, %v4092
        %v4094 = vsel %vm4084, %v4091, %v4093
        %v4095 = vsel %vm4083, %v4073, %v4076
        %v4096 = vsel %vm4086, %v4082, 1326507024
        %v4097 = vsel %vm4085, %v4079, %v4096
        %v4098 = vsel %vm4084, %v4095, %v4097
        %v4099 = vshll.u32 %v4059, 8
        %v4100 = vmul.u32.u64.compose %v4099, %v4098
        %v4101 = vextract.low.u32 %v4100
        %v4102 = vextract.high.u32 %v4100
        %v4103 = vmul.u32.u64.compose %v4099, %v4094
        %v4104 = vextract.low.u32 %v4103
        %v4105 = vextract.high.u32 %v4103
        %v4106 = vmul.u32 %v4099, %v4090
        %v4107 = vadd.s32 %v4102, %v4104
        %vm4108 = vc.u32 %v4102, %v4104
        %v4109 = vadd.s32 %v4105, 1
        %v4110 = vsel %vm4108, %v4109, %v4105
        %v4111 = vadd.s32 %v4106, %v4110
        %v4112 = vadd.s32 %v4111, 536870912
        %v4113 = vshrl.u32 %v4112, 30
        %v4114 = vshll.u32 %v4113, 30
        %v4115 = vsub.s32 %v4111, %v4114
        %vm4116 = vcmp.lt.s32.totalorder %v4115, 0
        %v4117 = vsub.s32 0, %v4115
        %v4118 = vsel %vm4116, %v4117, %v4115
        %v4119 = vclz %v4118
        %v4120 = vsub.s32 %v4119, 2
        %vm4121 = vcmp.gt.s32.totalorder 0, %v4120
        %v4122 = vsel %vm4121, 0, %v4120
        %v4123 = vsub.s32 32, %v4122
        %v4124 = vshll.u32 %v4115, %v4122
        %v4125 = vshrl.u32 %v4107, %v4123
        %v4126 = vor.u32 %v4124, %v4125
        %v4127 = vsub.s32 4294967266, %v4122
        %v4128 = vadd.s32 %v4127, 127
        %v4129 = vshll.u32 %v4128, 23
        %v4130 = vor.u32 4788187, %v4129
        %v4131 = vand.u32 2147483647, %v4130
        %v4133 = vcvt.s32.f32 %v4126
        %v4134 = vmul.f32 %v4133, %v4131
        %v4135 = vxor.u32 %v4134, 2147483648
        %v4136 = vsel %vm4053, %v4135, %v4134
        %v4137 = vsub.s32 4, %v4113
        %v4138 = vsel %vm4053, %v4137, %v4113
        %v4139 = vsel %vm4052, %v1104, %v4136
        %v4140 = vsel %vm4052, 0, %v4138
        %v4141 = vcosq.f32.pop %v4139
        %v4142 = vsinq.f32.pop %v4139
        %vm4143 = vweird.f32 %v1104
        %v4144 = vadd.s32 %v4140, 3
        %v4145 = vand.u32 %v4144, 3
        %vm4146 = vcmp.lt.s32.totalorder %v4145, 2
        %vm4147 = vcmp.eq.s32.totalorder %v4145, 0
        %v4148 = vxor.u32 %v4142, 2147483648
        %v4149 = vsel %vm4147, %v4141, %v4148
        %vm4150 = vcmp.eq.s32.totalorder %v4145, 2
        %v4151 = vxor.u32 %v4141, 2147483648
        %v4152 = vsel %vm4150, %v4151, %v4142
        %v4153 = vsel %vm4146, %v4149, %v4152
        %v4154 = vsel %vm4143, nan, %v4153
        %v4155 = vand.u32 2147483647, %v1105
        %vm4156 = vcmp.le.f32.partialorder %v4155, 0.7853982
        %vm4157 = vcmp.lt.s32.totalorder %v1105, 0
        %v4158 = vand.u32 %v1105, 2139095040
        %v4159 = vshrl.u32 %v4158, 23
        %v4160 = vsub.s32 %v4159, 127
        %v4161 = vand.u32 2147483647, %v1105
        %v4162 = vand.u32 %v4161, 8388607
        %v4163 = vor.u32 %v4162, 8388608
        %v4164 = vsub.s32 0, %v4163
        %v4165 = vadd.s32 %v4160, 1
        %vm4166 = vcmp.gt.s32.totalorder %v4165, 0
        %v4167 = vsel %vm4166, %v4165, 0
        %v4168 = vshrl.u32 %v4167, 5
        %v4169 = vand.u32 %v4167, 31
        %v4170 = vsub.s32 32, %v4169
        %v4171 = vshrl.u32 683565275, %v4170
        %v4172 = vshll.u32 683565275, %v4169
        %v4173 = vshrl.u32 2475754826, %v4170
        %v4174 = vor.u32 %v4172, %v4173
        %v4175 = vshll.u32 2475754826, %v4169
        %v4176 = vshrl.u32 2131351028, %v4170
        %v4177 = vor.u32 %v4175, %v4176
        %v4178 = vshll.u32 2131351028, %v4169
        %v4179 = vshrl.u32 2102212464, %v4170
        %v4180 = vor.u32 %v4178, %v4179
        %v4181 = vshll.u32 2102212464, %v4169
        %v4182 = vshrl.u32 920167782, %v4170
        %v4183 = vor.u32 %v4181, %v4182
        %v4184 = vshll.u32 920167782, %v4169
        %v4185 = vshrl.u32 1326507024, %v4170
        %v4186 = vor.u32 %v4184, %v4185
        %vm4187 = vcmp.lt.s32.totalorder %v4168, 1
        %vm4188 = vcmp.lt.s32.totalorder %v4168, 2
        %vm4189 = vcmp.lt.s32.totalorder %v4168, 3
        %vm4190 = vcmp.lt.s32.totalorder %v4168, 4
        %v4191 = vsel %vm4187, %v4171, %v4174
        %v4192 = vsel %vm4190, %v4180, 2102212464
        %v4193 = vsel %vm4189, %v4177, %v4192
        %v4194 = vsel %vm4188, %v4191, %v4193
        %v4195 = vsel %vm4187, %v4174, %v4177
        %v4196 = vsel %vm4190, %v4183, 920167782
        %v4197 = vsel %vm4189, %v4180, %v4196
        %v4198 = vsel %vm4188, %v4195, %v4197
        %v4199 = vsel %vm4187, %v4177, %v4180
        %v4200 = vsel %vm4190, %v4186, 1326507024
        %v4201 = vsel %vm4189, %v4183, %v4200
        %v4202 = vsel %vm4188, %v4199, %v4201
        %v4203 = vshll.u32 %v4163, 8
        %v4204 = vmul.u32.u64.compose %v4203, %v4202
        %v4205 = vextract.low.u32 %v4204
        %v4206 = vextract.high.u32 %v4204
        %v4207 = vmul.u32.u64.compose %v4203, %v4198
        %v4208 = vextract.low.u32 %v4207
        %v4209 = vextract.high.u32 %v4207
        %v4210 = vmul.u32 %v4203, %v4194
        %v4211 = vadd.s32 %v4206, %v4208
        %vm4212 = vc.u32 %v4206, %v4208
        %v4213 = vadd.s32 %v4209, 1
        %v4214 = vsel %vm4212, %v4213, %v4209
        %v4215 = vadd.s32 %v4210, %v4214
        %v4216 = vadd.s32 %v4215, 536870912
        %v4217 = vshrl.u32 %v4216, 30
        %v4218 = vshll.u32 %v4217, 30
        %v4219 = vsub.s32 %v4215, %v4218
        %vm4220 = vcmp.lt.s32.totalorder %v4219, 0
        %v4221 = vsub.s32 0, %v4219
        %v4222 = vsel %vm4220, %v4221, %v4219
        %v4223 = vclz %v4222
        %v4224 = vsub.s32 %v4223, 2
        %vm4225 = vcmp.gt.s32.totalorder 0, %v4224
        %v4226 = vsel %vm4225, 0, %v4224
        %v4227 = vsub.s32 32, %v4226
        %v4228 = vshll.u32 %v4219, %v4226
        %v4229 = vshrl.u32 %v4211, %v4227
        %v4230 = vor.u32 %v4228, %v4229
        %v4231 = vsub.s32 4294967266, %v4226
        %v4232 = vadd.s32 %v4231, 127
        %v4233 = vshll.u32 %v4232, 23
        %v4234 = vor.u32 4788187, %v4233
        %v4235 = vand.u32 2147483647, %v4234
        %v4237 = vcvt.s32.f32 %v4230
        %v4238 = vmul.f32 %v4237, %v4235
        %v4239 = vxor.u32 %v4238, 2147483648
        %v4240 = vsel %vm4157, %v4239, %v4238
        %v4241 = vsub.s32 4, %v4217
        %v4242 = vsel %vm4157, %v4241, %v4217
        %v4243 = vsel %vm4156, %v1105, %v4240
        %v4244 = vsel %vm4156, 0, %v4242
        %v4245 = vcosq.f32.pop %v4243
        %v4246 = vsinq.f32.pop %v4243
        %vm4247 = vweird.f32 %v1105
        %v4248 = vadd.s32 %v4244, 3
        %v4249 = vand.u32 %v4248, 3
        %vm4250 = vcmp.lt.s32.totalorder %v4249, 2
        %vm4251 = vcmp.eq.s32.totalorder %v4249, 0
        %v4252 = vxor.u32 %v4246, 2147483648
        %v4253 = vsel %vm4251, %v4245, %v4252
        %vm4254 = vcmp.eq.s32.totalorder %v4249, 2
        %v4255 = vxor.u32 %v4245, 2147483648
        %v4256 = vsel %vm4254, %v4255, %v4246
        %v4257 = vsel %vm4250, %v4253, %v4256
        %v4258 = vsel %vm4247, nan, %v4257
        %v4259 = vand.u32 2147483647, %v1106
        %vm4260 = vcmp.le.f32.partialorder %v4259, 0.7853982
        %vm4261 = vcmp.lt.s32.totalorder %v1106, 0
        %v4262 = vand.u32 %v1106, 2139095040
        %v4263 = vshrl.u32 %v4262, 23
        %v4264 = vsub.s32 %v4263, 127
        %v4265 = vand.u32 2147483647, %v1106
        %v4266 = vand.u32 %v4265, 8388607
        %v4267 = vor.u32 %v4266, 8388608
        %v4268 = vsub.s32 0, %v4267
        %v4269 = vadd.s32 %v4264, 1
        %vm4270 = vcmp.gt.s32.totalorder %v4269, 0
        %v4271 = vsel %vm4270, %v4269, 0
        %v4272 = vshrl.u32 %v4271, 5
        %v4273 = vand.u32 %v4271, 31
        %v4274 = vsub.s32 32, %v4273
        %v4275 = vshrl.u32 683565275, %v4274
        %v4276 = vshll.u32 683565275, %v4273
        %v4277 = vshrl.u32 2475754826, %v4274
        %v4278 = vor.u32 %v4276, %v4277
        %v4279 = vshll.u32 2475754826, %v4273
        %v4280 = vshrl.u32 2131351028, %v4274
        %v4281 = vor.u32 %v4279, %v4280
        %v4282 = vshll.u32 2131351028, %v4273
        %v4283 = vshrl.u32 2102212464, %v4274
        %v4284 = vor.u32 %v4282, %v4283
        %v4285 = vshll.u32 2102212464, %v4273
        %v4286 = vshrl.u32 920167782, %v4274
        %v4287 = vor.u32 %v4285, %v4286
        %v4288 = vshll.u32 920167782, %v4273
        %v4289 = vshrl.u32 1326507024, %v4274
        %v4290 = vor.u32 %v4288, %v4289
        %vm4291 = vcmp.lt.s32.totalorder %v4272, 1
        %vm4292 = vcmp.lt.s32.totalorder %v4272, 2
        %vm4293 = vcmp.lt.s32.totalorder %v4272, 3
        %vm4294 = vcmp.lt.s32.totalorder %v4272, 4
        %v4295 = vsel %vm4291, %v4275, %v4278
        %v4296 = vsel %vm4294, %v4284, 2102212464
        %v4297 = vsel %vm4293, %v4281, %v4296
        %v4298 = vsel %vm4292, %v4295, %v4297
        %v4299 = vsel %vm4291, %v4278, %v4281
        %v4300 = vsel %vm4294, %v4287, 920167782
        %v4301 = vsel %vm4293, %v4284, %v4300
        %v4302 = vsel %vm4292, %v4299, %v4301
        %v4303 = vsel %vm4291, %v4281, %v4284
        %v4304 = vsel %vm4294, %v4290, 1326507024
        %v4305 = vsel %vm4293, %v4287, %v4304
        %v4306 = vsel %vm4292, %v4303, %v4305
        %v4307 = vshll.u32 %v4267, 8
        %v4308 = vmul.u32.u64.compose %v4307, %v4306
        %v4309 = vextract.low.u32 %v4308
        %v4310 = vextract.high.u32 %v4308
        %v4311 = vmul.u32.u64.compose %v4307, %v4302
        %v4312 = vextract.low.u32 %v4311
        %v4313 = vextract.high.u32 %v4311
        %v4314 = vmul.u32 %v4307, %v4298
        %v4315 = vadd.s32 %v4310, %v4312
        %vm4316 = vc.u32 %v4310, %v4312
        %v4317 = vadd.s32 %v4313, 1
        %v4318 = vsel %vm4316, %v4317, %v4313
        %v4319 = vadd.s32 %v4314, %v4318
        %v4320 = vadd.s32 %v4319, 536870912
        %v4321 = vshrl.u32 %v4320, 30
        %v4322 = vshll.u32 %v4321, 30
        %v4323 = vsub.s32 %v4319, %v4322
        %vm4324 = vcmp.lt.s32.totalorder %v4323, 0
        %v4325 = vsub.s32 0, %v4323
        %v4326 = vsel %vm4324, %v4325, %v4323
        %v4327 = vclz %v4326
        %v4328 = vsub.s32 %v4327, 2
        %vm4329 = vcmp.gt.s32.totalorder 0, %v4328
        %v4330 = vsel %vm4329, 0, %v4328
        %v4331 = vsub.s32 32, %v4330
        %v4332 = vshll.u32 %v4323, %v4330
        %v4333 = vshrl.u32 %v4315, %v4331
        %v4334 = vor.u32 %v4332, %v4333
        %v4335 = vsub.s32 4294967266, %v4330
        %v4336 = vadd.s32 %v4335, 127
        %v4337 = vshll.u32 %v4336, 23
        %v4338 = vor.u32 4788187, %v4337
        %v4339 = vand.u32 2147483647, %v4338
        %v4341 = vcvt.s32.f32 %v4334
        %v4342 = vmul.f32 %v4341, %v4339
        %v4343 = vxor.u32 %v4342, 2147483648
        %v4344 = vsel %vm4261, %v4343, %v4342
        %v4345 = vsub.s32 4, %v4321
        %v4346 = vsel %vm4261, %v4345, %v4321
        %v4347 = vsel %vm4260, %v1106, %v4344
        %v4348 = vsel %vm4260, 0, %v4346
        %v4349 = vcosq.f32.pop %v4347
        %v4350 = vsinq.f32.pop %v4347
        %vm4351 = vweird.f32 %v1106
        %v4352 = vadd.s32 %v4348, 3
        %v4353 = vand.u32 %v4352, 3
        %vm4354 = vcmp.lt.s32.totalorder %v4353, 2
        %vm4355 = vcmp.eq.s32.totalorder %v4353, 0
        %v4356 = vxor.u32 %v4350, 2147483648
        %v4357 = vsel %vm4355, %v4349, %v4356
        %vm4358 = vcmp.eq.s32.totalorder %v4353, 2
        %v4359 = vxor.u32 %v4349, 2147483648
        %v4360 = vsel %vm4358, %v4359, %v4350
        %v4361 = vsel %vm4354, %v4357, %v4360
        %v4362 = vsel %vm4351, nan, %v4361
        %v4363 = vand.u32 2147483647, %v1107
        %vm4364 = vcmp.le.f32.partialorder %v4363, 0.7853982
        %vm4365 = vcmp.lt.s32.totalorder %v1107, 0
        %v4366 = vand.u32 %v1107, 2139095040
        %v4367 = vshrl.u32 %v4366, 23
        %v4368 = vsub.s32 %v4367, 127
        %v4369 = vand.u32 2147483647, %v1107
        %v4370 = vand.u32 %v4369, 8388607
        %v4371 = vor.u32 %v4370, 8388608
        %v4372 = vsub.s32 0, %v4371
        %v4373 = vadd.s32 %v4368, 1
        %vm4374 = vcmp.gt.s32.totalorder %v4373, 0
        %v4375 = vsel %vm4374, %v4373, 0
        %v4376 = vshrl.u32 %v4375, 5
        %v4377 = vand.u32 %v4375, 31
        %v4378 = vsub.s32 32, %v4377
        %v4379 = vshrl.u32 683565275, %v4378
        %v4380 = vshll.u32 683565275, %v4377
        %v4381 = vshrl.u32 2475754826, %v4378
        %v4382 = vor.u32 %v4380, %v4381
        %v4383 = vshll.u32 2475754826, %v4377
        %v4384 = vshrl.u32 2131351028, %v4378
        %v4385 = vor.u32 %v4383, %v4384
        %v4386 = vshll.u32 2131351028, %v4377
        %v4387 = vshrl.u32 2102212464, %v4378
        %v4388 = vor.u32 %v4386, %v4387
        %v4389 = vshll.u32 2102212464, %v4377
        %v4390 = vshrl.u32 920167782, %v4378
        %v4391 = vor.u32 %v4389, %v4390
        %v4392 = vshll.u32 920167782, %v4377
        %v4393 = vshrl.u32 1326507024, %v4378
        %v4394 = vor.u32 %v4392, %v4393
        %vm4395 = vcmp.lt.s32.totalorder %v4376, 1
        %vm4396 = vcmp.lt.s32.totalorder %v4376, 2
        %vm4397 = vcmp.lt.s32.totalorder %v4376, 3
        %vm4398 = vcmp.lt.s32.totalorder %v4376, 4
        %v4399 = vsel %vm4395, %v4379, %v4382
        %v4400 = vsel %vm4398, %v4388, 2102212464
        %v4401 = vsel %vm4397, %v4385, %v4400
        %v4402 = vsel %vm4396, %v4399, %v4401
        %v4403 = vsel %vm4395, %v4382, %v4385
        %v4404 = vsel %vm4398, %v4391, 920167782
        %v4405 = vsel %vm4397, %v4388, %v4404
        %v4406 = vsel %vm4396, %v4403, %v4405
        %v4407 = vsel %vm4395, %v4385, %v4388
        %v4408 = vsel %vm4398, %v4394, 1326507024
        %v4409 = vsel %vm4397, %v4391, %v4408
        %v4410 = vsel %vm4396, %v4407, %v4409
        %v4411 = vshll.u32 %v4371, 8
        %v4412 = vmul.u32.u64.compose %v4411, %v4410
        %v4413 = vextract.low.u32 %v4412
        %v4414 = vextract.high.u32 %v4412
        %v4415 = vmul.u32.u64.compose %v4411, %v4406
        %v4416 = vextract.low.u32 %v4415
        %v4417 = vextract.high.u32 %v4415
        %v4418 = vmul.u32 %v4411, %v4402
        %v4419 = vadd.s32 %v4414, %v4416
        %vm4420 = vc.u32 %v4414, %v4416
        %v4421 = vadd.s32 %v4417, 1
        %v4422 = vsel %vm4420, %v4421, %v4417
        %v4423 = vadd.s32 %v4418, %v4422
        %v4424 = vadd.s32 %v4423, 536870912
        %v4425 = vshrl.u32 %v4424, 30
        %v4426 = vshll.u32 %v4425, 30
        %v4427 = vsub.s32 %v4423, %v4426
        %vm4428 = vcmp.lt.s32.totalorder %v4427, 0
        %v4429 = vsub.s32 0, %v4427
        %v4430 = vsel %vm4428, %v4429, %v4427
        %v4431 = vclz %v4430
        %v4432 = vsub.s32 %v4431, 2
        %vm4433 = vcmp.gt.s32.totalorder 0, %v4432
        %v4434 = vsel %vm4433, 0, %v4432
        %v4435 = vsub.s32 32, %v4434
        %v4436 = vshll.u32 %v4427, %v4434
        %v4437 = vshrl.u32 %v4419, %v4435
        %v4438 = vor.u32 %v4436, %v4437
        %v4439 = vsub.s32 4294967266, %v4434
        %v4440 = vadd.s32 %v4439, 127
        %v4441 = vshll.u32 %v4440, 23
        %v4442 = vor.u32 4788187, %v4441
        %v4443 = vand.u32 2147483647, %v4442
        %v4445 = vcvt.s32.f32 %v4438
        %v4446 = vmul.f32 %v4445, %v4443
        %v4447 = vxor.u32 %v4446, 2147483648
        %v4448 = vsel %vm4365, %v4447, %v4446
        %v4449 = vsub.s32 4, %v4425
        %v4450 = vsel %vm4365, %v4449, %v4425
        %v4451 = vsel %vm4364, %v1107, %v4448
        %v4452 = vsel %vm4364, 0, %v4450
        %v4453 = vcosq.f32.pop %v4451
        %v4454 = vsinq.f32.pop %v4451
        %vm4455 = vweird.f32 %v1107
        %v4456 = vadd.s32 %v4452, 3
        %v4457 = vand.u32 %v4456, 3
        %vm4458 = vcmp.lt.s32.totalorder %v4457, 2
        %vm4459 = vcmp.eq.s32.totalorder %v4457, 0
        %v4460 = vxor.u32 %v4454, 2147483648
        %v4461 = vsel %vm4459, %v4453, %v4460
        %vm4462 = vcmp.eq.s32.totalorder %v4457, 2
        %v4463 = vxor.u32 %v4453, 2147483648
        %v4464 = vsel %vm4462, %v4463, %v4454
        %v4465 = vsel %vm4458, %v4461, %v4464
        %v4466 = vsel %vm4455, nan, %v4465
        %v4467 = vand.u32 2147483647, %v1108
        %vm4468 = vcmp.le.f32.partialorder %v4467, 0.7853982
        %vm4469 = vcmp.lt.s32.totalorder %v1108, 0
        %v4470 = vand.u32 %v1108, 2139095040
        %v4471 = vshrl.u32 %v4470, 23
        %v4472 = vsub.s32 %v4471, 127
        %v4473 = vand.u32 2147483647, %v1108
        %v4474 = vand.u32 %v4473, 8388607
        %v4475 = vor.u32 %v4474, 8388608
        %v4476 = vsub.s32 0, %v4475
        %v4477 = vadd.s32 %v4472, 1
        %vm4478 = vcmp.gt.s32.totalorder %v4477, 0
        %v4479 = vsel %vm4478, %v4477, 0
        %v4480 = vshrl.u32 %v4479, 5
        %v4481 = vand.u32 %v4479, 31
        %v4482 = vsub.s32 32, %v4481
        %v4483 = vshrl.u32 683565275, %v4482
        %v4484 = vshll.u32 683565275, %v4481
        %v4485 = vshrl.u32 2475754826, %v4482
        %v4486 = vor.u32 %v4484, %v4485
        %v4487 = vshll.u32 2475754826, %v4481
        %v4488 = vshrl.u32 2131351028, %v4482
        %v4489 = vor.u32 %v4487, %v4488
        %v4490 = vshll.u32 2131351028, %v4481
        %v4491 = vshrl.u32 2102212464, %v4482
        %v4492 = vor.u32 %v4490, %v4491
        %v4493 = vshll.u32 2102212464, %v4481
        %v4494 = vshrl.u32 920167782, %v4482
        %v4495 = vor.u32 %v4493, %v4494
        %v4496 = vshll.u32 920167782, %v4481
        %v4497 = vshrl.u32 1326507024, %v4482
        %v4498 = vor.u32 %v4496, %v4497
        %vm4499 = vcmp.lt.s32.totalorder %v4480, 1
        %vm4500 = vcmp.lt.s32.totalorder %v4480, 2
        %vm4501 = vcmp.lt.s32.totalorder %v4480, 3
        %vm4502 = vcmp.lt.s32.totalorder %v4480, 4
        %v4503 = vsel %vm4499, %v4483, %v4486
        %v4504 = vsel %vm4502, %v4492, 2102212464
        %v4505 = vsel %vm4501, %v4489, %v4504
        %v4506 = vsel %vm4500, %v4503, %v4505
        %v4507 = vsel %vm4499, %v4486, %v4489
        %v4508 = vsel %vm4502, %v4495, 920167782
        %v4509 = vsel %vm4501, %v4492, %v4508
        %v4510 = vsel %vm4500, %v4507, %v4509
        %v4511 = vsel %vm4499, %v4489, %v4492
        %v4512 = vsel %vm4502, %v4498, 1326507024
        %v4513 = vsel %vm4501, %v4495, %v4512
        %v4514 = vsel %vm4500, %v4511, %v4513
        %v4515 = vshll.u32 %v4475, 8
        %v4516 = vmul.u32.u64.compose %v4515, %v4514
        %v4517 = vextract.low.u32 %v4516
        %v4518 = vextract.high.u32 %v4516
        %v4519 = vmul.u32.u64.compose %v4515, %v4510
        %v4520 = vextract.low.u32 %v4519
        %v4521 = vextract.high.u32 %v4519
        %v4522 = vmul.u32 %v4515, %v4506
        %v4523 = vadd.s32 %v4518, %v4520
        %vm4524 = vc.u32 %v4518, %v4520
        %v4525 = vadd.s32 %v4521, 1
        %v4526 = vsel %vm4524, %v4525, %v4521
        %v4527 = vadd.s32 %v4522, %v4526
        %v4528 = vadd.s32 %v4527, 536870912
        %v4529 = vshrl.u32 %v4528, 30
        %v4530 = vshll.u32 %v4529, 30
        %v4531 = vsub.s32 %v4527, %v4530
        %vm4532 = vcmp.lt.s32.totalorder %v4531, 0
        %v4533 = vsub.s32 0, %v4531
        %v4534 = vsel %vm4532, %v4533, %v4531
        %v4535 = vclz %v4534
        %v4536 = vsub.s32 %v4535, 2
        %vm4537 = vcmp.gt.s32.totalorder 0, %v4536
        %v4538 = vsel %vm4537, 0, %v4536
        %v4539 = vsub.s32 32, %v4538
        %v4540 = vshll.u32 %v4531, %v4538
        %v4541 = vshrl.u32 %v4523, %v4539
        %v4542 = vor.u32 %v4540, %v4541
        %v4543 = vsub.s32 4294967266, %v4538
        %v4544 = vadd.s32 %v4543, 127
        %v4545 = vshll.u32 %v4544, 23
        %v4546 = vor.u32 4788187, %v4545
        %v4547 = vand.u32 2147483647, %v4546
        %v4549 = vcvt.s32.f32 %v4542
        %v4550 = vmul.f32 %v4549, %v4547
        %v4551 = vxor.u32 %v4550, 2147483648
        %v4552 = vsel %vm4469, %v4551, %v4550
        %v4553 = vsub.s32 4, %v4529
        %v4554 = vsel %vm4469, %v4553, %v4529
        %v4555 = vsel %vm4468, %v1108, %v4552
        %v4556 = vsel %vm4468, 0, %v4554
        %v4557 = vcosq.f32.pop %v4555
        %v4558 = vsinq.f32.pop %v4555
        %vm4559 = vweird.f32 %v1108
        %v4560 = vadd.s32 %v4556, 3
        %v4561 = vand.u32 %v4560, 3
        %vm4562 = vcmp.lt.s32.totalorder %v4561, 2
        %vm4563 = vcmp.eq.s32.totalorder %v4561, 0
        %v4564 = vxor.u32 %v4558, 2147483648
        %v4565 = vsel %vm4563, %v4557, %v4564
        %vm4566 = vcmp.eq.s32.totalorder %v4561, 2
        %v4567 = vxor.u32 %v4557, 2147483648
        %v4568 = vsel %vm4566, %v4567, %v4558
        %v4569 = vsel %vm4562, %v4565, %v4568
        %v4570 = vsel %vm4559, nan, %v4569
        %v4571 = vand.u32 2147483647, %v1109
        %vm4572 = vcmp.le.f32.partialorder %v4571, 0.7853982
        %vm4573 = vcmp.lt.s32.totalorder %v1109, 0
        %v4574 = vand.u32 %v1109, 2139095040
        %v4575 = vshrl.u32 %v4574, 23
        %v4576 = vsub.s32 %v4575, 127
        %v4577 = vand.u32 2147483647, %v1109
        %v4578 = vand.u32 %v4577, 8388607
        %v4579 = vor.u32 %v4578, 8388608
        %v4580 = vsub.s32 0, %v4579
        %v4581 = vadd.s32 %v4576, 1
        %vm4582 = vcmp.gt.s32.totalorder %v4581, 0
        %v4583 = vsel %vm4582, %v4581, 0
        %v4584 = vshrl.u32 %v4583, 5
        %v4585 = vand.u32 %v4583, 31
        %v4586 = vsub.s32 32, %v4585
        %v4587 = vshrl.u32 683565275, %v4586
        %v4588 = vshll.u32 683565275, %v4585
        %v4589 = vshrl.u32 2475754826, %v4586
        %v4590 = vor.u32 %v4588, %v4589
        %v4591 = vshll.u32 2475754826, %v4585
        %v4592 = vshrl.u32 2131351028, %v4586
        %v4593 = vor.u32 %v4591, %v4592
        %v4594 = vshll.u32 2131351028, %v4585
        %v4595 = vshrl.u32 2102212464, %v4586
        %v4596 = vor.u32 %v4594, %v4595
        %v4597 = vshll.u32 2102212464, %v4585
        %v4598 = vshrl.u32 920167782, %v4586
        %v4599 = vor.u32 %v4597, %v4598
        %v4600 = vshll.u32 920167782, %v4585
        %v4601 = vshrl.u32 1326507024, %v4586
        %v4602 = vor.u32 %v4600, %v4601
        %vm4603 = vcmp.lt.s32.totalorder %v4584, 1
        %vm4604 = vcmp.lt.s32.totalorder %v4584, 2
        %vm4605 = vcmp.lt.s32.totalorder %v4584, 3
        %vm4606 = vcmp.lt.s32.totalorder %v4584, 4
        %v4607 = vsel %vm4603, %v4587, %v4590
        %v4608 = vsel %vm4606, %v4596, 2102212464
        %v4609 = vsel %vm4605, %v4593, %v4608
        %v4610 = vsel %vm4604, %v4607, %v4609
        %v4611 = vsel %vm4603, %v4590, %v4593
        %v4612 = vsel %vm4606, %v4599, 920167782
        %v4613 = vsel %vm4605, %v4596, %v4612
        %v4614 = vsel %vm4604, %v4611, %v4613
        %v4615 = vsel %vm4603, %v4593, %v4596
        %v4616 = vsel %vm4606, %v4602, 1326507024
        %v4617 = vsel %vm4605, %v4599, %v4616
        %v4618 = vsel %vm4604, %v4615, %v4617
        %v4619 = vshll.u32 %v4579, 8
        %v4620 = vmul.u32.u64.compose %v4619, %v4618
        %v4621 = vextract.low.u32 %v4620
        %v4622 = vextract.high.u32 %v4620
        %v4623 = vmul.u32.u64.compose %v4619, %v4614
        %v4624 = vextract.low.u32 %v4623
        %v4625 = vextract.high.u32 %v4623
        %v4626 = vmul.u32 %v4619, %v4610
        %v4627 = vadd.s32 %v4622, %v4624
        %vm4628 = vc.u32 %v4622, %v4624
        %v4629 = vadd.s32 %v4625, 1
        %v4630 = vsel %vm4628, %v4629, %v4625
        %v4631 = vadd.s32 %v4626, %v4630
        %v4632 = vadd.s32 %v4631, 536870912
        %v4633 = vshrl.u32 %v4632, 30
        %v4634 = vshll.u32 %v4633, 30
        %v4635 = vsub.s32 %v4631, %v4634
        %vm4636 = vcmp.lt.s32.totalorder %v4635, 0
        %v4637 = vsub.s32 0, %v4635
        %v4638 = vsel %vm4636, %v4637, %v4635
        %v4639 = vclz %v4638
        %v4640 = vsub.s32 %v4639, 2
        %vm4641 = vcmp.gt.s32.totalorder 0, %v4640
        %v4642 = vsel %vm4641, 0, %v4640
        %v4643 = vsub.s32 32, %v4642
        %v4644 = vshll.u32 %v4635, %v4642
        %v4645 = vshrl.u32 %v4627, %v4643
        %v4646 = vor.u32 %v4644, %v4645
        %v4647 = vsub.s32 4294967266, %v4642
        %v4648 = vadd.s32 %v4647, 127
        %v4649 = vshll.u32 %v4648, 23
        %v4650 = vor.u32 4788187, %v4649
        %v4651 = vand.u32 2147483647, %v4650
        %v4653 = vcvt.s32.f32 %v4646
        %v4654 = vmul.f32 %v4653, %v4651
        %v4655 = vxor.u32 %v4654, 2147483648
        %v4656 = vsel %vm4573, %v4655, %v4654
        %v4657 = vsub.s32 4, %v4633
        %v4658 = vsel %vm4573, %v4657, %v4633
        %v4659 = vsel %vm4572, %v1109, %v4656
        %v4660 = vsel %vm4572, 0, %v4658
        %v4661 = vcosq.f32.pop %v4659
        %v4662 = vsinq.f32.pop %v4659
        %vm4663 = vweird.f32 %v1109
        %v4664 = vadd.s32 %v4660, 3
        %v4665 = vand.u32 %v4664, 3
        %vm4666 = vcmp.lt.s32.totalorder %v4665, 2
        %vm4667 = vcmp.eq.s32.totalorder %v4665, 0
        %v4668 = vxor.u32 %v4662, 2147483648
        %v4669 = vsel %vm4667, %v4661, %v4668
        %vm4670 = vcmp.eq.s32.totalorder %v4665, 2
        %v4671 = vxor.u32 %v4661, 2147483648
        %v4672 = vsel %vm4670, %v4671, %v4662
        %v4673 = vsel %vm4666, %v4669, %v4672
        %v4674 = vsel %vm4663, nan, %v4673
        %v4675 = vand.u32 2147483647, %v1110
        %vm4676 = vcmp.le.f32.partialorder %v4675, 0.7853982
        %vm4677 = vcmp.lt.s32.totalorder %v1110, 0
        %v4678 = vand.u32 %v1110, 2139095040
        %v4679 = vshrl.u32 %v4678, 23
        %v4680 = vsub.s32 %v4679, 127
        %v4681 = vand.u32 2147483647, %v1110
        %v4682 = vand.u32 %v4681, 8388607
        %v4683 = vor.u32 %v4682, 8388608
        %v4684 = vsub.s32 0, %v4683
        %v4685 = vadd.s32 %v4680, 1
        %vm4686 = vcmp.gt.s32.totalorder %v4685, 0
        %v4687 = vsel %vm4686, %v4685, 0
        %v4688 = vshrl.u32 %v4687, 5
        %v4689 = vand.u32 %v4687, 31
        %v4690 = vsub.s32 32, %v4689
        %v4691 = vshrl.u32 683565275, %v4690
        %v4692 = vshll.u32 683565275, %v4689
        %v4693 = vshrl.u32 2475754826, %v4690
        %v4694 = vor.u32 %v4692, %v4693
        %v4695 = vshll.u32 2475754826, %v4689
        %v4696 = vshrl.u32 2131351028, %v4690
        %v4697 = vor.u32 %v4695, %v4696
        %v4698 = vshll.u32 2131351028, %v4689
        %v4699 = vshrl.u32 2102212464, %v4690
        %v4700 = vor.u32 %v4698, %v4699
        %v4701 = vshll.u32 2102212464, %v4689
        %v4702 = vshrl.u32 920167782, %v4690
        %v4703 = vor.u32 %v4701, %v4702
        %v4704 = vshll.u32 920167782, %v4689
        %v4705 = vshrl.u32 1326507024, %v4690
        %v4706 = vor.u32 %v4704, %v4705
        %vm4707 = vcmp.lt.s32.totalorder %v4688, 1
        %vm4708 = vcmp.lt.s32.totalorder %v4688, 2
        %vm4709 = vcmp.lt.s32.totalorder %v4688, 3
        %vm4710 = vcmp.lt.s32.totalorder %v4688, 4
        %v4711 = vsel %vm4707, %v4691, %v4694
        %v4712 = vsel %vm4710, %v4700, 2102212464
        %v4713 = vsel %vm4709, %v4697, %v4712
        %v4714 = vsel %vm4708, %v4711, %v4713
        %v4715 = vsel %vm4707, %v4694, %v4697
        %v4716 = vsel %vm4710, %v4703, 920167782
        %v4717 = vsel %vm4709, %v4700, %v4716
        %v4718 = vsel %vm4708, %v4715, %v4717
        %v4719 = vsel %vm4707, %v4697, %v4700
        %v4720 = vsel %vm4710, %v4706, 1326507024
        %v4721 = vsel %vm4709, %v4703, %v4720
        %v4722 = vsel %vm4708, %v4719, %v4721
        %v4723 = vshll.u32 %v4683, 8
        %v4724 = vmul.u32.u64.compose %v4723, %v4722
        %v4725 = vextract.low.u32 %v4724
        %v4726 = vextract.high.u32 %v4724
        %v4727 = vmul.u32.u64.compose %v4723, %v4718
        %v4728 = vextract.low.u32 %v4727
        %v4729 = vextract.high.u32 %v4727
        %v4730 = vmul.u32 %v4723, %v4714
        %v4731 = vadd.s32 %v4726, %v4728
        %vm4732 = vc.u32 %v4726, %v4728
        %v4733 = vadd.s32 %v4729, 1
        %v4734 = vsel %vm4732, %v4733, %v4729
        %v4735 = vadd.s32 %v4730, %v4734
        %v4736 = vadd.s32 %v4735, 536870912
        %v4737 = vshrl.u32 %v4736, 30
        %v4738 = vshll.u32 %v4737, 30
        %v4739 = vsub.s32 %v4735, %v4738
        %vm4740 = vcmp.lt.s32.totalorder %v4739, 0
        %v4741 = vsub.s32 0, %v4739
        %v4742 = vsel %vm4740, %v4741, %v4739
        %v4743 = vclz %v4742
        %v4744 = vsub.s32 %v4743, 2
        %vm4745 = vcmp.gt.s32.totalorder 0, %v4744
        %v4746 = vsel %vm4745, 0, %v4744
        %v4747 = vsub.s32 32, %v4746
        %v4748 = vshll.u32 %v4739, %v4746
        %v4749 = vshrl.u32 %v4731, %v4747
        %v4750 = vor.u32 %v4748, %v4749
        %v4751 = vsub.s32 4294967266, %v4746
        %v4752 = vadd.s32 %v4751, 127
        %v4753 = vshll.u32 %v4752, 23
        %v4754 = vor.u32 4788187, %v4753
        %v4755 = vand.u32 2147483647, %v4754
        %v4757 = vcvt.s32.f32 %v4750
        %v4758 = vmul.f32 %v4757, %v4755
        %v4759 = vxor.u32 %v4758, 2147483648
        %v4760 = vsel %vm4677, %v4759, %v4758
        %v4761 = vsub.s32 4, %v4737
        %v4762 = vsel %vm4677, %v4761, %v4737
        %v4763 = vsel %vm4676, %v1110, %v4760
        %v4764 = vsel %vm4676, 0, %v4762
        %v4765 = vcosq.f32.pop %v4763
        %v4766 = vsinq.f32.pop %v4763
        %vm4767 = vweird.f32 %v1110
        %v4768 = vadd.s32 %v4764, 3
        %v4769 = vand.u32 %v4768, 3
        %vm4770 = vcmp.lt.s32.totalorder %v4769, 2
        %vm4771 = vcmp.eq.s32.totalorder %v4769, 0
        %v4772 = vxor.u32 %v4766, 2147483648
        %v4773 = vsel %vm4771, %v4765, %v4772
        %vm4774 = vcmp.eq.s32.totalorder %v4769, 2
        %v4775 = vxor.u32 %v4765, 2147483648
        %v4776 = vsel %vm4774, %v4775, %v4766
        %v4777 = vsel %vm4770, %v4773, %v4776
        %v4778 = vsel %vm4767, nan, %v4777
        %v4779 = vand.u32 2147483647, %v1111
        %vm4780 = vcmp.le.f32.partialorder %v4779, 0.7853982
        %vm4781 = vcmp.lt.s32.totalorder %v1111, 0
        %v4782 = vand.u32 %v1111, 2139095040
        %v4783 = vshrl.u32 %v4782, 23
        %v4784 = vsub.s32 %v4783, 127
        %v4785 = vand.u32 2147483647, %v1111
        %v4786 = vand.u32 %v4785, 8388607
        %v4787 = vor.u32 %v4786, 8388608
        %v4788 = vsub.s32 0, %v4787
        %v4789 = vadd.s32 %v4784, 1
        %vm4790 = vcmp.gt.s32.totalorder %v4789, 0
        %v4791 = vsel %vm4790, %v4789, 0
        %v4792 = vshrl.u32 %v4791, 5
        %v4793 = vand.u32 %v4791, 31
        %v4794 = vsub.s32 32, %v4793
        %v4795 = vshrl.u32 683565275, %v4794
        %v4796 = vshll.u32 683565275, %v4793
        %v4797 = vshrl.u32 2475754826, %v4794
        %v4798 = vor.u32 %v4796, %v4797
        %v4799 = vshll.u32 2475754826, %v4793
        %v4800 = vshrl.u32 2131351028, %v4794
        %v4801 = vor.u32 %v4799, %v4800
        %v4802 = vshll.u32 2131351028, %v4793
        %v4803 = vshrl.u32 2102212464, %v4794
        %v4804 = vor.u32 %v4802, %v4803
        %v4805 = vshll.u32 2102212464, %v4793
        %v4806 = vshrl.u32 920167782, %v4794
        %v4807 = vor.u32 %v4805, %v4806
        %v4808 = vshll.u32 920167782, %v4793
        %v4809 = vshrl.u32 1326507024, %v4794
        %v4810 = vor.u32 %v4808, %v4809
        %vm4811 = vcmp.lt.s32.totalorder %v4792, 1
        %vm4812 = vcmp.lt.s32.totalorder %v4792, 2
        %vm4813 = vcmp.lt.s32.totalorder %v4792, 3
        %vm4814 = vcmp.lt.s32.totalorder %v4792, 4
        %v4815 = vsel %vm4811, %v4795, %v4798
        %v4816 = vsel %vm4814, %v4804, 2102212464
        %v4817 = vsel %vm4813, %v4801, %v4816
        %v4818 = vsel %vm4812, %v4815, %v4817
        %v4819 = vsel %vm4811, %v4798, %v4801
        %v4820 = vsel %vm4814, %v4807, 920167782
        %v4821 = vsel %vm4813, %v4804, %v4820
        %v4822 = vsel %vm4812, %v4819, %v4821
        %v4823 = vsel %vm4811, %v4801, %v4804
        %v4824 = vsel %vm4814, %v4810, 1326507024
        %v4825 = vsel %vm4813, %v4807, %v4824
        %v4826 = vsel %vm4812, %v4823, %v4825
        %v4827 = vshll.u32 %v4787, 8
        %v4828 = vmul.u32.u64.compose %v4827, %v4826
        %v4829 = vextract.low.u32 %v4828
        %v4830 = vextract.high.u32 %v4828
        %v4831 = vmul.u32.u64.compose %v4827, %v4822
        %v4832 = vextract.low.u32 %v4831
        %v4833 = vextract.high.u32 %v4831
        %v4834 = vmul.u32 %v4827, %v4818
        %v4835 = vadd.s32 %v4830, %v4832
        %vm4836 = vc.u32 %v4830, %v4832
        %v4837 = vadd.s32 %v4833, 1
        %v4838 = vsel %vm4836, %v4837, %v4833
        %v4839 = vadd.s32 %v4834, %v4838
        %v4840 = vadd.s32 %v4839, 536870912
        %v4841 = vshrl.u32 %v4840, 30
        %v4842 = vshll.u32 %v4841, 30
        %v4843 = vsub.s32 %v4839, %v4842
        %vm4844 = vcmp.lt.s32.totalorder %v4843, 0
        %v4845 = vsub.s32 0, %v4843
        %v4846 = vsel %vm4844, %v4845, %v4843
        %v4847 = vclz %v4846
        %v4848 = vsub.s32 %v4847, 2
        %vm4849 = vcmp.gt.s32.totalorder 0, %v4848
        %v4850 = vsel %vm4849, 0, %v4848
        %v4851 = vsub.s32 32, %v4850
        %v4852 = vshll.u32 %v4843, %v4850
        %v4853 = vshrl.u32 %v4835, %v4851
        %v4854 = vor.u32 %v4852, %v4853
        %v4855 = vsub.s32 4294967266, %v4850
        %v4856 = vadd.s32 %v4855, 127
        %v4857 = vshll.u32 %v4856, 23
        %v4858 = vor.u32 4788187, %v4857
        %v4859 = vand.u32 2147483647, %v4858
        %v4861 = vcvt.s32.f32 %v4854
        %v4862 = vmul.f32 %v4861, %v4859
        %v4863 = vxor.u32 %v4862, 2147483648
        %v4864 = vsel %vm4781, %v4863, %v4862
        %v4865 = vsub.s32 4, %v4841
        %v4866 = vsel %vm4781, %v4865, %v4841
        %v4867 = vsel %vm4780, %v1111, %v4864
        %v4868 = vsel %vm4780, 0, %v4866
        %v4869 = vcosq.f32.pop %v4867
        %v4870 = vsinq.f32.pop %v4867
        %vm4871 = vweird.f32 %v1111
        %v4872 = vadd.s32 %v4868, 3
        %v4873 = vand.u32 %v4872, 3
        %vm4874 = vcmp.lt.s32.totalorder %v4873, 2
        %vm4875 = vcmp.eq.s32.totalorder %v4873, 0
        %v4876 = vxor.u32 %v4870, 2147483648
        %v4877 = vsel %vm4875, %v4869, %v4876
        %vm4878 = vcmp.eq.s32.totalorder %v4873, 2
        %v4879 = vxor.u32 %v4869, 2147483648
        %v4880 = vsel %vm4878, %v4879, %v4870
        %v4881 = vsel %vm4874, %v4877, %v4880
        %v4882 = vsel %vm4871, nan, %v4881
        %v4883 = vand.u32 2147483647, %v1112
        %vm4884 = vcmp.le.f32.partialorder %v4883, 0.7853982
        %vm4885 = vcmp.lt.s32.totalorder %v1112, 0
        %v4886 = vand.u32 %v1112, 2139095040
        %v4887 = vshrl.u32 %v4886, 23
        %v4888 = vsub.s32 %v4887, 127
        %v4889 = vand.u32 2147483647, %v1112
        %v4890 = vand.u32 %v4889, 8388607
        %v4891 = vor.u32 %v4890, 8388608
        %v4892 = vsub.s32 0, %v4891
        %v4893 = vadd.s32 %v4888, 1
        %vm4894 = vcmp.gt.s32.totalorder %v4893, 0
        %v4895 = vsel %vm4894, %v4893, 0
        %v4896 = vshrl.u32 %v4895, 5
        %v4897 = vand.u32 %v4895, 31
        %v4898 = vsub.s32 32, %v4897
        %v4899 = vshrl.u32 683565275, %v4898
        %v4900 = vshll.u32 683565275, %v4897
        %v4901 = vshrl.u32 2475754826, %v4898
        %v4902 = vor.u32 %v4900, %v4901
        %v4903 = vshll.u32 2475754826, %v4897
        %v4904 = vshrl.u32 2131351028, %v4898
        %v4905 = vor.u32 %v4903, %v4904
        %v4906 = vshll.u32 2131351028, %v4897
        %v4907 = vshrl.u32 2102212464, %v4898
        %v4908 = vor.u32 %v4906, %v4907
        %v4909 = vshll.u32 2102212464, %v4897
        %v4910 = vshrl.u32 920167782, %v4898
        %v4911 = vor.u32 %v4909, %v4910
        %v4912 = vshll.u32 920167782, %v4897
        %v4913 = vshrl.u32 1326507024, %v4898
        %v4914 = vor.u32 %v4912, %v4913
        %vm4915 = vcmp.lt.s32.totalorder %v4896, 1
        %vm4916 = vcmp.lt.s32.totalorder %v4896, 2
        %vm4917 = vcmp.lt.s32.totalorder %v4896, 3
        %vm4918 = vcmp.lt.s32.totalorder %v4896, 4
        %v4919 = vsel %vm4915, %v4899, %v4902
        %v4920 = vsel %vm4918, %v4908, 2102212464
        %v4921 = vsel %vm4917, %v4905, %v4920
        %v4922 = vsel %vm4916, %v4919, %v4921
        %v4923 = vsel %vm4915, %v4902, %v4905
        %v4924 = vsel %vm4918, %v4911, 920167782
        %v4925 = vsel %vm4917, %v4908, %v4924
        %v4926 = vsel %vm4916, %v4923, %v4925
        %v4927 = vsel %vm4915, %v4905, %v4908
        %v4928 = vsel %vm4918, %v4914, 1326507024
        %v4929 = vsel %vm4917, %v4911, %v4928
        %v4930 = vsel %vm4916, %v4927, %v4929
        %v4931 = vshll.u32 %v4891, 8
        %v4932 = vmul.u32.u64.compose %v4931, %v4930
        %v4933 = vextract.low.u32 %v4932
        %v4934 = vextract.high.u32 %v4932
        %v4935 = vmul.u32.u64.compose %v4931, %v4926
        %v4936 = vextract.low.u32 %v4935
        %v4937 = vextract.high.u32 %v4935
        %v4938 = vmul.u32 %v4931, %v4922
        %v4939 = vadd.s32 %v4934, %v4936
        %vm4940 = vc.u32 %v4934, %v4936
        %v4941 = vadd.s32 %v4937, 1
        %v4942 = vsel %vm4940, %v4941, %v4937
        %v4943 = vadd.s32 %v4938, %v4942
        %v4944 = vadd.s32 %v4943, 536870912
        %v4945 = vshrl.u32 %v4944, 30
        %v4946 = vshll.u32 %v4945, 30
        %v4947 = vsub.s32 %v4943, %v4946
        %vm4948 = vcmp.lt.s32.totalorder %v4947, 0
        %v4949 = vsub.s32 0, %v4947
        %v4950 = vsel %vm4948, %v4949, %v4947
        %v4951 = vclz %v4950
        %v4952 = vsub.s32 %v4951, 2
        %vm4953 = vcmp.gt.s32.totalorder 0, %v4952
        %v4954 = vsel %vm4953, 0, %v4952
        %v4955 = vsub.s32 32, %v4954
        %v4956 = vshll.u32 %v4947, %v4954
        %v4957 = vshrl.u32 %v4939, %v4955
        %v4958 = vor.u32 %v4956, %v4957
        %v4959 = vsub.s32 4294967266, %v4954
        %v4960 = vadd.s32 %v4959, 127
        %v4961 = vshll.u32 %v4960, 23
        %v4962 = vor.u32 4788187, %v4961
        %v4963 = vand.u32 2147483647, %v4962
        %v4965 = vcvt.s32.f32 %v4958
        %v4966 = vmul.f32 %v4965, %v4963
        %v4967 = vxor.u32 %v4966, 2147483648
        %v4968 = vsel %vm4885, %v4967, %v4966
        %v4969 = vsub.s32 4, %v4945
        %v4970 = vsel %vm4885, %v4969, %v4945
        %v4971 = vsel %vm4884, %v1112, %v4968
        %v4972 = vsel %vm4884, 0, %v4970
        %v4973 = vcosq.f32.pop %v4971
        %v4974 = vsinq.f32.pop %v4971
        %vm4975 = vweird.f32 %v1112
        %v4976 = vadd.s32 %v4972, 3
        %v4977 = vand.u32 %v4976, 3
        %vm4978 = vcmp.lt.s32.totalorder %v4977, 2
        %vm4979 = vcmp.eq.s32.totalorder %v4977, 0
        %v4980 = vxor.u32 %v4974, 2147483648
        %v4981 = vsel %vm4979, %v4973, %v4980
        %vm4982 = vcmp.eq.s32.totalorder %v4977, 2
        %v4983 = vxor.u32 %v4973, 2147483648
        %v4984 = vsel %vm4982, %v4983, %v4974
        %v4985 = vsel %vm4978, %v4981, %v4984
        %v4986 = vsel %vm4975, nan, %v4985
        %v4987 = vand.u32 2147483647, %v1113
        %vm4988 = vcmp.le.f32.partialorder %v4987, 0.7853982
        %vm4989 = vcmp.lt.s32.totalorder %v1113, 0
        %v4990 = vand.u32 %v1113, 2139095040
        %v4991 = vshrl.u32 %v4990, 23
        %v4992 = vsub.s32 %v4991, 127
        %v4993 = vand.u32 2147483647, %v1113
        %v4994 = vand.u32 %v4993, 8388607
        %v4995 = vor.u32 %v4994, 8388608
        %v4996 = vsub.s32 0, %v4995
        %v4997 = vadd.s32 %v4992, 1
        %vm4998 = vcmp.gt.s32.totalorder %v4997, 0
        %v4999 = vsel %vm4998, %v4997, 0
        %v5000 = vshrl.u32 %v4999, 5
        %v5001 = vand.u32 %v4999, 31
        %v5002 = vsub.s32 32, %v5001
        %v5003 = vshrl.u32 683565275, %v5002
        %v5004 = vshll.u32 683565275, %v5001
        %v5005 = vshrl.u32 2475754826, %v5002
        %v5006 = vor.u32 %v5004, %v5005
        %v5007 = vshll.u32 2475754826, %v5001
        %v5008 = vshrl.u32 2131351028, %v5002
        %v5009 = vor.u32 %v5007, %v5008
        %v5010 = vshll.u32 2131351028, %v5001
        %v5011 = vshrl.u32 2102212464, %v5002
        %v5012 = vor.u32 %v5010, %v5011
        %v5013 = vshll.u32 2102212464, %v5001
        %v5014 = vshrl.u32 920167782, %v5002
        %v5015 = vor.u32 %v5013, %v5014
        %v5016 = vshll.u32 920167782, %v5001
        %v5017 = vshrl.u32 1326507024, %v5002
        %v5018 = vor.u32 %v5016, %v5017
        %vm5019 = vcmp.lt.s32.totalorder %v5000, 1
        %vm5020 = vcmp.lt.s32.totalorder %v5000, 2
        %vm5021 = vcmp.lt.s32.totalorder %v5000, 3
        %vm5022 = vcmp.lt.s32.totalorder %v5000, 4
        %v5023 = vsel %vm5019, %v5003, %v5006
        %v5024 = vsel %vm5022, %v5012, 2102212464
        %v5025 = vsel %vm5021, %v5009, %v5024
        %v5026 = vsel %vm5020, %v5023, %v5025
        %v5027 = vsel %vm5019, %v5006, %v5009
        %v5028 = vsel %vm5022, %v5015, 920167782
        %v5029 = vsel %vm5021, %v5012, %v5028
        %v5030 = vsel %vm5020, %v5027, %v5029
        %v5031 = vsel %vm5019, %v5009, %v5012
        %v5032 = vsel %vm5022, %v5018, 1326507024
        %v5033 = vsel %vm5021, %v5015, %v5032
        %v5034 = vsel %vm5020, %v5031, %v5033
        %v5035 = vshll.u32 %v4995, 8
        %v5036 = vmul.u32.u64.compose %v5035, %v5034
        %v5037 = vextract.low.u32 %v5036
        %v5038 = vextract.high.u32 %v5036
        %v5039 = vmul.u32.u64.compose %v5035, %v5030
        %v5040 = vextract.low.u32 %v5039
        %v5041 = vextract.high.u32 %v5039
        %v5042 = vmul.u32 %v5035, %v5026
        %v5043 = vadd.s32 %v5038, %v5040
        %vm5044 = vc.u32 %v5038, %v5040
        %v5045 = vadd.s32 %v5041, 1
        %v5046 = vsel %vm5044, %v5045, %v5041
        %v5047 = vadd.s32 %v5042, %v5046
        %v5048 = vadd.s32 %v5047, 536870912
        %v5049 = vshrl.u32 %v5048, 30
        %v5050 = vshll.u32 %v5049, 30
        %v5051 = vsub.s32 %v5047, %v5050
        %vm5052 = vcmp.lt.s32.totalorder %v5051, 0
        %v5053 = vsub.s32 0, %v5051
        %v5054 = vsel %vm5052, %v5053, %v5051
        %v5055 = vclz %v5054
        %v5056 = vsub.s32 %v5055, 2
        %vm5057 = vcmp.gt.s32.totalorder 0, %v5056
        %v5058 = vsel %vm5057, 0, %v5056
        %v5059 = vsub.s32 32, %v5058
        %v5060 = vshll.u32 %v5051, %v5058
        %v5061 = vshrl.u32 %v5043, %v5059
        %v5062 = vor.u32 %v5060, %v5061
        %v5063 = vsub.s32 4294967266, %v5058
        %v5064 = vadd.s32 %v5063, 127
        %v5065 = vshll.u32 %v5064, 23
        %v5066 = vor.u32 4788187, %v5065
        %v5067 = vand.u32 2147483647, %v5066
        %v5069 = vcvt.s32.f32 %v5062
        %v5070 = vmul.f32 %v5069, %v5067
        %v5071 = vxor.u32 %v5070, 2147483648
        %v5072 = vsel %vm4989, %v5071, %v5070
        %v5073 = vsub.s32 4, %v5049
        %v5074 = vsel %vm4989, %v5073, %v5049
        %v5075 = vsel %vm4988, %v1113, %v5072
        %v5076 = vsel %vm4988, 0, %v5074
        %v5077 = vcosq.f32.pop %v5075
        %v5078 = vsinq.f32.pop %v5075
        %vm5079 = vweird.f32 %v1113
        %v5080 = vadd.s32 %v5076, 3
        %v5081 = vand.u32 %v5080, 3
        %vm5082 = vcmp.lt.s32.totalorder %v5081, 2
        %vm5083 = vcmp.eq.s32.totalorder %v5081, 0
        %v5084 = vxor.u32 %v5078, 2147483648
        %v5085 = vsel %vm5083, %v5077, %v5084
        %vm5086 = vcmp.eq.s32.totalorder %v5081, 2
        %v5087 = vxor.u32 %v5077, 2147483648
        %v5088 = vsel %vm5086, %v5087, %v5078
        %v5089 = vsel %vm5082, %v5085, %v5088
        %v5090 = vsel %vm5079, nan, %v5089
        %v5091 = vand.u32 2147483647, %v1114
        %vm5092 = vcmp.le.f32.partialorder %v5091, 0.7853982
        %vm5093 = vcmp.lt.s32.totalorder %v1114, 0
        %v5094 = vand.u32 %v1114, 2139095040
        %v5095 = vshrl.u32 %v5094, 23
        %v5096 = vsub.s32 %v5095, 127
        %v5097 = vand.u32 2147483647, %v1114
        %v5098 = vand.u32 %v5097, 8388607
        %v5099 = vor.u32 %v5098, 8388608
        %v5100 = vsub.s32 0, %v5099
        %v5101 = vadd.s32 %v5096, 1
        %vm5102 = vcmp.gt.s32.totalorder %v5101, 0
        %v5103 = vsel %vm5102, %v5101, 0
        %v5104 = vshrl.u32 %v5103, 5
        %v5105 = vand.u32 %v5103, 31
        %v5106 = vsub.s32 32, %v5105
        %v5107 = vshrl.u32 683565275, %v5106
        %v5108 = vshll.u32 683565275, %v5105
        %v5109 = vshrl.u32 2475754826, %v5106
        %v5110 = vor.u32 %v5108, %v5109
        %v5111 = vshll.u32 2475754826, %v5105
        %v5112 = vshrl.u32 2131351028, %v5106
        %v5113 = vor.u32 %v5111, %v5112
        %v5114 = vshll.u32 2131351028, %v5105
        %v5115 = vshrl.u32 2102212464, %v5106
        %v5116 = vor.u32 %v5114, %v5115
        %v5117 = vshll.u32 2102212464, %v5105
        %v5118 = vshrl.u32 920167782, %v5106
        %v5119 = vor.u32 %v5117, %v5118
        %v5120 = vshll.u32 920167782, %v5105
        %v5121 = vshrl.u32 1326507024, %v5106
        %v5122 = vor.u32 %v5120, %v5121
        %vm5123 = vcmp.lt.s32.totalorder %v5104, 1
        %vm5124 = vcmp.lt.s32.totalorder %v5104, 2
        %vm5125 = vcmp.lt.s32.totalorder %v5104, 3
        %vm5126 = vcmp.lt.s32.totalorder %v5104, 4
        %v5127 = vsel %vm5123, %v5107, %v5110
        %v5128 = vsel %vm5126, %v5116, 2102212464
        %v5129 = vsel %vm5125, %v5113, %v5128
        %v5130 = vsel %vm5124, %v5127, %v5129
        %v5131 = vsel %vm5123, %v5110, %v5113
        %v5132 = vsel %vm5126, %v5119, 920167782
        %v5133 = vsel %vm5125, %v5116, %v5132
        %v5134 = vsel %vm5124, %v5131, %v5133
        %v5135 = vsel %vm5123, %v5113, %v5116
        %v5136 = vsel %vm5126, %v5122, 1326507024
        %v5137 = vsel %vm5125, %v5119, %v5136
        %v5138 = vsel %vm5124, %v5135, %v5137
        %v5139 = vshll.u32 %v5099, 8
        %v5140 = vmul.u32.u64.compose %v5139, %v5138
        %v5141 = vextract.low.u32 %v5140
        %v5142 = vextract.high.u32 %v5140
        %v5143 = vmul.u32.u64.compose %v5139, %v5134
        %v5144 = vextract.low.u32 %v5143
        %v5145 = vextract.high.u32 %v5143
        %v5146 = vmul.u32 %v5139, %v5130
        %v5147 = vadd.s32 %v5142, %v5144
        %vm5148 = vc.u32 %v5142, %v5144
        %v5149 = vadd.s32 %v5145, 1
        %v5150 = vsel %vm5148, %v5149, %v5145
        %v5151 = vadd.s32 %v5146, %v5150
        %v5152 = vadd.s32 %v5151, 536870912
        %v5153 = vshrl.u32 %v5152, 30
        %v5154 = vshll.u32 %v5153, 30
        %v5155 = vsub.s32 %v5151, %v5154
        %vm5156 = vcmp.lt.s32.totalorder %v5155, 0
        %v5157 = vsub.s32 0, %v5155
        %v5158 = vsel %vm5156, %v5157, %v5155
        %v5159 = vclz %v5158
        %v5160 = vsub.s32 %v5159, 2
        %vm5161 = vcmp.gt.s32.totalorder 0, %v5160
        %v5162 = vsel %vm5161, 0, %v5160
        %v5163 = vsub.s32 32, %v5162
        %v5164 = vshll.u32 %v5155, %v5162
        %v5165 = vshrl.u32 %v5147, %v5163
        %v5166 = vor.u32 %v5164, %v5165
        %v5167 = vsub.s32 4294967266, %v5162
        %v5168 = vadd.s32 %v5167, 127
        %v5169 = vshll.u32 %v5168, 23
        %v5170 = vor.u32 4788187, %v5169
        %v5171 = vand.u32 2147483647, %v5170
        %v5173 = vcvt.s32.f32 %v5166
        %v5174 = vmul.f32 %v5173, %v5171
        %v5175 = vxor.u32 %v5174, 2147483648
        %v5176 = vsel %vm5093, %v5175, %v5174
        %v5177 = vsub.s32 4, %v5153
        %v5178 = vsel %vm5093, %v5177, %v5153
        %v5179 = vsel %vm5092, %v1114, %v5176
        %v5180 = vsel %vm5092, 0, %v5178
        %v5181 = vcosq.f32.pop %v5179
        %v5182 = vsinq.f32.pop %v5179
        %vm5183 = vweird.f32 %v1114
        %v5184 = vadd.s32 %v5180, 3
        %v5185 = vand.u32 %v5184, 3
        %vm5186 = vcmp.lt.s32.totalorder %v5185, 2
        %vm5187 = vcmp.eq.s32.totalorder %v5185, 0
        %v5188 = vxor.u32 %v5182, 2147483648
        %v5189 = vsel %vm5187, %v5181, %v5188
        %vm5190 = vcmp.eq.s32.totalorder %v5185, 2
        %v5191 = vxor.u32 %v5181, 2147483648
        %v5192 = vsel %vm5190, %v5191, %v5182
        %v5193 = vsel %vm5186, %v5189, %v5192
        %v5194 = vsel %vm5183, nan, %v5193
        %v5195 = vand.u32 2147483647, %v1115
        %vm5196 = vcmp.le.f32.partialorder %v5195, 0.7853982
        %vm5197 = vcmp.lt.s32.totalorder %v1115, 0
        %v5198 = vand.u32 %v1115, 2139095040
        %v5199 = vshrl.u32 %v5198, 23
        %v5200 = vsub.s32 %v5199, 127
        %v5201 = vand.u32 2147483647, %v1115
        %v5202 = vand.u32 %v5201, 8388607
        %v5203 = vor.u32 %v5202, 8388608
        %v5204 = vsub.s32 0, %v5203
        %v5205 = vadd.s32 %v5200, 1
        %vm5206 = vcmp.gt.s32.totalorder %v5205, 0
        %v5207 = vsel %vm5206, %v5205, 0
        %v5208 = vshrl.u32 %v5207, 5
        %v5209 = vand.u32 %v5207, 31
        %v5210 = vsub.s32 32, %v5209
        %v5211 = vshrl.u32 683565275, %v5210
        %v5212 = vshll.u32 683565275, %v5209
        %v5213 = vshrl.u32 2475754826, %v5210
        %v5214 = vor.u32 %v5212, %v5213
        %v5215 = vshll.u32 2475754826, %v5209
        %v5216 = vshrl.u32 2131351028, %v5210
        %v5217 = vor.u32 %v5215, %v5216
        %v5218 = vshll.u32 2131351028, %v5209
        %v5219 = vshrl.u32 2102212464, %v5210
        %v5220 = vor.u32 %v5218, %v5219
        %v5221 = vshll.u32 2102212464, %v5209
        %v5222 = vshrl.u32 920167782, %v5210
        %v5223 = vor.u32 %v5221, %v5222
        %v5224 = vshll.u32 920167782, %v5209
        %v5225 = vshrl.u32 1326507024, %v5210
        %v5226 = vor.u32 %v5224, %v5225
        %vm5227 = vcmp.lt.s32.totalorder %v5208, 1
        %vm5228 = vcmp.lt.s32.totalorder %v5208, 2
        %vm5229 = vcmp.lt.s32.totalorder %v5208, 3
        %vm5230 = vcmp.lt.s32.totalorder %v5208, 4
        %v5231 = vsel %vm5227, %v5211, %v5214
        %v5232 = vsel %vm5230, %v5220, 2102212464
        %v5233 = vsel %vm5229, %v5217, %v5232
        %v5234 = vsel %vm5228, %v5231, %v5233
        %v5235 = vsel %vm5227, %v5214, %v5217
        %v5236 = vsel %vm5230, %v5223, 920167782
        %v5237 = vsel %vm5229, %v5220, %v5236
        %v5238 = vsel %vm5228, %v5235, %v5237
        %v5239 = vsel %vm5227, %v5217, %v5220
        %v5240 = vsel %vm5230, %v5226, 1326507024
        %v5241 = vsel %vm5229, %v5223, %v5240
        %v5242 = vsel %vm5228, %v5239, %v5241
        %v5243 = vshll.u32 %v5203, 8
        %v5244 = vmul.u32.u64.compose %v5243, %v5242
        %v5245 = vextract.low.u32 %v5244
        %v5246 = vextract.high.u32 %v5244
        %v5247 = vmul.u32.u64.compose %v5243, %v5238
        %v5248 = vextract.low.u32 %v5247
        %v5249 = vextract.high.u32 %v5247
        %v5250 = vmul.u32 %v5243, %v5234
        %v5251 = vadd.s32 %v5246, %v5248
        %vm5252 = vc.u32 %v5246, %v5248
        %v5253 = vadd.s32 %v5249, 1
        %v5254 = vsel %vm5252, %v5253, %v5249
        %v5255 = vadd.s32 %v5250, %v5254
        %v5256 = vadd.s32 %v5255, 536870912
        %v5257 = vshrl.u32 %v5256, 30
        %v5258 = vshll.u32 %v5257, 30
        %v5259 = vsub.s32 %v5255, %v5258
        %vm5260 = vcmp.lt.s32.totalorder %v5259, 0
        %v5261 = vsub.s32 0, %v5259
        %v5262 = vsel %vm5260, %v5261, %v5259
        %v5263 = vclz %v5262
        %v5264 = vsub.s32 %v5263, 2
        %vm5265 = vcmp.gt.s32.totalorder 0, %v5264
        %v5266 = vsel %vm5265, 0, %v5264
        %v5267 = vsub.s32 32, %v5266
        %v5268 = vshll.u32 %v5259, %v5266
        %v5269 = vshrl.u32 %v5251, %v5267
        %v5270 = vor.u32 %v5268, %v5269
        %v5271 = vsub.s32 4294967266, %v5266
        %v5272 = vadd.s32 %v5271, 127
        %v5273 = vshll.u32 %v5272, 23
        %v5274 = vor.u32 4788187, %v5273
        %v5275 = vand.u32 2147483647, %v5274
        %v5277 = vcvt.s32.f32 %v5270
        %v5278 = vmul.f32 %v5277, %v5275
        %v5279 = vxor.u32 %v5278, 2147483648
        %v5280 = vsel %vm5197, %v5279, %v5278
        %v5281 = vsub.s32 4, %v5257
        %v5282 = vsel %vm5197, %v5281, %v5257
        %v5283 = vsel %vm5196, %v1115, %v5280
        %v5284 = vsel %vm5196, 0, %v5282
        %v5285 = vcosq.f32.pop %v5283
        %v5286 = vsinq.f32.pop %v5283
        %vm5287 = vweird.f32 %v1115
        %v5288 = vadd.s32 %v5284, 3
        %v5289 = vand.u32 %v5288, 3
        %vm5290 = vcmp.lt.s32.totalorder %v5289, 2
        %vm5291 = vcmp.eq.s32.totalorder %v5289, 0
        %v5292 = vxor.u32 %v5286, 2147483648
        %v5293 = vsel %vm5291, %v5285, %v5292
        %vm5294 = vcmp.eq.s32.totalorder %v5289, 2
        %v5295 = vxor.u32 %v5285, 2147483648
        %v5296 = vsel %vm5294, %v5295, %v5286
        %v5297 = vsel %vm5290, %v5293, %v5296
        %v5298 = vsel %vm5287, nan, %v5297
        %v5299 = vand.u32 2147483647, %v1116
        %vm5300 = vcmp.le.f32.partialorder %v5299, 0.7853982
        %vm5301 = vcmp.lt.s32.totalorder %v1116, 0
        %v5302 = vand.u32 %v1116, 2139095040
        %v5303 = vshrl.u32 %v5302, 23
        %v5304 = vsub.s32 %v5303, 127
        %v5305 = vand.u32 2147483647, %v1116
        %v5306 = vand.u32 %v5305, 8388607
        %v5307 = vor.u32 %v5306, 8388608
        %v5308 = vsub.s32 0, %v5307
        %v5309 = vadd.s32 %v5304, 1
        %vm5310 = vcmp.gt.s32.totalorder %v5309, 0
        %v5311 = vsel %vm5310, %v5309, 0
        %v5312 = vshrl.u32 %v5311, 5
        %v5313 = vand.u32 %v5311, 31
        %v5314 = vsub.s32 32, %v5313
        %v5315 = vshrl.u32 683565275, %v5314
        %v5316 = vshll.u32 683565275, %v5313
        %v5317 = vshrl.u32 2475754826, %v5314
        %v5318 = vor.u32 %v5316, %v5317
        %v5319 = vshll.u32 2475754826, %v5313
        %v5320 = vshrl.u32 2131351028, %v5314
        %v5321 = vor.u32 %v5319, %v5320
        %v5322 = vshll.u32 2131351028, %v5313
        %v5323 = vshrl.u32 2102212464, %v5314
        %v5324 = vor.u32 %v5322, %v5323
        %v5325 = vshll.u32 2102212464, %v5313
        %v5326 = vshrl.u32 920167782, %v5314
        %v5327 = vor.u32 %v5325, %v5326
        %v5328 = vshll.u32 920167782, %v5313
        %v5329 = vshrl.u32 1326507024, %v5314
        %v5330 = vor.u32 %v5328, %v5329
        %vm5331 = vcmp.lt.s32.totalorder %v5312, 1
        %vm5332 = vcmp.lt.s32.totalorder %v5312, 2
        %vm5333 = vcmp.lt.s32.totalorder %v5312, 3
        %vm5334 = vcmp.lt.s32.totalorder %v5312, 4
        %v5335 = vsel %vm5331, %v5315, %v5318
        %v5336 = vsel %vm5334, %v5324, 2102212464
        %v5337 = vsel %vm5333, %v5321, %v5336
        %v5338 = vsel %vm5332, %v5335, %v5337
        %v5339 = vsel %vm5331, %v5318, %v5321
        %v5340 = vsel %vm5334, %v5327, 920167782
        %v5341 = vsel %vm5333, %v5324, %v5340
        %v5342 = vsel %vm5332, %v5339, %v5341
        %v5343 = vsel %vm5331, %v5321, %v5324
        %v5344 = vsel %vm5334, %v5330, 1326507024
        %v5345 = vsel %vm5333, %v5327, %v5344
        %v5346 = vsel %vm5332, %v5343, %v5345
        %v5347 = vshll.u32 %v5307, 8
        %v5348 = vmul.u32.u64.compose %v5347, %v5346
        %v5349 = vextract.low.u32 %v5348
        %v5350 = vextract.high.u32 %v5348
        %v5351 = vmul.u32.u64.compose %v5347, %v5342
        %v5352 = vextract.low.u32 %v5351
        %v5353 = vextract.high.u32 %v5351
        %v5354 = vmul.u32 %v5347, %v5338
        %v5355 = vadd.s32 %v5350, %v5352
        %vm5356 = vc.u32 %v5350, %v5352
        %v5357 = vadd.s32 %v5353, 1
        %v5358 = vsel %vm5356, %v5357, %v5353
        %v5359 = vadd.s32 %v5354, %v5358
        %v5360 = vadd.s32 %v5359, 536870912
        %v5361 = vshrl.u32 %v5360, 30
        %v5362 = vshll.u32 %v5361, 30
        %v5363 = vsub.s32 %v5359, %v5362
        %vm5364 = vcmp.lt.s32.totalorder %v5363, 0
        %v5365 = vsub.s32 0, %v5363
        %v5366 = vsel %vm5364, %v5365, %v5363
        %v5367 = vclz %v5366
        %v5368 = vsub.s32 %v5367, 2
        %vm5369 = vcmp.gt.s32.totalorder 0, %v5368
        %v5370 = vsel %vm5369, 0, %v5368
        %v5371 = vsub.s32 32, %v5370
        %v5372 = vshll.u32 %v5363, %v5370
        %v5373 = vshrl.u32 %v5355, %v5371
        %v5374 = vor.u32 %v5372, %v5373
        %v5375 = vsub.s32 4294967266, %v5370
        %v5376 = vadd.s32 %v5375, 127
        %v5377 = vshll.u32 %v5376, 23
        %v5378 = vor.u32 4788187, %v5377
        %v5379 = vand.u32 2147483647, %v5378
        %v5381 = vcvt.s32.f32 %v5374
        %v5382 = vmul.f32 %v5381, %v5379
        %v5383 = vxor.u32 %v5382, 2147483648
        %v5384 = vsel %vm5301, %v5383, %v5382
        %v5385 = vsub.s32 4, %v5361
        %v5386 = vsel %vm5301, %v5385, %v5361
        %v5387 = vsel %vm5300, %v1116, %v5384
        %v5388 = vsel %vm5300, 0, %v5386
        %v5389 = vcosq.f32.pop %v5387
        %v5390 = vsinq.f32.pop %v5387
        %vm5391 = vweird.f32 %v1116
        %v5392 = vadd.s32 %v5388, 3
        %v5393 = vand.u32 %v5392, 3
        %vm5394 = vcmp.lt.s32.totalorder %v5393, 2
        %vm5395 = vcmp.eq.s32.totalorder %v5393, 0
        %v5396 = vxor.u32 %v5390, 2147483648
        %v5397 = vsel %vm5395, %v5389, %v5396
        %vm5398 = vcmp.eq.s32.totalorder %v5393, 2
        %v5399 = vxor.u32 %v5389, 2147483648
        %v5400 = vsel %vm5398, %v5399, %v5390
        %v5401 = vsel %vm5394, %v5397, %v5400
        %v5402 = vsel %vm5391, nan, %v5401
        %v5403 = vand.u32 2147483647, %v1117
        %vm5404 = vcmp.le.f32.partialorder %v5403, 0.7853982
        %vm5405 = vcmp.lt.s32.totalorder %v1117, 0
        %v5406 = vand.u32 %v1117, 2139095040
        %v5407 = vshrl.u32 %v5406, 23
        %v5408 = vsub.s32 %v5407, 127
        %v5409 = vand.u32 2147483647, %v1117
        %v5410 = vand.u32 %v5409, 8388607
        %v5411 = vor.u32 %v5410, 8388608
        %v5412 = vsub.s32 0, %v5411
        %v5413 = vadd.s32 %v5408, 1
        %vm5414 = vcmp.gt.s32.totalorder %v5413, 0
        %v5415 = vsel %vm5414, %v5413, 0
        %v5416 = vshrl.u32 %v5415, 5
        %v5417 = vand.u32 %v5415, 31
        %v5418 = vsub.s32 32, %v5417
        %v5419 = vshrl.u32 683565275, %v5418
        %v5420 = vshll.u32 683565275, %v5417
        %v5421 = vshrl.u32 2475754826, %v5418
        %v5422 = vor.u32 %v5420, %v5421
        %v5423 = vshll.u32 2475754826, %v5417
        %v5424 = vshrl.u32 2131351028, %v5418
        %v5425 = vor.u32 %v5423, %v5424
        %v5426 = vshll.u32 2131351028, %v5417
        %v5427 = vshrl.u32 2102212464, %v5418
        %v5428 = vor.u32 %v5426, %v5427
        %v5429 = vshll.u32 2102212464, %v5417
        %v5430 = vshrl.u32 920167782, %v5418
        %v5431 = vor.u32 %v5429, %v5430
        %v5432 = vshll.u32 920167782, %v5417
        %v5433 = vshrl.u32 1326507024, %v5418
        %v5434 = vor.u32 %v5432, %v5433
        %vm5435 = vcmp.lt.s32.totalorder %v5416, 1
        %vm5436 = vcmp.lt.s32.totalorder %v5416, 2
        %vm5437 = vcmp.lt.s32.totalorder %v5416, 3
        %vm5438 = vcmp.lt.s32.totalorder %v5416, 4
        %v5439 = vsel %vm5435, %v5419, %v5422
        %v5440 = vsel %vm5438, %v5428, 2102212464
        %v5441 = vsel %vm5437, %v5425, %v5440
        %v5442 = vsel %vm5436, %v5439, %v5441
        %v5443 = vsel %vm5435, %v5422, %v5425
        %v5444 = vsel %vm5438, %v5431, 920167782
        %v5445 = vsel %vm5437, %v5428, %v5444
        %v5446 = vsel %vm5436, %v5443, %v5445
        %v5447 = vsel %vm5435, %v5425, %v5428
        %v5448 = vsel %vm5438, %v5434, 1326507024
        %v5449 = vsel %vm5437, %v5431, %v5448
        %v5450 = vsel %vm5436, %v5447, %v5449
        %v5451 = vshll.u32 %v5411, 8
        %v5452 = vmul.u32.u64.compose %v5451, %v5450
        %v5453 = vextract.low.u32 %v5452
        %v5454 = vextract.high.u32 %v5452
        %v5455 = vmul.u32.u64.compose %v5451, %v5446
        %v5456 = vextract.low.u32 %v5455
        %v5457 = vextract.high.u32 %v5455
        %v5458 = vmul.u32 %v5451, %v5442
        %v5459 = vadd.s32 %v5454, %v5456
        %vm5460 = vc.u32 %v5454, %v5456
        %v5461 = vadd.s32 %v5457, 1
        %v5462 = vsel %vm5460, %v5461, %v5457
        %v5463 = vadd.s32 %v5458, %v5462
        %v5464 = vadd.s32 %v5463, 536870912
        %v5465 = vshrl.u32 %v5464, 30
        %v5466 = vshll.u32 %v5465, 30
        %v5467 = vsub.s32 %v5463, %v5466
        %vm5468 = vcmp.lt.s32.totalorder %v5467, 0
        %v5469 = vsub.s32 0, %v5467
        %v5470 = vsel %vm5468, %v5469, %v5467
        %v5471 = vclz %v5470
        %v5472 = vsub.s32 %v5471, 2
        %vm5473 = vcmp.gt.s32.totalorder 0, %v5472
        %v5474 = vsel %vm5473, 0, %v5472
        %v5475 = vsub.s32 32, %v5474
        %v5476 = vshll.u32 %v5467, %v5474
        %v5477 = vshrl.u32 %v5459, %v5475
        %v5478 = vor.u32 %v5476, %v5477
        %v5479 = vsub.s32 4294967266, %v5474
        %v5480 = vadd.s32 %v5479, 127
        %v5481 = vshll.u32 %v5480, 23
        %v5482 = vor.u32 4788187, %v5481
        %v5483 = vand.u32 2147483647, %v5482
        %v5485 = vcvt.s32.f32 %v5478
        %v5486 = vmul.f32 %v5485, %v5483
        %v5487 = vxor.u32 %v5486, 2147483648
        %v5488 = vsel %vm5405, %v5487, %v5486
        %v5489 = vsub.s32 4, %v5465
        %v5490 = vsel %vm5405, %v5489, %v5465
        %v5491 = vsel %vm5404, %v1117, %v5488
        %v5492 = vsel %vm5404, 0, %v5490
        %v5493 = vcosq.f32.pop %v5491
        %v5494 = vsinq.f32.pop %v5491
        %vm5495 = vweird.f32 %v1117
        %v5496 = vadd.s32 %v5492, 3
        %v5497 = vand.u32 %v5496, 3
        %vm5498 = vcmp.lt.s32.totalorder %v5497, 2
        %vm5499 = vcmp.eq.s32.totalorder %v5497, 0
        %v5500 = vxor.u32 %v5494, 2147483648
        %v5501 = vsel %vm5499, %v5493, %v5500
        %vm5502 = vcmp.eq.s32.totalorder %v5497, 2
        %v5503 = vxor.u32 %v5493, 2147483648
        %v5504 = vsel %vm5502, %v5503, %v5494
        %v5505 = vsel %vm5498, %v5501, %v5504
        %v5506 = vsel %vm5495, nan, %v5505
        %v5507 = vand.u32 2147483647, %v1118
        %vm5508 = vcmp.le.f32.partialorder %v5507, 0.7853982
        %vm5509 = vcmp.lt.s32.totalorder %v1118, 0
        %v5510 = vand.u32 %v1118, 2139095040
        %v5511 = vshrl.u32 %v5510, 23
        %v5512 = vsub.s32 %v5511, 127
        %v5513 = vand.u32 2147483647, %v1118
        %v5514 = vand.u32 %v5513, 8388607
        %v5515 = vor.u32 %v5514, 8388608
        %v5516 = vsub.s32 0, %v5515
        %v5517 = vadd.s32 %v5512, 1
        %vm5518 = vcmp.gt.s32.totalorder %v5517, 0
        %v5519 = vsel %vm5518, %v5517, 0
        %v5520 = vshrl.u32 %v5519, 5
        %v5521 = vand.u32 %v5519, 31
        %v5522 = vsub.s32 32, %v5521
        %v5523 = vshrl.u32 683565275, %v5522
        %v5524 = vshll.u32 683565275, %v5521
        %v5525 = vshrl.u32 2475754826, %v5522
        %v5526 = vor.u32 %v5524, %v5525
        %v5527 = vshll.u32 2475754826, %v5521
        %v5528 = vshrl.u32 2131351028, %v5522
        %v5529 = vor.u32 %v5527, %v5528
        %v5530 = vshll.u32 2131351028, %v5521
        %v5531 = vshrl.u32 2102212464, %v5522
        %v5532 = vor.u32 %v5530, %v5531
        %v5533 = vshll.u32 2102212464, %v5521
        %v5534 = vshrl.u32 920167782, %v5522
        %v5535 = vor.u32 %v5533, %v5534
        %v5536 = vshll.u32 920167782, %v5521
        %v5537 = vshrl.u32 1326507024, %v5522
        %v5538 = vor.u32 %v5536, %v5537
        %vm5539 = vcmp.lt.s32.totalorder %v5520, 1
        %vm5540 = vcmp.lt.s32.totalorder %v5520, 2
        %vm5541 = vcmp.lt.s32.totalorder %v5520, 3
        %vm5542 = vcmp.lt.s32.totalorder %v5520, 4
        %v5543 = vsel %vm5539, %v5523, %v5526
        %v5544 = vsel %vm5542, %v5532, 2102212464
        %v5545 = vsel %vm5541, %v5529, %v5544
        %v5546 = vsel %vm5540, %v5543, %v5545
        %v5547 = vsel %vm5539, %v5526, %v5529
        %v5548 = vsel %vm5542, %v5535, 920167782
        %v5549 = vsel %vm5541, %v5532, %v5548
        %v5550 = vsel %vm5540, %v5547, %v5549
        %v5551 = vsel %vm5539, %v5529, %v5532
        %v5552 = vsel %vm5542, %v5538, 1326507024
        %v5553 = vsel %vm5541, %v5535, %v5552
        %v5554 = vsel %vm5540, %v5551, %v5553
        %v5555 = vshll.u32 %v5515, 8
        %v5556 = vmul.u32.u64.compose %v5555, %v5554
        %v5557 = vextract.low.u32 %v5556
        %v5558 = vextract.high.u32 %v5556
        %v5559 = vmul.u32.u64.compose %v5555, %v5550
        %v5560 = vextract.low.u32 %v5559
        %v5561 = vextract.high.u32 %v5559
        %v5562 = vmul.u32 %v5555, %v5546
        %v5563 = vadd.s32 %v5558, %v5560
        %vm5564 = vc.u32 %v5558, %v5560
        %v5565 = vadd.s32 %v5561, 1
        %v5566 = vsel %vm5564, %v5565, %v5561
        %v5567 = vadd.s32 %v5562, %v5566
        %v5568 = vadd.s32 %v5567, 536870912
        %v5569 = vshrl.u32 %v5568, 30
        %v5570 = vshll.u32 %v5569, 30
        %v5571 = vsub.s32 %v5567, %v5570
        %vm5572 = vcmp.lt.s32.totalorder %v5571, 0
        %v5573 = vsub.s32 0, %v5571
        %v5574 = vsel %vm5572, %v5573, %v5571
        %v5575 = vclz %v5574
        %v5576 = vsub.s32 %v5575, 2
        %vm5577 = vcmp.gt.s32.totalorder 0, %v5576
        %v5578 = vsel %vm5577, 0, %v5576
        %v5579 = vsub.s32 32, %v5578
        %v5580 = vshll.u32 %v5571, %v5578
        %v5581 = vshrl.u32 %v5563, %v5579
        %v5582 = vor.u32 %v5580, %v5581
        %v5583 = vsub.s32 4294967266, %v5578
        %v5584 = vadd.s32 %v5583, 127
        %v5585 = vshll.u32 %v5584, 23
        %v5586 = vor.u32 4788187, %v5585
        %v5587 = vand.u32 2147483647, %v5586
        %v5589 = vcvt.s32.f32 %v5582
        %v5590 = vmul.f32 %v5589, %v5587
        %v5591 = vxor.u32 %v5590, 2147483648
        %v5592 = vsel %vm5509, %v5591, %v5590
        %v5593 = vsub.s32 4, %v5569
        %v5594 = vsel %vm5509, %v5593, %v5569
        %v5595 = vsel %vm5508, %v1118, %v5592
        %v5596 = vsel %vm5508, 0, %v5594
        %v5597 = vcosq.f32.pop %v5595
        %v5598 = vsinq.f32.pop %v5595
        %vm5599 = vweird.f32 %v1118
        %v5600 = vadd.s32 %v5596, 3
        %v5601 = vand.u32 %v5600, 3
        %vm5602 = vcmp.lt.s32.totalorder %v5601, 2
        %vm5603 = vcmp.eq.s32.totalorder %v5601, 0
        %v5604 = vxor.u32 %v5598, 2147483648
        %v5605 = vsel %vm5603, %v5597, %v5604
        %vm5606 = vcmp.eq.s32.totalorder %v5601, 2
        %v5607 = vxor.u32 %v5597, 2147483648
        %v5608 = vsel %vm5606, %v5607, %v5598
        %v5609 = vsel %vm5602, %v5605, %v5608
        %v5610 = vsel %vm5599, nan, %v5609
        %v5611 = vand.u32 2147483647, %v1119
        %vm5612 = vcmp.le.f32.partialorder %v5611, 0.7853982
        %vm5613 = vcmp.lt.s32.totalorder %v1119, 0
        %v5614 = vand.u32 %v1119, 2139095040
        %v5615 = vshrl.u32 %v5614, 23
        %v5616 = vsub.s32 %v5615, 127
        %v5617 = vand.u32 2147483647, %v1119
        %v5618 = vand.u32 %v5617, 8388607
        %v5619 = vor.u32 %v5618, 8388608
        %v5620 = vsub.s32 0, %v5619
        %v5621 = vadd.s32 %v5616, 1
        %vm5622 = vcmp.gt.s32.totalorder %v5621, 0
        %v5623 = vsel %vm5622, %v5621, 0
        %v5624 = vshrl.u32 %v5623, 5
        %v5625 = vand.u32 %v5623, 31
        %v5626 = vsub.s32 32, %v5625
        %v5627 = vshrl.u32 683565275, %v5626
        %v5628 = vshll.u32 683565275, %v5625
        %v5629 = vshrl.u32 2475754826, %v5626
        %v5630 = vor.u32 %v5628, %v5629
        %v5631 = vshll.u32 2475754826, %v5625
        %v5632 = vshrl.u32 2131351028, %v5626
        %v5633 = vor.u32 %v5631, %v5632
        %v5634 = vshll.u32 2131351028, %v5625
        %v5635 = vshrl.u32 2102212464, %v5626
        %v5636 = vor.u32 %v5634, %v5635
        %v5637 = vshll.u32 2102212464, %v5625
        %v5638 = vshrl.u32 920167782, %v5626
        %v5639 = vor.u32 %v5637, %v5638
        %v5640 = vshll.u32 920167782, %v5625
        %v5641 = vshrl.u32 1326507024, %v5626
        %v5642 = vor.u32 %v5640, %v5641
        %vm5643 = vcmp.lt.s32.totalorder %v5624, 1
        %vm5644 = vcmp.lt.s32.totalorder %v5624, 2
        %vm5645 = vcmp.lt.s32.totalorder %v5624, 3
        %vm5646 = vcmp.lt.s32.totalorder %v5624, 4
        %v5647 = vsel %vm5643, %v5627, %v5630
        %v5648 = vsel %vm5646, %v5636, 2102212464
        %v5649 = vsel %vm5645, %v5633, %v5648
        %v5650 = vsel %vm5644, %v5647, %v5649
        %v5651 = vsel %vm5643, %v5630, %v5633
        %v5652 = vsel %vm5646, %v5639, 920167782
        %v5653 = vsel %vm5645, %v5636, %v5652
        %v5654 = vsel %vm5644, %v5651, %v5653
        %v5655 = vsel %vm5643, %v5633, %v5636
        %v5656 = vsel %vm5646, %v5642, 1326507024
        %v5657 = vsel %vm5645, %v5639, %v5656
        %v5658 = vsel %vm5644, %v5655, %v5657
        %v5659 = vshll.u32 %v5619, 8
        %v5660 = vmul.u32.u64.compose %v5659, %v5658
        %v5661 = vextract.low.u32 %v5660
        %v5662 = vextract.high.u32 %v5660
        %v5663 = vmul.u32.u64.compose %v5659, %v5654
        %v5664 = vextract.low.u32 %v5663
        %v5665 = vextract.high.u32 %v5663
        %v5666 = vmul.u32 %v5659, %v5650
        %v5667 = vadd.s32 %v5662, %v5664
        %vm5668 = vc.u32 %v5662, %v5664
        %v5669 = vadd.s32 %v5665, 1
        %v5670 = vsel %vm5668, %v5669, %v5665
        %v5671 = vadd.s32 %v5666, %v5670
        %v5672 = vadd.s32 %v5671, 536870912
        %v5673 = vshrl.u32 %v5672, 30
        %v5674 = vshll.u32 %v5673, 30
        %v5675 = vsub.s32 %v5671, %v5674
        %vm5676 = vcmp.lt.s32.totalorder %v5675, 0
        %v5677 = vsub.s32 0, %v5675
        %v5678 = vsel %vm5676, %v5677, %v5675
        %v5679 = vclz %v5678
        %v5680 = vsub.s32 %v5679, 2
        %vm5681 = vcmp.gt.s32.totalorder 0, %v5680
        %v5682 = vsel %vm5681, 0, %v5680
        %v5683 = vsub.s32 32, %v5682
        %v5684 = vshll.u32 %v5675, %v5682
        %v5685 = vshrl.u32 %v5667, %v5683
        %v5686 = vor.u32 %v5684, %v5685
        %v5687 = vsub.s32 4294967266, %v5682
        %v5688 = vadd.s32 %v5687, 127
        %v5689 = vshll.u32 %v5688, 23
        %v5690 = vor.u32 4788187, %v5689
        %v5691 = vand.u32 2147483647, %v5690
        %v5693 = vcvt.s32.f32 %v5686
        %v5694 = vmul.f32 %v5693, %v5691
        %v5695 = vxor.u32 %v5694, 2147483648
        %v5696 = vsel %vm5613, %v5695, %v5694
        %v5697 = vsub.s32 4, %v5673
        %v5698 = vsel %vm5613, %v5697, %v5673
        %v5699 = vsel %vm5612, %v1119, %v5696
        %v5700 = vsel %vm5612, 0, %v5698
        %v5701 = vcosq.f32.pop %v5699
        %v5702 = vsinq.f32.pop %v5699
        %vm5703 = vweird.f32 %v1119
        %v5704 = vadd.s32 %v5700, 3
        %v5705 = vand.u32 %v5704, 3
        %vm5706 = vcmp.lt.s32.totalorder %v5705, 2
        %vm5707 = vcmp.eq.s32.totalorder %v5705, 0
        %v5708 = vxor.u32 %v5702, 2147483648
        %v5709 = vsel %vm5707, %v5701, %v5708
        %vm5710 = vcmp.eq.s32.totalorder %v5705, 2
        %v5711 = vxor.u32 %v5701, 2147483648
        %v5712 = vsel %vm5710, %v5711, %v5702
        %v5713 = vsel %vm5706, %v5709, %v5712
        %v5714 = vsel %vm5703, nan, %v5713
        %v5715 = vand.u32 2147483647, %v1120
        %vm5716 = vcmp.le.f32.partialorder %v5715, 0.7853982
        %vm5717 = vcmp.lt.s32.totalorder %v1120, 0
        %v5718 = vand.u32 %v1120, 2139095040
        %v5719 = vshrl.u32 %v5718, 23
        %v5720 = vsub.s32 %v5719, 127
        %v5721 = vand.u32 2147483647, %v1120
        %v5722 = vand.u32 %v5721, 8388607
        %v5723 = vor.u32 %v5722, 8388608
        %v5724 = vsub.s32 0, %v5723
        %v5725 = vadd.s32 %v5720, 1
        %vm5726 = vcmp.gt.s32.totalorder %v5725, 0
        %v5727 = vsel %vm5726, %v5725, 0
        %v5728 = vshrl.u32 %v5727, 5
        %v5729 = vand.u32 %v5727, 31
        %v5730 = vsub.s32 32, %v5729
        %v5731 = vshrl.u32 683565275, %v5730
        %v5732 = vshll.u32 683565275, %v5729
        %v5733 = vshrl.u32 2475754826, %v5730
        %v5734 = vor.u32 %v5732, %v5733
        %v5735 = vshll.u32 2475754826, %v5729
        %v5736 = vshrl.u32 2131351028, %v5730
        %v5737 = vor.u32 %v5735, %v5736
        %v5738 = vshll.u32 2131351028, %v5729
        %v5739 = vshrl.u32 2102212464, %v5730
        %v5740 = vor.u32 %v5738, %v5739
        %v5741 = vshll.u32 2102212464, %v5729
        %v5742 = vshrl.u32 920167782, %v5730
        %v5743 = vor.u32 %v5741, %v5742
        %v5744 = vshll.u32 920167782, %v5729
        %v5745 = vshrl.u32 1326507024, %v5730
        %v5746 = vor.u32 %v5744, %v5745
        %vm5747 = vcmp.lt.s32.totalorder %v5728, 1
        %vm5748 = vcmp.lt.s32.totalorder %v5728, 2
        %vm5749 = vcmp.lt.s32.totalorder %v5728, 3
        %vm5750 = vcmp.lt.s32.totalorder %v5728, 4
        %v5751 = vsel %vm5747, %v5731, %v5734
        %v5752 = vsel %vm5750, %v5740, 2102212464
        %v5753 = vsel %vm5749, %v5737, %v5752
        %v5754 = vsel %vm5748, %v5751, %v5753
        %v5755 = vsel %vm5747, %v5734, %v5737
        %v5756 = vsel %vm5750, %v5743, 920167782
        %v5757 = vsel %vm5749, %v5740, %v5756
        %v5758 = vsel %vm5748, %v5755, %v5757
        %v5759 = vsel %vm5747, %v5737, %v5740
        %v5760 = vsel %vm5750, %v5746, 1326507024
        %v5761 = vsel %vm5749, %v5743, %v5760
        %v5762 = vsel %vm5748, %v5759, %v5761
        %v5763 = vshll.u32 %v5723, 8
        %v5764 = vmul.u32.u64.compose %v5763, %v5762
        %v5765 = vextract.low.u32 %v5764
        %v5766 = vextract.high.u32 %v5764
        %v5767 = vmul.u32.u64.compose %v5763, %v5758
        %v5768 = vextract.low.u32 %v5767
        %v5769 = vextract.high.u32 %v5767
        %v5770 = vmul.u32 %v5763, %v5754
        %v5771 = vadd.s32 %v5766, %v5768
        %vm5772 = vc.u32 %v5766, %v5768
        %v5773 = vadd.s32 %v5769, 1
        %v5774 = vsel %vm5772, %v5773, %v5769
        %v5775 = vadd.s32 %v5770, %v5774
        %v5776 = vadd.s32 %v5775, 536870912
        %v5777 = vshrl.u32 %v5776, 30
        %v5778 = vshll.u32 %v5777, 30
        %v5779 = vsub.s32 %v5775, %v5778
        %vm5780 = vcmp.lt.s32.totalorder %v5779, 0
        %v5781 = vsub.s32 0, %v5779
        %v5782 = vsel %vm5780, %v5781, %v5779
        %v5783 = vclz %v5782
        %v5784 = vsub.s32 %v5783, 2
        %vm5785 = vcmp.gt.s32.totalorder 0, %v5784
        %v5786 = vsel %vm5785, 0, %v5784
        %v5787 = vsub.s32 32, %v5786
        %v5788 = vshll.u32 %v5779, %v5786
        %v5789 = vshrl.u32 %v5771, %v5787
        %v5790 = vor.u32 %v5788, %v5789
        %v5791 = vsub.s32 4294967266, %v5786
        %v5792 = vadd.s32 %v5791, 127
        %v5793 = vshll.u32 %v5792, 23
        %v5794 = vor.u32 4788187, %v5793
        %v5795 = vand.u32 2147483647, %v5794
        %v5797 = vcvt.s32.f32 %v5790
        %v5798 = vmul.f32 %v5797, %v5795
        %v5799 = vxor.u32 %v5798, 2147483648
        %v5800 = vsel %vm5717, %v5799, %v5798
        %v5801 = vsub.s32 4, %v5777
        %v5802 = vsel %vm5717, %v5801, %v5777
        %v5803 = vsel %vm5716, %v1120, %v5800
        %v5804 = vsel %vm5716, 0, %v5802
        %v5805 = vcosq.f32.pop %v5803
        %v5806 = vsinq.f32.pop %v5803
        %vm5807 = vweird.f32 %v1120
        %v5808 = vadd.s32 %v5804, 3
        %v5809 = vand.u32 %v5808, 3
        %vm5810 = vcmp.lt.s32.totalorder %v5809, 2
        %vm5811 = vcmp.eq.s32.totalorder %v5809, 0
        %v5812 = vxor.u32 %v5806, 2147483648
        %v5813 = vsel %vm5811, %v5805, %v5812
        %vm5814 = vcmp.eq.s32.totalorder %v5809, 2
        %v5815 = vxor.u32 %v5805, 2147483648
        %v5816 = vsel %vm5814, %v5815, %v5806
        %v5817 = vsel %vm5810, %v5813, %v5816
        %v5818 = vsel %vm5807, nan, %v5817
        %v5819 = vand.u32 2147483647, %v1121
        %vm5820 = vcmp.le.f32.partialorder %v5819, 0.7853982
        %vm5821 = vcmp.lt.s32.totalorder %v1121, 0
        %v5822 = vand.u32 %v1121, 2139095040
        %v5823 = vshrl.u32 %v5822, 23
        %v5824 = vsub.s32 %v5823, 127
        %v5825 = vand.u32 2147483647, %v1121
        %v5826 = vand.u32 %v5825, 8388607
        %v5827 = vor.u32 %v5826, 8388608
        %v5828 = vsub.s32 0, %v5827
        %v5829 = vadd.s32 %v5824, 1
        %vm5830 = vcmp.gt.s32.totalorder %v5829, 0
        %v5831 = vsel %vm5830, %v5829, 0
        %v5832 = vshrl.u32 %v5831, 5
        %v5833 = vand.u32 %v5831, 31
        %v5834 = vsub.s32 32, %v5833
        %v5835 = vshrl.u32 683565275, %v5834
        %v5836 = vshll.u32 683565275, %v5833
        %v5837 = vshrl.u32 2475754826, %v5834
        %v5838 = vor.u32 %v5836, %v5837
        %v5839 = vshll.u32 2475754826, %v5833
        %v5840 = vshrl.u32 2131351028, %v5834
        %v5841 = vor.u32 %v5839, %v5840
        %v5842 = vshll.u32 2131351028, %v5833
        %v5843 = vshrl.u32 2102212464, %v5834
        %v5844 = vor.u32 %v5842, %v5843
        %v5845 = vshll.u32 2102212464, %v5833
        %v5846 = vshrl.u32 920167782, %v5834
        %v5847 = vor.u32 %v5845, %v5846
        %v5848 = vshll.u32 920167782, %v5833
        %v5849 = vshrl.u32 1326507024, %v5834
        %v5850 = vor.u32 %v5848, %v5849
        %vm5851 = vcmp.lt.s32.totalorder %v5832, 1
        %vm5852 = vcmp.lt.s32.totalorder %v5832, 2
        %vm5853 = vcmp.lt.s32.totalorder %v5832, 3
        %vm5854 = vcmp.lt.s32.totalorder %v5832, 4
        %v5855 = vsel %vm5851, %v5835, %v5838
        %v5856 = vsel %vm5854, %v5844, 2102212464
        %v5857 = vsel %vm5853, %v5841, %v5856
        %v5858 = vsel %vm5852, %v5855, %v5857
        %v5859 = vsel %vm5851, %v5838, %v5841
        %v5860 = vsel %vm5854, %v5847, 920167782
        %v5861 = vsel %vm5853, %v5844, %v5860
        %v5862 = vsel %vm5852, %v5859, %v5861
        %v5863 = vsel %vm5851, %v5841, %v5844
        %v5864 = vsel %vm5854, %v5850, 1326507024
        %v5865 = vsel %vm5853, %v5847, %v5864
        %v5866 = vsel %vm5852, %v5863, %v5865
        %v5867 = vshll.u32 %v5827, 8
        %v5868 = vmul.u32.u64.compose %v5867, %v5866
        %v5869 = vextract.low.u32 %v5868
        %v5870 = vextract.high.u32 %v5868
        %v5871 = vmul.u32.u64.compose %v5867, %v5862
        %v5872 = vextract.low.u32 %v5871
        %v5873 = vextract.high.u32 %v5871
        %v5874 = vmul.u32 %v5867, %v5858
        %v5875 = vadd.s32 %v5870, %v5872
        %vm5876 = vc.u32 %v5870, %v5872
        %v5877 = vadd.s32 %v5873, 1
        %v5878 = vsel %vm5876, %v5877, %v5873
        %v5879 = vadd.s32 %v5874, %v5878
        %v5880 = vadd.s32 %v5879, 536870912
        %v5881 = vshrl.u32 %v5880, 30
        %v5882 = vshll.u32 %v5881, 30
        %v5883 = vsub.s32 %v5879, %v5882
        %vm5884 = vcmp.lt.s32.totalorder %v5883, 0
        %v5885 = vsub.s32 0, %v5883
        %v5886 = vsel %vm5884, %v5885, %v5883
        %v5887 = vclz %v5886
        %v5888 = vsub.s32 %v5887, 2
        %vm5889 = vcmp.gt.s32.totalorder 0, %v5888
        %v5890 = vsel %vm5889, 0, %v5888
        %v5891 = vsub.s32 32, %v5890
        %v5892 = vshll.u32 %v5883, %v5890
        %v5893 = vshrl.u32 %v5875, %v5891
        %v5894 = vor.u32 %v5892, %v5893
        %v5895 = vsub.s32 4294967266, %v5890
        %v5896 = vadd.s32 %v5895, 127
        %v5897 = vshll.u32 %v5896, 23
        %v5898 = vor.u32 4788187, %v5897
        %v5899 = vand.u32 2147483647, %v5898
        %v5901 = vcvt.s32.f32 %v5894
        %v5902 = vmul.f32 %v5901, %v5899
        %v5903 = vxor.u32 %v5902, 2147483648
        %v5904 = vsel %vm5821, %v5903, %v5902
        %v5905 = vsub.s32 4, %v5881
        %v5906 = vsel %vm5821, %v5905, %v5881
        %v5907 = vsel %vm5820, %v1121, %v5904
        %v5908 = vsel %vm5820, 0, %v5906
        %v5909 = vcosq.f32.pop %v5907
        %v5910 = vsinq.f32.pop %v5907
        %vm5911 = vweird.f32 %v1121
        %v5912 = vadd.s32 %v5908, 3
        %v5913 = vand.u32 %v5912, 3
        %vm5914 = vcmp.lt.s32.totalorder %v5913, 2
        %vm5915 = vcmp.eq.s32.totalorder %v5913, 0
        %v5916 = vxor.u32 %v5910, 2147483648
        %v5917 = vsel %vm5915, %v5909, %v5916
        %vm5918 = vcmp.eq.s32.totalorder %v5913, 2
        %v5919 = vxor.u32 %v5909, 2147483648
        %v5920 = vsel %vm5918, %v5919, %v5910
        %v5921 = vsel %vm5914, %v5917, %v5920
        %v5922 = vsel %vm5911, nan, %v5921
        %v5923 = vand.u32 2147483647, %v1122
        %vm5924 = vcmp.le.f32.partialorder %v5923, 0.7853982
        %vm5925 = vcmp.lt.s32.totalorder %v1122, 0
        %v5926 = vand.u32 %v1122, 2139095040
        %v5927 = vshrl.u32 %v5926, 23
        %v5928 = vsub.s32 %v5927, 127
        %v5929 = vand.u32 2147483647, %v1122
        %v5930 = vand.u32 %v5929, 8388607
        %v5931 = vor.u32 %v5930, 8388608
        %v5932 = vsub.s32 0, %v5931
        %v5933 = vadd.s32 %v5928, 1
        %vm5934 = vcmp.gt.s32.totalorder %v5933, 0
        %v5935 = vsel %vm5934, %v5933, 0
        %v5936 = vshrl.u32 %v5935, 5
        %v5937 = vand.u32 %v5935, 31
        %v5938 = vsub.s32 32, %v5937
        %v5939 = vshrl.u32 683565275, %v5938
        %v5940 = vshll.u32 683565275, %v5937
        %v5941 = vshrl.u32 2475754826, %v5938
        %v5942 = vor.u32 %v5940, %v5941
        %v5943 = vshll.u32 2475754826, %v5937
        %v5944 = vshrl.u32 2131351028, %v5938
        %v5945 = vor.u32 %v5943, %v5944
        %v5946 = vshll.u32 2131351028, %v5937
        %v5947 = vshrl.u32 2102212464, %v5938
        %v5948 = vor.u32 %v5946, %v5947
        %v5949 = vshll.u32 2102212464, %v5937
        %v5950 = vshrl.u32 920167782, %v5938
        %v5951 = vor.u32 %v5949, %v5950
        %v5952 = vshll.u32 920167782, %v5937
        %v5953 = vshrl.u32 1326507024, %v5938
        %v5954 = vor.u32 %v5952, %v5953
        %vm5955 = vcmp.lt.s32.totalorder %v5936, 1
        %vm5956 = vcmp.lt.s32.totalorder %v5936, 2
        %vm5957 = vcmp.lt.s32.totalorder %v5936, 3
        %vm5958 = vcmp.lt.s32.totalorder %v5936, 4
        %v5959 = vsel %vm5955, %v5939, %v5942
        %v5960 = vsel %vm5958, %v5948, 2102212464
        %v5961 = vsel %vm5957, %v5945, %v5960
        %v5962 = vsel %vm5956, %v5959, %v5961
        %v5963 = vsel %vm5955, %v5942, %v5945
        %v5964 = vsel %vm5958, %v5951, 920167782
        %v5965 = vsel %vm5957, %v5948, %v5964
        %v5966 = vsel %vm5956, %v5963, %v5965
        %v5967 = vsel %vm5955, %v5945, %v5948
        %v5968 = vsel %vm5958, %v5954, 1326507024
        %v5969 = vsel %vm5957, %v5951, %v5968
        %v5970 = vsel %vm5956, %v5967, %v5969
        %v5971 = vshll.u32 %v5931, 8
        %v5972 = vmul.u32.u64.compose %v5971, %v5970
        %v5973 = vextract.low.u32 %v5972
        %v5974 = vextract.high.u32 %v5972
        %v5975 = vmul.u32.u64.compose %v5971, %v5966
        %v5976 = vextract.low.u32 %v5975
        %v5977 = vextract.high.u32 %v5975
        %v5978 = vmul.u32 %v5971, %v5962
        %v5979 = vadd.s32 %v5974, %v5976
        %vm5980 = vc.u32 %v5974, %v5976
        %v5981 = vadd.s32 %v5977, 1
        %v5982 = vsel %vm5980, %v5981, %v5977
        %v5983 = vadd.s32 %v5978, %v5982
        %v5984 = vadd.s32 %v5983, 536870912
        %v5985 = vshrl.u32 %v5984, 30
        %v5986 = vshll.u32 %v5985, 30
        %v5987 = vsub.s32 %v5983, %v5986
        %vm5988 = vcmp.lt.s32.totalorder %v5987, 0
        %v5989 = vsub.s32 0, %v5987
        %v5990 = vsel %vm5988, %v5989, %v5987
        %v5991 = vclz %v5990
        %v5992 = vsub.s32 %v5991, 2
        %vm5993 = vcmp.gt.s32.totalorder 0, %v5992
        %v5994 = vsel %vm5993, 0, %v5992
        %v5995 = vsub.s32 32, %v5994
        %v5996 = vshll.u32 %v5987, %v5994
        %v5997 = vshrl.u32 %v5979, %v5995
        %v5998 = vor.u32 %v5996, %v5997
        %v5999 = vsub.s32 4294967266, %v5994
        %v6000 = vadd.s32 %v5999, 127
        %v6001 = vshll.u32 %v6000, 23
        %v6002 = vor.u32 4788187, %v6001
        %v6003 = vand.u32 2147483647, %v6002
        %v6005 = vcvt.s32.f32 %v5998
        %v6006 = vmul.f32 %v6005, %v6003
        %v6007 = vxor.u32 %v6006, 2147483648
        %v6008 = vsel %vm5925, %v6007, %v6006
        %v6009 = vsub.s32 4, %v5985
        %v6010 = vsel %vm5925, %v6009, %v5985
        %v6011 = vsel %vm5924, %v1122, %v6008
        %v6012 = vsel %vm5924, 0, %v6010
        %v6013 = vcosq.f32.pop %v6011
        %v6014 = vsinq.f32.pop %v6011
        %vm6015 = vweird.f32 %v1122
        %v6016 = vadd.s32 %v6012, 3
        %v6017 = vand.u32 %v6016, 3
        %vm6018 = vcmp.lt.s32.totalorder %v6017, 2
        %vm6019 = vcmp.eq.s32.totalorder %v6017, 0
        %v6020 = vxor.u32 %v6014, 2147483648
        %v6021 = vsel %vm6019, %v6013, %v6020
        %vm6022 = vcmp.eq.s32.totalorder %v6017, 2
        %v6023 = vxor.u32 %v6013, 2147483648
        %v6024 = vsel %vm6022, %v6023, %v6014
        %v6025 = vsel %vm6018, %v6021, %v6024
        %v6026 = vsel %vm6015, nan, %v6025
        %v6027 = vand.u32 2147483647, %v1123
        %vm6028 = vcmp.le.f32.partialorder %v6027, 0.7853982
        %vm6029 = vcmp.lt.s32.totalorder %v1123, 0
        %v6030 = vand.u32 %v1123, 2139095040
        %v6031 = vshrl.u32 %v6030, 23
        %v6032 = vsub.s32 %v6031, 127
        %v6033 = vand.u32 2147483647, %v1123
        %v6034 = vand.u32 %v6033, 8388607
        %v6035 = vor.u32 %v6034, 8388608
        %v6036 = vsub.s32 0, %v6035
        %v6037 = vadd.s32 %v6032, 1
        %vm6038 = vcmp.gt.s32.totalorder %v6037, 0
        %v6039 = vsel %vm6038, %v6037, 0
        %v6040 = vshrl.u32 %v6039, 5
        %v6041 = vand.u32 %v6039, 31
        %v6042 = vsub.s32 32, %v6041
        %v6043 = vshrl.u32 683565275, %v6042
        %v6044 = vshll.u32 683565275, %v6041
        %v6045 = vshrl.u32 2475754826, %v6042
        %v6046 = vor.u32 %v6044, %v6045
        %v6047 = vshll.u32 2475754826, %v6041
        %v6048 = vshrl.u32 2131351028, %v6042
        %v6049 = vor.u32 %v6047, %v6048
        %v6050 = vshll.u32 2131351028, %v6041
        %v6051 = vshrl.u32 2102212464, %v6042
        %v6052 = vor.u32 %v6050, %v6051
        %v6053 = vshll.u32 2102212464, %v6041
        %v6054 = vshrl.u32 920167782, %v6042
        %v6055 = vor.u32 %v6053, %v6054
        %v6056 = vshll.u32 920167782, %v6041
        %v6057 = vshrl.u32 1326507024, %v6042
        %v6058 = vor.u32 %v6056, %v6057
        %vm6059 = vcmp.lt.s32.totalorder %v6040, 1
        %vm6060 = vcmp.lt.s32.totalorder %v6040, 2
        %vm6061 = vcmp.lt.s32.totalorder %v6040, 3
        %vm6062 = vcmp.lt.s32.totalorder %v6040, 4
        %v6063 = vsel %vm6059, %v6043, %v6046
        %v6064 = vsel %vm6062, %v6052, 2102212464
        %v6065 = vsel %vm6061, %v6049, %v6064
        %v6066 = vsel %vm6060, %v6063, %v6065
        %v6067 = vsel %vm6059, %v6046, %v6049
        %v6068 = vsel %vm6062, %v6055, 920167782
        %v6069 = vsel %vm6061, %v6052, %v6068
        %v6070 = vsel %vm6060, %v6067, %v6069
        %v6071 = vsel %vm6059, %v6049, %v6052
        %v6072 = vsel %vm6062, %v6058, 1326507024
        %v6073 = vsel %vm6061, %v6055, %v6072
        %v6074 = vsel %vm6060, %v6071, %v6073
        %v6075 = vshll.u32 %v6035, 8
        %v6076 = vmul.u32.u64.compose %v6075, %v6074
        %v6077 = vextract.low.u32 %v6076
        %v6078 = vextract.high.u32 %v6076
        %v6079 = vmul.u32.u64.compose %v6075, %v6070
        %v6080 = vextract.low.u32 %v6079
        %v6081 = vextract.high.u32 %v6079
        %v6082 = vmul.u32 %v6075, %v6066
        %v6083 = vadd.s32 %v6078, %v6080
        %vm6084 = vc.u32 %v6078, %v6080
        %v6085 = vadd.s32 %v6081, 1
        %v6086 = vsel %vm6084, %v6085, %v6081
        %v6087 = vadd.s32 %v6082, %v6086
        %v6088 = vadd.s32 %v6087, 536870912
        %v6089 = vshrl.u32 %v6088, 30
        %v6090 = vshll.u32 %v6089, 30
        %v6091 = vsub.s32 %v6087, %v6090
        %vm6092 = vcmp.lt.s32.totalorder %v6091, 0
        %v6093 = vsub.s32 0, %v6091
        %v6094 = vsel %vm6092, %v6093, %v6091
        %v6095 = vclz %v6094
        %v6096 = vsub.s32 %v6095, 2
        %vm6097 = vcmp.gt.s32.totalorder 0, %v6096
        %v6098 = vsel %vm6097, 0, %v6096
        %v6099 = vsub.s32 32, %v6098
        %v6100 = vshll.u32 %v6091, %v6098
        %v6101 = vshrl.u32 %v6083, %v6099
        %v6102 = vor.u32 %v6100, %v6101
        %v6103 = vsub.s32 4294967266, %v6098
        %v6104 = vadd.s32 %v6103, 127
        %v6105 = vshll.u32 %v6104, 23
        %v6106 = vor.u32 4788187, %v6105
        %v6107 = vand.u32 2147483647, %v6106
        %v6109 = vcvt.s32.f32 %v6102
        %v6110 = vmul.f32 %v6109, %v6107
        %v6111 = vxor.u32 %v6110, 2147483648
        %v6112 = vsel %vm6029, %v6111, %v6110
        %v6113 = vsub.s32 4, %v6089
        %v6114 = vsel %vm6029, %v6113, %v6089
        %v6115 = vsel %vm6028, %v1123, %v6112
        %v6116 = vsel %vm6028, 0, %v6114
        %v6117 = vcosq.f32.pop %v6115
        %v6118 = vsinq.f32.pop %v6115
        %vm6119 = vweird.f32 %v1123
        %v6120 = vadd.s32 %v6116, 3
        %v6121 = vand.u32 %v6120, 3
        %vm6122 = vcmp.lt.s32.totalorder %v6121, 2
        %vm6123 = vcmp.eq.s32.totalorder %v6121, 0
        %v6124 = vxor.u32 %v6118, 2147483648
        %v6125 = vsel %vm6123, %v6117, %v6124
        %vm6126 = vcmp.eq.s32.totalorder %v6121, 2
        %v6127 = vxor.u32 %v6117, 2147483648
        %v6128 = vsel %vm6126, %v6127, %v6118
        %v6129 = vsel %vm6122, %v6125, %v6128
        %v6130 = vsel %vm6119, nan, %v6129
        %v6131 = vand.u32 2147483647, %v1124
        %vm6132 = vcmp.le.f32.partialorder %v6131, 0.7853982
        %vm6133 = vcmp.lt.s32.totalorder %v1124, 0
        %v6134 = vand.u32 %v1124, 2139095040
        %v6135 = vshrl.u32 %v6134, 23
        %v6136 = vsub.s32 %v6135, 127
        %v6137 = vand.u32 2147483647, %v1124
        %v6138 = vand.u32 %v6137, 8388607
        %v6139 = vor.u32 %v6138, 8388608
        %v6140 = vsub.s32 0, %v6139
        %v6141 = vadd.s32 %v6136, 1
        %vm6142 = vcmp.gt.s32.totalorder %v6141, 0
        %v6143 = vsel %vm6142, %v6141, 0
        %v6144 = vshrl.u32 %v6143, 5
        %v6145 = vand.u32 %v6143, 31
        %v6146 = vsub.s32 32, %v6145
        %v6147 = vshrl.u32 683565275, %v6146
        %v6148 = vshll.u32 683565275, %v6145
        %v6149 = vshrl.u32 2475754826, %v6146
        %v6150 = vor.u32 %v6148, %v6149
        %v6151 = vshll.u32 2475754826, %v6145
        %v6152 = vshrl.u32 2131351028, %v6146
        %v6153 = vor.u32 %v6151, %v6152
        %v6154 = vshll.u32 2131351028, %v6145
        %v6155 = vshrl.u32 2102212464, %v6146
        %v6156 = vor.u32 %v6154, %v6155
        %v6157 = vshll.u32 2102212464, %v6145
        %v6158 = vshrl.u32 920167782, %v6146
        %v6159 = vor.u32 %v6157, %v6158
        %v6160 = vshll.u32 920167782, %v6145
        %v6161 = vshrl.u32 1326507024, %v6146
        %v6162 = vor.u32 %v6160, %v6161
        %vm6163 = vcmp.lt.s32.totalorder %v6144, 1
        %vm6164 = vcmp.lt.s32.totalorder %v6144, 2
        %vm6165 = vcmp.lt.s32.totalorder %v6144, 3
        %vm6166 = vcmp.lt.s32.totalorder %v6144, 4
        %v6167 = vsel %vm6163, %v6147, %v6150
        %v6168 = vsel %vm6166, %v6156, 2102212464
        %v6169 = vsel %vm6165, %v6153, %v6168
        %v6170 = vsel %vm6164, %v6167, %v6169
        %v6171 = vsel %vm6163, %v6150, %v6153
        %v6172 = vsel %vm6166, %v6159, 920167782
        %v6173 = vsel %vm6165, %v6156, %v6172
        %v6174 = vsel %vm6164, %v6171, %v6173
        %v6175 = vsel %vm6163, %v6153, %v6156
        %v6176 = vsel %vm6166, %v6162, 1326507024
        %v6177 = vsel %vm6165, %v6159, %v6176
        %v6178 = vsel %vm6164, %v6175, %v6177
        %v6179 = vshll.u32 %v6139, 8
        %v6180 = vmul.u32.u64.compose %v6179, %v6178
        %v6181 = vextract.low.u32 %v6180
        %v6182 = vextract.high.u32 %v6180
        %v6183 = vmul.u32.u64.compose %v6179, %v6174
        %v6184 = vextract.low.u32 %v6183
        %v6185 = vextract.high.u32 %v6183
        %v6186 = vmul.u32 %v6179, %v6170
        %v6187 = vadd.s32 %v6182, %v6184
        %vm6188 = vc.u32 %v6182, %v6184
        %v6189 = vadd.s32 %v6185, 1
        %v6190 = vsel %vm6188, %v6189, %v6185
        %v6191 = vadd.s32 %v6186, %v6190
        %v6192 = vadd.s32 %v6191, 536870912
        %v6193 = vshrl.u32 %v6192, 30
        %v6194 = vshll.u32 %v6193, 30
        %v6195 = vsub.s32 %v6191, %v6194
        %vm6196 = vcmp.lt.s32.totalorder %v6195, 0
        %v6197 = vsub.s32 0, %v6195
        %v6198 = vsel %vm6196, %v6197, %v6195
        %v6199 = vclz %v6198
        %v6200 = vsub.s32 %v6199, 2
        %vm6201 = vcmp.gt.s32.totalorder 0, %v6200
        %v6202 = vsel %vm6201, 0, %v6200
        %v6203 = vsub.s32 32, %v6202
        %v6204 = vshll.u32 %v6195, %v6202
        %v6205 = vshrl.u32 %v6187, %v6203
        %v6206 = vor.u32 %v6204, %v6205
        %v6207 = vsub.s32 4294967266, %v6202
        %v6208 = vadd.s32 %v6207, 127
        %v6209 = vshll.u32 %v6208, 23
        %v6210 = vor.u32 4788187, %v6209
        %v6211 = vand.u32 2147483647, %v6210
        %v6213 = vcvt.s32.f32 %v6206
        %v6214 = vmul.f32 %v6213, %v6211
        %v6215 = vxor.u32 %v6214, 2147483648
        %v6216 = vsel %vm6133, %v6215, %v6214
        %v6217 = vsub.s32 4, %v6193
        %v6218 = vsel %vm6133, %v6217, %v6193
        %v6219 = vsel %vm6132, %v1124, %v6216
        %v6220 = vsel %vm6132, 0, %v6218
        %v6221 = vcosq.f32.pop %v6219
        %v6222 = vsinq.f32.pop %v6219
        %vm6223 = vweird.f32 %v1124
        %v6224 = vadd.s32 %v6220, 3
        %v6225 = vand.u32 %v6224, 3
        %vm6226 = vcmp.lt.s32.totalorder %v6225, 2
        %vm6227 = vcmp.eq.s32.totalorder %v6225, 0
        %v6228 = vxor.u32 %v6222, 2147483648
        %v6229 = vsel %vm6227, %v6221, %v6228
        %vm6230 = vcmp.eq.s32.totalorder %v6225, 2
        %v6231 = vxor.u32 %v6221, 2147483648
        %v6232 = vsel %vm6230, %v6231, %v6222
        %v6233 = vsel %vm6226, %v6229, %v6232
        %v6234 = vsel %vm6223, nan, %v6233
        %v6235 = vand.u32 2147483647, %v1125
        %vm6236 = vcmp.le.f32.partialorder %v6235, 0.7853982
        %vm6237 = vcmp.lt.s32.totalorder %v1125, 0
        %v6238 = vand.u32 %v1125, 2139095040
        %v6239 = vshrl.u32 %v6238, 23
        %v6240 = vsub.s32 %v6239, 127
        %v6241 = vand.u32 2147483647, %v1125
        %v6242 = vand.u32 %v6241, 8388607
        %v6243 = vor.u32 %v6242, 8388608
        %v6244 = vsub.s32 0, %v6243
        %v6245 = vadd.s32 %v6240, 1
        %vm6246 = vcmp.gt.s32.totalorder %v6245, 0
        %v6247 = vsel %vm6246, %v6245, 0
        %v6248 = vshrl.u32 %v6247, 5
        %v6249 = vand.u32 %v6247, 31
        %v6250 = vsub.s32 32, %v6249
        %v6251 = vshrl.u32 683565275, %v6250
        %v6252 = vshll.u32 683565275, %v6249
        %v6253 = vshrl.u32 2475754826, %v6250
        %v6254 = vor.u32 %v6252, %v6253
        %v6255 = vshll.u32 2475754826, %v6249
        %v6256 = vshrl.u32 2131351028, %v6250
        %v6257 = vor.u32 %v6255, %v6256
        %v6258 = vshll.u32 2131351028, %v6249
        %v6259 = vshrl.u32 2102212464, %v6250
        %v6260 = vor.u32 %v6258, %v6259
        %v6261 = vshll.u32 2102212464, %v6249
        %v6262 = vshrl.u32 920167782, %v6250
        %v6263 = vor.u32 %v6261, %v6262
        %v6264 = vshll.u32 920167782, %v6249
        %v6265 = vshrl.u32 1326507024, %v6250
        %v6266 = vor.u32 %v6264, %v6265
        %vm6267 = vcmp.lt.s32.totalorder %v6248, 1
        %vm6268 = vcmp.lt.s32.totalorder %v6248, 2
        %vm6269 = vcmp.lt.s32.totalorder %v6248, 3
        %vm6270 = vcmp.lt.s32.totalorder %v6248, 4
        %v6271 = vsel %vm6267, %v6251, %v6254
        %v6272 = vsel %vm6270, %v6260, 2102212464
        %v6273 = vsel %vm6269, %v6257, %v6272
        %v6274 = vsel %vm6268, %v6271, %v6273
        %v6275 = vsel %vm6267, %v6254, %v6257
        %v6276 = vsel %vm6270, %v6263, 920167782
        %v6277 = vsel %vm6269, %v6260, %v6276
        %v6278 = vsel %vm6268, %v6275, %v6277
        %v6279 = vsel %vm6267, %v6257, %v6260
        %v6280 = vsel %vm6270, %v6266, 1326507024
        %v6281 = vsel %vm6269, %v6263, %v6280
        %v6282 = vsel %vm6268, %v6279, %v6281
        %v6283 = vshll.u32 %v6243, 8
        %v6284 = vmul.u32.u64.compose %v6283, %v6282
        %v6285 = vextract.low.u32 %v6284
        %v6286 = vextract.high.u32 %v6284
        %v6287 = vmul.u32.u64.compose %v6283, %v6278
        %v6288 = vextract.low.u32 %v6287
        %v6289 = vextract.high.u32 %v6287
        %v6290 = vmul.u32 %v6283, %v6274
        %v6291 = vadd.s32 %v6286, %v6288
        %vm6292 = vc.u32 %v6286, %v6288
        %v6293 = vadd.s32 %v6289, 1
        %v6294 = vsel %vm6292, %v6293, %v6289
        %v6295 = vadd.s32 %v6290, %v6294
        %v6296 = vadd.s32 %v6295, 536870912
        %v6297 = vshrl.u32 %v6296, 30
        %v6298 = vshll.u32 %v6297, 30
        %v6299 = vsub.s32 %v6295, %v6298
        %vm6300 = vcmp.lt.s32.totalorder %v6299, 0
        %v6301 = vsub.s32 0, %v6299
        %v6302 = vsel %vm6300, %v6301, %v6299
        %v6303 = vclz %v6302
        %v6304 = vsub.s32 %v6303, 2
        %vm6305 = vcmp.gt.s32.totalorder 0, %v6304
        %v6306 = vsel %vm6305, 0, %v6304
        %v6307 = vsub.s32 32, %v6306
        %v6308 = vshll.u32 %v6299, %v6306
        %v6309 = vshrl.u32 %v6291, %v6307
        %v6310 = vor.u32 %v6308, %v6309
        %v6311 = vsub.s32 4294967266, %v6306
        %v6312 = vadd.s32 %v6311, 127
        %v6313 = vshll.u32 %v6312, 23
        %v6314 = vor.u32 4788187, %v6313
        %v6315 = vand.u32 2147483647, %v6314
        %v6317 = vcvt.s32.f32 %v6310
        %v6318 = vmul.f32 %v6317, %v6315
        %v6319 = vxor.u32 %v6318, 2147483648
        %v6320 = vsel %vm6237, %v6319, %v6318
        %v6321 = vsub.s32 4, %v6297
        %v6322 = vsel %vm6237, %v6321, %v6297
        %v6323 = vsel %vm6236, %v1125, %v6320
        %v6324 = vsel %vm6236, 0, %v6322
        %v6325 = vcosq.f32.pop %v6323
        %v6326 = vsinq.f32.pop %v6323
        %vm6327 = vweird.f32 %v1125
        %v6328 = vadd.s32 %v6324, 3
        %v6329 = vand.u32 %v6328, 3
        %vm6330 = vcmp.lt.s32.totalorder %v6329, 2
        %vm6331 = vcmp.eq.s32.totalorder %v6329, 0
        %v6332 = vxor.u32 %v6326, 2147483648
        %v6333 = vsel %vm6331, %v6325, %v6332
        %vm6334 = vcmp.eq.s32.totalorder %v6329, 2
        %v6335 = vxor.u32 %v6325, 2147483648
        %v6336 = vsel %vm6334, %v6335, %v6326
        %v6337 = vsel %vm6330, %v6333, %v6336
        %v6338 = vsel %vm6327, nan, %v6337
        %v6339 = vand.u32 2147483647, %v1126
        %vm6340 = vcmp.le.f32.partialorder %v6339, 0.7853982
        %vm6341 = vcmp.lt.s32.totalorder %v1126, 0
        %v6342 = vand.u32 %v1126, 2139095040
        %v6343 = vshrl.u32 %v6342, 23
        %v6344 = vsub.s32 %v6343, 127
        %v6345 = vand.u32 2147483647, %v1126
        %v6346 = vand.u32 %v6345, 8388607
        %v6347 = vor.u32 %v6346, 8388608
        %v6348 = vsub.s32 0, %v6347
        %v6349 = vadd.s32 %v6344, 1
        %vm6350 = vcmp.gt.s32.totalorder %v6349, 0
        %v6351 = vsel %vm6350, %v6349, 0
        %v6352 = vshrl.u32 %v6351, 5
        %v6353 = vand.u32 %v6351, 31
        %v6354 = vsub.s32 32, %v6353
        %v6355 = vshrl.u32 683565275, %v6354
        %v6356 = vshll.u32 683565275, %v6353
        %v6357 = vshrl.u32 2475754826, %v6354
        %v6358 = vor.u32 %v6356, %v6357
        %v6359 = vshll.u32 2475754826, %v6353
        %v6360 = vshrl.u32 2131351028, %v6354
        %v6361 = vor.u32 %v6359, %v6360
        %v6362 = vshll.u32 2131351028, %v6353
        %v6363 = vshrl.u32 2102212464, %v6354
        %v6364 = vor.u32 %v6362, %v6363
        %v6365 = vshll.u32 2102212464, %v6353
        %v6366 = vshrl.u32 920167782, %v6354
        %v6367 = vor.u32 %v6365, %v6366
        %v6368 = vshll.u32 920167782, %v6353
        %v6369 = vshrl.u32 1326507024, %v6354
        %v6370 = vor.u32 %v6368, %v6369
        %vm6371 = vcmp.lt.s32.totalorder %v6352, 1
        %vm6372 = vcmp.lt.s32.totalorder %v6352, 2
        %vm6373 = vcmp.lt.s32.totalorder %v6352, 3
        %vm6374 = vcmp.lt.s32.totalorder %v6352, 4
        %v6375 = vsel %vm6371, %v6355, %v6358
        %v6376 = vsel %vm6374, %v6364, 2102212464
        %v6377 = vsel %vm6373, %v6361, %v6376
        %v6378 = vsel %vm6372, %v6375, %v6377
        %v6379 = vsel %vm6371, %v6358, %v6361
        %v6380 = vsel %vm6374, %v6367, 920167782
        %v6381 = vsel %vm6373, %v6364, %v6380
        %v6382 = vsel %vm6372, %v6379, %v6381
        %v6383 = vsel %vm6371, %v6361, %v6364
        %v6384 = vsel %vm6374, %v6370, 1326507024
        %v6385 = vsel %vm6373, %v6367, %v6384
        %v6386 = vsel %vm6372, %v6383, %v6385
        %v6387 = vshll.u32 %v6347, 8
        %v6388 = vmul.u32.u64.compose %v6387, %v6386
        %v6389 = vextract.low.u32 %v6388
        %v6390 = vextract.high.u32 %v6388
        %v6391 = vmul.u32.u64.compose %v6387, %v6382
        %v6392 = vextract.low.u32 %v6391
        %v6393 = vextract.high.u32 %v6391
        %v6394 = vmul.u32 %v6387, %v6378
        %v6395 = vadd.s32 %v6390, %v6392
        %vm6396 = vc.u32 %v6390, %v6392
        %v6397 = vadd.s32 %v6393, 1
        %v6398 = vsel %vm6396, %v6397, %v6393
        %v6399 = vadd.s32 %v6394, %v6398
        %v6400 = vadd.s32 %v6399, 536870912
        %v6401 = vshrl.u32 %v6400, 30
        %v6402 = vshll.u32 %v6401, 30
        %v6403 = vsub.s32 %v6399, %v6402
        %vm6404 = vcmp.lt.s32.totalorder %v6403, 0
        %v6405 = vsub.s32 0, %v6403
        %v6406 = vsel %vm6404, %v6405, %v6403
        %v6407 = vclz %v6406
        %v6408 = vsub.s32 %v6407, 2
        %vm6409 = vcmp.gt.s32.totalorder 0, %v6408
        %v6410 = vsel %vm6409, 0, %v6408
        %v6411 = vsub.s32 32, %v6410
        %v6412 = vshll.u32 %v6403, %v6410
        %v6413 = vshrl.u32 %v6395, %v6411
        %v6414 = vor.u32 %v6412, %v6413
        %v6415 = vsub.s32 4294967266, %v6410
        %v6416 = vadd.s32 %v6415, 127
        %v6417 = vshll.u32 %v6416, 23
        %v6418 = vor.u32 4788187, %v6417
        %v6419 = vand.u32 2147483647, %v6418
        %v6421 = vcvt.s32.f32 %v6414
        %v6422 = vmul.f32 %v6421, %v6419
        %v6423 = vxor.u32 %v6422, 2147483648
        %v6424 = vsel %vm6341, %v6423, %v6422
        %v6425 = vsub.s32 4, %v6401
        %v6426 = vsel %vm6341, %v6425, %v6401
        %v6427 = vsel %vm6340, %v1126, %v6424
        %v6428 = vsel %vm6340, 0, %v6426
        %v6429 = vcosq.f32.pop %v6427
        %v6430 = vsinq.f32.pop %v6427
        %vm6431 = vweird.f32 %v1126
        %v6432 = vadd.s32 %v6428, 3
        %v6433 = vand.u32 %v6432, 3
        %vm6434 = vcmp.lt.s32.totalorder %v6433, 2
        %vm6435 = vcmp.eq.s32.totalorder %v6433, 0
        %v6436 = vxor.u32 %v6430, 2147483648
        %v6437 = vsel %vm6435, %v6429, %v6436
        %vm6438 = vcmp.eq.s32.totalorder %v6433, 2
        %v6439 = vxor.u32 %v6429, 2147483648
        %v6440 = vsel %vm6438, %v6439, %v6430
        %v6441 = vsel %vm6434, %v6437, %v6440
        %v6442 = vsel %vm6431, nan, %v6441
        %v6443 = vand.u32 2147483647, %v1127
        %vm6444 = vcmp.le.f32.partialorder %v6443, 0.7853982
        %vm6445 = vcmp.lt.s32.totalorder %v1127, 0
        %v6446 = vand.u32 %v1127, 2139095040
        %v6447 = vshrl.u32 %v6446, 23
        %v6448 = vsub.s32 %v6447, 127
        %v6449 = vand.u32 2147483647, %v1127
        %v6450 = vand.u32 %v6449, 8388607
        %v6451 = vor.u32 %v6450, 8388608
        %v6452 = vsub.s32 0, %v6451
        %v6453 = vadd.s32 %v6448, 1
        %vm6454 = vcmp.gt.s32.totalorder %v6453, 0
        %v6455 = vsel %vm6454, %v6453, 0
        %v6456 = vshrl.u32 %v6455, 5
        %v6457 = vand.u32 %v6455, 31
        %v6458 = vsub.s32 32, %v6457
        %v6459 = vshrl.u32 683565275, %v6458
        %v6460 = vshll.u32 683565275, %v6457
        %v6461 = vshrl.u32 2475754826, %v6458
        %v6462 = vor.u32 %v6460, %v6461
        %v6463 = vshll.u32 2475754826, %v6457
        %v6464 = vshrl.u32 2131351028, %v6458
        %v6465 = vor.u32 %v6463, %v6464
        %v6466 = vshll.u32 2131351028, %v6457
        %v6467 = vshrl.u32 2102212464, %v6458
        %v6468 = vor.u32 %v6466, %v6467
        %v6469 = vshll.u32 2102212464, %v6457
        %v6470 = vshrl.u32 920167782, %v6458
        %v6471 = vor.u32 %v6469, %v6470
        %v6472 = vshll.u32 920167782, %v6457
        %v6473 = vshrl.u32 1326507024, %v6458
        %v6474 = vor.u32 %v6472, %v6473
        %vm6475 = vcmp.lt.s32.totalorder %v6456, 1
        %vm6476 = vcmp.lt.s32.totalorder %v6456, 2
        %vm6477 = vcmp.lt.s32.totalorder %v6456, 3
        %vm6478 = vcmp.lt.s32.totalorder %v6456, 4
        %v6479 = vsel %vm6475, %v6459, %v6462
        %v6480 = vsel %vm6478, %v6468, 2102212464
        %v6481 = vsel %vm6477, %v6465, %v6480
        %v6482 = vsel %vm6476, %v6479, %v6481
        %v6483 = vsel %vm6475, %v6462, %v6465
        %v6484 = vsel %vm6478, %v6471, 920167782
        %v6485 = vsel %vm6477, %v6468, %v6484
        %v6486 = vsel %vm6476, %v6483, %v6485
        %v6487 = vsel %vm6475, %v6465, %v6468
        %v6488 = vsel %vm6478, %v6474, 1326507024
        %v6489 = vsel %vm6477, %v6471, %v6488
        %v6490 = vsel %vm6476, %v6487, %v6489
        %v6491 = vshll.u32 %v6451, 8
        %v6492 = vmul.u32.u64.compose %v6491, %v6490
        %v6493 = vextract.low.u32 %v6492
        %v6494 = vextract.high.u32 %v6492
        %v6495 = vmul.u32.u64.compose %v6491, %v6486
        %v6496 = vextract.low.u32 %v6495
        %v6497 = vextract.high.u32 %v6495
        %v6498 = vmul.u32 %v6491, %v6482
        %v6499 = vadd.s32 %v6494, %v6496
        %vm6500 = vc.u32 %v6494, %v6496
        %v6501 = vadd.s32 %v6497, 1
        %v6502 = vsel %vm6500, %v6501, %v6497
        %v6503 = vadd.s32 %v6498, %v6502
        %v6504 = vadd.s32 %v6503, 536870912
        %v6505 = vshrl.u32 %v6504, 30
        %v6506 = vshll.u32 %v6505, 30
        %v6507 = vsub.s32 %v6503, %v6506
        %vm6508 = vcmp.lt.s32.totalorder %v6507, 0
        %v6509 = vsub.s32 0, %v6507
        %v6510 = vsel %vm6508, %v6509, %v6507
        %v6511 = vclz %v6510
        %v6512 = vsub.s32 %v6511, 2
        %vm6513 = vcmp.gt.s32.totalorder 0, %v6512
        %v6514 = vsel %vm6513, 0, %v6512
        %v6515 = vsub.s32 32, %v6514
        %v6516 = vshll.u32 %v6507, %v6514
        %v6517 = vshrl.u32 %v6499, %v6515
        %v6518 = vor.u32 %v6516, %v6517
        %v6519 = vsub.s32 4294967266, %v6514
        %v6520 = vadd.s32 %v6519, 127
        %v6521 = vshll.u32 %v6520, 23
        %v6522 = vor.u32 4788187, %v6521
        %v6523 = vand.u32 2147483647, %v6522
        %v6525 = vcvt.s32.f32 %v6518
        %v6526 = vmul.f32 %v6525, %v6523
        %v6527 = vxor.u32 %v6526, 2147483648
        %v6528 = vsel %vm6445, %v6527, %v6526
        %v6529 = vsub.s32 4, %v6505
        %v6530 = vsel %vm6445, %v6529, %v6505
        %v6531 = vsel %vm6444, %v1127, %v6528
        %v6532 = vsel %vm6444, 0, %v6530
        %v6533 = vcosq.f32.pop %v6531
        %v6534 = vsinq.f32.pop %v6531
        %vm6535 = vweird.f32 %v1127
        %v6536 = vadd.s32 %v6532, 3
        %v6537 = vand.u32 %v6536, 3
        %vm6538 = vcmp.lt.s32.totalorder %v6537, 2
        %vm6539 = vcmp.eq.s32.totalorder %v6537, 0
        %v6540 = vxor.u32 %v6534, 2147483648
        %v6541 = vsel %vm6539, %v6533, %v6540
        %vm6542 = vcmp.eq.s32.totalorder %v6537, 2
        %v6543 = vxor.u32 %v6533, 2147483648
        %v6544 = vsel %vm6542, %v6543, %v6534
        %v6545 = vsel %vm6538, %v6541, %v6544
        %v6546 = vsel %vm6535, nan, %v6545
        %v6547 = vand.u32 2147483647, %v1128
        %vm6548 = vcmp.le.f32.partialorder %v6547, 0.7853982
        %vm6549 = vcmp.lt.s32.totalorder %v1128, 0
        %v6550 = vand.u32 %v1128, 2139095040
        %v6551 = vshrl.u32 %v6550, 23
        %v6552 = vsub.s32 %v6551, 127
        %v6553 = vand.u32 2147483647, %v1128
        %v6554 = vand.u32 %v6553, 8388607
        %v6555 = vor.u32 %v6554, 8388608
        %v6556 = vsub.s32 0, %v6555
        %v6557 = vadd.s32 %v6552, 1
        %vm6558 = vcmp.gt.s32.totalorder %v6557, 0
        %v6559 = vsel %vm6558, %v6557, 0
        %v6560 = vshrl.u32 %v6559, 5
        %v6561 = vand.u32 %v6559, 31
        %v6562 = vsub.s32 32, %v6561
        %v6563 = vshrl.u32 683565275, %v6562
        %v6564 = vshll.u32 683565275, %v6561
        %v6565 = vshrl.u32 2475754826, %v6562
        %v6566 = vor.u32 %v6564, %v6565
        %v6567 = vshll.u32 2475754826, %v6561
        %v6568 = vshrl.u32 2131351028, %v6562
        %v6569 = vor.u32 %v6567, %v6568
        %v6570 = vshll.u32 2131351028, %v6561
        %v6571 = vshrl.u32 2102212464, %v6562
        %v6572 = vor.u32 %v6570, %v6571
        %v6573 = vshll.u32 2102212464, %v6561
        %v6574 = vshrl.u32 920167782, %v6562
        %v6575 = vor.u32 %v6573, %v6574
        %v6576 = vshll.u32 920167782, %v6561
        %v6577 = vshrl.u32 1326507024, %v6562
        %v6578 = vor.u32 %v6576, %v6577
        %vm6579 = vcmp.lt.s32.totalorder %v6560, 1
        %vm6580 = vcmp.lt.s32.totalorder %v6560, 2
        %vm6581 = vcmp.lt.s32.totalorder %v6560, 3
        %vm6582 = vcmp.lt.s32.totalorder %v6560, 4
        %v6583 = vsel %vm6579, %v6563, %v6566
        %v6584 = vsel %vm6582, %v6572, 2102212464
        %v6585 = vsel %vm6581, %v6569, %v6584
        %v6586 = vsel %vm6580, %v6583, %v6585
        %v6587 = vsel %vm6579, %v6566, %v6569
        %v6588 = vsel %vm6582, %v6575, 920167782
        %v6589 = vsel %vm6581, %v6572, %v6588
        %v6590 = vsel %vm6580, %v6587, %v6589
        %v6591 = vsel %vm6579, %v6569, %v6572
        %v6592 = vsel %vm6582, %v6578, 1326507024
        %v6593 = vsel %vm6581, %v6575, %v6592
        %v6594 = vsel %vm6580, %v6591, %v6593
        %v6595 = vshll.u32 %v6555, 8
        %v6596 = vmul.u32.u64.compose %v6595, %v6594
        %v6597 = vextract.low.u32 %v6596
        %v6598 = vextract.high.u32 %v6596
        %v6599 = vmul.u32.u64.compose %v6595, %v6590
        %v6600 = vextract.low.u32 %v6599
        %v6601 = vextract.high.u32 %v6599
        %v6602 = vmul.u32 %v6595, %v6586
        %v6603 = vadd.s32 %v6598, %v6600
        %vm6604 = vc.u32 %v6598, %v6600
        %v6605 = vadd.s32 %v6601, 1
        %v6606 = vsel %vm6604, %v6605, %v6601
        %v6607 = vadd.s32 %v6602, %v6606
        %v6608 = vadd.s32 %v6607, 536870912
        %v6609 = vshrl.u32 %v6608, 30
        %v6610 = vshll.u32 %v6609, 30
        %v6611 = vsub.s32 %v6607, %v6610
        %vm6612 = vcmp.lt.s32.totalorder %v6611, 0
        %v6613 = vsub.s32 0, %v6611
        %v6614 = vsel %vm6612, %v6613, %v6611
        %v6615 = vclz %v6614
        %v6616 = vsub.s32 %v6615, 2
        %vm6617 = vcmp.gt.s32.totalorder 0, %v6616
        %v6618 = vsel %vm6617, 0, %v6616
        %v6619 = vsub.s32 32, %v6618
        %v6620 = vshll.u32 %v6611, %v6618
        %v6621 = vshrl.u32 %v6603, %v6619
        %v6622 = vor.u32 %v6620, %v6621
        %v6623 = vsub.s32 4294967266, %v6618
        %v6624 = vadd.s32 %v6623, 127
        %v6625 = vshll.u32 %v6624, 23
        %v6626 = vor.u32 4788187, %v6625
        %v6627 = vand.u32 2147483647, %v6626
        %v6629 = vcvt.s32.f32 %v6622
        %v6630 = vmul.f32 %v6629, %v6627
        %v6631 = vxor.u32 %v6630, 2147483648
        %v6632 = vsel %vm6549, %v6631, %v6630
        %v6633 = vsub.s32 4, %v6609
        %v6634 = vsel %vm6549, %v6633, %v6609
        %v6635 = vsel %vm6548, %v1128, %v6632
        %v6636 = vsel %vm6548, 0, %v6634
        %v6637 = vcosq.f32.pop %v6635
        %v6638 = vsinq.f32.pop %v6635
        %vm6639 = vweird.f32 %v1128
        %v6640 = vadd.s32 %v6636, 3
        %v6641 = vand.u32 %v6640, 3
        %vm6642 = vcmp.lt.s32.totalorder %v6641, 2
        %vm6643 = vcmp.eq.s32.totalorder %v6641, 0
        %v6644 = vxor.u32 %v6638, 2147483648
        %v6645 = vsel %vm6643, %v6637, %v6644
        %vm6646 = vcmp.eq.s32.totalorder %v6641, 2
        %v6647 = vxor.u32 %v6637, 2147483648
        %v6648 = vsel %vm6646, %v6647, %v6638
        %v6649 = vsel %vm6642, %v6645, %v6648
        %v6650 = vsel %vm6639, nan, %v6649
        %v6651 = vand.u32 2147483647, %v1129
        %vm6652 = vcmp.le.f32.partialorder %v6651, 0.7853982
        %vm6653 = vcmp.lt.s32.totalorder %v1129, 0
        %v6654 = vand.u32 %v1129, 2139095040
        %v6655 = vshrl.u32 %v6654, 23
        %v6656 = vsub.s32 %v6655, 127
        %v6657 = vand.u32 2147483647, %v1129
        %v6658 = vand.u32 %v6657, 8388607
        %v6659 = vor.u32 %v6658, 8388608
        %v6660 = vsub.s32 0, %v6659
        %v6661 = vadd.s32 %v6656, 1
        %vm6662 = vcmp.gt.s32.totalorder %v6661, 0
        %v6663 = vsel %vm6662, %v6661, 0
        %v6664 = vshrl.u32 %v6663, 5
        %v6665 = vand.u32 %v6663, 31
        %v6666 = vsub.s32 32, %v6665
        %v6667 = vshrl.u32 683565275, %v6666
        %v6668 = vshll.u32 683565275, %v6665
        %v6669 = vshrl.u32 2475754826, %v6666
        %v6670 = vor.u32 %v6668, %v6669
        %v6671 = vshll.u32 2475754826, %v6665
        %v6672 = vshrl.u32 2131351028, %v6666
        %v6673 = vor.u32 %v6671, %v6672
        %v6674 = vshll.u32 2131351028, %v6665
        %v6675 = vshrl.u32 2102212464, %v6666
        %v6676 = vor.u32 %v6674, %v6675
        %v6677 = vshll.u32 2102212464, %v6665
        %v6678 = vshrl.u32 920167782, %v6666
        %v6679 = vor.u32 %v6677, %v6678
        %v6680 = vshll.u32 920167782, %v6665
        %v6681 = vshrl.u32 1326507024, %v6666
        %v6682 = vor.u32 %v6680, %v6681
        %vm6683 = vcmp.lt.s32.totalorder %v6664, 1
        %vm6684 = vcmp.lt.s32.totalorder %v6664, 2
        %vm6685 = vcmp.lt.s32.totalorder %v6664, 3
        %vm6686 = vcmp.lt.s32.totalorder %v6664, 4
        %v6687 = vsel %vm6683, %v6667, %v6670
        %v6688 = vsel %vm6686, %v6676, 2102212464
        %v6689 = vsel %vm6685, %v6673, %v6688
        %v6690 = vsel %vm6684, %v6687, %v6689
        %v6691 = vsel %vm6683, %v6670, %v6673
        %v6692 = vsel %vm6686, %v6679, 920167782
        %v6693 = vsel %vm6685, %v6676, %v6692
        %v6694 = vsel %vm6684, %v6691, %v6693
        %v6695 = vsel %vm6683, %v6673, %v6676
        %v6696 = vsel %vm6686, %v6682, 1326507024
        %v6697 = vsel %vm6685, %v6679, %v6696
        %v6698 = vsel %vm6684, %v6695, %v6697
        %v6699 = vshll.u32 %v6659, 8
        %v6700 = vmul.u32.u64.compose %v6699, %v6698
        %v6701 = vextract.low.u32 %v6700
        %v6702 = vextract.high.u32 %v6700
        %v6703 = vmul.u32.u64.compose %v6699, %v6694
        %v6704 = vextract.low.u32 %v6703
        %v6705 = vextract.high.u32 %v6703
        %v6706 = vmul.u32 %v6699, %v6690
        %v6707 = vadd.s32 %v6702, %v6704
        %vm6708 = vc.u32 %v6702, %v6704
        %v6709 = vadd.s32 %v6705, 1
        %v6710 = vsel %vm6708, %v6709, %v6705
        %v6711 = vadd.s32 %v6706, %v6710
        %v6712 = vadd.s32 %v6711, 536870912
        %v6713 = vshrl.u32 %v6712, 30
        %v6714 = vshll.u32 %v6713, 30
        %v6715 = vsub.s32 %v6711, %v6714
        %vm6716 = vcmp.lt.s32.totalorder %v6715, 0
        %v6717 = vsub.s32 0, %v6715
        %v6718 = vsel %vm6716, %v6717, %v6715
        %v6719 = vclz %v6718
        %v6720 = vsub.s32 %v6719, 2
        %vm6721 = vcmp.gt.s32.totalorder 0, %v6720
        %v6722 = vsel %vm6721, 0, %v6720
        %v6723 = vsub.s32 32, %v6722
        %v6724 = vshll.u32 %v6715, %v6722
        %v6725 = vshrl.u32 %v6707, %v6723
        %v6726 = vor.u32 %v6724, %v6725
        %v6727 = vsub.s32 4294967266, %v6722
        %v6728 = vadd.s32 %v6727, 127
        %v6729 = vshll.u32 %v6728, 23
        %v6730 = vor.u32 4788187, %v6729
        %v6731 = vand.u32 2147483647, %v6730
        %v6733 = vcvt.s32.f32 %v6726
        %v6734 = vmul.f32 %v6733, %v6731
        %v6735 = vxor.u32 %v6734, 2147483648
        %v6736 = vsel %vm6653, %v6735, %v6734
        %v6737 = vsub.s32 4, %v6713
        %v6738 = vsel %vm6653, %v6737, %v6713
        %v6739 = vsel %vm6652, %v1129, %v6736
        %v6740 = vsel %vm6652, 0, %v6738
        %v6741 = vcosq.f32.pop %v6739
        %v6742 = vsinq.f32.pop %v6739
        %vm6743 = vweird.f32 %v1129
        %v6744 = vadd.s32 %v6740, 3
        %v6745 = vand.u32 %v6744, 3
        %vm6746 = vcmp.lt.s32.totalorder %v6745, 2
        %vm6747 = vcmp.eq.s32.totalorder %v6745, 0
        %v6748 = vxor.u32 %v6742, 2147483648
        %v6749 = vsel %vm6747, %v6741, %v6748
        %vm6750 = vcmp.eq.s32.totalorder %v6745, 2
        %v6751 = vxor.u32 %v6741, 2147483648
        %v6752 = vsel %vm6750, %v6751, %v6742
        %v6753 = vsel %vm6746, %v6749, %v6752
        %v6754 = vsel %vm6743, nan, %v6753
        %v6755 = vand.u32 2147483647, %v1130
        %vm6756 = vcmp.le.f32.partialorder %v6755, 0.7853982
        %vm6757 = vcmp.lt.s32.totalorder %v1130, 0
        %v6758 = vand.u32 %v1130, 2139095040
        %v6759 = vshrl.u32 %v6758, 23
        %v6760 = vsub.s32 %v6759, 127
        %v6761 = vand.u32 2147483647, %v1130
        %v6762 = vand.u32 %v6761, 8388607
        %v6763 = vor.u32 %v6762, 8388608
        %v6764 = vsub.s32 0, %v6763
        %v6765 = vadd.s32 %v6760, 1
        %vm6766 = vcmp.gt.s32.totalorder %v6765, 0
        %v6767 = vsel %vm6766, %v6765, 0
        %v6768 = vshrl.u32 %v6767, 5
        %v6769 = vand.u32 %v6767, 31
        %v6770 = vsub.s32 32, %v6769
        %v6771 = vshrl.u32 683565275, %v6770
        %v6772 = vshll.u32 683565275, %v6769
        %v6773 = vshrl.u32 2475754826, %v6770
        %v6774 = vor.u32 %v6772, %v6773
        %v6775 = vshll.u32 2475754826, %v6769
        %v6776 = vshrl.u32 2131351028, %v6770
        %v6777 = vor.u32 %v6775, %v6776
        %v6778 = vshll.u32 2131351028, %v6769
        %v6779 = vshrl.u32 2102212464, %v6770
        %v6780 = vor.u32 %v6778, %v6779
        %v6781 = vshll.u32 2102212464, %v6769
        %v6782 = vshrl.u32 920167782, %v6770
        %v6783 = vor.u32 %v6781, %v6782
        %v6784 = vshll.u32 920167782, %v6769
        %v6785 = vshrl.u32 1326507024, %v6770
        %v6786 = vor.u32 %v6784, %v6785
        %vm6787 = vcmp.lt.s32.totalorder %v6768, 1
        %vm6788 = vcmp.lt.s32.totalorder %v6768, 2
        %vm6789 = vcmp.lt.s32.totalorder %v6768, 3
        %vm6790 = vcmp.lt.s32.totalorder %v6768, 4
        %v6791 = vsel %vm6787, %v6771, %v6774
        %v6792 = vsel %vm6790, %v6780, 2102212464
        %v6793 = vsel %vm6789, %v6777, %v6792
        %v6794 = vsel %vm6788, %v6791, %v6793
        %v6795 = vsel %vm6787, %v6774, %v6777
        %v6796 = vsel %vm6790, %v6783, 920167782
        %v6797 = vsel %vm6789, %v6780, %v6796
        %v6798 = vsel %vm6788, %v6795, %v6797
        %v6799 = vsel %vm6787, %v6777, %v6780
        %v6800 = vsel %vm6790, %v6786, 1326507024
        %v6801 = vsel %vm6789, %v6783, %v6800
        %v6802 = vsel %vm6788, %v6799, %v6801
        %v6803 = vshll.u32 %v6763, 8
        %v6804 = vmul.u32.u64.compose %v6803, %v6802
        %v6805 = vextract.low.u32 %v6804
        %v6806 = vextract.high.u32 %v6804
        %v6807 = vmul.u32.u64.compose %v6803, %v6798
        %v6808 = vextract.low.u32 %v6807
        %v6809 = vextract.high.u32 %v6807
        %v6810 = vmul.u32 %v6803, %v6794
        %v6811 = vadd.s32 %v6806, %v6808
        %vm6812 = vc.u32 %v6806, %v6808
        %v6813 = vadd.s32 %v6809, 1
        %v6814 = vsel %vm6812, %v6813, %v6809
        %v6815 = vadd.s32 %v6810, %v6814
        %v6816 = vadd.s32 %v6815, 536870912
        %v6817 = vshrl.u32 %v6816, 30
        %v6818 = vshll.u32 %v6817, 30
        %v6819 = vsub.s32 %v6815, %v6818
        %vm6820 = vcmp.lt.s32.totalorder %v6819, 0
        %v6821 = vsub.s32 0, %v6819
        %v6822 = vsel %vm6820, %v6821, %v6819
        %v6823 = vclz %v6822
        %v6824 = vsub.s32 %v6823, 2
        %vm6825 = vcmp.gt.s32.totalorder 0, %v6824
        %v6826 = vsel %vm6825, 0, %v6824
        %v6827 = vsub.s32 32, %v6826
        %v6828 = vshll.u32 %v6819, %v6826
        %v6829 = vshrl.u32 %v6811, %v6827
        %v6830 = vor.u32 %v6828, %v6829
        %v6831 = vsub.s32 4294967266, %v6826
        %v6832 = vadd.s32 %v6831, 127
        %v6833 = vshll.u32 %v6832, 23
        %v6834 = vor.u32 4788187, %v6833
        %v6835 = vand.u32 2147483647, %v6834
        %v6837 = vcvt.s32.f32 %v6830
        %v6838 = vmul.f32 %v6837, %v6835
        %v6839 = vxor.u32 %v6838, 2147483648
        %v6840 = vsel %vm6757, %v6839, %v6838
        %v6841 = vsub.s32 4, %v6817
        %v6842 = vsel %vm6757, %v6841, %v6817
        %v6843 = vsel %vm6756, %v1130, %v6840
        %v6844 = vsel %vm6756, 0, %v6842
        %v6845 = vcosq.f32.pop %v6843
        %v6846 = vsinq.f32.pop %v6843
        %vm6847 = vweird.f32 %v1130
        %v6848 = vadd.s32 %v6844, 3
        %v6849 = vand.u32 %v6848, 3
        %vm6850 = vcmp.lt.s32.totalorder %v6849, 2
        %vm6851 = vcmp.eq.s32.totalorder %v6849, 0
        %v6852 = vxor.u32 %v6846, 2147483648
        %v6853 = vsel %vm6851, %v6845, %v6852
        %vm6854 = vcmp.eq.s32.totalorder %v6849, 2
        %v6855 = vxor.u32 %v6845, 2147483648
        %v6856 = vsel %vm6854, %v6855, %v6846
        %v6857 = vsel %vm6850, %v6853, %v6856
        %v6858 = vsel %vm6847, nan, %v6857
        %v6859 = vand.u32 2147483647, %v1131
        %vm6860 = vcmp.le.f32.partialorder %v6859, 0.7853982
        %vm6861 = vcmp.lt.s32.totalorder %v1131, 0
        %v6862 = vand.u32 %v1131, 2139095040
        %v6863 = vshrl.u32 %v6862, 23
        %v6864 = vsub.s32 %v6863, 127
        %v6865 = vand.u32 2147483647, %v1131
        %v6866 = vand.u32 %v6865, 8388607
        %v6867 = vor.u32 %v6866, 8388608
        %v6868 = vsub.s32 0, %v6867
        %v6869 = vadd.s32 %v6864, 1
        %vm6870 = vcmp.gt.s32.totalorder %v6869, 0
        %v6871 = vsel %vm6870, %v6869, 0
        %v6872 = vshrl.u32 %v6871, 5
        %v6873 = vand.u32 %v6871, 31
        %v6874 = vsub.s32 32, %v6873
        %v6875 = vshrl.u32 683565275, %v6874
        %v6876 = vshll.u32 683565275, %v6873
        %v6877 = vshrl.u32 2475754826, %v6874
        %v6878 = vor.u32 %v6876, %v6877
        %v6879 = vshll.u32 2475754826, %v6873
        %v6880 = vshrl.u32 2131351028, %v6874
        %v6881 = vor.u32 %v6879, %v6880
        %v6882 = vshll.u32 2131351028, %v6873
        %v6883 = vshrl.u32 2102212464, %v6874
        %v6884 = vor.u32 %v6882, %v6883
        %v6885 = vshll.u32 2102212464, %v6873
        %v6886 = vshrl.u32 920167782, %v6874
        %v6887 = vor.u32 %v6885, %v6886
        %v6888 = vshll.u32 920167782, %v6873
        %v6889 = vshrl.u32 1326507024, %v6874
        %v6890 = vor.u32 %v6888, %v6889
        %vm6891 = vcmp.lt.s32.totalorder %v6872, 1
        %vm6892 = vcmp.lt.s32.totalorder %v6872, 2
        %vm6893 = vcmp.lt.s32.totalorder %v6872, 3
        %vm6894 = vcmp.lt.s32.totalorder %v6872, 4
        %v6895 = vsel %vm6891, %v6875, %v6878
        %v6896 = vsel %vm6894, %v6884, 2102212464
        %v6897 = vsel %vm6893, %v6881, %v6896
        %v6898 = vsel %vm6892, %v6895, %v6897
        %v6899 = vsel %vm6891, %v6878, %v6881
        %v6900 = vsel %vm6894, %v6887, 920167782
        %v6901 = vsel %vm6893, %v6884, %v6900
        %v6902 = vsel %vm6892, %v6899, %v6901
        %v6903 = vsel %vm6891, %v6881, %v6884
        %v6904 = vsel %vm6894, %v6890, 1326507024
        %v6905 = vsel %vm6893, %v6887, %v6904
        %v6906 = vsel %vm6892, %v6903, %v6905
        %v6907 = vshll.u32 %v6867, 8
        %v6908 = vmul.u32.u64.compose %v6907, %v6906
        %v6909 = vextract.low.u32 %v6908
        %v6910 = vextract.high.u32 %v6908
        %v6911 = vmul.u32.u64.compose %v6907, %v6902
        %v6912 = vextract.low.u32 %v6911
        %v6913 = vextract.high.u32 %v6911
        %v6914 = vmul.u32 %v6907, %v6898
        %v6915 = vadd.s32 %v6910, %v6912
        %vm6916 = vc.u32 %v6910, %v6912
        %v6917 = vadd.s32 %v6913, 1
        %v6918 = vsel %vm6916, %v6917, %v6913
        %v6919 = vadd.s32 %v6914, %v6918
        %v6920 = vadd.s32 %v6919, 536870912
        %v6921 = vshrl.u32 %v6920, 30
        %v6922 = vshll.u32 %v6921, 30
        %v6923 = vsub.s32 %v6919, %v6922
        %vm6924 = vcmp.lt.s32.totalorder %v6923, 0
        %v6925 = vsub.s32 0, %v6923
        %v6926 = vsel %vm6924, %v6925, %v6923
        %v6927 = vclz %v6926
        %v6928 = vsub.s32 %v6927, 2
        %vm6929 = vcmp.gt.s32.totalorder 0, %v6928
        %v6930 = vsel %vm6929, 0, %v6928
        %v6931 = vsub.s32 32, %v6930
        %v6932 = vshll.u32 %v6923, %v6930
        %v6933 = vshrl.u32 %v6915, %v6931
        %v6934 = vor.u32 %v6932, %v6933
        %v6935 = vsub.s32 4294967266, %v6930
        %v6936 = vadd.s32 %v6935, 127
        %v6937 = vshll.u32 %v6936, 23
        %v6938 = vor.u32 4788187, %v6937
        %v6939 = vand.u32 2147483647, %v6938
        %v6941 = vcvt.s32.f32 %v6934
        %v6942 = vmul.f32 %v6941, %v6939
        %v6943 = vxor.u32 %v6942, 2147483648
        %v6944 = vsel %vm6861, %v6943, %v6942
        %v6945 = vsub.s32 4, %v6921
        %v6946 = vsel %vm6861, %v6945, %v6921
        %v6947 = vsel %vm6860, %v1131, %v6944
        %v6948 = vsel %vm6860, 0, %v6946
        %v6949 = vcosq.f32.pop %v6947
        %v6950 = vsinq.f32.pop %v6947
        %vm6951 = vweird.f32 %v1131
        %v6952 = vadd.s32 %v6948, 3
        %v6953 = vand.u32 %v6952, 3
        %vm6954 = vcmp.lt.s32.totalorder %v6953, 2
        %vm6955 = vcmp.eq.s32.totalorder %v6953, 0
        %v6956 = vxor.u32 %v6950, 2147483648
        %v6957 = vsel %vm6955, %v6949, %v6956
        %vm6958 = vcmp.eq.s32.totalorder %v6953, 2
        %v6959 = vxor.u32 %v6949, 2147483648
        %v6960 = vsel %vm6958, %v6959, %v6950
        %v6961 = vsel %vm6954, %v6957, %v6960
        %v6962 = vsel %vm6951, nan, %v6961
        %v6963 = vand.u32 2147483647, %v1132
        %vm6964 = vcmp.le.f32.partialorder %v6963, 0.7853982
        %vm6965 = vcmp.lt.s32.totalorder %v1132, 0
        %v6966 = vand.u32 %v1132, 2139095040
        %v6967 = vshrl.u32 %v6966, 23
        %v6968 = vsub.s32 %v6967, 127
        %v6969 = vand.u32 2147483647, %v1132
        %v6970 = vand.u32 %v6969, 8388607
        %v6971 = vor.u32 %v6970, 8388608
        %v6972 = vsub.s32 0, %v6971
        %v6973 = vadd.s32 %v6968, 1
        %vm6974 = vcmp.gt.s32.totalorder %v6973, 0
        %v6975 = vsel %vm6974, %v6973, 0
        %v6976 = vshrl.u32 %v6975, 5
        %v6977 = vand.u32 %v6975, 31
        %v6978 = vsub.s32 32, %v6977
        %v6979 = vshrl.u32 683565275, %v6978
        %v6980 = vshll.u32 683565275, %v6977
        %v6981 = vshrl.u32 2475754826, %v6978
        %v6982 = vor.u32 %v6980, %v6981
        %v6983 = vshll.u32 2475754826, %v6977
        %v6984 = vshrl.u32 2131351028, %v6978
        %v6985 = vor.u32 %v6983, %v6984
        %v6986 = vshll.u32 2131351028, %v6977
        %v6987 = vshrl.u32 2102212464, %v6978
        %v6988 = vor.u32 %v6986, %v6987
        %v6989 = vshll.u32 2102212464, %v6977
        %v6990 = vshrl.u32 920167782, %v6978
        %v6991 = vor.u32 %v6989, %v6990
        %v6992 = vshll.u32 920167782, %v6977
        %v6993 = vshrl.u32 1326507024, %v6978
        %v6994 = vor.u32 %v6992, %v6993
        %vm6995 = vcmp.lt.s32.totalorder %v6976, 1
        %vm6996 = vcmp.lt.s32.totalorder %v6976, 2
        %vm6997 = vcmp.lt.s32.totalorder %v6976, 3
        %vm6998 = vcmp.lt.s32.totalorder %v6976, 4
        %v6999 = vsel %vm6995, %v6979, %v6982
        %v7000 = vsel %vm6998, %v6988, 2102212464
        %v7001 = vsel %vm6997, %v6985, %v7000
        %v7002 = vsel %vm6996, %v6999, %v7001
        %v7003 = vsel %vm6995, %v6982, %v6985
        %v7004 = vsel %vm6998, %v6991, 920167782
        %v7005 = vsel %vm6997, %v6988, %v7004
        %v7006 = vsel %vm6996, %v7003, %v7005
        %v7007 = vsel %vm6995, %v6985, %v6988
        %v7008 = vsel %vm6998, %v6994, 1326507024
        %v7009 = vsel %vm6997, %v6991, %v7008
        %v7010 = vsel %vm6996, %v7007, %v7009
        %v7011 = vshll.u32 %v6971, 8
        %v7012 = vmul.u32.u64.compose %v7011, %v7010
        %v7013 = vextract.low.u32 %v7012
        %v7014 = vextract.high.u32 %v7012
        %v7015 = vmul.u32.u64.compose %v7011, %v7006
        %v7016 = vextract.low.u32 %v7015
        %v7017 = vextract.high.u32 %v7015
        %v7018 = vmul.u32 %v7011, %v7002
        %v7019 = vadd.s32 %v7014, %v7016
        %vm7020 = vc.u32 %v7014, %v7016
        %v7021 = vadd.s32 %v7017, 1
        %v7022 = vsel %vm7020, %v7021, %v7017
        %v7023 = vadd.s32 %v7018, %v7022
        %v7024 = vadd.s32 %v7023, 536870912
        %v7025 = vshrl.u32 %v7024, 30
        %v7026 = vshll.u32 %v7025, 30
        %v7027 = vsub.s32 %v7023, %v7026
        %vm7028 = vcmp.lt.s32.totalorder %v7027, 0
        %v7029 = vsub.s32 0, %v7027
        %v7030 = vsel %vm7028, %v7029, %v7027
        %v7031 = vclz %v7030
        %v7032 = vsub.s32 %v7031, 2
        %vm7033 = vcmp.gt.s32.totalorder 0, %v7032
        %v7034 = vsel %vm7033, 0, %v7032
        %v7035 = vsub.s32 32, %v7034
        %v7036 = vshll.u32 %v7027, %v7034
        %v7037 = vshrl.u32 %v7019, %v7035
        %v7038 = vor.u32 %v7036, %v7037
        %v7039 = vsub.s32 4294967266, %v7034
        %v7040 = vadd.s32 %v7039, 127
        %v7041 = vshll.u32 %v7040, 23
        %v7042 = vor.u32 4788187, %v7041
        %v7043 = vand.u32 2147483647, %v7042
        %v7045 = vcvt.s32.f32 %v7038
        %v7046 = vmul.f32 %v7045, %v7043
        %v7047 = vxor.u32 %v7046, 2147483648
        %v7048 = vsel %vm6965, %v7047, %v7046
        %v7049 = vsub.s32 4, %v7025
        %v7050 = vsel %vm6965, %v7049, %v7025
        %v7051 = vsel %vm6964, %v1132, %v7048
        %v7052 = vsel %vm6964, 0, %v7050
        %v7053 = vcosq.f32.pop %v7051
        %v7054 = vsinq.f32.pop %v7051
        %vm7055 = vweird.f32 %v1132
        %v7056 = vadd.s32 %v7052, 3
        %v7057 = vand.u32 %v7056, 3
        %vm7058 = vcmp.lt.s32.totalorder %v7057, 2
        %vm7059 = vcmp.eq.s32.totalorder %v7057, 0
        %v7060 = vxor.u32 %v7054, 2147483648
        %v7061 = vsel %vm7059, %v7053, %v7060
        %vm7062 = vcmp.eq.s32.totalorder %v7057, 2
        %v7063 = vxor.u32 %v7053, 2147483648
        %v7064 = vsel %vm7062, %v7063, %v7054
        %v7065 = vsel %vm7058, %v7061, %v7064
        %v7066 = vsel %vm7055, nan, %v7065
        %v7067 = vand.u32 2147483647, %v1133
        %vm7068 = vcmp.le.f32.partialorder %v7067, 0.7853982
        %vm7069 = vcmp.lt.s32.totalorder %v1133, 0
        %v7070 = vand.u32 %v1133, 2139095040
        %v7071 = vshrl.u32 %v7070, 23
        %v7072 = vsub.s32 %v7071, 127
        %v7073 = vand.u32 2147483647, %v1133
        %v7074 = vand.u32 %v7073, 8388607
        %v7075 = vor.u32 %v7074, 8388608
        %v7076 = vsub.s32 0, %v7075
        %v7077 = vadd.s32 %v7072, 1
        %vm7078 = vcmp.gt.s32.totalorder %v7077, 0
        %v7079 = vsel %vm7078, %v7077, 0
        %v7080 = vshrl.u32 %v7079, 5
        %v7081 = vand.u32 %v7079, 31
        %v7082 = vsub.s32 32, %v7081
        %v7083 = vshrl.u32 683565275, %v7082
        %v7084 = vshll.u32 683565275, %v7081
        %v7085 = vshrl.u32 2475754826, %v7082
        %v7086 = vor.u32 %v7084, %v7085
        %v7087 = vshll.u32 2475754826, %v7081
        %v7088 = vshrl.u32 2131351028, %v7082
        %v7089 = vor.u32 %v7087, %v7088
        %v7090 = vshll.u32 2131351028, %v7081
        %v7091 = vshrl.u32 2102212464, %v7082
        %v7092 = vor.u32 %v7090, %v7091
        %v7093 = vshll.u32 2102212464, %v7081
        %v7094 = vshrl.u32 920167782, %v7082
        %v7095 = vor.u32 %v7093, %v7094
        %v7096 = vshll.u32 920167782, %v7081
        %v7097 = vshrl.u32 1326507024, %v7082
        %v7098 = vor.u32 %v7096, %v7097
        %vm7099 = vcmp.lt.s32.totalorder %v7080, 1
        %vm7100 = vcmp.lt.s32.totalorder %v7080, 2
        %vm7101 = vcmp.lt.s32.totalorder %v7080, 3
        %vm7102 = vcmp.lt.s32.totalorder %v7080, 4
        %v7103 = vsel %vm7099, %v7083, %v7086
        %v7104 = vsel %vm7102, %v7092, 2102212464
        %v7105 = vsel %vm7101, %v7089, %v7104
        %v7106 = vsel %vm7100, %v7103, %v7105
        %v7107 = vsel %vm7099, %v7086, %v7089
        %v7108 = vsel %vm7102, %v7095, 920167782
        %v7109 = vsel %vm7101, %v7092, %v7108
        %v7110 = vsel %vm7100, %v7107, %v7109
        %v7111 = vsel %vm7099, %v7089, %v7092
        %v7112 = vsel %vm7102, %v7098, 1326507024
        %v7113 = vsel %vm7101, %v7095, %v7112
        %v7114 = vsel %vm7100, %v7111, %v7113
        %v7115 = vshll.u32 %v7075, 8
        %v7116 = vmul.u32.u64.compose %v7115, %v7114
        %v7117 = vextract.low.u32 %v7116
        %v7118 = vextract.high.u32 %v7116
        %v7119 = vmul.u32.u64.compose %v7115, %v7110
        %v7120 = vextract.low.u32 %v7119
        %v7121 = vextract.high.u32 %v7119
        %v7122 = vmul.u32 %v7115, %v7106
        %v7123 = vadd.s32 %v7118, %v7120
        %vm7124 = vc.u32 %v7118, %v7120
        %v7125 = vadd.s32 %v7121, 1
        %v7126 = vsel %vm7124, %v7125, %v7121
        %v7127 = vadd.s32 %v7122, %v7126
        %v7128 = vadd.s32 %v7127, 536870912
        %v7129 = vshrl.u32 %v7128, 30
        %v7130 = vshll.u32 %v7129, 30
        %v7131 = vsub.s32 %v7127, %v7130
        %vm7132 = vcmp.lt.s32.totalorder %v7131, 0
        %v7133 = vsub.s32 0, %v7131
        %v7134 = vsel %vm7132, %v7133, %v7131
        %v7135 = vclz %v7134
        %v7136 = vsub.s32 %v7135, 2
        %vm7137 = vcmp.gt.s32.totalorder 0, %v7136
        %v7138 = vsel %vm7137, 0, %v7136
        %v7139 = vsub.s32 32, %v7138
        %v7140 = vshll.u32 %v7131, %v7138
        %v7141 = vshrl.u32 %v7123, %v7139
        %v7142 = vor.u32 %v7140, %v7141
        %v7143 = vsub.s32 4294967266, %v7138
        %v7144 = vadd.s32 %v7143, 127
        %v7145 = vshll.u32 %v7144, 23
        %v7146 = vor.u32 4788187, %v7145
        %v7147 = vand.u32 2147483647, %v7146
        %v7149 = vcvt.s32.f32 %v7142
        %v7150 = vmul.f32 %v7149, %v7147
        %v7151 = vxor.u32 %v7150, 2147483648
        %v7152 = vsel %vm7069, %v7151, %v7150
        %v7153 = vsub.s32 4, %v7129
        %v7154 = vsel %vm7069, %v7153, %v7129
        %v7155 = vsel %vm7068, %v1133, %v7152
        %v7156 = vsel %vm7068, 0, %v7154
        %v7157 = vcosq.f32.pop %v7155
        %v7158 = vsinq.f32.pop %v7155
        %vm7159 = vweird.f32 %v1133
        %v7160 = vadd.s32 %v7156, 3
        %v7161 = vand.u32 %v7160, 3
        %vm7162 = vcmp.lt.s32.totalorder %v7161, 2
        %vm7163 = vcmp.eq.s32.totalorder %v7161, 0
        %v7164 = vxor.u32 %v7158, 2147483648
        %v7165 = vsel %vm7163, %v7157, %v7164
        %vm7166 = vcmp.eq.s32.totalorder %v7161, 2
        %v7167 = vxor.u32 %v7157, 2147483648
        %v7168 = vsel %vm7166, %v7167, %v7158
        %v7169 = vsel %vm7162, %v7165, %v7168
        %v7170 = vsel %vm7159, nan, %v7169
        %v7171 = vand.u32 2147483647, %v1134
        %vm7172 = vcmp.le.f32.partialorder %v7171, 0.7853982
        %vm7173 = vcmp.lt.s32.totalorder %v1134, 0
        %v7174 = vand.u32 %v1134, 2139095040
        %v7175 = vshrl.u32 %v7174, 23
        %v7176 = vsub.s32 %v7175, 127
        %v7177 = vand.u32 2147483647, %v1134
        %v7178 = vand.u32 %v7177, 8388607
        %v7179 = vor.u32 %v7178, 8388608
        %v7180 = vsub.s32 0, %v7179
        %v7181 = vadd.s32 %v7176, 1
        %vm7182 = vcmp.gt.s32.totalorder %v7181, 0
        %v7183 = vsel %vm7182, %v7181, 0
        %v7184 = vshrl.u32 %v7183, 5
        %v7185 = vand.u32 %v7183, 31
        %v7186 = vsub.s32 32, %v7185
        %v7187 = vshrl.u32 683565275, %v7186
        %v7188 = vshll.u32 683565275, %v7185
        %v7189 = vshrl.u32 2475754826, %v7186
        %v7190 = vor.u32 %v7188, %v7189
        %v7191 = vshll.u32 2475754826, %v7185
        %v7192 = vshrl.u32 2131351028, %v7186
        %v7193 = vor.u32 %v7191, %v7192
        %v7194 = vshll.u32 2131351028, %v7185
        %v7195 = vshrl.u32 2102212464, %v7186
        %v7196 = vor.u32 %v7194, %v7195
        %v7197 = vshll.u32 2102212464, %v7185
        %v7198 = vshrl.u32 920167782, %v7186
        %v7199 = vor.u32 %v7197, %v7198
        %v7200 = vshll.u32 920167782, %v7185
        %v7201 = vshrl.u32 1326507024, %v7186
        %v7202 = vor.u32 %v7200, %v7201
        %vm7203 = vcmp.lt.s32.totalorder %v7184, 1
        %vm7204 = vcmp.lt.s32.totalorder %v7184, 2
        %vm7205 = vcmp.lt.s32.totalorder %v7184, 3
        %vm7206 = vcmp.lt.s32.totalorder %v7184, 4
        %v7207 = vsel %vm7203, %v7187, %v7190
        %v7208 = vsel %vm7206, %v7196, 2102212464
        %v7209 = vsel %vm7205, %v7193, %v7208
        %v7210 = vsel %vm7204, %v7207, %v7209
        %v7211 = vsel %vm7203, %v7190, %v7193
        %v7212 = vsel %vm7206, %v7199, 920167782
        %v7213 = vsel %vm7205, %v7196, %v7212
        %v7214 = vsel %vm7204, %v7211, %v7213
        %v7215 = vsel %vm7203, %v7193, %v7196
        %v7216 = vsel %vm7206, %v7202, 1326507024
        %v7217 = vsel %vm7205, %v7199, %v7216
        %v7218 = vsel %vm7204, %v7215, %v7217
        %v7219 = vshll.u32 %v7179, 8
        %v7220 = vmul.u32.u64.compose %v7219, %v7218
        %v7221 = vextract.low.u32 %v7220
        %v7222 = vextract.high.u32 %v7220
        %v7223 = vmul.u32.u64.compose %v7219, %v7214
        %v7224 = vextract.low.u32 %v7223
        %v7225 = vextract.high.u32 %v7223
        %v7226 = vmul.u32 %v7219, %v7210
        %v7227 = vadd.s32 %v7222, %v7224
        %vm7228 = vc.u32 %v7222, %v7224
        %v7229 = vadd.s32 %v7225, 1
        %v7230 = vsel %vm7228, %v7229, %v7225
        %v7231 = vadd.s32 %v7226, %v7230
        %v7232 = vadd.s32 %v7231, 536870912
        %v7233 = vshrl.u32 %v7232, 30
        %v7234 = vshll.u32 %v7233, 30
        %v7235 = vsub.s32 %v7231, %v7234
        %vm7236 = vcmp.lt.s32.totalorder %v7235, 0
        %v7237 = vsub.s32 0, %v7235
        %v7238 = vsel %vm7236, %v7237, %v7235
        %v7239 = vclz %v7238
        %v7240 = vsub.s32 %v7239, 2
        %vm7241 = vcmp.gt.s32.totalorder 0, %v7240
        %v7242 = vsel %vm7241, 0, %v7240
        %v7243 = vsub.s32 32, %v7242
        %v7244 = vshll.u32 %v7235, %v7242
        %v7245 = vshrl.u32 %v7227, %v7243
        %v7246 = vor.u32 %v7244, %v7245
        %v7247 = vsub.s32 4294967266, %v7242
        %v7248 = vadd.s32 %v7247, 127
        %v7249 = vshll.u32 %v7248, 23
        %v7250 = vor.u32 4788187, %v7249
        %v7251 = vand.u32 2147483647, %v7250
        %v7253 = vcvt.s32.f32 %v7246
        %v7254 = vmul.f32 %v7253, %v7251
        %v7255 = vxor.u32 %v7254, 2147483648
        %v7256 = vsel %vm7173, %v7255, %v7254
        %v7257 = vsub.s32 4, %v7233
        %v7258 = vsel %vm7173, %v7257, %v7233
        %v7259 = vsel %vm7172, %v1134, %v7256
        %v7260 = vsel %vm7172, 0, %v7258
        %v7261 = vcosq.f32.pop %v7259
        %v7262 = vsinq.f32.pop %v7259
        %vm7263 = vweird.f32 %v1134
        %v7264 = vadd.s32 %v7260, 3
        %v7265 = vand.u32 %v7264, 3
        %vm7266 = vcmp.lt.s32.totalorder %v7265, 2
        %vm7267 = vcmp.eq.s32.totalorder %v7265, 0
        %v7268 = vxor.u32 %v7262, 2147483648
        %v7269 = vsel %vm7267, %v7261, %v7268
        %vm7270 = vcmp.eq.s32.totalorder %v7265, 2
        %v7271 = vxor.u32 %v7261, 2147483648
        %v7272 = vsel %vm7270, %v7271, %v7262
        %v7273 = vsel %vm7266, %v7269, %v7272
        %v7274 = vsel %vm7263, nan, %v7273
        %v7275 = vand.u32 2147483647, %v1135
        %vm7276 = vcmp.le.f32.partialorder %v7275, 0.7853982
        %vm7277 = vcmp.lt.s32.totalorder %v1135, 0
        %v7278 = vand.u32 %v1135, 2139095040
        %v7279 = vshrl.u32 %v7278, 23
        %v7280 = vsub.s32 %v7279, 127
        %v7281 = vand.u32 2147483647, %v1135
        %v7282 = vand.u32 %v7281, 8388607
        %v7283 = vor.u32 %v7282, 8388608
        %v7284 = vsub.s32 0, %v7283
        %v7285 = vadd.s32 %v7280, 1
        %vm7286 = vcmp.gt.s32.totalorder %v7285, 0
        %v7287 = vsel %vm7286, %v7285, 0
        %v7288 = vshrl.u32 %v7287, 5
        %v7289 = vand.u32 %v7287, 31
        %v7290 = vsub.s32 32, %v7289
        %v7291 = vshrl.u32 683565275, %v7290
        %v7292 = vshll.u32 683565275, %v7289
        %v7293 = vshrl.u32 2475754826, %v7290
        %v7294 = vor.u32 %v7292, %v7293
        %v7295 = vshll.u32 2475754826, %v7289
        %v7296 = vshrl.u32 2131351028, %v7290
        %v7297 = vor.u32 %v7295, %v7296
        %v7298 = vshll.u32 2131351028, %v7289
        %v7299 = vshrl.u32 2102212464, %v7290
        %v7300 = vor.u32 %v7298, %v7299
        %v7301 = vshll.u32 2102212464, %v7289
        %v7302 = vshrl.u32 920167782, %v7290
        %v7303 = vor.u32 %v7301, %v7302
        %v7304 = vshll.u32 920167782, %v7289
        %v7305 = vshrl.u32 1326507024, %v7290
        %v7306 = vor.u32 %v7304, %v7305
        %vm7307 = vcmp.lt.s32.totalorder %v7288, 1
        %vm7308 = vcmp.lt.s32.totalorder %v7288, 2
        %vm7309 = vcmp.lt.s32.totalorder %v7288, 3
        %vm7310 = vcmp.lt.s32.totalorder %v7288, 4
        %v7311 = vsel %vm7307, %v7291, %v7294
        %v7312 = vsel %vm7310, %v7300, 2102212464
        %v7313 = vsel %vm7309, %v7297, %v7312
        %v7314 = vsel %vm7308, %v7311, %v7313
        %v7315 = vsel %vm7307, %v7294, %v7297
        %v7316 = vsel %vm7310, %v7303, 920167782
        %v7317 = vsel %vm7309, %v7300, %v7316
        %v7318 = vsel %vm7308, %v7315, %v7317
        %v7319 = vsel %vm7307, %v7297, %v7300
        %v7320 = vsel %vm7310, %v7306, 1326507024
        %v7321 = vsel %vm7309, %v7303, %v7320
        %v7322 = vsel %vm7308, %v7319, %v7321
        %v7323 = vshll.u32 %v7283, 8
        %v7324 = vmul.u32.u64.compose %v7323, %v7322
        %v7325 = vextract.low.u32 %v7324
        %v7326 = vextract.high.u32 %v7324
        %v7327 = vmul.u32.u64.compose %v7323, %v7318
        %v7328 = vextract.low.u32 %v7327
        %v7329 = vextract.high.u32 %v7327
        %v7330 = vmul.u32 %v7323, %v7314
        %v7331 = vadd.s32 %v7326, %v7328
        %vm7332 = vc.u32 %v7326, %v7328
        %v7333 = vadd.s32 %v7329, 1
        %v7334 = vsel %vm7332, %v7333, %v7329
        %v7335 = vadd.s32 %v7330, %v7334
        %v7336 = vadd.s32 %v7335, 536870912
        %v7337 = vshrl.u32 %v7336, 30
        %v7338 = vshll.u32 %v7337, 30
        %v7339 = vsub.s32 %v7335, %v7338
        %vm7340 = vcmp.lt.s32.totalorder %v7339, 0
        %v7341 = vsub.s32 0, %v7339
        %v7342 = vsel %vm7340, %v7341, %v7339
        %v7343 = vclz %v7342
        %v7344 = vsub.s32 %v7343, 2
        %vm7345 = vcmp.gt.s32.totalorder 0, %v7344
        %v7346 = vsel %vm7345, 0, %v7344
        %v7347 = vsub.s32 32, %v7346
        %v7348 = vshll.u32 %v7339, %v7346
        %v7349 = vshrl.u32 %v7331, %v7347
        %v7350 = vor.u32 %v7348, %v7349
        %v7351 = vsub.s32 4294967266, %v7346
        %v7352 = vadd.s32 %v7351, 127
        %v7353 = vshll.u32 %v7352, 23
        %v7354 = vor.u32 4788187, %v7353
        %v7355 = vand.u32 2147483647, %v7354
        %v7357 = vcvt.s32.f32 %v7350
        %v7358 = vmul.f32 %v7357, %v7355
        %v7359 = vxor.u32 %v7358, 2147483648
        %v7360 = vsel %vm7277, %v7359, %v7358
        %v7361 = vsub.s32 4, %v7337
        %v7362 = vsel %vm7277, %v7361, %v7337
        %v7363 = vsel %vm7276, %v1135, %v7360
        %v7364 = vsel %vm7276, 0, %v7362
        %v7365 = vcosq.f32.pop %v7363
        %v7366 = vsinq.f32.pop %v7363
        %vm7367 = vweird.f32 %v1135
        %v7368 = vadd.s32 %v7364, 3
        %v7369 = vand.u32 %v7368, 3
        %vm7370 = vcmp.lt.s32.totalorder %v7369, 2
        %vm7371 = vcmp.eq.s32.totalorder %v7369, 0
        %v7372 = vxor.u32 %v7366, 2147483648
        %v7373 = vsel %vm7371, %v7365, %v7372
        %vm7374 = vcmp.eq.s32.totalorder %v7369, 2
        %v7375 = vxor.u32 %v7365, 2147483648
        %v7376 = vsel %vm7374, %v7375, %v7366
        %v7377 = vsel %vm7370, %v7373, %v7376
        %v7378 = vsel %vm7367, nan, %v7377
        %v7379 = vand.u32 2147483647, %v1136
        %vm7380 = vcmp.le.f32.partialorder %v7379, 0.7853982
        %vm7381 = vcmp.lt.s32.totalorder %v1136, 0
        %v7382 = vand.u32 %v1136, 2139095040
        %v7383 = vshrl.u32 %v7382, 23
        %v7384 = vsub.s32 %v7383, 127
        %v7385 = vand.u32 2147483647, %v1136
        %v7386 = vand.u32 %v7385, 8388607
        %v7387 = vor.u32 %v7386, 8388608
        %v7388 = vsub.s32 0, %v7387
        %v7389 = vadd.s32 %v7384, 1
        %vm7390 = vcmp.gt.s32.totalorder %v7389, 0
        %v7391 = vsel %vm7390, %v7389, 0
        %v7392 = vshrl.u32 %v7391, 5
        %v7393 = vand.u32 %v7391, 31
        %v7394 = vsub.s32 32, %v7393
        %v7395 = vshrl.u32 683565275, %v7394
        %v7396 = vshll.u32 683565275, %v7393
        %v7397 = vshrl.u32 2475754826, %v7394
        %v7398 = vor.u32 %v7396, %v7397
        %v7399 = vshll.u32 2475754826, %v7393
        %v7400 = vshrl.u32 2131351028, %v7394
        %v7401 = vor.u32 %v7399, %v7400
        %v7402 = vshll.u32 2131351028, %v7393
        %v7403 = vshrl.u32 2102212464, %v7394
        %v7404 = vor.u32 %v7402, %v7403
        %v7405 = vshll.u32 2102212464, %v7393
        %v7406 = vshrl.u32 920167782, %v7394
        %v7407 = vor.u32 %v7405, %v7406
        %v7408 = vshll.u32 920167782, %v7393
        %v7409 = vshrl.u32 1326507024, %v7394
        %v7410 = vor.u32 %v7408, %v7409
        %vm7411 = vcmp.lt.s32.totalorder %v7392, 1
        %vm7412 = vcmp.lt.s32.totalorder %v7392, 2
        %vm7413 = vcmp.lt.s32.totalorder %v7392, 3
        %vm7414 = vcmp.lt.s32.totalorder %v7392, 4
        %v7415 = vsel %vm7411, %v7395, %v7398
        %v7416 = vsel %vm7414, %v7404, 2102212464
        %v7417 = vsel %vm7413, %v7401, %v7416
        %v7418 = vsel %vm7412, %v7415, %v7417
        %v7419 = vsel %vm7411, %v7398, %v7401
        %v7420 = vsel %vm7414, %v7407, 920167782
        %v7421 = vsel %vm7413, %v7404, %v7420
        %v7422 = vsel %vm7412, %v7419, %v7421
        %v7423 = vsel %vm7411, %v7401, %v7404
        %v7424 = vsel %vm7414, %v7410, 1326507024
        %v7425 = vsel %vm7413, %v7407, %v7424
        %v7426 = vsel %vm7412, %v7423, %v7425
        %v7427 = vshll.u32 %v7387, 8
        %v7428 = vmul.u32.u64.compose %v7427, %v7426
        %v7429 = vextract.low.u32 %v7428
        %v7430 = vextract.high.u32 %v7428
        %v7431 = vmul.u32.u64.compose %v7427, %v7422
        %v7432 = vextract.low.u32 %v7431
        %v7433 = vextract.high.u32 %v7431
        %v7434 = vmul.u32 %v7427, %v7418
        %v7435 = vadd.s32 %v7430, %v7432
        %vm7436 = vc.u32 %v7430, %v7432
        %v7437 = vadd.s32 %v7433, 1
        %v7438 = vsel %vm7436, %v7437, %v7433
        %v7439 = vadd.s32 %v7434, %v7438
        %v7440 = vadd.s32 %v7439, 536870912
        %v7441 = vshrl.u32 %v7440, 30
        %v7442 = vshll.u32 %v7441, 30
        %v7443 = vsub.s32 %v7439, %v7442
        %vm7444 = vcmp.lt.s32.totalorder %v7443, 0
        %v7445 = vsub.s32 0, %v7443
        %v7446 = vsel %vm7444, %v7445, %v7443
        %v7447 = vclz %v7446
        %v7448 = vsub.s32 %v7447, 2
        %vm7449 = vcmp.gt.s32.totalorder 0, %v7448
        %v7450 = vsel %vm7449, 0, %v7448
        %v7451 = vsub.s32 32, %v7450
        %v7452 = vshll.u32 %v7443, %v7450
        %v7453 = vshrl.u32 %v7435, %v7451
        %v7454 = vor.u32 %v7452, %v7453
        %v7455 = vsub.s32 4294967266, %v7450
        %v7456 = vadd.s32 %v7455, 127
        %v7457 = vshll.u32 %v7456, 23
        %v7458 = vor.u32 4788187, %v7457
        %v7459 = vand.u32 2147483647, %v7458
        %v7461 = vcvt.s32.f32 %v7454
        %v7462 = vmul.f32 %v7461, %v7459
        %v7463 = vxor.u32 %v7462, 2147483648
        %v7464 = vsel %vm7381, %v7463, %v7462
        %v7465 = vsub.s32 4, %v7441
        %v7466 = vsel %vm7381, %v7465, %v7441
        %v7467 = vsel %vm7380, %v1136, %v7464
        %v7468 = vsel %vm7380, 0, %v7466
        %v7469 = vcosq.f32.pop %v7467
        %v7470 = vsinq.f32.pop %v7467
        %vm7471 = vweird.f32 %v1136
        %v7472 = vadd.s32 %v7468, 3
        %v7473 = vand.u32 %v7472, 3
        %vm7474 = vcmp.lt.s32.totalorder %v7473, 2
        %vm7475 = vcmp.eq.s32.totalorder %v7473, 0
        %v7476 = vxor.u32 %v7470, 2147483648
        %v7477 = vsel %vm7475, %v7469, %v7476
        %vm7478 = vcmp.eq.s32.totalorder %v7473, 2
        %v7479 = vxor.u32 %v7469, 2147483648
        %v7480 = vsel %vm7478, %v7479, %v7470
        %v7481 = vsel %vm7474, %v7477, %v7480
        %v7482 = vsel %vm7471, nan, %v7481
        %v7483 = vand.u32 2147483647, %v1137
        %vm7484 = vcmp.le.f32.partialorder %v7483, 0.7853982
        %vm7485 = vcmp.lt.s32.totalorder %v1137, 0
        %v7486 = vand.u32 %v1137, 2139095040
        %v7487 = vshrl.u32 %v7486, 23
        %v7488 = vsub.s32 %v7487, 127
        %v7489 = vand.u32 2147483647, %v1137
        %v7490 = vand.u32 %v7489, 8388607
        %v7491 = vor.u32 %v7490, 8388608
        %v7492 = vsub.s32 0, %v7491
        %v7493 = vadd.s32 %v7488, 1
        %vm7494 = vcmp.gt.s32.totalorder %v7493, 0
        %v7495 = vsel %vm7494, %v7493, 0
        %v7496 = vshrl.u32 %v7495, 5
        %v7497 = vand.u32 %v7495, 31
        %v7498 = vsub.s32 32, %v7497
        %v7499 = vshrl.u32 683565275, %v7498
        %v7500 = vshll.u32 683565275, %v7497
        %v7501 = vshrl.u32 2475754826, %v7498
        %v7502 = vor.u32 %v7500, %v7501
        %v7503 = vshll.u32 2475754826, %v7497
        %v7504 = vshrl.u32 2131351028, %v7498
        %v7505 = vor.u32 %v7503, %v7504
        %v7506 = vshll.u32 2131351028, %v7497
        %v7507 = vshrl.u32 2102212464, %v7498
        %v7508 = vor.u32 %v7506, %v7507
        %v7509 = vshll.u32 2102212464, %v7497
        %v7510 = vshrl.u32 920167782, %v7498
        %v7511 = vor.u32 %v7509, %v7510
        %v7512 = vshll.u32 920167782, %v7497
        %v7513 = vshrl.u32 1326507024, %v7498
        %v7514 = vor.u32 %v7512, %v7513
        %vm7515 = vcmp.lt.s32.totalorder %v7496, 1
        %vm7516 = vcmp.lt.s32.totalorder %v7496, 2
        %vm7517 = vcmp.lt.s32.totalorder %v7496, 3
        %vm7518 = vcmp.lt.s32.totalorder %v7496, 4
        %v7519 = vsel %vm7515, %v7499, %v7502
        %v7520 = vsel %vm7518, %v7508, 2102212464
        %v7521 = vsel %vm7517, %v7505, %v7520
        %v7522 = vsel %vm7516, %v7519, %v7521
        %v7523 = vsel %vm7515, %v7502, %v7505
        %v7524 = vsel %vm7518, %v7511, 920167782
        %v7525 = vsel %vm7517, %v7508, %v7524
        %v7526 = vsel %vm7516, %v7523, %v7525
        %v7527 = vsel %vm7515, %v7505, %v7508
        %v7528 = vsel %vm7518, %v7514, 1326507024
        %v7529 = vsel %vm7517, %v7511, %v7528
        %v7530 = vsel %vm7516, %v7527, %v7529
        %v7531 = vshll.u32 %v7491, 8
        %v7532 = vmul.u32.u64.compose %v7531, %v7530
        %v7533 = vextract.low.u32 %v7532
        %v7534 = vextract.high.u32 %v7532
        %v7535 = vmul.u32.u64.compose %v7531, %v7526
        %v7536 = vextract.low.u32 %v7535
        %v7537 = vextract.high.u32 %v7535
        %v7538 = vmul.u32 %v7531, %v7522
        %v7539 = vadd.s32 %v7534, %v7536
        %vm7540 = vc.u32 %v7534, %v7536
        %v7541 = vadd.s32 %v7537, 1
        %v7542 = vsel %vm7540, %v7541, %v7537
        %v7543 = vadd.s32 %v7538, %v7542
        %v7544 = vadd.s32 %v7543, 536870912
        %v7545 = vshrl.u32 %v7544, 30
        %v7546 = vshll.u32 %v7545, 30
        %v7547 = vsub.s32 %v7543, %v7546
        %vm7548 = vcmp.lt.s32.totalorder %v7547, 0
        %v7549 = vsub.s32 0, %v7547
        %v7550 = vsel %vm7548, %v7549, %v7547
        %v7551 = vclz %v7550
        %v7552 = vsub.s32 %v7551, 2
        %vm7553 = vcmp.gt.s32.totalorder 0, %v7552
        %v7554 = vsel %vm7553, 0, %v7552
        %v7555 = vsub.s32 32, %v7554
        %v7556 = vshll.u32 %v7547, %v7554
        %v7557 = vshrl.u32 %v7539, %v7555
        %v7558 = vor.u32 %v7556, %v7557
        %v7559 = vsub.s32 4294967266, %v7554
        %v7560 = vadd.s32 %v7559, 127
        %v7561 = vshll.u32 %v7560, 23
        %v7562 = vor.u32 4788187, %v7561
        %v7563 = vand.u32 2147483647, %v7562
        %v7565 = vcvt.s32.f32 %v7558
        %v7566 = vmul.f32 %v7565, %v7563
        %v7567 = vxor.u32 %v7566, 2147483648
        %v7568 = vsel %vm7485, %v7567, %v7566
        %v7569 = vsub.s32 4, %v7545
        %v7570 = vsel %vm7485, %v7569, %v7545
        %v7571 = vsel %vm7484, %v1137, %v7568
        %v7572 = vsel %vm7484, 0, %v7570
        %v7573 = vcosq.f32.pop %v7571
        %v7574 = vsinq.f32.pop %v7571
        %vm7575 = vweird.f32 %v1137
        %v7576 = vadd.s32 %v7572, 3
        %v7577 = vand.u32 %v7576, 3
        %vm7578 = vcmp.lt.s32.totalorder %v7577, 2
        %vm7579 = vcmp.eq.s32.totalorder %v7577, 0
        %v7580 = vxor.u32 %v7574, 2147483648
        %v7581 = vsel %vm7579, %v7573, %v7580
        %vm7582 = vcmp.eq.s32.totalorder %v7577, 2
        %v7583 = vxor.u32 %v7573, 2147483648
        %v7584 = vsel %vm7582, %v7583, %v7574
        %v7585 = vsel %vm7578, %v7581, %v7584
        %v7586 = vsel %vm7575, nan, %v7585
        %v7587 = vand.u32 2147483647, %v1138
        %vm7588 = vcmp.le.f32.partialorder %v7587, 0.7853982
        %vm7589 = vcmp.lt.s32.totalorder %v1138, 0
        %v7590 = vand.u32 %v1138, 2139095040
        %v7591 = vshrl.u32 %v7590, 23
        %v7592 = vsub.s32 %v7591, 127
        %v7593 = vand.u32 2147483647, %v1138
        %v7594 = vand.u32 %v7593, 8388607
        %v7595 = vor.u32 %v7594, 8388608
        %v7596 = vsub.s32 0, %v7595
        %v7597 = vadd.s32 %v7592, 1
        %vm7598 = vcmp.gt.s32.totalorder %v7597, 0
        %v7599 = vsel %vm7598, %v7597, 0
        %v7600 = vshrl.u32 %v7599, 5
        %v7601 = vand.u32 %v7599, 31
        %v7602 = vsub.s32 32, %v7601
        %v7603 = vshrl.u32 683565275, %v7602
        %v7604 = vshll.u32 683565275, %v7601
        %v7605 = vshrl.u32 2475754826, %v7602
        %v7606 = vor.u32 %v7604, %v7605
        %v7607 = vshll.u32 2475754826, %v7601
        %v7608 = vshrl.u32 2131351028, %v7602
        %v7609 = vor.u32 %v7607, %v7608
        %v7610 = vshll.u32 2131351028, %v7601
        %v7611 = vshrl.u32 2102212464, %v7602
        %v7612 = vor.u32 %v7610, %v7611
        %v7613 = vshll.u32 2102212464, %v7601
        %v7614 = vshrl.u32 920167782, %v7602
        %v7615 = vor.u32 %v7613, %v7614
        %v7616 = vshll.u32 920167782, %v7601
        %v7617 = vshrl.u32 1326507024, %v7602
        %v7618 = vor.u32 %v7616, %v7617
        %vm7619 = vcmp.lt.s32.totalorder %v7600, 1
        %vm7620 = vcmp.lt.s32.totalorder %v7600, 2
        %vm7621 = vcmp.lt.s32.totalorder %v7600, 3
        %vm7622 = vcmp.lt.s32.totalorder %v7600, 4
        %v7623 = vsel %vm7619, %v7603, %v7606
        %v7624 = vsel %vm7622, %v7612, 2102212464
        %v7625 = vsel %vm7621, %v7609, %v7624
        %v7626 = vsel %vm7620, %v7623, %v7625
        %v7627 = vsel %vm7619, %v7606, %v7609
        %v7628 = vsel %vm7622, %v7615, 920167782
        %v7629 = vsel %vm7621, %v7612, %v7628
        %v7630 = vsel %vm7620, %v7627, %v7629
        %v7631 = vsel %vm7619, %v7609, %v7612
        %v7632 = vsel %vm7622, %v7618, 1326507024
        %v7633 = vsel %vm7621, %v7615, %v7632
        %v7634 = vsel %vm7620, %v7631, %v7633
        %v7635 = vshll.u32 %v7595, 8
        %v7636 = vmul.u32.u64.compose %v7635, %v7634
        %v7637 = vextract.low.u32 %v7636
        %v7638 = vextract.high.u32 %v7636
        %v7639 = vmul.u32.u64.compose %v7635, %v7630
        %v7640 = vextract.low.u32 %v7639
        %v7641 = vextract.high.u32 %v7639
        %v7642 = vmul.u32 %v7635, %v7626
        %v7643 = vadd.s32 %v7638, %v7640
        %vm7644 = vc.u32 %v7638, %v7640
        %v7645 = vadd.s32 %v7641, 1
        %v7646 = vsel %vm7644, %v7645, %v7641
        %v7647 = vadd.s32 %v7642, %v7646
        %v7648 = vadd.s32 %v7647, 536870912
        %v7649 = vshrl.u32 %v7648, 30
        %v7650 = vshll.u32 %v7649, 30
        %v7651 = vsub.s32 %v7647, %v7650
        %vm7652 = vcmp.lt.s32.totalorder %v7651, 0
        %v7653 = vsub.s32 0, %v7651
        %v7654 = vsel %vm7652, %v7653, %v7651
        %v7655 = vclz %v7654
        %v7656 = vsub.s32 %v7655, 2
        %vm7657 = vcmp.gt.s32.totalorder 0, %v7656
        %v7658 = vsel %vm7657, 0, %v7656
        %v7659 = vsub.s32 32, %v7658
        %v7660 = vshll.u32 %v7651, %v7658
        %v7661 = vshrl.u32 %v7643, %v7659
        %v7662 = vor.u32 %v7660, %v7661
        %v7663 = vsub.s32 4294967266, %v7658
        %v7664 = vadd.s32 %v7663, 127
        %v7665 = vshll.u32 %v7664, 23
        %v7666 = vor.u32 4788187, %v7665
        %v7667 = vand.u32 2147483647, %v7666
        %v7669 = vcvt.s32.f32 %v7662
        %v7670 = vmul.f32 %v7669, %v7667
        %v7671 = vxor.u32 %v7670, 2147483648
        %v7672 = vsel %vm7589, %v7671, %v7670
        %v7673 = vsub.s32 4, %v7649
        %v7674 = vsel %vm7589, %v7673, %v7649
        %v7675 = vsel %vm7588, %v1138, %v7672
        %v7676 = vsel %vm7588, 0, %v7674
        %v7677 = vcosq.f32.pop %v7675
        %v7678 = vsinq.f32.pop %v7675
        %vm7679 = vweird.f32 %v1138
        %v7680 = vadd.s32 %v7676, 3
        %v7681 = vand.u32 %v7680, 3
        %vm7682 = vcmp.lt.s32.totalorder %v7681, 2
        %vm7683 = vcmp.eq.s32.totalorder %v7681, 0
        %v7684 = vxor.u32 %v7678, 2147483648
        %v7685 = vsel %vm7683, %v7677, %v7684
        %vm7686 = vcmp.eq.s32.totalorder %v7681, 2
        %v7687 = vxor.u32 %v7677, 2147483648
        %v7688 = vsel %vm7686, %v7687, %v7678
        %v7689 = vsel %vm7682, %v7685, %v7688
        %v7690 = vsel %vm7679, nan, %v7689
        %7691 = vst [vmem:[%s214] sm:$0xff] %v1242
        %7692 = vst [vmem:[%s214 + $0x8] sm:$0xff] %v1346
        %7693 = vst [vmem:[%s214 + $0x10] sm:$0xff] %v1450
        %7694 = vst [vmem:[%s214 + $0x18] sm:$0xff] %v1554
        %7695 = vst [vmem:[%s214 + $0x20] sm:$0xff] %v1658
        %7696 = vst [vmem:[%s214 + $0x28] sm:$0xff] %v1762
        %7697 = vst [vmem:[%s214 + $0x30] sm:$0xff] %v1866
        %7698 = vst [vmem:[%s214 + $0x38] sm:$0xff] %v1970
        %7699 = vst [vmem:[%s214 + $0x40] sm:$0xff] %v2074
        %7700 = vst [vmem:[%s214 + $0x48] sm:$0xff] %v2178
        %7701 = vst [vmem:[%s214 + $0x50] sm:$0xff] %v2282
        %7702 = vst [vmem:[%s214 + $0x58] sm:$0xff] %v2386
        %7703 = vst [vmem:[%s214 + $0x60] sm:$0xff] %v2490
        %7704 = vst [vmem:[%s214 + $0x68] sm:$0xff] %v2594
        %7705 = vst [vmem:[%s214 + $0x70] sm:$0xff] %v2698
        %7706 = vst [vmem:[%s214 + $0x78] sm:$0xff] %v2802
        %7707 = vst [vmem:[%s214 + $0x80] sm:$0xff] %v2906
        %7708 = vst [vmem:[%s214 + $0x88] sm:$0xff] %v3010
        %7709 = vst [vmem:[%s214 + $0x90] sm:$0xff] %v3114
        %7710 = vst [vmem:[%s214 + $0x98] sm:$0xff] %v3218
        %7711 = vst [vmem:[%s214 + $0xa0] sm:$0xff] %v3322
        %7712 = vst [vmem:[%s214 + $0xa8] sm:$0xff] %v3426
        %7713 = vst [vmem:[%s214 + $0xb0] sm:$0xff] %v3530
        %7714 = vst [vmem:[%s214 + $0xb8] sm:$0xff] %v3634
        %7715 = vst [vmem:[%s214 + $0xc0] sm:$0xff] %v3738
        %7716 = vst [vmem:[%s214 + $0xc8] sm:$0xff] %v3842
        %7717 = vst [vmem:[%s214 + $0xd0] sm:$0xff] %v3946
        %7718 = vst [vmem:[%s214 + $0xd8] sm:$0xff] %v4050
        %7719 = vst [vmem:[%s214 + $0xe0] sm:$0xff] %v4154
        %7720 = vst [vmem:[%s214 + $0xe8] sm:$0xff] %v4258
        %7721 = vst [vmem:[%s214 + $0xf0] sm:$0xff] %v4362
        %7722 = vst [vmem:[%s214 + $0xf8] sm:$0xff] %v4466
        %7723 = vst [vmem:[%s214 + $0x100] sm:$0xff] %v4570
        %7724 = vst [vmem:[%s214 + $0x108] sm:$0xff] %v4674
        %7725 = vst [vmem:[%s214 + $0x110] sm:$0xff] %v4778
        %7726 = vst [vmem:[%s214 + $0x118] sm:$0xff] %v4882
        %7727 = vst [vmem:[%s214 + $0x120] sm:$0xff] %v4986
        %7728 = vst [vmem:[%s214 + $0x128] sm:$0xff] %v5090
        %7729 = vst [vmem:[%s214 + $0x130] sm:$0xff] %v5194
        %7730 = vst [vmem:[%s214 + $0x138] sm:$0xff] %v5298
        %7731 = vst [vmem:[%s214 + $0x140] sm:$0xff] %v5402
        %7732 = vst [vmem:[%s214 + $0x148] sm:$0xff] %v5506
        %7733 = vst [vmem:[%s214 + $0x150] sm:$0xff] %v5610
        %7734 = vst [vmem:[%s214 + $0x158] sm:$0xff] %v5714
        %7735 = vst [vmem:[%s214 + $0x160] sm:$0xff] %v5818
        %7736 = vst [vmem:[%s214 + $0x168] sm:$0xff] %v5922
        %7737 = vst [vmem:[%s214 + $0x170] sm:$0xff] %v6026
        %7738 = vst [vmem:[%s214 + $0x178] sm:$0xff] %v6130
        %7739 = vst [vmem:[%s214 + $0x180] sm:$0xff] %v6234
        %7740 = vst [vmem:[%s214 + $0x188] sm:$0xff] %v6338
        %7741 = vst [vmem:[%s214 + $0x190] sm:$0xff] %v6442
        %7742 = vst [vmem:[%s214 + $0x198] sm:$0xff] %v6546
        %7743 = vst [vmem:[%s214 + $0x1a0] sm:$0xff] %v6650
        %7744 = vst [vmem:[%s214 + $0x1a8] sm:$0xff] %v6754
        %7745 = vst [vmem:[%s214 + $0x1b0] sm:$0xff] %v6858
        %7746 = vst [vmem:[%s214 + $0x1b8] sm:$0xff] %v6962
        %7747 = vst [vmem:[%s214 + $0x1c0] sm:$0xff] %v7066
        %7748 = vst [vmem:[%s214 + $0x1c8] sm:$0xff] %v7170
        %7749 = vst [vmem:[%s214 + $0x1d0] sm:$0xff] %v7274
        %7750 = vst [vmem:[%s214 + $0x1d8] sm:$0xff] %v7378
        %7751 = vst [vmem:[%s214 + $0x1e0] sm:$0xff] %v7482
        %7752 = vst [vmem:[%s214 + $0x1e8] sm:$0xff] %v7586
        %7753 = vst [vmem:[%s214 + $0x1f0] sm:$0xff] %v7690
        %s7754 = sand.u32 %s117, 1
        %s7755 = scalar_lea.sflag [#allocation3], %s7754
        %s7756 = sand.u32 %s117, 1
        %s7757 = smul.addr %s7756, 504
        %s7758 = scalar_lea.vmem [#allocation2], %s7757
        // Predicated region
        $region33: #{tpu_custom_call.1} parent=31 // pred_check
          %p7759 = pneg %p127
        $region34: #{tpu_custom_call.1} parent=31 // pred_check_branch
          %7761 = sbr.rel (%p7759) target = $region36
        $region35: #{tpu_custom_call.1} parent=31 // pred_region
          %s7762 = smul.u32 63, %s21
          %s7763 = ssub.s32 125, %s7762
          %p7764 = scmp.lt.s32.totalorder %s7763, 63
          %s7765 = scalar_select %p7764, %s7763, 63
          %s7766 = smul.u32 128, %s7765
          %s7768 = ssub.s32 8064, %s7766
          %7769 = vsyncadd %s7755, %s7768
          %p7770 = scmp.ne.s32.totalorder 0, %s7766
          %s7771 = sadd.s32 %s22, %s7762
          %s7772 = smul.addr %s7771, 128
          %s7773 = scalar_lea.hbm %s3, %s7772
          %s7774 = smul.u32 8, %s7765
          %s7775 = sshll.u32 %s7758, 4
          %s7776 = int_to_ptr.vmem [resolvable:$true] %s7775
          %s7777 = sshll.u32 %s7774, 4
          %7781 = dma.vmem_to_hbm [thread:$0]  (%p7770), %s7776, %s7777, %s7773, %s7755, 128, 128, 8
        $region36: #{tpu_custom_call.1} parent=31 // pred_fallthru
          _
      $region32: #{tpu_custom_call.1} parent=5 // pred_fallthru
        _
      %p7782 = scmp.le.s32.totalorder 2, %s12
      // Predicated region
      $region37: #{tpu_custom_call.1} parent=5 // pred_check
        %p7783 = pneg %p7782
      $region38: #{tpu_custom_call.1} parent=5 // pred_check_branch
        %7785 = sbr.rel (%p7783) target = $region40
      $region39: #{tpu_custom_call.1} parent=5 // pred_region
        %s7786 = ssub.s32 %s12, 2
        // Predicated region
        $region41: #{tpu_custom_call.1} parent=39 // pred_check
          %p7787 = pneg %p133
        $region42: #{tpu_custom_call.1} parent=39 // pred_check_branch
          %7789 = sbr.rel (%p7787) target = $region44
        $region43: #{tpu_custom_call.1} parent=39 // pred_region
          %s7790 = sand.u32 %s118, 1
          %s7791 = scalar_lea.sflag [#allocation3], %s7790
          %s7792 = sand.u32 %s118, 1
          %s7793 = smul.addr %s7792, 504
          %s7794 = scalar_lea.vmem [#allocation2], %s7793
          %7795 = dma.done %s7791, 8064
        $region44: #{tpu_custom_call.1} parent=39 // pred_fallthru
          _
      $region40: #{tpu_custom_call.1} parent=5 // pred_fallthru
        _
    $region6: #{tpu_custom_call.1} parent=1 // loop_footer
      %s16 = sadd.s32 1, %s12
    $region7: #{tpu_custom_call.1} parent=1 // loop_footer_branch
      %11 = sbr.rel target = $region3
    $region8: #{tpu_custom_call.1} parent=1 // loop_exit
      _
    %7796 = vsyncpa [#allocation3], 1
    %s7797 = scalar_lea.sflag [#allocation3], 1
    %7798 = vsyncpa %s7797, 1

</llo_original>
